<compile_context>
chip_gen: v7x
topology: tpu7x:2x2x1
jax: 0.10.0
libtpu: 0.0.40
codegen_flags: <defaults>
</compile_context>

<pallas_src>
import functools
import math

import jax
import jax.numpy as jnp
from jax.experimental import pallas as pl
from jax.experimental.pallas import tpu as pltpu

# ----------------------------- config (small synthetic RoBERTa) -----------------------------
VOCAB_SIZE = 128
TYPE_VOCAB_SIZE = 2
MAX_POSITION = 64
HIDDEN = 64
NUM_HEADS = 2
HEAD_DIM = HIDDEN // NUM_HEADS
INTERMEDIATE = 128
NUM_LAYERS = 2
LAYER_NORM_EPS = 1e-5

TILE = 256                # token tile for all kernels (also the attention q/kv tile)
NEG_INF = -1e30
ACT_DTYPE = jnp.bfloat16  # activation / matmul-operand dtype


# ----------------------------- shared in-kernel helpers -----------------------------
def _layernorm_f32(x, gamma, beta, eps):
    mean = jnp.mean(x, axis=-1, keepdims=True)
    xc = x - mean
    var = jnp.mean(xc * xc, axis=-1, keepdims=True)
    inv = jax.lax.rsqrt(var + eps)
    return xc * inv * gamma + beta


def _gelu_f32(x):
    # TODO(synk): torch.nn.functional.gelu uses exact erf; tanh approximation used here.
    c = math.sqrt(2.0 / math.pi)
    return 0.5 * x * (1.0 + jnp.tanh(c * (x + 0.044715 * x * x * x)))


# ----------------------------- kernel: residual add + LayerNorm (embeddings) -----------------------------
def _add_ln_kernel(x_ref, res_ref, g_ref, b_ref, o_ref, *, eps):
    x = x_ref[...].astype(jnp.float32) + res_ref[...].astype(jnp.float32)
    o_ref[...] = _layernorm_f32(x, g_ref[...], b_ref[...], eps).astype(o_ref.dtype)


def add_layernorm(x, residual, gamma, beta):
    """LN(x + residual) * gamma + beta.  x, residual: (T, H); gamma, beta: (1, H) -> (T, H) bf16."""
    T, H = x.shape
    grid = (T // TILE,)
    return pl.pallas_call(
        functools.partial(_add_ln_kernel, eps=LAYER_NORM_EPS),
        out_shape=jax.ShapeDtypeStruct((T, H), ACT_DTYPE),
        grid=grid,
        in_specs=[
            pl.BlockSpec((TILE, H), lambda t: (t, 0)),
            pl.BlockSpec((TILE, H), lambda t: (t, 0)),
            pl.BlockSpec((1, H), lambda t: (0, 0)),
            pl.BlockSpec((1, H), lambda t: (0, 0)),
        ],
        out_specs=pl.BlockSpec((TILE, H), lambda t: (t, 0)),
        compiler_params=pltpu.CompilerParams(dimension_semantics=("parallel",)),
    )(x, residual, gamma, beta)


# ----------------------------- kernel: fused QKV projection (one wide matmul per tile) -----------------------------
def _qkv_proj_kernel(x_ref, w_ref, b_ref, o_ref, *, hidden):
    # (TILE, H) x (H, 3H) on the MXU with full contraction depth K = H and width N = 3H.
    y = jnp.dot(x_ref[...], w_ref[...], preferred_element_type=jnp.float32) + b_ref[...]
    y = y.astype(o_ref.dtype)
    # split into lane-dense q / k / v slabs (at real dims H=768 the offsets are vreg-aligned)
    o_ref[0] = y[:, :hidden]
    o_ref[1] = y[:, hidden:2 * hidden]
    o_ref[2] = y[:, 2 * hidden:3 * hidden]


def qkv_projection(x, w, b):
    """x: (T, H) bf16; w: (H, 3H) bf16 (q cols pre-scaled); b: (1, 3H) f32 -> (3, T, H) bf16."""
    T, H = x.shape
    grid = (T // TILE,)
    return pl.pallas_call(
        functools.partial(_qkv_proj_kernel, hidden=H),
        out_shape=jax.ShapeDtypeStruct((3, T, H), ACT_DTYPE),
        grid=grid,
        in_specs=[
            pl.BlockSpec((TILE, H), lambda t: (t, 0)),
            pl.BlockSpec((H, 3 * H), lambda t: (0, 0)),
            pl.BlockSpec((1, 3 * H), lambda t: (0, 0)),
        ],
        out_specs=pl.BlockSpec((3, TILE, H), lambda t: (0, t, 0)),
        compiler_params=pltpu.CompilerParams(dimension_semantics=("parallel",)),
    )(x, w, b)


# ----------------------------- kernel: varlen flash attention with block-diagonal tile skipping -----------------------------
def _flash_attn_kernel(tmin_ref, tmax_ref, q_ref, k_ref, v_ref, segq_ref, segk_ref, o_ref,
                       m_sc, l_sc, acc_sc, *, num_heads, head_dim):
    qi = pl.program_id(0)
    ki = pl.program_id(1)

    @pl.when(ki == 0)
    def _():
        m_sc[...] = jnp.full_like(m_sc, NEG_INF)
        l_sc[...] = jnp.zeros_like(l_sc)
        acc_sc[...] = jnp.zeros_like(acc_sc)

    # packed sequences only interact block-diagonally: skip (q, kv) tile pairs whose
    # segment-id ranges cannot overlap (per-tile min/max prefetched into SMEM).
    overlap = jnp.logical_and(tmin_ref[qi] <= tmax_ref[ki], tmin_ref[ki] <= tmax_ref[qi])

    @pl.when(overlap)
    def _():
        q = q_ref[0]   # (TQ, H) bf16 -- q columns pre-scaled by 1/sqrt(head_dim)
        k = k_ref[0]   # (TK, H) bf16
        v = v_ref[0]   # (TK, H) bf16
        mask = segq_ref[...] == segk_ref[...]   # (TQ, 1) vs (1, TK) -> (TQ, TK)

        for h in range(num_heads):              # static unroll; each dot is a plain MXU matmul
            sl = slice(h * head_dim, (h + 1) * head_dim)
            s = jnp.einsum("qd,kd->qk", q[:, sl], k[:, sl],
                           preferred_element_type=jnp.float32)       # (TQ, TK) f32
            s = jnp.where(mask, s, NEG_INF)
            m_prev = m_sc[h]                                         # (TQ, 1)
            m_new = jnp.maximum(m_prev, jnp.max(s, axis=-1, keepdims=True))
            alpha = jnp.exp(m_prev - m_new)
            # zero masked probabilities so a still-NEG_INF running max never pollutes l/acc
            p = jnp.where(mask, jnp.exp(s - m_new), 0.0)
            l_sc[h] = alpha * l_sc[h] + jnp.sum(p, axis=-1, keepdims=True)
            acc_sc[h] = alpha * acc_sc[h] + jnp.dot(
                p.astype(v.dtype), v[:, sl], preferred_element_type=jnp.float32)
            m_sc[h] = m_new

    @pl.when(ki == pl.num_programs(1) - 1)
    def _():
        inv_l = pl.reciprocal(l_sc[...], approx=True)                # (NH, TQ, 1)
        out = acc_sc[...] * inv_l                                    # (NH, TQ, HD) f32
        # heads concatenated along lanes -> one lane-dense (TQ, H) store
        o_ref[...] = jnp.concatenate(
            [out[h] for h in range(num_heads)], axis=-1).astype(o_ref.dtype)


def varlen_flash_attention(qkv, seg_col, seg_row, tile_min, tile_max):
    """qkv: (3, T, H) bf16; seg_col: (T,1) i32; seg_row: (1,T) i32;
    tile_min/tile_max: (T//TILE,) i32 per-tile segment-id range  ->  (T, H) bf16."""
    _, T, H = qkv.shape
    n_tiles = T // TILE
    grid = (n_tiles, n_tiles)
    kernel = functools.partial(_flash_attn_kernel, num_heads=NUM_HEADS, head_dim=HEAD_DIM)
    return pl.pallas_call(
        kernel,
        out_shape=jax.ShapeDtypeStruct((T, H), qkv.dtype),
        grid_spec=pltpu.PrefetchScalarGridSpec(
            num_scalar_prefetch=2,
            grid=grid,
            in_specs=[
                pl.BlockSpec((1, TILE, H), lambda qi, ki, tmin, tmax: (0, qi, 0)),  # q slab
                pl.BlockSpec((1, TILE, H), lambda qi, ki, tmin, tmax: (1, ki, 0)),  # k slab
                pl.BlockSpec((1, TILE, H), lambda qi, ki, tmin, tmax: (2, ki, 0)),  # v slab
                pl.BlockSpec((TILE, 1), lambda qi, ki, tmin, tmax: (qi, 0)),
                pl.BlockSpec((1, TILE), lambda qi, ki, tmin, tmax: (0, ki)),
            ],
            out_specs=pl.BlockSpec((TILE, H), lambda qi, ki, tmin, tmax: (qi, 0)),
            scratch_shapes=[
                pltpu.VMEM((NUM_HEADS, TILE, 1), jnp.float32),          # running max
                pltpu.VMEM((NUM_HEADS, TILE, 1), jnp.float32),          # running denom
                pltpu.VMEM((NUM_HEADS, TILE, HEAD_DIM), jnp.float32),   # output accumulator
            ],
        ),
        compiler_params=pltpu.CompilerParams(dimension_semantics=("parallel", "arbitrary")),
    )(tile_min, tile_max, qkv, qkv, qkv, seg_col, seg_row)


# ----------------------------- kernel: attn-out proj + LN + FFN + LN (fully fused per token tile) -----------------------------
def _attn_ffn_ln_kernel(attn_ref, wo_ref, bo_ref, res_ref, g1_ref, bln1_ref,
                        w1_ref, b1_ref, w2_ref, b2_ref, g2_ref, bln2_ref, o_ref, *, eps):
    a = attn_ref[...]                                                        # (TILE, H) bf16
    # attention output projection: single matmul with contraction K = H (heads already lane-concat)
    y = jnp.dot(a, wo_ref[...], preferred_element_type=jnp.float32) + bo_ref[...]
    x1 = _layernorm_f32(y + res_ref[...].astype(jnp.float32), g1_ref[...], bln1_ref[...], eps)
    x1_lp = x1.astype(a.dtype)
    # FFN, intermediate stays in VMEM
    h1 = jnp.dot(x1_lp, w1_ref[...], preferred_element_type=jnp.float32) + b1_ref[...]
    h1 = _gelu_f32(h1)
    y2 = jnp.dot(h1.astype(a.dtype), w2_ref[...], preferred_element_type=jnp.float32) + b2_ref[...]
    out = _layernorm_f32(y2 + x1, g2_ref[...], bln2_ref[...], eps)
    o_ref[...] = out.astype(o_ref.dtype)


def attn_ffn_layernorm(attn, residual, lp):
    """LN2(FFN(LN1(attn @ Wo + bo + residual)) + LN1(...)).  attn, residual: (T, H) bf16 -> (T, H) bf16."""
    T, H = attn.shape
    inter = lp["inter_w"].shape[1]
    grid = (T // TILE,)
    # TODO(synk): at real dims on v7x, mark the constant-index weight specs pipeline_mode=pl.Buffered(1)
    #   (they never change block index) and/or split the intermediate dim onto a grid axis.
    return pl.pallas_call(
        functools.partial(_attn_ffn_ln_kernel, eps=LAYER_NORM_EPS),
        out_shape=jax.ShapeDtypeStruct((T, H), ACT_DTYPE),
        grid=grid,
        in_specs=[
            pl.BlockSpec((TILE, H), lambda t: (t, 0)),     # attention output
            pl.BlockSpec((H, H), lambda t: (0, 0)),        # wo
            pl.BlockSpec((1, H), lambda t: (0, 0)),        # bo
            pl.BlockSpec((TILE, H), lambda t: (t, 0)),     # residual (layer input)
            pl.BlockSpec((1, H), lambda t: (0, 0)),        # ln1 gamma
            pl.BlockSpec((1, H), lambda t: (0, 0)),        # ln1 beta
            pl.BlockSpec((H, inter), lambda t: (0, 0)),    # w1
            pl.BlockSpec((1, inter), lambda t: (0, 0)),    # b1
            pl.BlockSpec((inter, H), lambda t: (0, 0)),    # w2
            pl.BlockSpec((1, H), lambda t: (0, 0)),        # b2
            pl.BlockSpec((1, H), lambda t: (0, 0)),        # ln2 gamma
            pl.BlockSpec((1, H), lambda t: (0, 0)),        # ln2 beta
        ],
        out_specs=pl.BlockSpec((TILE, H), lambda t: (t, 0)),
        compiler_params=pltpu.CompilerParams(dimension_semantics=("parallel",)),
    )(attn, lp["attn_out_w"], lp["attn_out_b"], residual,
      lp["attn_ln_g"], lp["attn_ln_b"],
      lp["inter_w"], lp["inter_b"], lp["out_w"], lp["out_b"],
      lp["out_ln_g"], lp["out_ln_b"])


# ----------------------------- parameter init (deterministic, synthetic) -----------------------------
def _normal(key, shape, std=0.02, dtype=jnp.float32):
    return (std * jax.random.normal(key, shape, dtype=jnp.float32)).astype(dtype)


def init_params(key):
    keys = jax.random.split(key, 3 + NUM_LAYERS)
    params = {
        "word_emb": _normal(keys[0], (VOCAB_SIZE, HIDDEN)),
        "pos_emb": _normal(keys[1], (MAX_POSITION, HIDDEN)),
        "type_emb": _normal(keys[2], (TYPE_VOCAB_SIZE, HIDDEN)),
        "emb_ln_g": jnp.ones((1, HIDDEN), jnp.float32),
        "emb_ln_b": jnp.zeros((1, HIDDEN), jnp.float32),
        "layers": [],
    }
    q_scale = 1.0 / math.sqrt(HEAD_DIM)
    # fold 1/sqrt(head_dim) into the q columns ([0, H)) of the packed QKV weight & bias so the
    # attention kernel never rescales the score tensor.
    col_scale = jnp.concatenate([jnp.full((HIDDEN,), q_scale, jnp.float32),
                                 jnp.ones((2 * HIDDEN,), jnp.float32)])
    for li in range(NUM_LAYERS):
        lk = jax.random.split(keys[3 + li], 4)
        qkv_w = _normal(lk[0], (HIDDEN, 3 * HIDDEN), dtype=jnp.float32)
        qkv_b = jnp.zeros((1, 3 * HIDDEN), jnp.float32)
        layer = {
            # packed lane-dense QKV: columns [0,H)=q, [H,2H)=k, [2H,3H)=v ; within each slab head h
            # occupies lanes [h*HD, (h+1)*HD).
            "qkv_w": (qkv_w * col_scale).astype(ACT_DTYPE),
            "qkv_b": qkv_b * col_scale,
            "attn_out_w": _normal(lk[1], (HIDDEN, HIDDEN), dtype=ACT_DTYPE),
            "attn_out_b": jnp.zeros((1, HIDDEN), jnp.float32),
            "attn_ln_g": jnp.ones((1, HIDDEN), jnp.float32),
            "attn_ln_b": jnp.zeros((1, HIDDEN), jnp.float32),
            "inter_w": _normal(lk[2], (HIDDEN, INTERMEDIATE), dtype=ACT_DTYPE),
            "inter_b": jnp.zeros((1, INTERMEDIATE), jnp.float32),
            "out_w": _normal(lk[3], (INTERMEDIATE, HIDDEN), dtype=ACT_DTYPE),
            "out_b": jnp.zeros((1, HIDDEN), jnp.float32),
            "out_ln_g": jnp.ones((1, HIDDEN), jnp.float32),
            "out_ln_b": jnp.zeros((1, HIDDEN), jnp.float32),
        }
        params["layers"].append(layer)
    return params


# ----------------------------- model forward (mirrors FlashRobertaModel.forward) -----------------------------
def embeddings_forward(params, input_ids, token_type_ids, position_ids):
    inputs_embeds = jnp.take(params["word_emb"], input_ids, axis=0)
    position_embeds = jnp.take(params["pos_emb"], position_ids, axis=0)
    token_type_embeds = jnp.take(params["type_emb"], token_type_ids, axis=0)
    # FastLayerNorm.forward(inputs_embeds + position_embeds, residual=token_type_embeds)
    return add_layernorm(inputs_embeds + position_embeds, token_type_embeds,
                         params["emb_ln_g"], params["emb_ln_b"])


def roberta_layer_forward(lp, hidden_states, seg_col, seg_row, tile_min, tile_max):
    qkv = qkv_projection(hidden_states, lp["qkv_w"], lp["qkv_b"])                  # (3, T, H)
    attn = varlen_flash_attention(qkv, seg_col, seg_row, tile_min, tile_max)       # (T, H)
    return attn_ffn_layernorm(attn, hidden_states, lp)                             # (T, H)


def flash_roberta_forward(params, input_ids, token_type_ids, position_ids, cu_seqlens, max_s):
    del max_s  # implicit in the segment-id mask
    T = input_ids.shape[0]
    T_pad = pl.cdiv(T, TILE) * TILE
    pad = T_pad - T
    input_ids_p = jnp.pad(input_ids, (0, pad))
    token_type_ids_p = jnp.pad(token_type_ids, (0, pad))
    position_ids_p = jnp.pad(position_ids, (0, pad))

    # per-token segment id from cu_seqlens; padded tokens get id == num_seqs (distinct segment,
    # so they never attend to / are attended by real tokens)
    seg = (jnp.searchsorted(cu_seqlens, jnp.arange(T_pad, dtype=cu_seqlens.dtype), side="right")
           - 1).astype(jnp.int32)
    seg_col = seg.reshape(T_pad, 1)
    seg_row = seg.reshape(1, T_pad)
    # per-tile segment-id range (segments are contiguous so first/last = min/max) for tile skipping
    seg_tiles = seg.reshape(T_pad // TILE, TILE)
    tile_min = seg_tiles[:, 0]
    tile_max = seg_tiles[:, -1]

    hidden_states = embeddings_forward(params, input_ids_p, token_type_ids_p, position_ids_p)
    for lp in params["layers"]:
        hidden_states = roberta_layer_forward(lp, hidden_states, seg_col, seg_row,
                                              tile_min, tile_max)
    # FlashRobertaModel returns encoder_outputs[cu_seqlens[:-1]]  (first token of each sequence)
    return hidden_states[cu_seqlens[:-1]]


# ----------------------------- driver -----------------------------
if __name__ == "__main__":
    key = jax.random.PRNGKey(0)
    pkey, ikey = jax.random.split(key)
    params = init_params(pkey)

    # two packed sequences of length 8 -> 16 total tokens (padded to TILE internally)
    seq_lens = [8, 8]
    total_tokens = sum(seq_lens)
    cu_seqlens = jnp.array([0, 8, 16], dtype=jnp.int32)
    max_s = max(seq_lens)

    input_ids = jax.random.randint(ikey, (total_tokens,), 0, VOCAB_SIZE, dtype=jnp.int32)
    token_type_ids = jnp.zeros((total_tokens,), dtype=jnp.int32)
    # RoBERTa-style position ids: padding_idx(=1) + 1 + arange per sequence
    position_ids = jnp.concatenate([2 + jnp.arange(l, dtype=jnp.int32) for l in seq_lens])

    fwd = jax.jit(flash_roberta_forward, static_argnames=("max_s",))
    out = fwd(params, input_ids, token_type_ids, position_ids, cu_seqlens, max_s=max_s)
    out = jax.block_until_ready(out)

    assert out.shape == (len(seq_lens), HIDDEN), out.shape
    assert bool(jnp.all(jnp.isfinite(out.astype(jnp.float32))))
    print("KERNEL_OK")
</pallas_src>

<mosaic_0001>
module attributes {stable_mosaic.version = 11 : i64} {
  func.func @_add_ln_kernel(%arg0: i32, %arg1: memref<256x64xf32, #tpu.memory_space<vmem>>, %arg2: memref<256x64xf32, #tpu.memory_space<vmem>>, %arg3: memref<1x64xf32, #tpu.memory_space<vmem>>, %arg4: memref<1x64xf32, #tpu.memory_space<vmem>>, %arg5: memref<256x64xbf16, #tpu.memory_space<vmem>>) attributes {dimension_semantics = [#tpu.dimension_semantics<parallel>], iteration_bounds = array<i64: 1>, scalar_prefetch = 0 : i64, scratch_operands = 0 : i64, tpu.core_type = #tpu.core_type<tc>, window_params = [{transform_indices = @transform_0, window_bounds = array<i64: 256, 64>}, {transform_indices = @transform_1, window_bounds = array<i64: 256, 64>}, {pipeline_mode = #tpu.pipeline_mode<synchronous>, transform_indices = @transform_2, window_bounds = array<i64: 1, 64>}, {pipeline_mode = #tpu.pipeline_mode<synchronous>, transform_indices = @transform_3, window_bounds = array<i64: 1, 64>}, {transform_indices = @transform_4, window_bounds = array<i64: 256, 64>}]} {
    %c0 = arith.constant 0 : index
    %c0_0 = arith.constant 0 : index
    %0 = vector.load %arg1[%c0, %c0_0] : memref<256x64xf32, #tpu.memory_space<vmem>>, vector<256x64xf32>
    %c0_1 = arith.constant 0 : index
    %c0_2 = arith.constant 0 : index
    %1 = vector.load %arg2[%c0_1, %c0_2] : memref<256x64xf32, #tpu.memory_space<vmem>>, vector<256x64xf32>
    %2 = arith.addf %0, %1 : vector<256x64xf32>
    %c0_3 = arith.constant 0 : index
    %c0_4 = arith.constant 0 : index
    %3 = vector.load %arg3[%c0_3, %c0_4] : memref<1x64xf32, #tpu.memory_space<vmem>>, vector<1x64xf32>
    %c0_5 = arith.constant 0 : index
    %c0_6 = arith.constant 0 : index
    %4 = vector.load %arg4[%c0_5, %c0_6] : memref<1x64xf32, #tpu.memory_space<vmem>>, vector<1x64xf32>
    %cst = arith.constant dense<0.000000e+00> : vector<256xf32>
    %5 = vector.multi_reduction <add>, %2, %cst [1] : vector<256x64xf32> to vector<256xf32>
    %6 = vector.shape_cast %5 : vector<256xf32> to vector<256x1xf32>
    %cst_7 = arith.constant 6.400000e+01 : f32
    %7 = vector.broadcast %cst_7 : f32 to vector<256x1xf32>
    %8 = arith.divf %6, %7 : vector<256x1xf32>
    %9 = vector.broadcast %8 : vector<256x1xf32> to vector<256x64xf32>
    %10 = arith.subf %2, %9 : vector<256x64xf32>
    %11 = arith.mulf %10, %10 : vector<256x64xf32>
    %cst_8 = arith.constant dense<0.000000e+00> : vector<256xf32>
    %12 = vector.multi_reduction <add>, %11, %cst_8 [1] : vector<256x64xf32> to vector<256xf32>
    %13 = vector.shape_cast %12 : vector<256xf32> to vector<256x1xf32>
    %cst_9 = arith.constant 6.400000e+01 : f32
    %14 = vector.broadcast %cst_9 : f32 to vector<256x1xf32>
    %15 = arith.divf %13, %14 : vector<256x1xf32>
    %cst_10 = arith.constant 9.99999974E-6 : f32
    %16 = vector.broadcast %cst_10 : f32 to vector<256x1xf32>
    %17 = arith.addf %15, %16 : vector<256x1xf32>
    %18 = math.rsqrt %17 : vector<256x1xf32>
    %19 = vector.broadcast %18 : vector<256x1xf32> to vector<256x64xf32>
    %20 = arith.mulf %10, %19 : vector<256x64xf32>
    %21 = vector.broadcast %3 : vector<1x64xf32> to vector<256x64xf32>
    %22 = arith.mulf %20, %21 : vector<256x64xf32>
    %23 = vector.broadcast %4 : vector<1x64xf32> to vector<256x64xf32>
    %24 = arith.addf %22, %23 : vector<256x64xf32>
    %25 = arith.truncf %24 : vector<256x64xf32> to vector<256x64xbf16>
    %c0_11 = arith.constant 0 : index
    %c0_12 = arith.constant 0 : index
    %26 = vector.load %arg5[%c0_11, %c0_12] : memref<256x64xbf16, #tpu.memory_space<vmem>>, vector<256x64xbf16>
    tpu.vector_store %arg5[%c0_11, %c0_12], %25 {strides = array<i32>} : memref<256x64xbf16, #tpu.memory_space<vmem>>, vector<256x64xbf16>,
    return
  }
  func.func @transform_0(%arg0: i32) -> (i32, i32) {
    %c0_i32 = arith.constant 0 : i32
    %c0_i32_0 = arith.constant 0 : i32
    return %arg0, %c0_i32 : i32, i32
  }
  func.func @transform_1(%arg0: i32) -> (i32, i32) {
    %c0_i32 = arith.constant 0 : i32
    %c0_i32_0 = arith.constant 0 : i32
    return %arg0, %c0_i32 : i32, i32
  }
  func.func @transform_2(%arg0: i32) -> (i32, i32) {
    %c0_i32 = arith.constant 0 : i32
    %c0_i32_0 = arith.constant 0 : i32
    %c0_i32_1 = arith.constant 0 : i32
    return %c0_i32, %c0_i32_0 : i32, i32
  }
  func.func @transform_3(%arg0: i32) -> (i32, i32) {
    %c0_i32 = arith.constant 0 : i32
    %c0_i32_0 = arith.constant 0 : i32
    %c0_i32_1 = arith.constant 0 : i32
    return %c0_i32, %c0_i32_0 : i32, i32
  }
  func.func @transform_4(%arg0: i32) -> (i32, i32) {
    %c0_i32 = arith.constant 0 : i32
    %c0_i32_0 = arith.constant 0 : i32
    return %arg0, %c0_i32 : i32, i32
  }
}

module attributes {stable_mosaic.version = 11 : i64} {
  func.func @_qkv_proj_kernel(%arg0: i32, %arg1: memref<256x64xbf16, #tpu.memory_space<vmem>>, %arg2: memref<64x192xbf16, #tpu.memory_space<vmem>>, %arg3: memref<1x192xf32, #tpu.memory_space<vmem>>, %arg4: memref<3x256x64xbf16, #tpu.memory_space<vmem>>) attributes {dimension_semantics = [#tpu.dimension_semantics<parallel>], iteration_bounds = array<i64: 1>, scalar_prefetch = 0 : i64, scratch_operands = 0 : i64, tpu.core_type = #tpu.core_type<tc>, window_params = [{transform_indices = @transform_0, window_bounds = array<i64: 256, 64>}, {pipeline_mode = #tpu.pipeline_mode<synchronous>, transform_indices = @transform_1, window_bounds = array<i64: 64, 192>}, {pipeline_mode = #tpu.pipeline_mode<synchronous>, transform_indices = @transform_2, window_bounds = array<i64: 1, 192>}, {transform_indices = @transform_3, window_bounds = array<i64: 3, 256, 64>}]} {
    %c0 = arith.constant 0 : index
    %c0_0 = arith.constant 0 : index
    %0 = vector.load %arg1[%c0, %c0_0] : memref<256x64xbf16, #tpu.memory_space<vmem>>, vector<256x64xbf16>
    %c0_1 = arith.constant 0 : index
    %c0_2 = arith.constant 0 : index
    %1 = vector.load %arg2[%c0_1, %c0_2] : memref<64x192xbf16, #tpu.memory_space<vmem>>, vector<64x192xbf16>
    %cst = arith.constant dense<0.000000e+00> : vector<256x192xf32>
    %2 = tpu.matmul %0, %1, %cst {dimension_numbers = #tpu.dot_dimension_numbers<[1], [0], [0], [1], [0, 0, 1, 1], [], []>} : vector<256x64xbf16>, vector<64x192xbf16>, vector<256x192xf32> -> vector<256x192xf32>
    %c0_3 = arith.constant 0 : index
    %c0_4 = arith.constant 0 : index
    %3 = vector.load %arg3[%c0_3, %c0_4] : memref<1x192xf32, #tpu.memory_space<vmem>>, vector<1x192xf32>
    %4 = vector.broadcast %3 : vector<1x192xf32> to vector<256x192xf32>
    %5 = arith.addf %2, %4 : vector<256x192xf32>
    %6 = arith.truncf %5 : vector<256x192xf32> to vector<256x192xbf16>
    %7 = vector.extract_strided_slice %6 {offsets = [0, 0], sizes = [256, 64], strides = [1, 1]} : vector<256x192xbf16> to vector<256x64xbf16>
    %c0_5 = arith.constant 0 : index
    %c0_6 = arith.constant 0 : index
    %c0_7 = arith.constant 0 : index
    %8 = vector.load %arg4[%c0_5, %c0_6, %c0_7] : memref<3x256x64xbf16, #tpu.memory_space<vmem>>, vector<1x256x64xbf16>
    %9 = vector.shape_cast %8 : vector<1x256x64xbf16> to vector<256x64xbf16>
    %10 = vector.shape_cast %7 : vector<256x64xbf16> to vector<1x256x64xbf16>
    tpu.vector_store %arg4[%c0_5, %c0_6, %c0_7], %10 {strides = array<i32>} : memref<3x256x64xbf16, #tpu.memory_space<vmem>>, vector<1x256x64xbf16>,
    %11 = vector.extract_strided_slice %6 {offsets = [0, 64], sizes = [256, 64], strides = [1, 1]} : vector<256x192xbf16> to vector<256x64xbf16>
    %c1 = arith.constant 1 : index
    %c0_8 = arith.constant 0 : index
    %c0_9 = arith.constant 0 : index
    %12 = vector.load %arg4[%c1, %c0_8, %c0_9] : memref<3x256x64xbf16, #tpu.memory_space<vmem>>, vector<1x256x64xbf16>
    %13 = vector.shape_cast %12 : vector<1x256x64xbf16> to vector<256x64xbf16>
    %14 = vector.shape_cast %11 : vector<256x64xbf16> to vector<1x256x64xbf16>
    tpu.vector_store %arg4[%c1, %c0_8, %c0_9], %14 {strides = array<i32>} : memref<3x256x64xbf16, #tpu.memory_space<vmem>>, vector<1x256x64xbf16>,
    %15 = vector.extract_strided_slice %6 {offsets = [0, 128], sizes = [256, 64], strides = [1, 1]} : vector<256x192xbf16> to vector<256x64xbf16>
    %c2 = arith.constant 2 : index
    %c0_10 = arith.constant 0 : index
    %c0_11 = arith.constant 0 : index
    %16 = vector.load %arg4[%c2, %c0_10, %c0_11] : memref<3x256x64xbf16, #tpu.memory_space<vmem>>, vector<1x256x64xbf16>
    %17 = vector.shape_cast %16 : vector<1x256x64xbf16> to vector<256x64xbf16>
    %18 = vector.shape_cast %15 : vector<256x64xbf16> to vector<1x256x64xbf16>
    tpu.vector_store %arg4[%c2, %c0_10, %c0_11], %18 {strides = array<i32>} : memref<3x256x64xbf16, #tpu.memory_space<vmem>>, vector<1x256x64xbf16>,
    return
  }
  func.func @transform_0(%arg0: i32) -> (i32, i32) {
    %c0_i32 = arith.constant 0 : i32
    %c0_i32_0 = arith.constant 0 : i32
    return %arg0, %c0_i32 : i32, i32
  }
  func.func @transform_1(%arg0: i32) -> (i32, i32) {
    %c0_i32 = arith.constant 0 : i32
    %c0_i32_0 = arith.constant 0 : i32
    %c0_i32_1 = arith.constant 0 : i32
    return %c0_i32, %c0_i32_0 : i32, i32
  }
  func.func @transform_2(%arg0: i32) -> (i32, i32) {
    %c0_i32 = arith.constant 0 : i32
    %c0_i32_0 = arith.constant 0 : i32
    %c0_i32_1 = arith.constant 0 : i32
    return %c0_i32, %c0_i32_0 : i32, i32
  }
  func.func @transform_3(%arg0: i32) -> (i32, i32, i32) {
    %c0_i32 = arith.constant 0 : i32
    %c0_i32_0 = arith.constant 0 : i32
    %c0_i32_1 = arith.constant 0 : i32
    return %c0_i32, %arg0, %c0_i32_0 : i32, i32, i32
  }
}

module attributes {stable_mosaic.version = 11 : i64} {
  func.func @_flash_attn_kernel(%arg0: i32, %arg1: i32, %arg2: memref<1xi32, #tpu.memory_space<smem>>, %arg3: memref<1xi32, #tpu.memory_space<smem>>, %arg4: memref<1x256x64xbf16, #tpu.memory_space<vmem>>, %arg5: memref<1x256x64xbf16, #tpu.memory_space<vmem>>, %arg6: memref<1x256x64xbf16, #tpu.memory_space<vmem>>, %arg7: memref<256x1xi32, #tpu.memory_space<vmem>>, %arg8: memref<1x256xi32, #tpu.memory_space<vmem>>, %arg9: memref<256x64xbf16, #tpu.memory_space<vmem>>, %arg10: memref<2x256x1xf32, #tpu.memory_space<vmem>>, %arg11: memref<2x256x1xf32, #tpu.memory_space<vmem>>, %arg12: memref<2x256x32xf32, #tpu.memory_space<vmem>>) attributes {dimension_semantics = [#tpu.dimension_semantics<parallel>, #tpu.dimension_semantics<arbitrary>], iteration_bounds = array<i64: 1, 1>, scalar_prefetch = 2 : i64, scratch_operands = 3 : i64, tpu.core_type = #tpu.core_type<tc>, window_params = [{transform_indices = @transform_0, window_bounds = array<i64: 1, 256, 64>}, {transform_indices = @transform_1, window_bounds = array<i64: 1, 256, 64>}, {transform_indices = @transform_2, window_bounds = array<i64: 1, 256, 64>}, {transform_indices = @transform_3, window_bounds = array<i64: 256, 1>}, {transform_indices = @transform_4, window_bounds = array<i64: 1, 256>}, {transform_indices = @transform_5, window_bounds = array<i64: 256, 64>}]} {
    %c0_i32 = arith.constant 0 : i32
    %0 = arith.cmpi eq, %arg1, %c0_i32 : i32
    %1 = arith.extui %0 : i1 to i32
    %c0_i32_0 = arith.constant 0 : i32
    %2 = arith.cmpi ne, %1, %c0_i32_0 : i32
    scf.if %2 {
      %cst = arith.constant -1.000000e+30 : f32
      %19 = vector.broadcast %cst : f32 to vector<2x256x1xf32>
      %c0 = arith.constant 0 : index
      %c0_4 = arith.constant 0 : index
      %c0_5 = arith.constant 0 : index
      %20 = vector.load %arg10[%c0, %c0_4, %c0_5] : memref<2x256x1xf32, #tpu.memory_space<vmem>>, vector<2x256x1xf32>
      tpu.vector_store %arg10[%c0, %c0_4, %c0_5], %19 {strides = array<i32>} : memref<2x256x1xf32, #tpu.memory_space<vmem>>, vector<2x256x1xf32>,
      %cst_6 = arith.constant 0.000000e+00 : f32
      %21 = vector.broadcast %cst_6 : f32 to vector<2x256x1xf32>
      %c0_7 = arith.constant 0 : index
      %c0_8 = arith.constant 0 : index
      %c0_9 = arith.constant 0 : index
      %22 = vector.load %arg11[%c0_7, %c0_8, %c0_9] : memref<2x256x1xf32, #tpu.memory_space<vmem>>, vector<2x256x1xf32>
      tpu.vector_store %arg11[%c0_7, %c0_8, %c0_9], %21 {strides = array<i32>} : memref<2x256x1xf32, #tpu.memory_space<vmem>>, vector<2x256x1xf32>,
      %cst_10 = arith.constant 0.000000e+00 : f32
      %23 = vector.broadcast %cst_10 : f32 to vector<2x256x32xf32>
      %c0_11 = arith.constant 0 : index
      %c0_12 = arith.constant 0 : index
      %c0_13 = arith.constant 0 : index
      %24 = vector.load %arg12[%c0_11, %c0_12, %c0_13] : memref<2x256x32xf32, #tpu.memory_space<vmem>>, vector<2x256x32xf32>
      tpu.vector_store %arg12[%c0_11, %c0_12, %c0_13], %23 {strides = array<i32>} : memref<2x256x32xf32, #tpu.memory_space<vmem>>, vector<2x256x32xf32>,
    } else {
    }
    %3 = arith.index_cast %arg0 : i32 to index
    %4 = memref.load %arg2[%3] : memref<1xi32, #tpu.memory_space<smem>>
    %5 = arith.index_cast %arg1 : i32 to index
    %6 = memref.load %arg3[%5] : memref<1xi32, #tpu.memory_space<smem>>
    %7 = arith.cmpi sle, %4, %6 : i32
    %8 = arith.index_cast %arg1 : i32 to index
    %9 = memref.load %arg2[%8] : memref<1xi32, #tpu.memory_space<smem>>
    %10 = arith.index_cast %arg0 : i32 to index
    %11 = memref.load %arg3[%10] : memref<1xi32, #tpu.memory_space<smem>>
    %12 = arith.cmpi sle, %9, %11 : i32
    %13 = arith.andi %7, %12 : i1
    %14 = arith.extui %13 : i1 to i32
    %c0_i32_1 = arith.constant 0 : i32
    %15 = arith.cmpi ne, %14, %c0_i32_1 : i32
    scf.if %15 {
      %c0 = arith.constant 0 : index
      %c0_4 = arith.constant 0 : index
      %c0_5 = arith.constant 0 : index
      %19 = vector.load %arg4[%c0, %c0_4, %c0_5] : memref<1x256x64xbf16, #tpu.memory_space<vmem>>, vector<1x256x64xbf16>
      %20 = vector.shape_cast %19 : vector<1x256x64xbf16> to vector<256x64xbf16>
      %c0_6 = arith.constant 0 : index
      %c0_7 = arith.constant 0 : index
      %c0_8 = arith.constant 0 : index
      %21 = vector.load %arg5[%c0_6, %c0_7, %c0_8] : memref<1x256x64xbf16, #tpu.memory_space<vmem>>, vector<1x256x64xbf16>
      %22 = vector.shape_cast %21 : vector<1x256x64xbf16> to vector<256x64xbf16>
      %c0_9 = arith.constant 0 : index
      %c0_10 = arith.constant 0 : index
      %c0_11 = arith.constant 0 : index
      %23 = vector.load %arg6[%c0_9, %c0_10, %c0_11] : memref<1x256x64xbf16, #tpu.memory_space<vmem>>, vector<1x256x64xbf16>
      %24 = vector.shape_cast %23 : vector<1x256x64xbf16> to vector<256x64xbf16>
      %c0_12 = arith.constant 0 : index
      %c0_13 = arith.constant 0 : index
      %25 = vector.load %arg7[%c0_12, %c0_13] : memref<256x1xi32, #tpu.memory_space<vmem>>, vector<256x1xi32>
      %c0_14 = arith.constant 0 : index
      %c0_15 = arith.constant 0 : index
      %26 = vector.load %arg8[%c0_14, %c0_15] : memref<1x256xi32, #tpu.memory_space<vmem>>, vector<1x256xi32>
      %27 = vector.broadcast %25 : vector<256x1xi32> to vector<256x256xi32>
      %28 = vector.broadcast %26 : vector<1x256xi32> to vector<256x256xi32>
      %29 = arith.cmpi eq, %27, %28 : vector<256x256xi32>
      %30 = vector.extract_strided_slice %20 {offsets = [0, 0], sizes = [256, 32], strides = [1, 1]} : vector<256x64xbf16> to vector<256x32xbf16>
      %31 = vector.extract_strided_slice %22 {offsets = [0, 0], sizes = [256, 32], strides = [1, 1]} : vector<256x64xbf16> to vector<256x32xbf16>
      "tpu.trace_start"() <{level = 10 : i32, message = "qd,kd->qk"}> : () -> ()
      %cst = arith.constant dense<0.000000e+00> : vector<256x256xf32>
      %32 = tpu.matmul %30, %31, %cst {dimension_numbers = #tpu.dot_dimension_numbers<[1], [1], [0], [0], [0, 0, 1, 0], [], []>} : vector<256x32xbf16>, vector<256x32xbf16>, vector<256x256xf32> -> vector<256x256xf32>
      %cst_16 = arith.constant -1.000000e+30 : f32
      "tpu.trace_stop"() : () -> ()
      %33 = vector.broadcast %cst_16 : f32 to vector<256x256xf32>
      %34 = arith.select %29, %32, %33 : vector<256x256xi1>, vector<256x256xf32>
      %c0_17 = arith.constant 0 : index
      %c0_18 = arith.constant 0 : index
      %c0_19 = arith.constant 0 : index
      %35 = vector.load %arg10[%c0_17, %c0_18, %c0_19] : memref<2x256x1xf32, #tpu.memory_space<vmem>>, vector<1x256x1xf32>
      %36 = vector.shape_cast %35 : vector<1x256x1xf32> to vector<256x1xf32>
      %cst_20 = arith.constant dense<0xFF800000> : vector<256xf32>
      %37 = vector.multi_reduction <maximumf>, %34, %cst_20 [1] : vector<256x256xf32> to vector<256xf32>
      %38 = vector.shape_cast %37 : vector<256xf32> to vector<256x1xf32>
      %39 = arith.maximumf %36, %38 : vector<256x1xf32>
      %40 = arith.subf %36, %39 : vector<256x1xf32>
      %41 = math.exp %40 : vector<256x1xf32>
      %42 = vector.broadcast %39 : vector<256x1xf32> to vector<256x256xf32>
      %43 = arith.subf %34, %42 : vector<256x256xf32>
      %44 = math.exp %43 : vector<256x256xf32>
      %cst_21 = arith.constant 0.000000e+00 : f32
      %45 = vector.broadcast %cst_21 : f32 to vector<256x256xf32>
      %46 = arith.select %29, %44, %45 : vector<256x256xi1>, vector<256x256xf32>
      %c0_22 = arith.constant 0 : index
      %c0_23 = arith.constant 0 : index
      %c0_24 = arith.constant 0 : index
      %47 = vector.load %arg11[%c0_22, %c0_23, %c0_24] : memref<2x256x1xf32, #tpu.memory_space<vmem>>, vector<1x256x1xf32>
      %48 = vector.shape_cast %47 : vector<1x256x1xf32> to vector<256x1xf32>
      %49 = arith.mulf %41, %48 : vector<256x1xf32>
      %cst_25 = arith.constant dense<0.000000e+00> : vector<256xf32>
      %50 = vector.multi_reduction <add>, %46, %cst_25 [1] : vector<256x256xf32> to vector<256xf32>
      %51 = vector.shape_cast %50 : vector<256xf32> to vector<256x1xf32>
      %52 = arith.addf %49, %51 : vector<256x1xf32>
      %c0_26 = arith.constant 0 : index
      %c0_27 = arith.constant 0 : index
      %c0_28 = arith.constant 0 : index
      %53 = vector.load %arg11[%c0_26, %c0_27, %c0_28] : memref<2x256x1xf32, #tpu.memory_space<vmem>>, vector<1x256x1xf32>
      %54 = vector.shape_cast %53 : vector<1x256x1xf32> to vector<256x1xf32>
      %55 = vector.shape_cast %52 : vector<256x1xf32> to vector<1x256x1xf32>
      tpu.vector_store %arg11[%c0_26, %c0_27, %c0_28], %55 {strides = array<i32>} : memref<2x256x1xf32, #tpu.memory_space<vmem>>, vector<1x256x1xf32>,
      %c0_29 = arith.constant 0 : index
      %c0_30 = arith.constant 0 : index
      %c0_31 = arith.constant 0 : index
      %56 = vector.load %arg12[%c0_29, %c0_30, %c0_31] : memref<2x256x32xf32, #tpu.memory_space<vmem>>, vector<1x256x32xf32>
      %57 = vector.shape_cast %56 : vector<1x256x32xf32> to vector<256x32xf32>
      %58 = vector.broadcast %41 : vector<256x1xf32> to vector<256x32xf32>
      %59 = arith.mulf %58, %57 : vector<256x32xf32>
      %60 = arith.truncf %46 : vector<256x256xf32> to vector<256x256xbf16>
      %61 = vector.extract_strided_slice %24 {offsets = [0, 0], sizes = [256, 32], strides = [1, 1]} : vector<256x64xbf16> to vector<256x32xbf16>
      %cst_32 = arith.constant dense<0.000000e+00> : vector<256x32xf32>
      %62 = tpu.matmul %60, %61, %cst_32 {dimension_numbers = #tpu.dot_dimension_numbers<[1], [0], [0], [1], [0, 0, 1, 1], [], []>} : vector<256x256xbf16>, vector<256x32xbf16>, vector<256x32xf32> -> vector<256x32xf32>
      %63 = arith.addf %59, %62 : vector<256x32xf32>
      %c0_33 = arith.constant 0 : index
      %c0_34 = arith.constant 0 : index
      %c0_35 = arith.constant 0 : index
      %64 = vector.load %arg12[%c0_33, %c0_34, %c0_35] : memref<2x256x32xf32, #tpu.memory_space<vmem>>, vector<1x256x32xf32>
      %65 = vector.shape_cast %64 : vector<1x256x32xf32> to vector<256x32xf32>
      %66 = vector.shape_cast %63 : vector<256x32xf32> to vector<1x256x32xf32>
      tpu.vector_store %arg12[%c0_33, %c0_34, %c0_35], %66 {strides = array<i32>} : memref<2x256x32xf32, #tpu.memory_space<vmem>>, vector<1x256x32xf32>,
      %c0_36 = arith.constant 0 : index
      %c0_37 = arith.constant 0 : index
      %c0_38 = arith.constant 0 : index
      %67 = vector.load %arg10[%c0_36, %c0_37, %c0_38] : memref<2x256x1xf32, #tpu.memory_space<vmem>>, vector<1x256x1xf32>
      %68 = vector.shape_cast %67 : vector<1x256x1xf32> to vector<256x1xf32>
      %69 = vector.shape_cast %39 : vector<256x1xf32> to vector<1x256x1xf32>
      tpu.vector_store %arg10[%c0_36, %c0_37, %c0_38], %69 {strides = array<i32>} : memref<2x256x1xf32, #tpu.memory_space<vmem>>, vector<1x256x1xf32>,
      %70 = vector.extract_strided_slice %20 {offsets = [0, 32], sizes = [256, 32], strides = [1, 1]} : vector<256x64xbf16> to vector<256x32xbf16>
      %71 = vector.extract_strided_slice %22 {offsets = [0, 32], sizes = [256, 32], strides = [1, 1]} : vector<256x64xbf16> to vector<256x32xbf16>
      "tpu.trace_start"() <{level = 10 : i32, message = "qd,kd->qk"}> : () -> ()
      %cst_39 = arith.constant dense<0.000000e+00> : vector<256x256xf32>
      %72 = tpu.matmul %70, %71, %cst_39 {dimension_numbers = #tpu.dot_dimension_numbers<[1], [1], [0], [0], [0, 0, 1, 0], [], []>} : vector<256x32xbf16>, vector<256x32xbf16>, vector<256x256xf32> -> vector<256x256xf32>
      %cst_40 = arith.constant -1.000000e+30 : f32
      "tpu.trace_stop"() : () -> ()
      %73 = vector.broadcast %cst_40 : f32 to vector<256x256xf32>
      %74 = arith.select %29, %72, %73 : vector<256x256xi1>, vector<256x256xf32>
      %c1 = arith.constant 1 : index
      %c0_41 = arith.constant 0 : index
      %c0_42 = arith.constant 0 : index
      %75 = vector.load %arg10[%c1, %c0_41, %c0_42] : memref<2x256x1xf32, #tpu.memory_space<vmem>>, vector<1x256x1xf32>
      %76 = vector.shape_cast %75 : vector<1x256x1xf32> to vector<256x1xf32>
      %cst_43 = arith.constant dense<0xFF800000> : vector<256xf32>
      %77 = vector.multi_reduction <maximumf>, %74, %cst_43 [1] : vector<256x256xf32> to vector<256xf32>
      %78 = vector.shape_cast %77 : vector<256xf32> to vector<256x1xf32>
      %79 = arith.maximumf %76, %78 : vector<256x1xf32>
      %80 = arith.subf %76, %79 : vector<256x1xf32>
      %81 = math.exp %80 : vector<256x1xf32>
      %82 = vector.broadcast %79 : vector<256x1xf32> to vector<256x256xf32>
      %83 = arith.subf %74, %82 : vector<256x256xf32>
      %84 = math.exp %83 : vector<256x256xf32>
      %cst_44 = arith.constant 0.000000e+00 : f32
      %85 = vector.broadcast %cst_44 : f32 to vector<256x256xf32>
      %86 = arith.select %29, %84, %85 : vector<256x256xi1>, vector<256x256xf32>
      %c1_45 = arith.constant 1 : index
      %c0_46 = arith.constant 0 : index
      %c0_47 = arith.constant 0 : index
      %87 = vector.load %arg11[%c1_45, %c0_46, %c0_47] : memref<2x256x1xf32, #tpu.memory_space<vmem>>, vector<1x256x1xf32>
      %88 = vector.shape_cast %87 : vector<1x256x1xf32> to vector<256x1xf32>
      %89 = arith.mulf %81, %88 : vector<256x1xf32>
      %cst_48 = arith.constant dense<0.000000e+00> : vector<256xf32>
      %90 = vector.multi_reduction <add>, %86, %cst_48 [1] : vector<256x256xf32> to vector<256xf32>
      %91 = vector.shape_cast %90 : vector<256xf32> to vector<256x1xf32>
      %92 = arith.addf %89, %91 : vector<256x1xf32>
      %c1_49 = arith.constant 1 : index
      %c0_50 = arith.constant 0 : index
      %c0_51 = arith.constant 0 : index
      %93 = vector.load %arg11[%c1_49, %c0_50, %c0_51] : memref<2x256x1xf32, #tpu.memory_space<vmem>>, vector<1x256x1xf32>
      %94 = vector.shape_cast %93 : vector<1x256x1xf32> to vector<256x1xf32>
      %95 = vector.shape_cast %92 : vector<256x1xf32> to vector<1x256x1xf32>
      tpu.vector_store %arg11[%c1_49, %c0_50, %c0_51], %95 {strides = array<i32>} : memref<2x256x1xf32, #tpu.memory_space<vmem>>, vector<1x256x1xf32>,
      %c1_52 = arith.constant 1 : index
      %c0_53 = arith.constant 0 : index
      %c0_54 = arith.constant 0 : index
      %96 = vector.load %arg12[%c1_52, %c0_53, %c0_54] : memref<2x256x32xf32, #tpu.memory_space<vmem>>, vector<1x256x32xf32>
      %97 = vector.shape_cast %96 : vector<1x256x32xf32> to vector<256x32xf32>
      %98 = vector.broadcast %81 : vector<256x1xf32> to vector<256x32xf32>
      %99 = arith.mulf %98, %97 : vector<256x32xf32>
      %100 = arith.truncf %86 : vector<256x256xf32> to vector<256x256xbf16>
      %101 = vector.extract_strided_slice %24 {offsets = [0, 32], sizes = [256, 32], strides = [1, 1]} : vector<256x64xbf16> to vector<256x32xbf16>
      %cst_55 = arith.constant dense<0.000000e+00> : vector<256x32xf32>
      %102 = tpu.matmul %100, %101, %cst_55 {dimension_numbers = #tpu.dot_dimension_numbers<[1], [0], [0], [1], [0, 0, 1, 1], [], []>} : vector<256x256xbf16>, vector<256x32xbf16>, vector<256x32xf32> -> vector<256x32xf32>
      %103 = arith.addf %99, %102 : vector<256x32xf32>
      %c1_56 = arith.constant 1 : index
      %c0_57 = arith.constant 0 : index
      %c0_58 = arith.constant 0 : index
      %104 = vector.load %arg12[%c1_56, %c0_57, %c0_58] : memref<2x256x32xf32, #tpu.memory_space<vmem>>, vector<1x256x32xf32>
      %105 = vector.shape_cast %104 : vector<1x256x32xf32> to vector<256x32xf32>
      %106 = vector.shape_cast %103 : vector<256x32xf32> to vector<1x256x32xf32>
      tpu.vector_store %arg12[%c1_56, %c0_57, %c0_58], %106 {strides = array<i32>} : memref<2x256x32xf32, #tpu.memory_space<vmem>>, vector<1x256x32xf32>,
      %c1_59 = arith.constant 1 : index
      %c0_60 = arith.constant 0 : index
      %c0_61 = arith.constant 0 : index
      %107 = vector.load %arg10[%c1_59, %c0_60, %c0_61] : memref<2x256x1xf32, #tpu.memory_space<vmem>>, vector<1x256x1xf32>
      %108 = vector.shape_cast %107 : vector<1x256x1xf32> to vector<256x1xf32>
      %109 = vector.shape_cast %79 : vector<256x1xf32> to vector<1x256x1xf32>
      tpu.vector_store %arg10[%c1_59, %c0_60, %c0_61], %109 {strides = array<i32>} : memref<2x256x1xf32, #tpu.memory_space<vmem>>, vector<1x256x1xf32>,
    } else {
    }
    %c0_i32_2 = arith.constant 0 : i32
    %16 = arith.cmpi eq, %arg1, %c0_i32_2 : i32
    %17 = arith.extui %16 : i1 to i32
    %c0_i32_3 = arith.constant 0 : i32
    %18 = arith.cmpi ne, %17, %c0_i32_3 : i32
    scf.if %18 {
      %c0 = arith.constant 0 : index
      %c0_4 = arith.constant 0 : index
      %c0_5 = arith.constant 0 : index
      %19 = vector.load %arg11[%c0, %c0_4, %c0_5] : memref<2x256x1xf32, #tpu.memory_space<vmem>>, vector<2x256x1xf32>
      %20 = tpu.reciprocal %19 {approx = true} : vector<2x256x1xf32> -> vector<2x256x1xf32>
      %c0_6 = arith.constant 0 : index
      %c0_7 = arith.constant 0 : index
      %c0_8 = arith.constant 0 : index
      %21 = vector.load %arg12[%c0_6, %c0_7, %c0_8] : memref<2x256x32xf32, #tpu.memory_space<vmem>>, vector<2x256x32xf32>
      %22 = vector.broadcast %20 : vector<2x256x1xf32> to vector<2x256x32xf32>
      %23 = arith.mulf %21, %22 : vector<2x256x32xf32>
      %24 = vector.extract_strided_slice %23 {offsets = [0, 0, 0], sizes = [1, 256, 32], strides = [1, 1, 1]} : vector<2x256x32xf32> to vector<1x256x32xf32>
      %25 = vector.shape_cast %24 : vector<1x256x32xf32> to vector<256x32xf32>
      %26 = vector.extract_strided_slice %23 {offsets = [1, 0, 0], sizes = [1, 256, 32], strides = [1, 1, 1]} : vector<2x256x32xf32> to vector<1x256x32xf32>
      %27 = vector.shape_cast %26 : vector<1x256x32xf32> to vector<256x32xf32>
      %28 = tpu.concatenate %25, %27 in 1 : vector<256x32xf32>, vector<256x32xf32> -> vector<256x64xf32>
      %29 = arith.truncf %28 : vector<256x64xf32> to vector<256x64xbf16>
      %c0_9 = arith.constant 0 : index
      %c0_10 = arith.constant 0 : index
      %30 = vector.load %arg9[%c0_9, %c0_10] : memref<256x64xbf16, #tpu.memory_space<vmem>>, vector<256x64xbf16>
      tpu.vector_store %arg9[%c0_9, %c0_10], %29 {strides = array<i32>} : memref<256x64xbf16, #tpu.memory_space<vmem>>, vector<256x64xbf16>,
    } else {
    }
    return
  }
  func.func @transform_0(%arg0: i32, %arg1: i32, %arg2: memref<1xi32, #tpu.memory_space<smem>>, %arg3: memref<1xi32, #tpu.memory_space<smem>>) -> (i32, i32, i32) {
    %c0_i32 = arith.constant 0 : i32
    %c0_i32_0 = arith.constant 0 : i32
    %c0_i32_1 = arith.constant 0 : i32
    return %c0_i32, %arg0, %c0_i32_0 : i32, i32, i32
  }
  func.func @transform_1(%arg0: i32, %arg1: i32, %arg2: memref<1xi32, #tpu.memory_space<smem>>, %arg3: memref<1xi32, #tpu.memory_space<smem>>) -> (i32, i32, i32) {
    %c1_i32 = arith.constant 1 : i32
    %c0_i32 = arith.constant 0 : i32
    %c0_i32_0 = arith.constant 0 : i32
    return %c1_i32, %arg1, %c0_i32 : i32, i32, i32
  }
  func.func @transform_2(%arg0: i32, %arg1: i32, %arg2: memref<1xi32, #tpu.memory_space<smem>>, %arg3: memref<1xi32, #tpu.memory_space<smem>>) -> (i32, i32, i32) {
    %c2_i32 = arith.constant 2 : i32
    %c0_i32 = arith.constant 0 : i32
    %c0_i32_0 = arith.constant 0 : i32
    return %c2_i32, %arg1, %c0_i32 : i32, i32, i32
  }
  func.func @transform_3(%arg0: i32, %arg1: i32, %arg2: memref<1xi32, #tpu.memory_space<smem>>, %arg3: memref<1xi32, #tpu.memory_space<smem>>) -> (i32, i32) {
    %c0_i32 = arith.constant 0 : i32
    %c0_i32_0 = arith.constant 0 : i32
    return %arg0, %c0_i32 : i32, i32
  }
  func.func @transform_4(%arg0: i32, %arg1: i32, %arg2: memref<1xi32, #tpu.memory_space<smem>>, %arg3: memref<1xi32, #tpu.memory_space<smem>>) -> (i32, i32) {
    %c0_i32 = arith.constant 0 : i32
    %c0_i32_0 = arith.constant 0 : i32
    return %c0_i32, %arg1 : i32, i32
  }
  func.func @transform_5(%arg0: i32, %arg1: i32, %arg2: memref<1xi32, #tpu.memory_space<smem>>, %arg3: memref<1xi32, #tpu.memory_space<smem>>) -> (i32, i32) {
    %c0_i32 = arith.constant 0 : i32
    %c0_i32_0 = arith.constant 0 : i32
    return %arg0, %c0_i32 : i32, i32
  }
}

module attributes {stable_mosaic.version = 11 : i64} {
  func.func @_attn_ffn_ln_kernel(%arg0: i32, %arg1: memref<256x64xbf16, #tpu.memory_space<vmem>>, %arg2: memref<64x64xbf16, #tpu.memory_space<vmem>>, %arg3: memref<1x64xf32, #tpu.memory_space<vmem>>, %arg4: memref<256x64xbf16, #tpu.memory_space<vmem>>, %arg5: memref<1x64xf32, #tpu.memory_space<vmem>>, %arg6: memref<1x64xf32, #tpu.memory_space<vmem>>, %arg7: memref<64x128xbf16, #tpu.memory_space<vmem>>, %arg8: memref<1x128xf32, #tpu.memory_space<vmem>>, %arg9: memref<128x64xbf16, #tpu.memory_space<vmem>>, %arg10: memref<1x64xf32, #tpu.memory_space<vmem>>, %arg11: memref<1x64xf32, #tpu.memory_space<vmem>>, %arg12: memref<1x64xf32, #tpu.memory_space<vmem>>, %arg13: memref<256x64xbf16, #tpu.memory_space<vmem>>) attributes {dimension_semantics = [#tpu.dimension_semantics<parallel>], iteration_bounds = array<i64: 1>, scalar_prefetch = 0 : i64, scratch_operands = 0 : i64, tpu.core_type = #tpu.core_type<tc>, window_params = [{transform_indices = @transform_0, window_bounds = array<i64: 256, 64>}, {pipeline_mode = #tpu.pipeline_mode<synchronous>, transform_indices = @transform_1, window_bounds = array<i64: 64, 64>}, {pipeline_mode = #tpu.pipeline_mode<synchronous>, transform_indices = @transform_2, window_bounds = array<i64: 1, 64>}, {transform_indices = @transform_3, window_bounds = array<i64: 256, 64>}, {pipeline_mode = #tpu.pipeline_mode<synchronous>, transform_indices = @transform_4, window_bounds = array<i64: 1, 64>}, {pipeline_mode = #tpu.pipeline_mode<synchronous>, transform_indices = @transform_5, window_bounds = array<i64: 1, 64>}, {pipeline_mode = #tpu.pipeline_mode<synchronous>, transform_indices = @transform_6, window_bounds = array<i64: 64, 128>}, {pipeline_mode = #tpu.pipeline_mode<synchronous>, transform_indices = @transform_7, window_bounds = array<i64: 1, 128>}, {pipeline_mode = #tpu.pipeline_mode<synchronous>, transform_indices = @transform_8, window_bounds = array<i64: 128, 64>}, {pipeline_mode = #tpu.pipeline_mode<synchronous>, transform_indices = @transform_9, window_bounds = array<i64: 1, 64>}, {pipeline_mode = #tpu.pipeline_mode<synchronous>, transform_indices = @transform_10, window_bounds = array<i64: 1, 64>}, {pipeline_mode = #tpu.pipeline_mode<synchronous>, transform_indices = @transform_11, window_bounds = array<i64: 1, 64>}, {transform_indices = @transform_12, window_bounds = array<i64: 256, 64>}]} {
    %c0 = arith.constant 0 : index
    %c0_0 = arith.constant 0 : index
    %0 = vector.load %arg1[%c0, %c0_0] : memref<256x64xbf16, #tpu.memory_space<vmem>>, vector<256x64xbf16>
    %c0_1 = arith.constant 0 : index
    %c0_2 = arith.constant 0 : index
    %1 = vector.load %arg2[%c0_1, %c0_2] : memref<64x64xbf16, #tpu.memory_space<vmem>>, vector<64x64xbf16>
    %cst = arith.constant dense<0.000000e+00> : vector<256x64xf32>
    %2 = tpu.matmul %0, %1, %cst {dimension_numbers = #tpu.dot_dimension_numbers<[1], [0], [0], [1], [0, 0, 1, 1], [], []>} : vector<256x64xbf16>, vector<64x64xbf16>, vector<256x64xf32> -> vector<256x64xf32>
    %c0_3 = arith.constant 0 : index
    %c0_4 = arith.constant 0 : index
    %3 = vector.load %arg3[%c0_3, %c0_4] : memref<1x64xf32, #tpu.memory_space<vmem>>, vector<1x64xf32>
    %4 = vector.broadcast %3 : vector<1x64xf32> to vector<256x64xf32>
    %5 = arith.addf %2, %4 : vector<256x64xf32>
    %c0_5 = arith.constant 0 : index
    %c0_6 = arith.constant 0 : index
    %6 = vector.load %arg4[%c0_5, %c0_6] : memref<256x64xbf16, #tpu.memory_space<vmem>>, vector<256x64xbf16>
    %7 = arith.extf %6 : vector<256x64xbf16> to vector<256x64xf32>
    %8 = arith.addf %5, %7 : vector<256x64xf32>
    %c0_7 = arith.constant 0 : index
    %c0_8 = arith.constant 0 : index
    %9 = vector.load %arg5[%c0_7, %c0_8] : memref<1x64xf32, #tpu.memory_space<vmem>>, vector<1x64xf32>
    %c0_9 = arith.constant 0 : index
    %c0_10 = arith.constant 0 : index
    %10 = vector.load %arg6[%c0_9, %c0_10] : memref<1x64xf32, #tpu.memory_space<vmem>>, vector<1x64xf32>
    %cst_11 = arith.constant dense<0.000000e+00> : vector<256xf32>
    %11 = vector.multi_reduction <add>, %8, %cst_11 [1] : vector<256x64xf32> to vector<256xf32>
    %12 = vector.shape_cast %11 : vector<256xf32> to vector<256x1xf32>
    %cst_12 = arith.constant 6.400000e+01 : f32
    %13 = vector.broadcast %cst_12 : f32 to vector<256x1xf32>
    %14 = arith.divf %12, %13 : vector<256x1xf32>
    %15 = vector.broadcast %14 : vector<256x1xf32> to vector<256x64xf32>
    %16 = arith.subf %8, %15 : vector<256x64xf32>
    %17 = arith.mulf %16, %16 : vector<256x64xf32>
    %cst_13 = arith.constant dense<0.000000e+00> : vector<256xf32>
    %18 = vector.multi_reduction <add>, %17, %cst_13 [1] : vector<256x64xf32> to vector<256xf32>
    %19 = vector.shape_cast %18 : vector<256xf32> to vector<256x1xf32>
    %cst_14 = arith.constant 6.400000e+01 : f32
    %20 = vector.broadcast %cst_14 : f32 to vector<256x1xf32>
    %21 = arith.divf %19, %20 : vector<256x1xf32>
    %cst_15 = arith.constant 9.99999974E-6 : f32
    %22 = vector.broadcast %cst_15 : f32 to vector<256x1xf32>
    %23 = arith.addf %21, %22 : vector<256x1xf32>
    %24 = math.rsqrt %23 : vector<256x1xf32>
    %25 = vector.broadcast %24 : vector<256x1xf32> to vector<256x64xf32>
    %26 = arith.mulf %16, %25 : vector<256x64xf32>
    %27 = vector.broadcast %9 : vector<1x64xf32> to vector<256x64xf32>
    %28 = arith.mulf %26, %27 : vector<256x64xf32>
    %29 = vector.broadcast %10 : vector<1x64xf32> to vector<256x64xf32>
    %30 = arith.addf %28, %29 : vector<256x64xf32>
    %31 = arith.truncf %30 : vector<256x64xf32> to vector<256x64xbf16>
    %c0_16 = arith.constant 0 : index
    %c0_17 = arith.constant 0 : index
    %32 = vector.load %arg7[%c0_16, %c0_17] : memref<64x128xbf16, #tpu.memory_space<vmem>>, vector<64x128xbf16>
    %cst_18 = arith.constant dense<0.000000e+00> : vector<256x128xf32>
    %33 = tpu.matmul %31, %32, %cst_18 {dimension_numbers = #tpu.dot_dimension_numbers<[1], [0], [0], [1], [0, 0, 1, 1], [], []>} : vector<256x64xbf16>, vector<64x128xbf16>, vector<256x128xf32> -> vector<256x128xf32>
    %c0_19 = arith.constant 0 : index
    %c0_20 = arith.constant 0 : index
    %34 = vector.load %arg8[%c0_19, %c0_20] : memref<1x128xf32, #tpu.memory_space<vmem>>, vector<1x128xf32>
    %35 = vector.broadcast %34 : vector<1x128xf32> to vector<256x128xf32>
    %36 = arith.addf %33, %35 : vector<256x128xf32>
    %cst_21 = arith.constant 5.000000e-01 : f32
    %37 = vector.broadcast %cst_21 : f32 to vector<256x128xf32>
    %38 = arith.mulf %37, %36 : vector<256x128xf32>
    %cst_22 = arith.constant 4.471500e-02 : f32
    %39 = vector.broadcast %cst_22 : f32 to vector<256x128xf32>
    %40 = arith.mulf %39, %36 : vector<256x128xf32>
    %41 = arith.mulf %40, %36 : vector<256x128xf32>
    %42 = arith.mulf %41, %36 : vector<256x128xf32>
    %43 = arith.addf %36, %42 : vector<256x128xf32>
    %cst_23 = arith.constant 0.797884583 : f32
    %44 = vector.broadcast %cst_23 : f32 to vector<256x128xf32>
    %45 = arith.mulf %44, %43 : vector<256x128xf32>
    %46 = math.tanh %45 : vector<256x128xf32>
    %cst_24 = arith.constant 1.000000e+00 : f32
    %47 = vector.broadcast %cst_24 : f32 to vector<256x128xf32>
    %48 = arith.addf %47, %46 : vector<256x128xf32>
    %49 = arith.mulf %38, %48 : vector<256x128xf32>
    %50 = arith.truncf %49 : vector<256x128xf32> to vector<256x128xbf16>
    %c0_25 = arith.constant 0 : index
    %c0_26 = arith.constant 0 : index
    %51 = vector.load %arg9[%c0_25, %c0_26] : memref<128x64xbf16, #tpu.memory_space<vmem>>, vector<128x64xbf16>
    %cst_27 = arith.constant dense<0.000000e+00> : vector<256x64xf32>
    %52 = tpu.matmul %50, %51, %cst_27 {dimension_numbers = #tpu.dot_dimension_numbers<[1], [0], [0], [1], [0, 0, 1, 1], [], []>} : vector<256x128xbf16>, vector<128x64xbf16>, vector<256x64xf32> -> vector<256x64xf32>
    %c0_28 = arith.constant 0 : index
    %c0_29 = arith.constant 0 : index
    %53 = vector.load %arg10[%c0_28, %c0_29] : memref<1x64xf32, #tpu.memory_space<vmem>>, vector<1x64xf32>
    %54 = vector.broadcast %53 : vector<1x64xf32> to vector<256x64xf32>
    %55 = arith.addf %52, %54 : vector<256x64xf32>
    %56 = arith.addf %55, %30 : vector<256x64xf32>
    %c0_30 = arith.constant 0 : index
    %c0_31 = arith.constant 0 : index
    %57 = vector.load %arg11[%c0_30, %c0_31] : memref<1x64xf32, #tpu.memory_space<vmem>>, vector<1x64xf32>
    %c0_32 = arith.constant 0 : index
    %c0_33 = arith.constant 0 : index
    %58 = vector.load %arg12[%c0_32, %c0_33] : memref<1x64xf32, #tpu.memory_space<vmem>>, vector<1x64xf32>
    %cst_34 = arith.constant dense<0.000000e+00> : vector<256xf32>
    %59 = vector.multi_reduction <add>, %56, %cst_34 [1] : vector<256x64xf32> to vector<256xf32>
    %60 = vector.shape_cast %59 : vector<256xf32> to vector<256x1xf32>
    %cst_35 = arith.constant 6.400000e+01 : f32
    %61 = vector.broadcast %cst_35 : f32 to vector<256x1xf32>
    %62 = arith.divf %60, %61 : vector<256x1xf32>
    %63 = vector.broadcast %62 : vector<256x1xf32> to vector<256x64xf32>
    %64 = arith.subf %56, %63 : vector<256x64xf32>
    %65 = arith.mulf %64, %64 : vector<256x64xf32>
    %cst_36 = arith.constant dense<0.000000e+00> : vector<256xf32>
    %66 = vector.multi_reduction <add>, %65, %cst_36 [1] : vector<256x64xf32> to vector<256xf32>
    %67 = vector.shape_cast %66 : vector<256xf32> to vector<256x1xf32>
    %cst_37 = arith.constant 6.400000e+01 : f32
    %68 = vector.broadcast %cst_37 : f32 to vector<256x1xf32>
    %69 = arith.divf %67, %68 : vector<256x1xf32>
    %cst_38 = arith.constant 9.99999974E-6 : f32
    %70 = vector.broadcast %cst_38 : f32 to vector<256x1xf32>
    %71 = arith.addf %69, %70 : vector<256x1xf32>
    %72 = math.rsqrt %71 : vector<256x1xf32>
    %73 = vector.broadcast %72 : vector<256x1xf32> to vector<256x64xf32>
    %74 = arith.mulf %64, %73 : vector<256x64xf32>
    %75 = vector.broadcast %57 : vector<1x64xf32> to vector<256x64xf32>
    %76 = arith.mulf %74, %75 : vector<256x64xf32>
    %77 = vector.broadcast %58 : vector<1x64xf32> to vector<256x64xf32>
    %78 = arith.addf %76, %77 : vector<256x64xf32>
    %79 = arith.truncf %78 : vector<256x64xf32> to vector<256x64xbf16>
    %c0_39 = arith.constant 0 : index
    %c0_40 = arith.constant 0 : index
    %80 = vector.load %arg13[%c0_39, %c0_40] : memref<256x64xbf16, #tpu.memory_space<vmem>>, vector<256x64xbf16>
    tpu.vector_store %arg13[%c0_39, %c0_40], %79 {strides = array<i32>} : memref<256x64xbf16, #tpu.memory_space<vmem>>, vector<256x64xbf16>,
    return
  }
  func.func @transform_0(%arg0: i32) -> (i32, i32) {
    %c0_i32 = arith.constant 0 : i32
    %c0_i32_0 = arith.constant 0 : i32
    return %arg0, %c0_i32 : i32, i32
  }
  func.func @transform_1(%arg0: i32) -> (i32, i32) {
    %c0_i32 = arith.constant 0 : i32
    %c0_i32_0 = arith.constant 0 : i32
    %c0_i32_1 = arith.constant 0 : i32
    return %c0_i32, %c0_i32_0 : i32, i32
  }
  func.func @transform_2(%arg0: i32) -> (i32, i32) {
    %c0_i32 = arith.constant 0 : i32
    %c0_i32_0 = arith.constant 0 : i32
    %c0_i32_1 = arith.constant 0 : i32
    return %c0_i32, %c0_i32_0 : i32, i32
  }
  func.func @transform_3(%arg0: i32) -> (i32, i32) {
    %c0_i32 = arith.constant 0 : i32
    %c0_i32_0 = arith.constant 0 : i32
    return %arg0, %c0_i32 : i32, i32
  }
  func.func @transform_4(%arg0: i32) -> (i32, i32) {
    %c0_i32 = arith.constant 0 : i32
    %c0_i32_0 = arith.constant 0 : i32
    %c0_i32_1 = arith.constant 0 : i32
    return %c0_i32, %c0_i32_0 : i32, i32
  }
  func.func @transform_5(%arg0: i32) -> (i32, i32) {
    %c0_i32 = arith.constant 0 : i32
    %c0_i32_0 = arith.constant 0 : i32
    %c0_i32_1 = arith.constant 0 : i32
    return %c0_i32, %c0_i32_0 : i32, i32
  }
  func.func @transform_6(%arg0: i32) -> (i32, i32) {
    %c0_i32 = arith.constant 0 : i32
    %c0_i32_0 = arith.constant 0 : i32
    %c0_i32_1 = arith.constant 0 : i32
    return %c0_i32, %c0_i32_0 : i32, i32
  }
  func.func @transform_7(%arg0: i32) -> (i32, i32) {
    %c0_i32 = arith.constant 0 : i32
    %c0_i32_0 = arith.constant 0 : i32
    %c0_i32_1 = arith.constant 0 : i32
    return %c0_i32, %c0_i32_0 : i32, i32
  }
  func.func @transform_8(%arg0: i32) -> (i32, i32) {
    %c0_i32 = arith.constant 0 : i32
    %c0_i32_0 = arith.constant 0 : i32
    %c0_i32_1 = arith.constant 0 : i32
    return %c0_i32, %c0_i32_0 : i32, i32
  }
  func.func @transform_9(%arg0: i32) -> (i32, i32) {
    %c0_i32 = arith.constant 0 : i32
    %c0_i32_0 = arith.constant 0 : i32
    %c0_i32_1 = arith.constant 0 : i32
    return %c0_i32, %c0_i32_0 : i32, i32
  }
  func.func @transform_10(%arg0: i32) -> (i32, i32) {
    %c0_i32 = arith.constant 0 : i32
    %c0_i32_0 = arith.constant 0 : i32
    %c0_i32_1 = arith.constant 0 : i32
    return %c0_i32, %c0_i32_0 : i32, i32
  }
  func.func @transform_11(%arg0: i32) -> (i32, i32) {
    %c0_i32 = arith.constant 0 : i32
    %c0_i32_0 = arith.constant 0 : i32
    %c0_i32_1 = arith.constant 0 : i32
    return %c0_i32, %c0_i32_0 : i32, i32
  }
  func.func @transform_12(%arg0: i32) -> (i32, i32) {
    %c0_i32 = arith.constant 0 : i32
    %c0_i32_0 = arith.constant 0 : i32
    return %arg0, %c0_i32 : i32, i32
  }
}

</mosaic_0001>

<llo_original>
// kernel: custom-call
$region0: #{custom-call}
  %s0 = inlined_call_operand.vmem [shape: u32[256], index: 0, kind: output, shape index: {}]

// kernel: flash_roberta_forward.7
$region0: #{flash_roberta_forward.7}
  #allocation0 [shape = 'u32[]', space=smem, size = 0x4, offset = 0x4, fixed_abs, tag = 'smem constant byte address 0x4 - core index']
  #allocation1 [shape = 'u32[144,128]{1,0:T(1,128)}', space=vmem, size = 0x12000, scoped, tag = 'internal scratch']
  %s0 = inlined_call_operand.vmem [shape: f32[256,64], index: 0, kind: input, shape index: {}]
  %s1 = inlined_call_operand.vmem [shape: f32[256,64], index: 1, kind: input, shape index: {}]
  %s2 = inlined_call_operand.vmem [shape: f32[1,64], index: 2, kind: input, shape index: {}]
  %s3 = inlined_call_operand.vmem [shape: f32[1,64], index: 3, kind: input, shape index: {}]
  %s4 = inlined_call_operand.vmem [shape: bf16[256,64], index: 4, kind: output, shape index: {}]
  %s5 = sld [smem:[#allocation0]]
  $region26: #{flash_roberta_forward.7} parent=0
    _
  %s7 = ssub.s32 1, %s5
  %s8 = scalar_select 0, %s7, %s5
  // Predicated region
  $region2: #{flash_roberta_forward.7} parent=0 // pred_check
    _
  $region3: #{flash_roberta_forward.7} parent=0 // pred_check_branch
    %10 = sbr.rel (0) target = $region5
  $region4: #{flash_roberta_forward.7} parent=0 // pred_region
    _
  $region5: #{flash_roberta_forward.7} parent=0 // pred_fallthru
    _
  // Predicated region
  $region6: #{flash_roberta_forward.7} parent=0 // pred_check
    _
  $region7: #{flash_roberta_forward.7} parent=0 // pred_check_branch
    %12 = sbr.rel (0) target = $region9
  $region8: #{flash_roberta_forward.7} parent=0 // pred_region
    _
  $region9: #{flash_roberta_forward.7} parent=0 // pred_fallthru
    _
  // Predicated region
  $region10: #{flash_roberta_forward.7} parent=0 // pred_check
    _
  $region11: #{flash_roberta_forward.7} parent=0 // pred_check_branch
    %14 = sbr.rel (0) target = $region13
  $region12: #{flash_roberta_forward.7} parent=0 // pred_region
    _
  $region13: #{flash_roberta_forward.7} parent=0 // pred_fallthru
    _
  // Predicated region
  $region14: #{flash_roberta_forward.7} parent=0 // pred_check
    _
  $region15: #{flash_roberta_forward.7} parent=0 // pred_check_branch
    %16 = sbr.rel (0) target = $region17
  $region16: #{flash_roberta_forward.7} parent=0 // pred_region
    _
  $region17: #{flash_roberta_forward.7} parent=0 // pred_fallthru
    _
  %v17 = vld [vmem:[%s0] sm:$0xff]
  %v18 = vld [vmem:[%s0 + $0x8] sm:$0xff]
  %v19 = vld [vmem:[%s0 + $0x10] sm:$0xff]
  %v20 = vld [vmem:[%s0 + $0x18] sm:$0xff]
  %v21 = vld [vmem:[%s0 + $0x20] sm:$0xff]
  %v22 = vld [vmem:[%s0 + $0x28] sm:$0xff]
  %v23 = vld [vmem:[%s0 + $0x30] sm:$0xff]
  %v24 = vld [vmem:[%s0 + $0x38] sm:$0xff]
  %v25 = vld [vmem:[%s0 + $0x40] sm:$0xff]
  %v26 = vld [vmem:[%s0 + $0x48] sm:$0xff]
  %v27 = vld [vmem:[%s0 + $0x50] sm:$0xff]
  %v28 = vld [vmem:[%s0 + $0x58] sm:$0xff]
  %v29 = vld [vmem:[%s0 + $0x60] sm:$0xff]
  %v30 = vld [vmem:[%s0 + $0x68] sm:$0xff]
  %v31 = vld [vmem:[%s0 + $0x70] sm:$0xff]
  %v32 = vld [vmem:[%s0 + $0x78] sm:$0xff]
  %v33 = vld [vmem:[%s0 + $0x80] sm:$0xff]
  %v34 = vld [vmem:[%s0 + $0x88] sm:$0xff]
  %v35 = vld [vmem:[%s0 + $0x90] sm:$0xff]
  %v36 = vld [vmem:[%s0 + $0x98] sm:$0xff]
  %v37 = vld [vmem:[%s0 + $0xa0] sm:$0xff]
  %v38 = vld [vmem:[%s0 + $0xa8] sm:$0xff]
  %v39 = vld [vmem:[%s0 + $0xb0] sm:$0xff]
  %v40 = vld [vmem:[%s0 + $0xb8] sm:$0xff]
  %v41 = vld [vmem:[%s0 + $0xc0] sm:$0xff]
  %v42 = vld [vmem:[%s0 + $0xc8] sm:$0xff]
  %v43 = vld [vmem:[%s0 + $0xd0] sm:$0xff]
  %v44 = vld [vmem:[%s0 + $0xd8] sm:$0xff]
  %v45 = vld [vmem:[%s0 + $0xe0] sm:$0xff]
  %v46 = vld [vmem:[%s0 + $0xe8] sm:$0xff]
  %v47 = vld [vmem:[%s0 + $0xf0] sm:$0xff]
  %v48 = vld [vmem:[%s0 + $0xf8] sm:$0xff]
  %v49 = vld [vmem:[%s1] sm:$0xff]
  %v50 = vld [vmem:[%s1 + $0x8] sm:$0xff]
  %v51 = vld [vmem:[%s1 + $0x10] sm:$0xff]
  %v52 = vld [vmem:[%s1 + $0x18] sm:$0xff]
  %v53 = vld [vmem:[%s1 + $0x20] sm:$0xff]
  %v54 = vld [vmem:[%s1 + $0x28] sm:$0xff]
  %v55 = vld [vmem:[%s1 + $0x30] sm:$0xff]
  %v56 = vld [vmem:[%s1 + $0x38] sm:$0xff]
  %v57 = vld [vmem:[%s1 + $0x40] sm:$0xff]
  %v58 = vld [vmem:[%s1 + $0x48] sm:$0xff]
  %v59 = vld [vmem:[%s1 + $0x50] sm:$0xff]
  %v60 = vld [vmem:[%s1 + $0x58] sm:$0xff]
  %v61 = vld [vmem:[%s1 + $0x60] sm:$0xff]
  %v62 = vld [vmem:[%s1 + $0x68] sm:$0xff]
  %v63 = vld [vmem:[%s1 + $0x70] sm:$0xff]
  %v64 = vld [vmem:[%s1 + $0x78] sm:$0xff]
  %v65 = vld [vmem:[%s1 + $0x80] sm:$0xff]
  %v66 = vld [vmem:[%s1 + $0x88] sm:$0xff]
  %v67 = vld [vmem:[%s1 + $0x90] sm:$0xff]
  %v68 = vld [vmem:[%s1 + $0x98] sm:$0xff]
  %v69 = vld [vmem:[%s1 + $0xa0] sm:$0xff]
  %v70 = vld [vmem:[%s1 + $0xa8] sm:$0xff]
  %v71 = vld [vmem:[%s1 + $0xb0] sm:$0xff]
  %v72 = vld [vmem:[%s1 + $0xb8] sm:$0xff]
  %v73 = vld [vmem:[%s1 + $0xc0] sm:$0xff]
  %v74 = vld [vmem:[%s1 + $0xc8] sm:$0xff]
  %v75 = vld [vmem:[%s1 + $0xd0] sm:$0xff]
  %v76 = vld [vmem:[%s1 + $0xd8] sm:$0xff]
  %v77 = vld [vmem:[%s1 + $0xe0] sm:$0xff]
  %v78 = vld [vmem:[%s1 + $0xe8] sm:$0xff]
  %v79 = vld [vmem:[%s1 + $0xf0] sm:$0xff]
  %v80 = vld [vmem:[%s1 + $0xf8] sm:$0xff]
  %v81 = vadd.f32 %v17, %v49
  %v82 = vadd.f32 %v18, %v50
  %v83 = vadd.f32 %v19, %v51
  %v84 = vadd.f32 %v20, %v52
  %v85 = vadd.f32 %v21, %v53
  %v86 = vadd.f32 %v22, %v54
  %v87 = vadd.f32 %v23, %v55
  %v88 = vadd.f32 %v24, %v56
  %v89 = vadd.f32 %v25, %v57
  %v90 = vadd.f32 %v26, %v58
  %v91 = vadd.f32 %v27, %v59
  %v92 = vadd.f32 %v28, %v60
  %v93 = vadd.f32 %v29, %v61
  %v94 = vadd.f32 %v30, %v62
  %v95 = vadd.f32 %v31, %v63
  %v96 = vadd.f32 %v32, %v64
  %v97 = vadd.f32 %v33, %v65
  %v98 = vadd.f32 %v34, %v66
  %v99 = vadd.f32 %v35, %v67
  %v100 = vadd.f32 %v36, %v68
  %v101 = vadd.f32 %v37, %v69
  %v102 = vadd.f32 %v38, %v70
  %v103 = vadd.f32 %v39, %v71
  %v104 = vadd.f32 %v40, %v72
  %v105 = vadd.f32 %v41, %v73
  %v106 = vadd.f32 %v42, %v74
  %v107 = vadd.f32 %v43, %v75
  %v108 = vadd.f32 %v44, %v76
  %v109 = vadd.f32 %v45, %v77
  %v110 = vadd.f32 %v46, %v78
  %v111 = vadd.f32 %v47, %v79
  %v112 = vadd.f32 %v48, %v80
  %v113 = vld [vmem:[%s2] sm:$0x1]
  %v114 = vld [vmem:[%s3] sm:$0x1]
  %vm115 = vcmask 523264
  %v116 = vsel %vm115, %v81, 0.0
  %117 = vadd.xlane.f32.xlu0 %v116
  %v118 = vpop.xlane.xlu0 %117
  %v119 = vsel %vm115, %v82, 0.0
  %120 = vadd.xlane.f32.xlu0 %v119
  %v121 = vpop.xlane.xlu0 %120
  %v122 = vsel %vm115, %v83, 0.0
  %123 = vadd.xlane.f32.xlu0 %v122
  %v124 = vpop.xlane.xlu0 %123
  %v125 = vsel %vm115, %v84, 0.0
  %126 = vadd.xlane.f32.xlu0 %v125
  %v127 = vpop.xlane.xlu0 %126
  %v128 = vsel %vm115, %v85, 0.0
  %129 = vadd.xlane.f32.xlu0 %v128
  %v130 = vpop.xlane.xlu0 %129
  %v131 = vsel %vm115, %v86, 0.0
  %132 = vadd.xlane.f32.xlu0 %v131
  %v133 = vpop.xlane.xlu0 %132
  %v134 = vsel %vm115, %v87, 0.0
  %135 = vadd.xlane.f32.xlu0 %v134
  %v136 = vpop.xlane.xlu0 %135
  %v137 = vsel %vm115, %v88, 0.0
  %138 = vadd.xlane.f32.xlu0 %v137
  %v139 = vpop.xlane.xlu0 %138
  %v140 = vsel %vm115, %v89, 0.0
  %141 = vadd.xlane.f32.xlu0 %v140
  %v142 = vpop.xlane.xlu0 %141
  %v143 = vsel %vm115, %v90, 0.0
  %144 = vadd.xlane.f32.xlu0 %v143
  %v145 = vpop.xlane.xlu0 %144
  %v146 = vsel %vm115, %v91, 0.0
  %147 = vadd.xlane.f32.xlu0 %v146
  %v148 = vpop.xlane.xlu0 %147
  %v149 = vsel %vm115, %v92, 0.0
  %150 = vadd.xlane.f32.xlu0 %v149
  %v151 = vpop.xlane.xlu0 %150
  %v152 = vsel %vm115, %v93, 0.0
  %153 = vadd.xlane.f32.xlu0 %v152
  %v154 = vpop.xlane.xlu0 %153
  %v155 = vsel %vm115, %v94, 0.0
  %156 = vadd.xlane.f32.xlu0 %v155
  %v157 = vpop.xlane.xlu0 %156
  %v158 = vsel %vm115, %v95, 0.0
  %159 = vadd.xlane.f32.xlu0 %v158
  %v160 = vpop.xlane.xlu0 %159
  %v161 = vsel %vm115, %v96, 0.0
  %162 = vadd.xlane.f32.xlu0 %v161
  %v163 = vpop.xlane.xlu0 %162
  %v164 = vsel %vm115, %v97, 0.0
  %165 = vadd.xlane.f32.xlu0 %v164
  %v166 = vpop.xlane.xlu0 %165
  %v167 = vsel %vm115, %v98, 0.0
  %168 = vadd.xlane.f32.xlu0 %v167
  %v169 = vpop.xlane.xlu0 %168
  %v170 = vsel %vm115, %v99, 0.0
  %171 = vadd.xlane.f32.xlu0 %v170
  %v172 = vpop.xlane.xlu0 %171
  %v173 = vsel %vm115, %v100, 0.0
  %174 = vadd.xlane.f32.xlu0 %v173
  %v175 = vpop.xlane.xlu0 %174
  %v176 = vsel %vm115, %v101, 0.0
  %177 = vadd.xlane.f32.xlu0 %v176
  %v178 = vpop.xlane.xlu0 %177
  %v179 = vsel %vm115, %v102, 0.0
  %180 = vadd.xlane.f32.xlu0 %v179
  %v181 = vpop.xlane.xlu0 %180
  %v182 = vsel %vm115, %v103, 0.0
  %183 = vadd.xlane.f32.xlu0 %v182
  %v184 = vpop.xlane.xlu0 %183
  %v185 = vsel %vm115, %v104, 0.0
  %186 = vadd.xlane.f32.xlu0 %v185
  %v187 = vpop.xlane.xlu0 %186
  %v188 = vsel %vm115, %v105, 0.0
  %189 = vadd.xlane.f32.xlu0 %v188
  %v190 = vpop.xlane.xlu0 %189
  %v191 = vsel %vm115, %v106, 0.0
  %192 = vadd.xlane.f32.xlu0 %v191
  %v193 = vpop.xlane.xlu0 %192
  %v194 = vsel %vm115, %v107, 0.0
  %195 = vadd.xlane.f32.xlu0 %v194
  %v196 = vpop.xlane.xlu0 %195
  %v197 = vsel %vm115, %v108, 0.0
  %198 = vadd.xlane.f32.xlu0 %v197
  %v199 = vpop.xlane.xlu0 %198
  %v200 = vsel %vm115, %v109, 0.0
  %201 = vadd.xlane.f32.xlu0 %v200
  %v202 = vpop.xlane.xlu0 %201
  %v203 = vsel %vm115, %v110, 0.0
  %204 = vadd.xlane.f32.xlu0 %v203
  %v205 = vpop.xlane.xlu0 %204
  %v206 = vsel %vm115, %v111, 0.0
  %207 = vadd.xlane.f32.xlu0 %v206
  %v208 = vpop.xlane.xlu0 %207
  %v209 = vsel %vm115, %v112, 0.0
  %210 = vadd.xlane.f32.xlu0 %v209
  %v211 = vpop.xlane.xlu0 %210
  %v212 = vrcp.pop 64.0
  %v213 = vmul.f32 %v118, %v212
  %v214 = vmul.f32 %v121, %v212
  %v215 = vmul.f32 %v124, %v212
  %v216 = vmul.f32 %v127, %v212
  %v217 = vmul.f32 %v130, %v212
  %v218 = vmul.f32 %v133, %v212
  %v219 = vmul.f32 %v136, %v212
  %v220 = vmul.f32 %v139, %v212
  %v221 = vmul.f32 %v142, %v212
  %v222 = vmul.f32 %v145, %v212
  %v223 = vmul.f32 %v148, %v212
  %v224 = vmul.f32 %v151, %v212
  %v225 = vmul.f32 %v154, %v212
  %v226 = vmul.f32 %v157, %v212
  %v227 = vmul.f32 %v160, %v212
  %v228 = vmul.f32 %v163, %v212
  %v229 = vmul.f32 %v166, %v212
  %v230 = vmul.f32 %v169, %v212
  %v231 = vmul.f32 %v172, %v212
  %v232 = vmul.f32 %v175, %v212
  %v233 = vmul.f32 %v178, %v212
  %v234 = vmul.f32 %v181, %v212
  %v235 = vmul.f32 %v184, %v212
  %v236 = vmul.f32 %v187, %v212
  %v237 = vmul.f32 %v190, %v212
  %v238 = vmul.f32 %v193, %v212
  %v239 = vmul.f32 %v196, %v212
  %v240 = vmul.f32 %v199, %v212
  %v241 = vmul.f32 %v202, %v212
  %v242 = vmul.f32 %v205, %v212
  %v243 = vmul.f32 %v208, %v212
  %v244 = vmul.f32 %v211, %v212
  %v245 = vsub.f32 %v81, %v213
  %v246 = vsub.f32 %v82, %v214
  %v247 = vsub.f32 %v83, %v215
  %v248 = vsub.f32 %v84, %v216
  %v249 = vsub.f32 %v85, %v217
  %v250 = vsub.f32 %v86, %v218
  %v251 = vsub.f32 %v87, %v219
  %v252 = vsub.f32 %v88, %v220
  %v253 = vsub.f32 %v89, %v221
  %v254 = vsub.f32 %v90, %v222
  %v255 = vsub.f32 %v91, %v223
  %v256 = vsub.f32 %v92, %v224
  %v257 = vsub.f32 %v93, %v225
  %v258 = vsub.f32 %v94, %v226
  %v259 = vsub.f32 %v95, %v227
  %v260 = vsub.f32 %v96, %v228
  %v261 = vsub.f32 %v97, %v229
  %v262 = vsub.f32 %v98, %v230
  %v263 = vsub.f32 %v99, %v231
  %v264 = vsub.f32 %v100, %v232
  %v265 = vsub.f32 %v101, %v233
  %v266 = vsub.f32 %v102, %v234
  %v267 = vsub.f32 %v103, %v235
  %v268 = vsub.f32 %v104, %v236
  %v269 = vsub.f32 %v105, %v237
  %v270 = vsub.f32 %v106, %v238
  %v271 = vsub.f32 %v107, %v239
  %v272 = vsub.f32 %v108, %v240
  %v273 = vsub.f32 %v109, %v241
  %v274 = vsub.f32 %v110, %v242
  %v275 = vsub.f32 %v111, %v243
  %v276 = vsub.f32 %v112, %v244
  %v277 = vmul.f32 %v245, %v245
  %v278 = vmul.f32 %v246, %v246
  %v279 = vmul.f32 %v247, %v247
  %v280 = vmul.f32 %v248, %v248
  %v281 = vmul.f32 %v249, %v249
  %v282 = vmul.f32 %v250, %v250
  %v283 = vmul.f32 %v251, %v251
  %v284 = vmul.f32 %v252, %v252
  %v285 = vmul.f32 %v253, %v253
  %v286 = vmul.f32 %v254, %v254
  %v287 = vmul.f32 %v255, %v255
  %v288 = vmul.f32 %v256, %v256
  %v289 = vmul.f32 %v257, %v257
  %v290 = vmul.f32 %v258, %v258
  %v291 = vmul.f32 %v259, %v259
  %v292 = vmul.f32 %v260, %v260
  %v293 = vmul.f32 %v261, %v261
  %v294 = vmul.f32 %v262, %v262
  %v295 = vmul.f32 %v263, %v263
  %v296 = vmul.f32 %v264, %v264
  %v297 = vmul.f32 %v265, %v265
  %v298 = vmul.f32 %v266, %v266
  %v299 = vmul.f32 %v267, %v267
  %v300 = vmul.f32 %v268, %v268
  %v301 = vmul.f32 %v269, %v269
  %v302 = vmul.f32 %v270, %v270
  %v303 = vmul.f32 %v271, %v271
  %v304 = vmul.f32 %v272, %v272
  %v305 = vmul.f32 %v273, %v273
  %v306 = vmul.f32 %v274, %v274
  %v307 = vmul.f32 %v275, %v275
  %v308 = vmul.f32 %v276, %v276
  %v309 = vsel %vm115, %v277, 0.0
  %310 = vadd.xlane.f32.xlu0 %v309
  %v311 = vpop.xlane.xlu0 %310
  %v312 = vsel %vm115, %v278, 0.0
  %313 = vadd.xlane.f32.xlu0 %v312
  %v314 = vpop.xlane.xlu0 %313
  %v315 = vsel %vm115, %v279, 0.0
  %316 = vadd.xlane.f32.xlu0 %v315
  %v317 = vpop.xlane.xlu0 %316
  %v318 = vsel %vm115, %v280, 0.0
  %319 = vadd.xlane.f32.xlu0 %v318
  %v320 = vpop.xlane.xlu0 %319
  %v321 = vsel %vm115, %v281, 0.0
  %322 = vadd.xlane.f32.xlu0 %v321
  %v323 = vpop.xlane.xlu0 %322
  %v324 = vsel %vm115, %v282, 0.0
  %325 = vadd.xlane.f32.xlu0 %v324
  %v326 = vpop.xlane.xlu0 %325
  %v327 = vsel %vm115, %v283, 0.0
  %328 = vadd.xlane.f32.xlu0 %v327
  %v329 = vpop.xlane.xlu0 %328
  %v330 = vsel %vm115, %v284, 0.0
  %331 = vadd.xlane.f32.xlu0 %v330
  %v332 = vpop.xlane.xlu0 %331
  %v333 = vsel %vm115, %v285, 0.0
  %334 = vadd.xlane.f32.xlu0 %v333
  %v335 = vpop.xlane.xlu0 %334
  %v336 = vsel %vm115, %v286, 0.0
  %337 = vadd.xlane.f32.xlu0 %v336
  %v338 = vpop.xlane.xlu0 %337
  %v339 = vsel %vm115, %v287, 0.0
  %340 = vadd.xlane.f32.xlu0 %v339
  %v341 = vpop.xlane.xlu0 %340
  %v342 = vsel %vm115, %v288, 0.0
  %343 = vadd.xlane.f32.xlu0 %v342
  %v344 = vpop.xlane.xlu0 %343
  %v345 = vsel %vm115, %v289, 0.0
  %346 = vadd.xlane.f32.xlu0 %v345
  %v347 = vpop.xlane.xlu0 %346
  %v348 = vsel %vm115, %v290, 0.0
  %349 = vadd.xlane.f32.xlu0 %v348
  %v350 = vpop.xlane.xlu0 %349
  %v351 = vsel %vm115, %v291, 0.0
  %352 = vadd.xlane.f32.xlu0 %v351
  %v353 = vpop.xlane.xlu0 %352
  %v354 = vsel %vm115, %v292, 0.0
  %355 = vadd.xlane.f32.xlu0 %v354
  %v356 = vpop.xlane.xlu0 %355
  %v357 = vsel %vm115, %v293, 0.0
  %358 = vadd.xlane.f32.xlu0 %v357
  %v359 = vpop.xlane.xlu0 %358
  %v360 = vsel %vm115, %v294, 0.0
  %361 = vadd.xlane.f32.xlu0 %v360
  %v362 = vpop.xlane.xlu0 %361
  %v363 = vsel %vm115, %v295, 0.0
  %364 = vadd.xlane.f32.xlu0 %v363
  %v365 = vpop.xlane.xlu0 %364
  %v366 = vsel %vm115, %v296, 0.0
  %367 = vadd.xlane.f32.xlu0 %v366
  %v368 = vpop.xlane.xlu0 %367
  %v369 = vsel %vm115, %v297, 0.0
  %370 = vadd.xlane.f32.xlu0 %v369
  %v371 = vpop.xlane.xlu0 %370
  %v372 = vsel %vm115, %v298, 0.0
  %373 = vadd.xlane.f32.xlu0 %v372
  %v374 = vpop.xlane.xlu0 %373
  %v375 = vsel %vm115, %v299, 0.0
  %376 = vadd.xlane.f32.xlu0 %v375
  %v377 = vpop.xlane.xlu0 %376
  %v378 = vsel %vm115, %v300, 0.0
  %379 = vadd.xlane.f32.xlu0 %v378
  %v380 = vpop.xlane.xlu0 %379
  %v381 = vsel %vm115, %v301, 0.0
  %382 = vadd.xlane.f32.xlu0 %v381
  %v383 = vpop.xlane.xlu0 %382
  %v384 = vsel %vm115, %v302, 0.0
  %385 = vadd.xlane.f32.xlu0 %v384
  %v386 = vpop.xlane.xlu0 %385
  %v387 = vsel %vm115, %v303, 0.0
  %388 = vadd.xlane.f32.xlu0 %v387
  %v389 = vpop.xlane.xlu0 %388
  %v390 = vsel %vm115, %v304, 0.0
  %391 = vadd.xlane.f32.xlu0 %v390
  %v392 = vpop.xlane.xlu0 %391
  %v393 = vsel %vm115, %v305, 0.0
  %394 = vadd.xlane.f32.xlu0 %v393
  %v395 = vpop.xlane.xlu0 %394
  %v396 = vsel %vm115, %v306, 0.0
  %397 = vadd.xlane.f32.xlu0 %v396
  %v398 = vpop.xlane.xlu0 %397
  %v399 = vsel %vm115, %v307, 0.0
  %400 = vadd.xlane.f32.xlu0 %v399
  %v401 = vpop.xlane.xlu0 %400
  %v402 = vsel %vm115, %v308, 0.0
  %403 = vadd.xlane.f32.xlu0 %v402
  %v404 = vpop.xlane.xlu0 %403
  %v405 = vmul.f32 %v311, %v212
  %v406 = vmul.f32 %v314, %v212
  %v407 = vmul.f32 %v317, %v212
  %v408 = vmul.f32 %v320, %v212
  %v409 = vmul.f32 %v323, %v212
  %v410 = vmul.f32 %v326, %v212
  %v411 = vmul.f32 %v329, %v212
  %v412 = vmul.f32 %v332, %v212
  %v413 = vmul.f32 %v335, %v212
  %v414 = vmul.f32 %v338, %v212
  %v415 = vmul.f32 %v341, %v212
  %v416 = vmul.f32 %v344, %v212
  %v417 = vmul.f32 %v347, %v212
  %v418 = vmul.f32 %v350, %v212
  %v419 = vmul.f32 %v353, %v212
  %v420 = vmul.f32 %v356, %v212
  %v421 = vmul.f32 %v359, %v212
  %v422 = vmul.f32 %v362, %v212
  %v423 = vmul.f32 %v365, %v212
  %v424 = vmul.f32 %v368, %v212
  %v425 = vmul.f32 %v371, %v212
  %v426 = vmul.f32 %v374, %v212
  %v427 = vmul.f32 %v377, %v212
  %v428 = vmul.f32 %v380, %v212
  %v429 = vmul.f32 %v383, %v212
  %v430 = vmul.f32 %v386, %v212
  %v431 = vmul.f32 %v389, %v212
  %v432 = vmul.f32 %v392, %v212
  %v433 = vmul.f32 %v395, %v212
  %v434 = vmul.f32 %v398, %v212
  %v435 = vmul.f32 %v401, %v212
  %v436 = vmul.f32 %v404, %v212
  %v437 = vadd.f32 %v405, 1e-05
  %v438 = vadd.f32 %v406, 1e-05
  %v439 = vadd.f32 %v407, 1e-05
  %v440 = vadd.f32 %v408, 1e-05
  %v441 = vadd.f32 %v409, 1e-05
  %v442 = vadd.f32 %v410, 1e-05
  %v443 = vadd.f32 %v411, 1e-05
  %v444 = vadd.f32 %v412, 1e-05
  %v445 = vadd.f32 %v413, 1e-05
  %v446 = vadd.f32 %v414, 1e-05
  %v447 = vadd.f32 %v415, 1e-05
  %v448 = vadd.f32 %v416, 1e-05
  %v449 = vadd.f32 %v417, 1e-05
  %v450 = vadd.f32 %v418, 1e-05
  %v451 = vadd.f32 %v419, 1e-05
  %v452 = vadd.f32 %v420, 1e-05
  %v453 = vadd.f32 %v421, 1e-05
  %v454 = vadd.f32 %v422, 1e-05
  %v455 = vadd.f32 %v423, 1e-05
  %v456 = vadd.f32 %v424, 1e-05
  %v457 = vadd.f32 %v425, 1e-05
  %v458 = vadd.f32 %v426, 1e-05
  %v459 = vadd.f32 %v427, 1e-05
  %v460 = vadd.f32 %v428, 1e-05
  %v461 = vadd.f32 %v429, 1e-05
  %v462 = vadd.f32 %v430, 1e-05
  %v463 = vadd.f32 %v431, 1e-05
  %v464 = vadd.f32 %v432, 1e-05
  %v465 = vadd.f32 %v433, 1e-05
  %v466 = vadd.f32 %v434, 1e-05
  %v467 = vadd.f32 %v435, 1e-05
  %v468 = vadd.f32 %v436, 1e-05
  %v469 = vrsqrt.pop %v437
  %v470 = vrsqrt.pop %v438
  %v471 = vrsqrt.pop %v439
  %v472 = vrsqrt.pop %v440
  %v473 = vrsqrt.pop %v441
  %v474 = vrsqrt.pop %v442
  %v475 = vrsqrt.pop %v443
  %v476 = vrsqrt.pop %v444
  %v477 = vrsqrt.pop %v445
  %v478 = vrsqrt.pop %v446
  %v479 = vrsqrt.pop %v447
  %v480 = vrsqrt.pop %v448
  %v481 = vrsqrt.pop %v449
  %v482 = vrsqrt.pop %v450
  %v483 = vrsqrt.pop %v451
  %v484 = vrsqrt.pop %v452
  %v485 = vrsqrt.pop %v453
  %v486 = vrsqrt.pop %v454
  %v487 = vrsqrt.pop %v455
  %v488 = vrsqrt.pop %v456
  %v489 = vrsqrt.pop %v457
  %v490 = vrsqrt.pop %v458
  %v491 = vrsqrt.pop %v459
  %v492 = vrsqrt.pop %v460
  %v493 = vrsqrt.pop %v461
  %v494 = vrsqrt.pop %v462
  %v495 = vrsqrt.pop %v463
  %v496 = vrsqrt.pop %v464
  %v497 = vrsqrt.pop %v465
  %v498 = vrsqrt.pop %v466
  %v499 = vrsqrt.pop %v467
  %v500 = vrsqrt.pop %v468
  %v501 = vmul.f32 %v245, %v469
  %v502 = vmul.f32 %v246, %v470
  %v503 = vmul.f32 %v247, %v471
  %v504 = vmul.f32 %v248, %v472
  %v505 = vmul.f32 %v249, %v473
  %v506 = vmul.f32 %v250, %v474
  %v507 = vmul.f32 %v251, %v475
  %v508 = vmul.f32 %v252, %v476
  %v509 = vmul.f32 %v253, %v477
  %v510 = vmul.f32 %v254, %v478
  %v511 = vmul.f32 %v255, %v479
  %v512 = vmul.f32 %v256, %v480
  %v513 = vmul.f32 %v257, %v481
  %v514 = vmul.f32 %v258, %v482
  %v515 = vmul.f32 %v259, %v483
  %v516 = vmul.f32 %v260, %v484
  %v517 = vmul.f32 %v261, %v485
  %v518 = vmul.f32 %v262, %v486
  %v519 = vmul.f32 %v263, %v487
  %v520 = vmul.f32 %v264, %v488
  %v521 = vmul.f32 %v265, %v489
  %v522 = vmul.f32 %v266, %v490
  %v523 = vmul.f32 %v267, %v491
  %v524 = vmul.f32 %v268, %v492
  %v525 = vmul.f32 %v269, %v493
  %v526 = vmul.f32 %v270, %v494
  %v527 = vmul.f32 %v271, %v495
  %v528 = vmul.f32 %v272, %v496
  %v529 = vmul.f32 %v273, %v497
  %v530 = vmul.f32 %v274, %v498
  %v531 = vmul.f32 %v275, %v499
  %v532 = vmul.f32 %v276, %v500
  %v534 = vlaneseq
  %v535 = vshrl.u32 %v534, 7
  %v536 = vsub.s32 0, %v535
  %v537 = vrot.slane %v113, %v536
  %v539 = vmul.f32 %v501, %v537
  %v540 = vmul.f32 %v502, %v537
  %v541 = vmul.f32 %v503, %v537
  %v542 = vmul.f32 %v504, %v537
  %v543 = vmul.f32 %v505, %v537
  %v544 = vmul.f32 %v506, %v537
  %v545 = vmul.f32 %v507, %v537
  %v546 = vmul.f32 %v508, %v537
  %v547 = vmul.f32 %v509, %v537
  %v548 = vmul.f32 %v510, %v537
  %v549 = vmul.f32 %v511, %v537
  %v550 = vmul.f32 %v512, %v537
  %v551 = vmul.f32 %v513, %v537
  %v552 = vmul.f32 %v514, %v537
  %v553 = vmul.f32 %v515, %v537
  %v554 = vmul.f32 %v516, %v537
  %v555 = vmul.f32 %v517, %v537
  %v556 = vmul.f32 %v518, %v537
  %v557 = vmul.f32 %v519, %v537
  %v558 = vmul.f32 %v520, %v537
  %v559 = vmul.f32 %v521, %v537
  %v560 = vmul.f32 %v522, %v537
  %v561 = vmul.f32 %v523, %v537
  %v562 = vmul.f32 %v524, %v537
  %v563 = vmul.f32 %v525, %v537
  %v564 = vmul.f32 %v526, %v537
  %v565 = vmul.f32 %v527, %v537
  %v566 = vmul.f32 %v528, %v537
  %v567 = vmul.f32 %v529, %v537
  %v568 = vmul.f32 %v530, %v537
  %v569 = vmul.f32 %v531, %v537
  %v570 = vmul.f32 %v532, %v537
  %v572 = vlaneseq
  %v573 = vshrl.u32 %v572, 7
  %v574 = vsub.s32 0, %v573
  %v575 = vrot.slane %v114, %v574
  %v577 = vadd.f32 %v539, %v575
  %v578 = vadd.f32 %v540, %v575
  %v579 = vadd.f32 %v541, %v575
  %v580 = vadd.f32 %v542, %v575
  %v581 = vadd.f32 %v543, %v575
  %v582 = vadd.f32 %v544, %v575
  %v583 = vadd.f32 %v545, %v575
  %v584 = vadd.f32 %v546, %v575
  %v585 = vadd.f32 %v547, %v575
  %v586 = vadd.f32 %v548, %v575
  %v587 = vadd.f32 %v549, %v575
  %v588 = vadd.f32 %v550, %v575
  %v589 = vadd.f32 %v551, %v575
  %v590 = vadd.f32 %v552, %v575
  %v591 = vadd.f32 %v553, %v575
  %v592 = vadd.f32 %v554, %v575
  %v593 = vadd.f32 %v555, %v575
  %v594 = vadd.f32 %v556, %v575
  %v595 = vadd.f32 %v557, %v575
  %v596 = vadd.f32 %v558, %v575
  %v597 = vadd.f32 %v559, %v575
  %v598 = vadd.f32 %v560, %v575
  %v599 = vadd.f32 %v561, %v575
  %v600 = vadd.f32 %v562, %v575
  %v601 = vadd.f32 %v563, %v575
  %v602 = vadd.f32 %v564, %v575
  %v603 = vadd.f32 %v565, %v575
  %v604 = vadd.f32 %v566, %v575
  %v605 = vadd.f32 %v567, %v575
  %v606 = vadd.f32 %v568, %v575
  %v607 = vadd.f32 %v569, %v575
  %v608 = vadd.f32 %v570, %v575
  %v609 = vpack.c.bf16 %v578, %v577
  %v610 = vpack.c.bf16 %v580, %v579
  %v611 = vpack.c.bf16 %v582, %v581
  %v612 = vpack.c.bf16 %v584, %v583
  %v613 = vpack.c.bf16 %v586, %v585
  %v614 = vpack.c.bf16 %v588, %v587
  %v615 = vpack.c.bf16 %v590, %v589
  %v616 = vpack.c.bf16 %v592, %v591
  %v617 = vpack.c.bf16 %v594, %v593
  %v618 = vpack.c.bf16 %v596, %v595
  %v619 = vpack.c.bf16 %v598, %v597
  %v620 = vpack.c.bf16 %v600, %v599
  %v621 = vpack.c.bf16 %v602, %v601
  %v622 = vpack.c.bf16 %v604, %v603
  %v623 = vpack.c.bf16 %v606, %v605
  %v624 = vpack.c.bf16 %v608, %v607
  %v641 = vunpack.c.l.b16 %v609
  %v642 = vunpack.c.h.b16 %v609
  %v643 = vunpack.c.l.b16 %v610
  %v644 = vunpack.c.h.b16 %v610
  %v645 = vunpack.c.l.b16 %v611
  %v646 = vunpack.c.h.b16 %v611
  %v647 = vunpack.c.l.b16 %v612
  %v648 = vunpack.c.h.b16 %v612
  %v649 = vunpack.c.l.b16 %v613
  %v650 = vunpack.c.h.b16 %v613
  %v651 = vunpack.c.l.b16 %v614
  %v652 = vunpack.c.h.b16 %v614
  %v653 = vunpack.c.l.b16 %v615
  %v654 = vunpack.c.h.b16 %v615
  %v655 = vunpack.c.l.b16 %v616
  %v656 = vunpack.c.h.b16 %v616
  %v657 = vunpack.c.l.b16 %v617
  %v658 = vunpack.c.h.b16 %v617
  %v659 = vunpack.c.l.b16 %v618
  %v660 = vunpack.c.h.b16 %v618
  %v661 = vunpack.c.l.b16 %v619
  %v662 = vunpack.c.h.b16 %v619
  %v663 = vunpack.c.l.b16 %v620
  %v664 = vunpack.c.h.b16 %v620
  %v665 = vunpack.c.l.b16 %v621
  %v666 = vunpack.c.h.b16 %v621
  %v667 = vunpack.c.l.b16 %v622
  %v668 = vunpack.c.h.b16 %v622
  %v669 = vunpack.c.l.b16 %v623
  %v670 = vunpack.c.h.b16 %v623
  %v671 = vunpack.c.l.b16 %v624
  %v672 = vunpack.c.h.b16 %v624
  %v673 = vpack.c.b16 %v641, %v641
  %v674 = vpack.c.b16 %v642, %v642
  %v675 = vpack.c.b16 %v643, %v643
  %v676 = vpack.c.b16 %v644, %v644
  %v677 = vpack.c.b16 %v645, %v645
  %v678 = vpack.c.b16 %v646, %v646
  %v679 = vpack.c.b16 %v647, %v647
  %v680 = vpack.c.b16 %v648, %v648
  %v681 = vpack.c.b16 %v649, %v649
  %v682 = vpack.c.b16 %v650, %v650
  %v683 = vpack.c.b16 %v651, %v651
  %v684 = vpack.c.b16 %v652, %v652
  %v685 = vpack.c.b16 %v653, %v653
  %v686 = vpack.c.b16 %v654, %v654
  %v687 = vpack.c.b16 %v655, %v655
  %v688 = vpack.c.b16 %v656, %v656
  %v689 = vpack.c.b16 %v657, %v657
  %v690 = vpack.c.b16 %v658, %v658
  %v691 = vpack.c.b16 %v659, %v659
  %v692 = vpack.c.b16 %v660, %v660
  %v693 = vpack.c.b16 %v661, %v661
  %v694 = vpack.c.b16 %v662, %v662
  %v695 = vpack.c.b16 %v663, %v663
  %v696 = vpack.c.b16 %v664, %v664
  %v697 = vpack.c.b16 %v665, %v665
  %v698 = vpack.c.b16 %v666, %v666
  %v699 = vpack.c.b16 %v667, %v667
  %v700 = vpack.c.b16 %v668, %v668
  %v701 = vpack.c.b16 %v669, %v669
  %v702 = vpack.c.b16 %v670, %v670
  %v703 = vpack.c.b16 %v671, %v671
  %v704 = vpack.c.b16 %v672, %v672
  %vm737 = vcmask 519168
  %738 = vst.msk [vmem:[%s4] sm:$0xf] %vm737, %v673
  %739 = vst.msk [vmem:[%s4 + $0x4] sm:$0xf] %vm737, %v674
  %740 = vst.msk [vmem:[%s4 + $0x8] sm:$0xf] %vm737, %v675
  %741 = vst.msk [vmem:[%s4 + $0xc] sm:$0xf] %vm737, %v676
  %742 = vst.msk [vmem:[%s4 + $0x10] sm:$0xf] %vm737, %v677
  %743 = vst.msk [vmem:[%s4 + $0x14] sm:$0xf] %vm737, %v678
  %744 = vst.msk [vmem:[%s4 + $0x18] sm:$0xf] %vm737, %v679
  %745 = vst.msk [vmem:[%s4 + $0x1c] sm:$0xf] %vm737, %v680
  %746 = vst.msk [vmem:[%s4 + $0x20] sm:$0xf] %vm737, %v681
  %747 = vst.msk [vmem:[%s4 + $0x24] sm:$0xf] %vm737, %v682
  %748 = vst.msk [vmem:[%s4 + $0x28] sm:$0xf] %vm737, %v683
  %749 = vst.msk [vmem:[%s4 + $0x2c] sm:$0xf] %vm737, %v684
  %750 = vst.msk [vmem:[%s4 + $0x30] sm:$0xf] %vm737, %v685
  %751 = vst.msk [vmem:[%s4 + $0x34] sm:$0xf] %vm737, %v686
  %752 = vst.msk [vmem:[%s4 + $0x38] sm:$0xf] %vm737, %v687
  %753 = vst.msk [vmem:[%s4 + $0x3c] sm:$0xf] %vm737, %v688
  %754 = vst.msk [vmem:[%s4 + $0x40] sm:$0xf] %vm737, %v689
  %755 = vst.msk [vmem:[%s4 + $0x44] sm:$0xf] %vm737, %v690
  %756 = vst.msk [vmem:[%s4 + $0x48] sm:$0xf] %vm737, %v691
  %757 = vst.msk [vmem:[%s4 + $0x4c] sm:$0xf] %vm737, %v692
  %758 = vst.msk [vmem:[%s4 + $0x50] sm:$0xf] %vm737, %v693
  %759 = vst.msk [vmem:[%s4 + $0x54] sm:$0xf] %vm737, %v694
  %760 = vst.msk [vmem:[%s4 + $0x58] sm:$0xf] %vm737, %v695
  %761 = vst.msk [vmem:[%s4 + $0x5c] sm:$0xf] %vm737, %v696
  %762 = vst.msk [vmem:[%s4 + $0x60] sm:$0xf] %vm737, %v697
  %763 = vst.msk [vmem:[%s4 + $0x64] sm:$0xf] %vm737, %v698
  %764 = vst.msk [vmem:[%s4 + $0x68] sm:$0xf] %vm737, %v699
  %765 = vst.msk [vmem:[%s4 + $0x6c] sm:$0xf] %vm737, %v700
  %766 = vst.msk [vmem:[%s4 + $0x70] sm:$0xf] %vm737, %v701
  %767 = vst.msk [vmem:[%s4 + $0x74] sm:$0xf] %vm737, %v702
  %768 = vst.msk [vmem:[%s4 + $0x78] sm:$0xf] %vm737, %v703
  %769 = vst.msk [vmem:[%s4 + $0x7c] sm:$0xf] %vm737, %v704
  // Predicated region
  $region18: #{flash_roberta_forward.7} parent=0 // pred_check
    _
  $region19: #{flash_roberta_forward.7} parent=0 // pred_check_branch
    %771 = sbr.rel (0) target = $region21
  $region20: #{flash_roberta_forward.7} parent=0 // pred_region
    _
  $region21: #{flash_roberta_forward.7} parent=0 // pred_fallthru
    _
  // Predicated region
  $region22: #{flash_roberta_forward.7} parent=0 // pred_check
    _
  $region23: #{flash_roberta_forward.7} parent=0 // pred_check_branch
    %773 = sbr.rel (0) target = $region25
  $region24: #{flash_roberta_forward.7} parent=0 // pred_region
    _
  $region25: #{flash_roberta_forward.7} parent=0 // pred_fallthru
    _

// kernel: flash_roberta_forward.8
$region0: #{flash_roberta_forward.8}
  #allocation0 [shape = 'u32[]', space=smem, size = 0x4, offset = 0x4, fixed_abs, tag = 'smem constant byte address 0x4 - core index']
  #allocation1 [shape = 'u32[144,128]{1,0:T(1,128)}', space=vmem, size = 0x12000, scoped, tag = 'internal scratch']
  %s0 = inlined_call_operand.vmem [shape: bf16[256,64], index: 0, kind: input, shape index: {}]
  %s1 = inlined_call_operand.vmem [shape: bf16[64,192], index: 1, kind: input, shape index: {}]
  %s2 = inlined_call_operand.vmem [shape: f32[1,192], index: 2, kind: input, shape index: {}]
  %s3 = inlined_call_operand.vmem [shape: bf16[3,256,64], index: 3, kind: output, shape index: {}]
  %s4 = sld [smem:[#allocation0]]
  $region22: #{flash_roberta_forward.8} parent=0
    _
  %s6 = ssub.s32 1, %s4
  %s7 = scalar_select 0, %s6, %s4
  // Predicated region
  $region2: #{flash_roberta_forward.8} parent=0 // pred_check
    _
  $region3: #{flash_roberta_forward.8} parent=0 // pred_check_branch
    %9 = sbr.rel (0) target = $region5
  $region4: #{flash_roberta_forward.8} parent=0 // pred_region
    _
  $region5: #{flash_roberta_forward.8} parent=0 // pred_fallthru
    _
  // Predicated region
  $region6: #{flash_roberta_forward.8} parent=0 // pred_check
    _
  $region7: #{flash_roberta_forward.8} parent=0 // pred_check_branch
    %11 = sbr.rel (0) target = $region9
  $region8: #{flash_roberta_forward.8} parent=0 // pred_region
    _
  $region9: #{flash_roberta_forward.8} parent=0 // pred_fallthru
    _
  // Predicated region
  $region10: #{flash_roberta_forward.8} parent=0 // pred_check
    _
  $region11: #{flash_roberta_forward.8} parent=0 // pred_check_branch
    %13 = sbr.rel (0) target = $region13
  $region12: #{flash_roberta_forward.8} parent=0 // pred_region
    _
  $region13: #{flash_roberta_forward.8} parent=0 // pred_fallthru
    _
  %v15 = vld [vmem:[%s0] sm:$0xf]
  %v16 = vld [vmem:[%s0 + $0x4] sm:$0xf]
  %v17 = vld [vmem:[%s0 + $0x8] sm:$0xf]
  %v18 = vld [vmem:[%s0 + $0xc] sm:$0xf]
  %v19 = vld [vmem:[%s0 + $0x10] sm:$0xf]
  %v20 = vld [vmem:[%s0 + $0x14] sm:$0xf]
  %v21 = vld [vmem:[%s0 + $0x18] sm:$0xf]
  %v22 = vld [vmem:[%s0 + $0x1c] sm:$0xf]
  %v23 = vld [vmem:[%s0 + $0x20] sm:$0xf]
  %v24 = vld [vmem:[%s0 + $0x24] sm:$0xf]
  %v25 = vld [vmem:[%s0 + $0x28] sm:$0xf]
  %v26 = vld [vmem:[%s0 + $0x2c] sm:$0xf]
  %v27 = vld [vmem:[%s0 + $0x30] sm:$0xf]
  %v28 = vld [vmem:[%s0 + $0x34] sm:$0xf]
  %v29 = vld [vmem:[%s0 + $0x38] sm:$0xf]
  %v30 = vld [vmem:[%s0 + $0x3c] sm:$0xf]
  %v31 = vld [vmem:[%s0 + $0x40] sm:$0xf]
  %v32 = vld [vmem:[%s0 + $0x44] sm:$0xf]
  %v33 = vld [vmem:[%s0 + $0x48] sm:$0xf]
  %v34 = vld [vmem:[%s0 + $0x4c] sm:$0xf]
  %v35 = vld [vmem:[%s0 + $0x50] sm:$0xf]
  %v36 = vld [vmem:[%s0 + $0x54] sm:$0xf]
  %v37 = vld [vmem:[%s0 + $0x58] sm:$0xf]
  %v38 = vld [vmem:[%s0 + $0x5c] sm:$0xf]
  %v39 = vld [vmem:[%s0 + $0x60] sm:$0xf]
  %v40 = vld [vmem:[%s0 + $0x64] sm:$0xf]
  %v41 = vld [vmem:[%s0 + $0x68] sm:$0xf]
  %v42 = vld [vmem:[%s0 + $0x6c] sm:$0xf]
  %v43 = vld [vmem:[%s0 + $0x70] sm:$0xf]
  %v44 = vld [vmem:[%s0 + $0x74] sm:$0xf]
  %v45 = vld [vmem:[%s0 + $0x78] sm:$0xf]
  %v46 = vld [vmem:[%s0 + $0x7c] sm:$0xf]
  %v47 = vld [vmem:[%s1] sm:$0xff]
  %v48 = vld [vmem:[%s1 + $0x8] sm:$0xff]
  %v49 = vld [vmem:[%s1 + $0x10] sm:$0xff]
  %v50 = vld [vmem:[%s1 + $0x18] sm:$0xff]
  %v51 = vld [vmem:[%s1 + $0x20] sm:$0xff]
  %v52 = vld [vmem:[%s1 + $0x28] sm:$0xff]
  %v53 = vld [vmem:[%s1 + $0x30] sm:$0xff]
  %v54 = vld [vmem:[%s1 + $0x38] sm:$0xff]
  %v55 = vld [vmem:[%s2] sm:$0x3]
  %v57 = vlaneseq
  %v58 = vshrl.u32 %v57, 7
  %v59 = vsub.s32 0, %v58
  %v60 = vrot.slane %v55, %v59
  %v61 = vlaneseq
  %v62 = vshrl.u32 %v61, 7
  %v63 = vsub.s32 1, %v62
  %v64 = vrot.slane %v55, %v63
  %v99 = vunpack.c.l.b16 %v15
  %v100 = vunpack.c.l.b16 %v16
  %v101 = vunpack.c.l.b16 %v17
  %v102 = vunpack.c.l.b16 %v18
  %v103 = vunpack.c.l.b16 %v19
  %v104 = vunpack.c.l.b16 %v20
  %v105 = vunpack.c.l.b16 %v21
  %v106 = vunpack.c.l.b16 %v22
  %v107 = vunpack.c.l.b16 %v23
  %v108 = vunpack.c.l.b16 %v24
  %v109 = vunpack.c.l.b16 %v25
  %v110 = vunpack.c.l.b16 %v26
  %v111 = vunpack.c.l.b16 %v27
  %v112 = vunpack.c.l.b16 %v28
  %v113 = vunpack.c.l.b16 %v29
  %v114 = vunpack.c.l.b16 %v30
  %v115 = vunpack.c.l.b16 %v31
  %v116 = vunpack.c.l.b16 %v32
  %v117 = vunpack.c.l.b16 %v33
  %v118 = vunpack.c.l.b16 %v34
  %v119 = vunpack.c.l.b16 %v35
  %v120 = vunpack.c.l.b16 %v36
  %v121 = vunpack.c.l.b16 %v37
  %v122 = vunpack.c.l.b16 %v38
  %v123 = vunpack.c.l.b16 %v39
  %v124 = vunpack.c.l.b16 %v40
  %v125 = vunpack.c.l.b16 %v41
  %v126 = vunpack.c.l.b16 %v42
  %v127 = vunpack.c.l.b16 %v43
  %v128 = vunpack.c.l.b16 %v44
  %v129 = vunpack.c.l.b16 %v45
  %v130 = vunpack.c.l.b16 %v46
  %v131 = vpack.c.b16 %v100, %v99
  %v132 = vpack.c.b16 %v102, %v101
  %v133 = vpack.c.b16 %v104, %v103
  %v134 = vpack.c.b16 %v106, %v105
  %v135 = vpack.c.b16 %v108, %v107
  %v136 = vpack.c.b16 %v110, %v109
  %v137 = vpack.c.b16 %v112, %v111
  %v138 = vpack.c.b16 %v114, %v113
  %v139 = vpack.c.b16 %v116, %v115
  %v140 = vpack.c.b16 %v118, %v117
  %v141 = vpack.c.b16 %v120, %v119
  %v142 = vpack.c.b16 %v122, %v121
  %v143 = vpack.c.b16 %v124, %v123
  %v144 = vpack.c.b16 %v126, %v125
  %v145 = vpack.c.b16 %v128, %v127
  %v146 = vpack.c.b16 %v130, %v129
  %v155 = vunpack.c.l.b16 %v47
  %v156 = vunpack.c.h.b16 %v47
  %v157 = vunpack.c.l.b16 %v48
  %v158 = vunpack.c.h.b16 %v48
  %v159 = vunpack.c.l.b16 %v49
  %v160 = vunpack.c.h.b16 %v49
  %v161 = vunpack.c.l.b16 %v50
  %v162 = vunpack.c.h.b16 %v50
  %v163 = vunpack.c.l.b16 %v51
  %v164 = vunpack.c.h.b16 %v51
  %v165 = vunpack.c.l.b16 %v52
  %v166 = vunpack.c.h.b16 %v52
  %v167 = vunpack.c.l.b16 %v53
  %v168 = vunpack.c.h.b16 %v53
  %v169 = vunpack.c.l.b16 %v54
  %v170 = vunpack.c.h.b16 %v54
  %v171 = vpack.c.b16 %v157, %v155
  %v172 = vpack.c.b16 %v158, %v156
  %v173 = vpack.c.b16 %v161, %v159
  %v174 = vpack.c.b16 %v162, %v160
  %v175 = vpack.c.b16 %v165, %v163
  %v176 = vpack.c.b16 %v166, %v164
  %v177 = vpack.c.b16 %v169, %v167
  %v178 = vpack.c.b16 %v170, %v168
  %vm187 = vcmask 523264
  %v189 = vsel %vm187, %v131, 0
  %v192 = vsel %vm187, %v132, 0
  %v195 = vsel %vm187, %v133, 0
  %v198 = vsel %vm187, %v134, 0
  %v201 = vsel %vm187, %v135, 0
  %v204 = vsel %vm187, %v136, 0
  %v207 = vsel %vm187, %v137, 0
  %v210 = vsel %vm187, %v138, 0
  %v213 = vsel %vm187, %v139, 0
  %v216 = vsel %vm187, %v140, 0
  %v219 = vsel %vm187, %v141, 0
  %v222 = vsel %vm187, %v142, 0
  %v225 = vsel %vm187, %v143, 0
  %v228 = vsel %vm187, %v144, 0
  %v231 = vsel %vm187, %v145, 0
  %v234 = vsel %vm187, %v146, 0
  %236 = vmatprep.subr.bf16.mxu0 %v172
  %237 = vmatpush1.bf16.msra.mxu0 %v171
  %238 = vmatprep.subr.bf16.mxu0 %v174
  %239 = vmatpush1.bf16.msra.mxu0 %v173
  %240 = vmatprep.subr.bf16.mxu0 %v176
  %241 = vmatpush1.bf16.msra.mxu0 %v175
  %242 = vmatprep.subr.bf16.mxu0 %v178
  %243 = vmatpush1.bf16.msra.mxu0 %v177
  %244 = vmatprep.subr.bf16.mxu0 0
  %245 = vmatpush1.bf16.msra.mxu0 0
  %246 = vmatprep.subr.bf16.mxu0 0
  %247 = vmatpush1.bf16.msra.mxu0 0
  %248 = vmatprep.subr.bf16.mxu0 0
  %249 = vmatpush1.bf16.msra.mxu0 0
  %250 = vmatprep.subr.bf16.mxu0 0
  %251 = vmatpush1.bf16.msra.mxu0 0
  %252 = vmatprep.subr.bf16.mxu0 0
  %253 = vmatpush1.bf16.msra.mxu0 0
  %254 = vmatprep.subr.bf16.mxu0 0
  %255 = vmatpush1.bf16.msra.mxu0 0
  %256 = vmatprep.subr.bf16.mxu0 0
  %257 = vmatpush1.bf16.msra.mxu0 0
  %258 = vmatprep.subr.bf16.mxu0 0
  %259 = vmatpush1.bf16.msra.mxu0 0
  %260 = vmatprep.subr.bf16.mxu0 0
  %261 = vmatpush1.bf16.msra.mxu0 0
  %262 = vmatprep.subr.bf16.mxu0 0
  %263 = vmatpush1.bf16.msra.mxu0 0
  %264 = vmatprep.subr.bf16.mxu0 0
  %265 = vmatpush1.bf16.msra.mxu0 0
  %266 = vmatprep.subr.bf16.mxu0 0
  %267 = vmatpush1.bf16.msra.mxu0 0
  %268 = vmatprep.mubr.bf16.mxu0 0
  %269 = vmatmul.mubr.bf16.gmra.mrb[0].mxu0 %v189
  %v270 = vpop.f32.mrb[0].mxu0
  %v271 = vadd.f32 %v60, %v270
  %v272 = vpop.f32.mrb[0].mxu0
  %v273 = vadd.f32 %v64, %v272
  %v274 = vpop.f32.mrb[0].mxu0
  %v275 = vadd.f32 %v60, %v274
  %v276 = vpop.f32.mrb[0].mxu0
  %v277 = vadd.f32 %v64, %v276
  %278 = vmatprep.mubr.bf16.mxu0 0
  %279 = vmatmul.mubr.bf16.gmra.mrb[0].mxu0 %v192
  %v280 = vpop.f32.mrb[0].mxu0
  %v281 = vadd.f32 %v60, %v280
  %v282 = vpop.f32.mrb[0].mxu0
  %v283 = vadd.f32 %v64, %v282
  %v284 = vpop.f32.mrb[0].mxu0
  %v285 = vadd.f32 %v60, %v284
  %v286 = vpop.f32.mrb[0].mxu0
  %v287 = vadd.f32 %v64, %v286
  %288 = vmatprep.mubr.bf16.mxu0 0
  %289 = vmatmul.mubr.bf16.gmra.mrb[0].mxu0 %v195
  %v290 = vpop.f32.mrb[0].mxu0
  %v291 = vadd.f32 %v60, %v290
  %v292 = vpop.f32.mrb[0].mxu0
  %v293 = vadd.f32 %v64, %v292
  %v294 = vpop.f32.mrb[0].mxu0
  %v295 = vadd.f32 %v60, %v294
  %v296 = vpop.f32.mrb[0].mxu0
  %v297 = vadd.f32 %v64, %v296
  %298 = vmatprep.mubr.bf16.mxu0 0
  %299 = vmatmul.mubr.bf16.gmra.mrb[0].mxu0 %v198
  %v300 = vpop.f32.mrb[0].mxu0
  %v301 = vadd.f32 %v60, %v300
  %v302 = vpop.f32.mrb[0].mxu0
  %v303 = vadd.f32 %v64, %v302
  %v304 = vpop.f32.mrb[0].mxu0
  %v305 = vadd.f32 %v60, %v304
  %v306 = vpop.f32.mrb[0].mxu0
  %v307 = vadd.f32 %v64, %v306
  %308 = vmatprep.mubr.bf16.mxu0 0
  %309 = vmatmul.mubr.bf16.gmra.mrb[0].mxu0 %v201
  %v310 = vpop.f32.mrb[0].mxu0
  %v311 = vadd.f32 %v60, %v310
  %v312 = vpop.f32.mrb[0].mxu0
  %v313 = vadd.f32 %v64, %v312
  %v314 = vpop.f32.mrb[0].mxu0
  %v315 = vadd.f32 %v60, %v314
  %v316 = vpop.f32.mrb[0].mxu0
  %v317 = vadd.f32 %v64, %v316
  %318 = vmatprep.mubr.bf16.mxu0 0
  %319 = vmatmul.mubr.bf16.gmra.mrb[0].mxu0 %v204
  %v320 = vpop.f32.mrb[0].mxu0
  %v321 = vadd.f32 %v60, %v320
  %v322 = vpop.f32.mrb[0].mxu0
  %v323 = vadd.f32 %v64, %v322
  %v324 = vpop.f32.mrb[0].mxu0
  %v325 = vadd.f32 %v60, %v324
  %v326 = vpop.f32.mrb[0].mxu0
  %v327 = vadd.f32 %v64, %v326
  %328 = vmatprep.mubr.bf16.mxu0 0
  %329 = vmatmul.mubr.bf16.gmra.mrb[0].mxu0 %v207
  %v330 = vpop.f32.mrb[0].mxu0
  %v331 = vadd.f32 %v60, %v330
  %v332 = vpop.f32.mrb[0].mxu0
  %v333 = vadd.f32 %v64, %v332
  %v334 = vpop.f32.mrb[0].mxu0
  %v335 = vadd.f32 %v60, %v334
  %v336 = vpop.f32.mrb[0].mxu0
  %v337 = vadd.f32 %v64, %v336
  %338 = vmatprep.mubr.bf16.mxu0 0
  %339 = vmatmul.mubr.bf16.gmra.mrb[0].mxu0 %v210
  %v340 = vpop.f32.mrb[0].mxu0
  %v341 = vadd.f32 %v60, %v340
  %v342 = vpop.f32.mrb[0].mxu0
  %v343 = vadd.f32 %v64, %v342
  %v344 = vpop.f32.mrb[0].mxu0
  %v345 = vadd.f32 %v60, %v344
  %v346 = vpop.f32.mrb[0].mxu0
  %v347 = vadd.f32 %v64, %v346
  %348 = vmatprep.mubr.bf16.mxu0 0
  %349 = vmatmul.mubr.bf16.gmra.mrb[0].mxu0 %v213
  %v350 = vpop.f32.mrb[0].mxu0
  %v351 = vadd.f32 %v60, %v350
  %v352 = vpop.f32.mrb[0].mxu0
  %v353 = vadd.f32 %v64, %v352
  %v354 = vpop.f32.mrb[0].mxu0
  %v355 = vadd.f32 %v60, %v354
  %v356 = vpop.f32.mrb[0].mxu0
  %v357 = vadd.f32 %v64, %v356
  %358 = vmatprep.mubr.bf16.mxu0 0
  %359 = vmatmul.mubr.bf16.gmra.mrb[0].mxu0 %v216
  %v360 = vpop.f32.mrb[0].mxu0
  %v361 = vadd.f32 %v60, %v360
  %v362 = vpop.f32.mrb[0].mxu0
  %v363 = vadd.f32 %v64, %v362
  %v364 = vpop.f32.mrb[0].mxu0
  %v365 = vadd.f32 %v60, %v364
  %v366 = vpop.f32.mrb[0].mxu0
  %v367 = vadd.f32 %v64, %v366
  %368 = vmatprep.mubr.bf16.mxu0 0
  %369 = vmatmul.mubr.bf16.gmra.mrb[0].mxu0 %v219
  %v370 = vpop.f32.mrb[0].mxu0
  %v371 = vadd.f32 %v60, %v370
  %v372 = vpop.f32.mrb[0].mxu0
  %v373 = vadd.f32 %v64, %v372
  %v374 = vpop.f32.mrb[0].mxu0
  %v375 = vadd.f32 %v60, %v374
  %v376 = vpop.f32.mrb[0].mxu0
  %v377 = vadd.f32 %v64, %v376
  %378 = vmatprep.mubr.bf16.mxu0 0
  %379 = vmatmul.mubr.bf16.gmra.mrb[0].mxu0 %v222
  %v380 = vpop.f32.mrb[0].mxu0
  %v381 = vadd.f32 %v60, %v380
  %v382 = vpop.f32.mrb[0].mxu0
  %v383 = vadd.f32 %v64, %v382
  %v384 = vpop.f32.mrb[0].mxu0
  %v385 = vadd.f32 %v60, %v384
  %v386 = vpop.f32.mrb[0].mxu0
  %v387 = vadd.f32 %v64, %v386
  %388 = vmatprep.mubr.bf16.mxu0 0
  %389 = vmatmul.mubr.bf16.gmra.mrb[0].mxu0 %v225
  %v390 = vpop.f32.mrb[0].mxu0
  %v391 = vadd.f32 %v60, %v390
  %v392 = vpop.f32.mrb[0].mxu0
  %v393 = vadd.f32 %v64, %v392
  %v394 = vpop.f32.mrb[0].mxu0
  %v395 = vadd.f32 %v60, %v394
  %v396 = vpop.f32.mrb[0].mxu0
  %v397 = vadd.f32 %v64, %v396
  %398 = vmatprep.mubr.bf16.mxu0 0
  %399 = vmatmul.mubr.bf16.gmra.mrb[0].mxu0 %v228
  %v400 = vpop.f32.mrb[0].mxu0
  %v401 = vadd.f32 %v60, %v400
  %v402 = vpop.f32.mrb[0].mxu0
  %v403 = vadd.f32 %v64, %v402
  %v404 = vpop.f32.mrb[0].mxu0
  %v405 = vadd.f32 %v60, %v404
  %v406 = vpop.f32.mrb[0].mxu0
  %v407 = vadd.f32 %v64, %v406
  %408 = vmatprep.mubr.bf16.mxu0 0
  %409 = vmatmul.mubr.bf16.gmra.mrb[0].mxu0 %v231
  %v410 = vpop.f32.mrb[0].mxu0
  %v411 = vadd.f32 %v60, %v410
  %v412 = vpop.f32.mrb[0].mxu0
  %v413 = vadd.f32 %v64, %v412
  %v414 = vpop.f32.mrb[0].mxu0
  %v415 = vadd.f32 %v60, %v414
  %v416 = vpop.f32.mrb[0].mxu0
  %v417 = vadd.f32 %v64, %v416
  %418 = vmatprep.mubr.bf16.mxu0 0
  %419 = vmatmul.mubr.bf16.gmra.mrb[0].mxu0 %v234
  %v420 = vpop.f32.mrb[0].mxu0
  %v421 = vadd.f32 %v60, %v420
  %v422 = vpop.f32.mrb[0].mxu0
  %v423 = vadd.f32 %v64, %v422
  %v424 = vpop.f32.mrb[0].mxu0
  %v425 = vadd.f32 %v60, %v424
  %v426 = vpop.f32.mrb[0].mxu0
  %v427 = vadd.f32 %v64, %v426
  %428 = vdwg.mxu0
  %v429 = vpack.c.bf16 %v275, %v271
  %v430 = vpack.c.bf16 %v277, %v273
  %v431 = vpack.c.bf16 %v285, %v281
  %v432 = vpack.c.bf16 %v287, %v283
  %v433 = vpack.c.bf16 %v295, %v291
  %v434 = vpack.c.bf16 %v297, %v293
  %v435 = vpack.c.bf16 %v305, %v301
  %v436 = vpack.c.bf16 %v307, %v303
  %v437 = vpack.c.bf16 %v315, %v311
  %v438 = vpack.c.bf16 %v317, %v313
  %v439 = vpack.c.bf16 %v325, %v321
  %v440 = vpack.c.bf16 %v327, %v323
  %v441 = vpack.c.bf16 %v335, %v331
  %v442 = vpack.c.bf16 %v337, %v333
  %v443 = vpack.c.bf16 %v345, %v341
  %v444 = vpack.c.bf16 %v347, %v343
  %v445 = vpack.c.bf16 %v355, %v351
  %v446 = vpack.c.bf16 %v357, %v353
  %v447 = vpack.c.bf16 %v365, %v361
  %v448 = vpack.c.bf16 %v367, %v363
  %v449 = vpack.c.bf16 %v375, %v371
  %v450 = vpack.c.bf16 %v377, %v373
  %v451 = vpack.c.bf16 %v385, %v381
  %v452 = vpack.c.bf16 %v387, %v383
  %v453 = vpack.c.bf16 %v395, %v391
  %v454 = vpack.c.bf16 %v397, %v393
  %v455 = vpack.c.bf16 %v405, %v401
  %v456 = vpack.c.bf16 %v407, %v403
  %v457 = vpack.c.bf16 %v415, %v411
  %v458 = vpack.c.bf16 %v417, %v413
  %v459 = vpack.c.bf16 %v425, %v421
  %v460 = vpack.c.bf16 %v427, %v423
  %v477 = vunpack.c.l.b16 %v429
  %v478 = vunpack.c.h.b16 %v429
  %v479 = vunpack.c.l.b16 %v431
  %v480 = vunpack.c.h.b16 %v431
  %v481 = vunpack.c.l.b16 %v433
  %v482 = vunpack.c.h.b16 %v433
  %v483 = vunpack.c.l.b16 %v435
  %v484 = vunpack.c.h.b16 %v435
  %v485 = vunpack.c.l.b16 %v437
  %v486 = vunpack.c.h.b16 %v437
  %v487 = vunpack.c.l.b16 %v439
  %v488 = vunpack.c.h.b16 %v439
  %v489 = vunpack.c.l.b16 %v441
  %v490 = vunpack.c.h.b16 %v441
  %v491 = vunpack.c.l.b16 %v443
  %v492 = vunpack.c.h.b16 %v443
  %v493 = vunpack.c.l.b16 %v445
  %v494 = vunpack.c.h.b16 %v445
  %v495 = vunpack.c.l.b16 %v447
  %v496 = vunpack.c.h.b16 %v447
  %v497 = vunpack.c.l.b16 %v449
  %v498 = vunpack.c.h.b16 %v449
  %v499 = vunpack.c.l.b16 %v451
  %v500 = vunpack.c.h.b16 %v451
  %v501 = vunpack.c.l.b16 %v453
  %v502 = vunpack.c.h.b16 %v453
  %v503 = vunpack.c.l.b16 %v455
  %v504 = vunpack.c.h.b16 %v455
  %v505 = vunpack.c.l.b16 %v457
  %v506 = vunpack.c.h.b16 %v457
  %v507 = vunpack.c.l.b16 %v459
  %v508 = vunpack.c.h.b16 %v459
  %v509 = vpack.c.b16 %v477, %v477
  %v510 = vpack.c.b16 %v478, %v478
  %v511 = vpack.c.b16 %v479, %v479
  %v512 = vpack.c.b16 %v480, %v480
  %v513 = vpack.c.b16 %v481, %v481
  %v514 = vpack.c.b16 %v482, %v482
  %v515 = vpack.c.b16 %v483, %v483
  %v516 = vpack.c.b16 %v484, %v484
  %v517 = vpack.c.b16 %v485, %v485
  %v518 = vpack.c.b16 %v486, %v486
  %v519 = vpack.c.b16 %v487, %v487
  %v520 = vpack.c.b16 %v488, %v488
  %v521 = vpack.c.b16 %v489, %v489
  %v522 = vpack.c.b16 %v490, %v490
  %v523 = vpack.c.b16 %v491, %v491
  %v524 = vpack.c.b16 %v492, %v492
  %v525 = vpack.c.b16 %v493, %v493
  %v526 = vpack.c.b16 %v494, %v494
  %v527 = vpack.c.b16 %v495, %v495
  %v528 = vpack.c.b16 %v496, %v496
  %v529 = vpack.c.b16 %v497, %v497
  %v530 = vpack.c.b16 %v498, %v498
  %v531 = vpack.c.b16 %v499, %v499
  %v532 = vpack.c.b16 %v500, %v500
  %v533 = vpack.c.b16 %v501, %v501
  %v534 = vpack.c.b16 %v502, %v502
  %v535 = vpack.c.b16 %v503, %v503
  %v536 = vpack.c.b16 %v504, %v504
  %v537 = vpack.c.b16 %v505, %v505
  %v538 = vpack.c.b16 %v506, %v506
  %v539 = vpack.c.b16 %v507, %v507
  %v540 = vpack.c.b16 %v508, %v508
  %vm573 = vcmask 519168
  %574 = vst.msk [vmem:[%s3] sm:$0xf] %vm573, %v509
  %575 = vst.msk [vmem:[%s3 + $0x4] sm:$0xf] %vm573, %v510
  %576 = vst.msk [vmem:[%s3 + $0x8] sm:$0xf] %vm573, %v511
  %577 = vst.msk [vmem:[%s3 + $0xc] sm:$0xf] %vm573, %v512
  %578 = vst.msk [vmem:[%s3 + $0x10] sm:$0xf] %vm573, %v513
  %579 = vst.msk [vmem:[%s3 + $0x14] sm:$0xf] %vm573, %v514
  %580 = vst.msk [vmem:[%s3 + $0x18] sm:$0xf] %vm573, %v515
  %581 = vst.msk [vmem:[%s3 + $0x1c] sm:$0xf] %vm573, %v516
  %582 = vst.msk [vmem:[%s3 + $0x20] sm:$0xf] %vm573, %v517
  %583 = vst.msk [vmem:[%s3 + $0x24] sm:$0xf] %vm573, %v518
  %584 = vst.msk [vmem:[%s3 + $0x28] sm:$0xf] %vm573, %v519
  %585 = vst.msk [vmem:[%s3 + $0x2c] sm:$0xf] %vm573, %v520
  %586 = vst.msk [vmem:[%s3 + $0x30] sm:$0xf] %vm573, %v521
  %587 = vst.msk [vmem:[%s3 + $0x34] sm:$0xf] %vm573, %v522
  %588 = vst.msk [vmem:[%s3 + $0x38] sm:$0xf] %vm573, %v523
  %589 = vst.msk [vmem:[%s3 + $0x3c] sm:$0xf] %vm573, %v524
  %590 = vst.msk [vmem:[%s3 + $0x40] sm:$0xf] %vm573, %v525
  %591 = vst.msk [vmem:[%s3 + $0x44] sm:$0xf] %vm573, %v526
  %592 = vst.msk [vmem:[%s3 + $0x48] sm:$0xf] %vm573, %v527
  %593 = vst.msk [vmem:[%s3 + $0x4c] sm:$0xf] %vm573, %v528
  %594 = vst.msk [vmem:[%s3 + $0x50] sm:$0xf] %vm573, %v529
  %595 = vst.msk [vmem:[%s3 + $0x54] sm:$0xf] %vm573, %v530
  %596 = vst.msk [vmem:[%s3 + $0x58] sm:$0xf] %vm573, %v531
  %597 = vst.msk [vmem:[%s3 + $0x5c] sm:$0xf] %vm573, %v532
  %598 = vst.msk [vmem:[%s3 + $0x60] sm:$0xf] %vm573, %v533
  %599 = vst.msk [vmem:[%s3 + $0x64] sm:$0xf] %vm573, %v534
  %600 = vst.msk [vmem:[%s3 + $0x68] sm:$0xf] %vm573, %v535
  %601 = vst.msk [vmem:[%s3 + $0x6c] sm:$0xf] %vm573, %v536
  %602 = vst.msk [vmem:[%s3 + $0x70] sm:$0xf] %vm573, %v537
  %603 = vst.msk [vmem:[%s3 + $0x74] sm:$0xf] %vm573, %v538
  %604 = vst.msk [vmem:[%s3 + $0x78] sm:$0xf] %vm573, %v539
  %605 = vst.msk [vmem:[%s3 + $0x7c] sm:$0xf] %vm573, %v540
  %606 = vrot.lane.b32.xlu0 %v509, 64
  %v607 = vpop.permute.xlu0 %606
  %608 = vrot.lane.b32.xlu0 %v510, 64
  %v609 = vpop.permute.xlu0 %608
  %610 = vrot.lane.b32.xlu0 %v511, 64
  %v611 = vpop.permute.xlu0 %610
  %612 = vrot.lane.b32.xlu0 %v512, 64
  %v613 = vpop.permute.xlu0 %612
  %614 = vrot.lane.b32.xlu0 %v513, 64
  %v615 = vpop.permute.xlu0 %614
  %616 = vrot.lane.b32.xlu0 %v514, 64
  %v617 = vpop.permute.xlu0 %616
  %618 = vrot.lane.b32.xlu0 %v515, 64
  %v619 = vpop.permute.xlu0 %618
  %620 = vrot.lane.b32.xlu0 %v516, 64
  %v621 = vpop.permute.xlu0 %620
  %622 = vrot.lane.b32.xlu0 %v517, 64
  %v623 = vpop.permute.xlu0 %622
  %624 = vrot.lane.b32.xlu0 %v518, 64
  %v625 = vpop.permute.xlu0 %624
  %626 = vrot.lane.b32.xlu0 %v519, 64
  %v627 = vpop.permute.xlu0 %626
  %628 = vrot.lane.b32.xlu0 %v520, 64
  %v629 = vpop.permute.xlu0 %628
  %630 = vrot.lane.b32.xlu0 %v521, 64
  %v631 = vpop.permute.xlu0 %630
  %632 = vrot.lane.b32.xlu0 %v522, 64
  %v633 = vpop.permute.xlu0 %632
  %634 = vrot.lane.b32.xlu0 %v523, 64
  %v635 = vpop.permute.xlu0 %634
  %636 = vrot.lane.b32.xlu0 %v524, 64
  %v637 = vpop.permute.xlu0 %636
  %638 = vrot.lane.b32.xlu0 %v525, 64
  %v639 = vpop.permute.xlu0 %638
  %640 = vrot.lane.b32.xlu0 %v526, 64
  %v641 = vpop.permute.xlu0 %640
  %642 = vrot.lane.b32.xlu0 %v527, 64
  %v643 = vpop.permute.xlu0 %642
  %644 = vrot.lane.b32.xlu0 %v528, 64
  %v645 = vpop.permute.xlu0 %644
  %646 = vrot.lane.b32.xlu0 %v529, 64
  %v647 = vpop.permute.xlu0 %646
  %648 = vrot.lane.b32.xlu0 %v530, 64
  %v649 = vpop.permute.xlu0 %648
  %650 = vrot.lane.b32.xlu0 %v531, 64
  %v651 = vpop.permute.xlu0 %650
  %652 = vrot.lane.b32.xlu0 %v532, 64
  %v653 = vpop.permute.xlu0 %652
  %654 = vrot.lane.b32.xlu0 %v533, 64
  %v655 = vpop.permute.xlu0 %654
  %656 = vrot.lane.b32.xlu0 %v534, 64
  %v657 = vpop.permute.xlu0 %656
  %658 = vrot.lane.b32.xlu0 %v535, 64
  %v659 = vpop.permute.xlu0 %658
  %660 = vrot.lane.b32.xlu0 %v536, 64
  %v661 = vpop.permute.xlu0 %660
  %662 = vrot.lane.b32.xlu0 %v537, 64
  %v663 = vpop.permute.xlu0 %662
  %664 = vrot.lane.b32.xlu0 %v538, 64
  %v665 = vpop.permute.xlu0 %664
  %666 = vrot.lane.b32.xlu0 %v539, 64
  %v667 = vpop.permute.xlu0 %666
  %668 = vrot.lane.b32.xlu0 %v540, 64
  %v669 = vpop.permute.xlu0 %668
  %s702 = scalar_lea.vmem %s3, 128
  %703 = vst.msk [vmem:[%s702] sm:$0xf] %vm573, %v607
  %704 = vst.msk [vmem:[%s702 + $0x4] sm:$0xf] %vm573, %v609
  %705 = vst.msk [vmem:[%s702 + $0x8] sm:$0xf] %vm573, %v611
  %706 = vst.msk [vmem:[%s702 + $0xc] sm:$0xf] %vm573, %v613
  %707 = vst.msk [vmem:[%s702 + $0x10] sm:$0xf] %vm573, %v615
  %708 = vst.msk [vmem:[%s702 + $0x14] sm:$0xf] %vm573, %v617
  %709 = vst.msk [vmem:[%s702 + $0x18] sm:$0xf] %vm573, %v619
  %710 = vst.msk [vmem:[%s702 + $0x1c] sm:$0xf] %vm573, %v621
  %711 = vst.msk [vmem:[%s702 + $0x20] sm:$0xf] %vm573, %v623
  %712 = vst.msk [vmem:[%s702 + $0x24] sm:$0xf] %vm573, %v625
  %713 = vst.msk [vmem:[%s702 + $0x28] sm:$0xf] %vm573, %v627
  %714 = vst.msk [vmem:[%s702 + $0x2c] sm:$0xf] %vm573, %v629
  %715 = vst.msk [vmem:[%s702 + $0x30] sm:$0xf] %vm573, %v631
  %716 = vst.msk [vmem:[%s702 + $0x34] sm:$0xf] %vm573, %v633
  %717 = vst.msk [vmem:[%s702 + $0x38] sm:$0xf] %vm573, %v635
  %718 = vst.msk [vmem:[%s702 + $0x3c] sm:$0xf] %vm573, %v637
  %719 = vst.msk [vmem:[%s702 + $0x40] sm:$0xf] %vm573, %v639
  %720 = vst.msk [vmem:[%s702 + $0x44] sm:$0xf] %vm573, %v641
  %721 = vst.msk [vmem:[%s702 + $0x48] sm:$0xf] %vm573, %v643
  %722 = vst.msk [vmem:[%s702 + $0x4c] sm:$0xf] %vm573, %v645
  %723 = vst.msk [vmem:[%s702 + $0x50] sm:$0xf] %vm573, %v647
  %724 = vst.msk [vmem:[%s702 + $0x54] sm:$0xf] %vm573, %v649
  %725 = vst.msk [vmem:[%s702 + $0x58] sm:$0xf] %vm573, %v651
  %726 = vst.msk [vmem:[%s702 + $0x5c] sm:$0xf] %vm573, %v653
  %727 = vst.msk [vmem:[%s702 + $0x60] sm:$0xf] %vm573, %v655
  %728 = vst.msk [vmem:[%s702 + $0x64] sm:$0xf] %vm573, %v657
  %729 = vst.msk [vmem:[%s702 + $0x68] sm:$0xf] %vm573, %v659
  %730 = vst.msk [vmem:[%s702 + $0x6c] sm:$0xf] %vm573, %v661
  %731 = vst.msk [vmem:[%s702 + $0x70] sm:$0xf] %vm573, %v663
  %732 = vst.msk [vmem:[%s702 + $0x74] sm:$0xf] %vm573, %v665
  %733 = vst.msk [vmem:[%s702 + $0x78] sm:$0xf] %vm573, %v667
  %734 = vst.msk [vmem:[%s702 + $0x7c] sm:$0xf] %vm573, %v669
  %v751 = vunpack.c.l.b16 %v430
  %v752 = vunpack.c.h.b16 %v430
  %v753 = vunpack.c.l.b16 %v432
  %v754 = vunpack.c.h.b16 %v432
  %v755 = vunpack.c.l.b16 %v434
  %v756 = vunpack.c.h.b16 %v434
  %v757 = vunpack.c.l.b16 %v436
  %v758 = vunpack.c.h.b16 %v436
  %v759 = vunpack.c.l.b16 %v438
  %v760 = vunpack.c.h.b16 %v438
  %v761 = vunpack.c.l.b16 %v440
  %v762 = vunpack.c.h.b16 %v440
  %v763 = vunpack.c.l.b16 %v442
  %v764 = vunpack.c.h.b16 %v442
  %v765 = vunpack.c.l.b16 %v444
  %v766 = vunpack.c.h.b16 %v444
  %v767 = vunpack.c.l.b16 %v446
  %v768 = vunpack.c.h.b16 %v446
  %v769 = vunpack.c.l.b16 %v448
  %v770 = vunpack.c.h.b16 %v448
  %v771 = vunpack.c.l.b16 %v450
  %v772 = vunpack.c.h.b16 %v450
  %v773 = vunpack.c.l.b16 %v452
  %v774 = vunpack.c.h.b16 %v452
  %v775 = vunpack.c.l.b16 %v454
  %v776 = vunpack.c.h.b16 %v454
  %v777 = vunpack.c.l.b16 %v456
  %v778 = vunpack.c.h.b16 %v456
  %v779 = vunpack.c.l.b16 %v458
  %v780 = vunpack.c.h.b16 %v458
  %v781 = vunpack.c.l.b16 %v460
  %v782 = vunpack.c.h.b16 %v460
  %v783 = vpack.c.b16 %v751, %v751
  %v784 = vpack.c.b16 %v752, %v752
  %v785 = vpack.c.b16 %v753, %v753
  %v786 = vpack.c.b16 %v754, %v754
  %v787 = vpack.c.b16 %v755, %v755
  %v788 = vpack.c.b16 %v756, %v756
  %v789 = vpack.c.b16 %v757, %v757
  %v790 = vpack.c.b16 %v758, %v758
  %v791 = vpack.c.b16 %v759, %v759
  %v792 = vpack.c.b16 %v760, %v760
  %v793 = vpack.c.b16 %v761, %v761
  %v794 = vpack.c.b16 %v762, %v762
  %v795 = vpack.c.b16 %v763, %v763
  %v796 = vpack.c.b16 %v764, %v764
  %v797 = vpack.c.b16 %v765, %v765
  %v798 = vpack.c.b16 %v766, %v766
  %v799 = vpack.c.b16 %v767, %v767
  %v800 = vpack.c.b16 %v768, %v768
  %v801 = vpack.c.b16 %v769, %v769
  %v802 = vpack.c.b16 %v770, %v770
  %v803 = vpack.c.b16 %v771, %v771
  %v804 = vpack.c.b16 %v772, %v772
  %v805 = vpack.c.b16 %v773, %v773
  %v806 = vpack.c.b16 %v774, %v774
  %v807 = vpack.c.b16 %v775, %v775
  %v808 = vpack.c.b16 %v776, %v776
  %v809 = vpack.c.b16 %v777, %v777
  %v810 = vpack.c.b16 %v778, %v778
  %v811 = vpack.c.b16 %v779, %v779
  %v812 = vpack.c.b16 %v780, %v780
  %v813 = vpack.c.b16 %v781, %v781
  %v814 = vpack.c.b16 %v782, %v782
  %s847 = scalar_lea.vmem %s3, 256
  %848 = vst.msk [vmem:[%s847] sm:$0xf] %vm573, %v783
  %849 = vst.msk [vmem:[%s847 + $0x4] sm:$0xf] %vm573, %v784
  %850 = vst.msk [vmem:[%s847 + $0x8] sm:$0xf] %vm573, %v785
  %851 = vst.msk [vmem:[%s847 + $0xc] sm:$0xf] %vm573, %v786
  %852 = vst.msk [vmem:[%s847 + $0x10] sm:$0xf] %vm573, %v787
  %853 = vst.msk [vmem:[%s847 + $0x14] sm:$0xf] %vm573, %v788
  %854 = vst.msk [vmem:[%s847 + $0x18] sm:$0xf] %vm573, %v789
  %855 = vst.msk [vmem:[%s847 + $0x1c] sm:$0xf] %vm573, %v790
  %856 = vst.msk [vmem:[%s847 + $0x20] sm:$0xf] %vm573, %v791
  %857 = vst.msk [vmem:[%s847 + $0x24] sm:$0xf] %vm573, %v792
  %858 = vst.msk [vmem:[%s847 + $0x28] sm:$0xf] %vm573, %v793
  %859 = vst.msk [vmem:[%s847 + $0x2c] sm:$0xf] %vm573, %v794
  %860 = vst.msk [vmem:[%s847 + $0x30] sm:$0xf] %vm573, %v795
  %861 = vst.msk [vmem:[%s847 + $0x34] sm:$0xf] %vm573, %v796
  %862 = vst.msk [vmem:[%s847 + $0x38] sm:$0xf] %vm573, %v797
  %863 = vst.msk [vmem:[%s847 + $0x3c] sm:$0xf] %vm573, %v798
  %864 = vst.msk [vmem:[%s847 + $0x40] sm:$0xf] %vm573, %v799
  %865 = vst.msk [vmem:[%s847 + $0x44] sm:$0xf] %vm573, %v800
  %866 = vst.msk [vmem:[%s847 + $0x48] sm:$0xf] %vm573, %v801
  %867 = vst.msk [vmem:[%s847 + $0x4c] sm:$0xf] %vm573, %v802
  %868 = vst.msk [vmem:[%s847 + $0x50] sm:$0xf] %vm573, %v803
  %869 = vst.msk [vmem:[%s847 + $0x54] sm:$0xf] %vm573, %v804
  %870 = vst.msk [vmem:[%s847 + $0x58] sm:$0xf] %vm573, %v805
  %871 = vst.msk [vmem:[%s847 + $0x5c] sm:$0xf] %vm573, %v806
  %872 = vst.msk [vmem:[%s847 + $0x60] sm:$0xf] %vm573, %v807
  %873 = vst.msk [vmem:[%s847 + $0x64] sm:$0xf] %vm573, %v808
  %874 = vst.msk [vmem:[%s847 + $0x68] sm:$0xf] %vm573, %v809
  %875 = vst.msk [vmem:[%s847 + $0x6c] sm:$0xf] %vm573, %v810
  %876 = vst.msk [vmem:[%s847 + $0x70] sm:$0xf] %vm573, %v811
  %877 = vst.msk [vmem:[%s847 + $0x74] sm:$0xf] %vm573, %v812
  %878 = vst.msk [vmem:[%s847 + $0x78] sm:$0xf] %vm573, %v813
  %879 = vst.msk [vmem:[%s847 + $0x7c] sm:$0xf] %vm573, %v814
  // Predicated region
  $region14: #{flash_roberta_forward.8} parent=0 // pred_check
    _
  $region15: #{flash_roberta_forward.8} parent=0 // pred_check_branch
    %881 = sbr.rel (0) target = $region17
  $region16: #{flash_roberta_forward.8} parent=0 // pred_region
    _
  $region17: #{flash_roberta_forward.8} parent=0 // pred_fallthru
    _
  // Predicated region
  $region18: #{flash_roberta_forward.8} parent=0 // pred_check
    _
  $region19: #{flash_roberta_forward.8} parent=0 // pred_check_branch
    %883 = sbr.rel (0) target = $region21
  $region20: #{flash_roberta_forward.8} parent=0 // pred_region
    _
  $region21: #{flash_roberta_forward.8} parent=0 // pred_fallthru
    _

// kernel: flash_roberta_forward.10
$region0: #{flash_roberta_forward.10}
  #allocation0 [shape = 'u32[]', space=smem, size = 0x4, offset = 0x4, fixed_abs, tag = 'smem constant byte address 0x4 - core index']
  #allocation1 [shape = 'u32[144,128]{1,0:T(1,128)}', space=vmem, size = 0x12000, scoped, tag = 'internal scratch']
  %s0 = inlined_call_operand.vmem [shape: bf16[256,64], index: 0, kind: input, shape index: {}]
  %s1 = inlined_call_operand.vmem [shape: bf16[64,64], index: 1, kind: input, shape index: {}]
  %s2 = inlined_call_operand.vmem [shape: f32[1,64], index: 2, kind: input, shape index: {}]
  %s3 = inlined_call_operand.vmem [shape: bf16[256,64], index: 3, kind: input, shape index: {}]
  %s4 = inlined_call_operand.vmem [shape: f32[1,64], index: 4, kind: input, shape index: {}]
  %s5 = inlined_call_operand.vmem [shape: f32[1,64], index: 5, kind: input, shape index: {}]
  %s6 = inlined_call_operand.vmem [shape: bf16[64,128], index: 6, kind: input, shape index: {}]
  %s7 = inlined_call_operand.vmem [shape: f32[1,128], index: 7, kind: input, shape index: {}]
  %s8 = inlined_call_operand.vmem [shape: bf16[128,64], index: 8, kind: input, shape index: {}]
  %s9 = inlined_call_operand.vmem [shape: f32[1,64], index: 9, kind: input, shape index: {}]
  %s10 = inlined_call_operand.vmem [shape: f32[1,64], index: 10, kind: input, shape index: {}]
  %s11 = inlined_call_operand.vmem [shape: f32[1,64], index: 11, kind: input, shape index: {}]
  %s12 = inlined_call_operand.vmem [shape: bf16[256,64], index: 12, kind: output, shape index: {}]
  %s13 = sld [smem:[#allocation0]]
  $region58: #{flash_roberta_forward.10} parent=0
    _
  %s15 = ssub.s32 1, %s13
  %s16 = scalar_select 0, %s15, %s13
  // Predicated region
  $region2: #{flash_roberta_forward.10} parent=0 // pred_check
    _
  $region3: #{flash_roberta_forward.10} parent=0 // pred_check_branch
    %18 = sbr.rel (0) target = $region5
  $region4: #{flash_roberta_forward.10} parent=0 // pred_region
    _
  $region5: #{flash_roberta_forward.10} parent=0 // pred_fallthru
    _
  // Predicated region
  $region6: #{flash_roberta_forward.10} parent=0 // pred_check
    _
  $region7: #{flash_roberta_forward.10} parent=0 // pred_check_branch
    %20 = sbr.rel (0) target = $region9
  $region8: #{flash_roberta_forward.10} parent=0 // pred_region
    _
  $region9: #{flash_roberta_forward.10} parent=0 // pred_fallthru
    _
  // Predicated region
  $region10: #{flash_roberta_forward.10} parent=0 // pred_check
    _
  $region11: #{flash_roberta_forward.10} parent=0 // pred_check_branch
    %22 = sbr.rel (0) target = $region13
  $region12: #{flash_roberta_forward.10} parent=0 // pred_region
    _
  $region13: #{flash_roberta_forward.10} parent=0 // pred_fallthru
    _
  // Predicated region
  $region14: #{flash_roberta_forward.10} parent=0 // pred_check
    _
  $region15: #{flash_roberta_forward.10} parent=0 // pred_check_branch
    %24 = sbr.rel (0) target = $region17
  $region16: #{flash_roberta_forward.10} parent=0 // pred_region
    _
  $region17: #{flash_roberta_forward.10} parent=0 // pred_fallthru
    _
  // Predicated region
  $region18: #{flash_roberta_forward.10} parent=0 // pred_check
    _
  $region19: #{flash_roberta_forward.10} parent=0 // pred_check_branch
    %26 = sbr.rel (0) target = $region21
  $region20: #{flash_roberta_forward.10} parent=0 // pred_region
    _
  $region21: #{flash_roberta_forward.10} parent=0 // pred_fallthru
    _
  // Predicated region
  $region22: #{flash_roberta_forward.10} parent=0 // pred_check
    _
  $region23: #{flash_roberta_forward.10} parent=0 // pred_check_branch
    %28 = sbr.rel (0) target = $region25
  $region24: #{flash_roberta_forward.10} parent=0 // pred_region
    _
  $region25: #{flash_roberta_forward.10} parent=0 // pred_fallthru
    _
  // Predicated region
  $region26: #{flash_roberta_forward.10} parent=0 // pred_check
    _
  $region27: #{flash_roberta_forward.10} parent=0 // pred_check_branch
    %30 = sbr.rel (0) target = $region29
  $region28: #{flash_roberta_forward.10} parent=0 // pred_region
    _
  $region29: #{flash_roberta_forward.10} parent=0 // pred_fallthru
    _
  // Predicated region
  $region30: #{flash_roberta_forward.10} parent=0 // pred_check
    _
  $region31: #{flash_roberta_forward.10} parent=0 // pred_check_branch
    %32 = sbr.rel (0) target = $region33
  $region32: #{flash_roberta_forward.10} parent=0 // pred_region
    _
  $region33: #{flash_roberta_forward.10} parent=0 // pred_fallthru
    _
  // Predicated region
  $region34: #{flash_roberta_forward.10} parent=0 // pred_check
    _
  $region35: #{flash_roberta_forward.10} parent=0 // pred_check_branch
    %34 = sbr.rel (0) target = $region37
  $region36: #{flash_roberta_forward.10} parent=0 // pred_region
    _
  $region37: #{flash_roberta_forward.10} parent=0 // pred_fallthru
    _
  // Predicated region
  $region38: #{flash_roberta_forward.10} parent=0 // pred_check
    _
  $region39: #{flash_roberta_forward.10} parent=0 // pred_check_branch
    %36 = sbr.rel (0) target = $region41
  $region40: #{flash_roberta_forward.10} parent=0 // pred_region
    _
  $region41: #{flash_roberta_forward.10} parent=0 // pred_fallthru
    _
  // Predicated region
  $region42: #{flash_roberta_forward.10} parent=0 // pred_check
    _
  $region43: #{flash_roberta_forward.10} parent=0 // pred_check_branch
    %38 = sbr.rel (0) target = $region45
  $region44: #{flash_roberta_forward.10} parent=0 // pred_region
    _
  $region45: #{flash_roberta_forward.10} parent=0 // pred_fallthru
    _
  // Predicated region
  $region46: #{flash_roberta_forward.10} parent=0 // pred_check
    _
  $region47: #{flash_roberta_forward.10} parent=0 // pred_check_branch
    %40 = sbr.rel (0) target = $region49
  $region48: #{flash_roberta_forward.10} parent=0 // pred_region
    _
  $region49: #{flash_roberta_forward.10} parent=0 // pred_fallthru
    _
  %v42 = vld [vmem:[%s0] sm:$0xf]
  %v43 = vld [vmem:[%s0 + $0x4] sm:$0xf]
  %v44 = vld [vmem:[%s0 + $0x8] sm:$0xf]
  %v45 = vld [vmem:[%s0 + $0xc] sm:$0xf]
  %v46 = vld [vmem:[%s0 + $0x10] sm:$0xf]
  %v47 = vld [vmem:[%s0 + $0x14] sm:$0xf]
  %v48 = vld [vmem:[%s0 + $0x18] sm:$0xf]
  %v49 = vld [vmem:[%s0 + $0x1c] sm:$0xf]
  %v50 = vld [vmem:[%s0 + $0x20] sm:$0xf]
  %v51 = vld [vmem:[%s0 + $0x24] sm:$0xf]
  %v52 = vld [vmem:[%s0 + $0x28] sm:$0xf]
  %v53 = vld [vmem:[%s0 + $0x2c] sm:$0xf]
  %v54 = vld [vmem:[%s0 + $0x30] sm:$0xf]
  %v55 = vld [vmem:[%s0 + $0x34] sm:$0xf]
  %v56 = vld [vmem:[%s0 + $0x38] sm:$0xf]
  %v57 = vld [vmem:[%s0 + $0x3c] sm:$0xf]
  %v58 = vld [vmem:[%s0 + $0x40] sm:$0xf]
  %v59 = vld [vmem:[%s0 + $0x44] sm:$0xf]
  %v60 = vld [vmem:[%s0 + $0x48] sm:$0xf]
  %v61 = vld [vmem:[%s0 + $0x4c] sm:$0xf]
  %v62 = vld [vmem:[%s0 + $0x50] sm:$0xf]
  %v63 = vld [vmem:[%s0 + $0x54] sm:$0xf]
  %v64 = vld [vmem:[%s0 + $0x58] sm:$0xf]
  %v65 = vld [vmem:[%s0 + $0x5c] sm:$0xf]
  %v66 = vld [vmem:[%s0 + $0x60] sm:$0xf]
  %v67 = vld [vmem:[%s0 + $0x64] sm:$0xf]
  %v68 = vld [vmem:[%s0 + $0x68] sm:$0xf]
  %v69 = vld [vmem:[%s0 + $0x6c] sm:$0xf]
  %v70 = vld [vmem:[%s0 + $0x70] sm:$0xf]
  %v71 = vld [vmem:[%s0 + $0x74] sm:$0xf]
  %v72 = vld [vmem:[%s0 + $0x78] sm:$0xf]
  %v73 = vld [vmem:[%s0 + $0x7c] sm:$0xf]
  %v74 = vld [vmem:[%s1] sm:$0xf]
  %v75 = vld [vmem:[%s1 + $0x4] sm:$0xf]
  %v76 = vld [vmem:[%s1 + $0x8] sm:$0xf]
  %v77 = vld [vmem:[%s1 + $0xc] sm:$0xf]
  %v78 = vld [vmem:[%s1 + $0x10] sm:$0xf]
  %v79 = vld [vmem:[%s1 + $0x14] sm:$0xf]
  %v80 = vld [vmem:[%s1 + $0x18] sm:$0xf]
  %v81 = vld [vmem:[%s1 + $0x1c] sm:$0xf]
  %v82 = vld [vmem:[%s2] sm:$0x1]
  %v84 = vlaneseq
  %v85 = vshrl.u32 %v84, 7
  %v86 = vsub.s32 0, %v85
  %v87 = vrot.slane %v82, %v86
  %v121 = vunpack.c.l.b16 %v42
  %v122 = vunpack.c.l.b16 %v43
  %v123 = vunpack.c.l.b16 %v44
  %v124 = vunpack.c.l.b16 %v45
  %v125 = vunpack.c.l.b16 %v46
  %v126 = vunpack.c.l.b16 %v47
  %v127 = vunpack.c.l.b16 %v48
  %v128 = vunpack.c.l.b16 %v49
  %v129 = vunpack.c.l.b16 %v50
  %v130 = vunpack.c.l.b16 %v51
  %v131 = vunpack.c.l.b16 %v52
  %v132 = vunpack.c.l.b16 %v53
  %v133 = vunpack.c.l.b16 %v54
  %v134 = vunpack.c.l.b16 %v55
  %v135 = vunpack.c.l.b16 %v56
  %v136 = vunpack.c.l.b16 %v57
  %v137 = vunpack.c.l.b16 %v58
  %v138 = vunpack.c.l.b16 %v59
  %v139 = vunpack.c.l.b16 %v60
  %v140 = vunpack.c.l.b16 %v61
  %v141 = vunpack.c.l.b16 %v62
  %v142 = vunpack.c.l.b16 %v63
  %v143 = vunpack.c.l.b16 %v64
  %v144 = vunpack.c.l.b16 %v65
  %v145 = vunpack.c.l.b16 %v66
  %v146 = vunpack.c.l.b16 %v67
  %v147 = vunpack.c.l.b16 %v68
  %v148 = vunpack.c.l.b16 %v69
  %v149 = vunpack.c.l.b16 %v70
  %v150 = vunpack.c.l.b16 %v71
  %v151 = vunpack.c.l.b16 %v72
  %v152 = vunpack.c.l.b16 %v73
  %v153 = vpack.c.b16 %v122, %v121
  %v154 = vpack.c.b16 %v124, %v123
  %v155 = vpack.c.b16 %v126, %v125
  %v156 = vpack.c.b16 %v128, %v127
  %v157 = vpack.c.b16 %v130, %v129
  %v158 = vpack.c.b16 %v132, %v131
  %v159 = vpack.c.b16 %v134, %v133
  %v160 = vpack.c.b16 %v136, %v135
  %v161 = vpack.c.b16 %v138, %v137
  %v162 = vpack.c.b16 %v140, %v139
  %v163 = vpack.c.b16 %v142, %v141
  %v164 = vpack.c.b16 %v144, %v143
  %v165 = vpack.c.b16 %v146, %v145
  %v166 = vpack.c.b16 %v148, %v147
  %v167 = vpack.c.b16 %v150, %v149
  %v168 = vpack.c.b16 %v152, %v151
  %v177 = vunpack.c.l.b16 %v74
  %v178 = vunpack.c.l.b16 %v75
  %v179 = vunpack.c.l.b16 %v76
  %v180 = vunpack.c.l.b16 %v77
  %v181 = vunpack.c.l.b16 %v78
  %v182 = vunpack.c.l.b16 %v79
  %v183 = vunpack.c.l.b16 %v80
  %v184 = vunpack.c.l.b16 %v81
  %v185 = vpack.c.b16 %v178, %v177
  %v186 = vpack.c.b16 %v180, %v179
  %v187 = vpack.c.b16 %v182, %v181
  %v188 = vpack.c.b16 %v184, %v183
  %vm193 = vcmask 523264
  %v195 = vsel %vm193, %v153, 0
  %v198 = vsel %vm193, %v154, 0
  %v201 = vsel %vm193, %v155, 0
  %v204 = vsel %vm193, %v156, 0
  %v207 = vsel %vm193, %v157, 0
  %v210 = vsel %vm193, %v158, 0
  %v213 = vsel %vm193, %v159, 0
  %v216 = vsel %vm193, %v160, 0
  %v219 = vsel %vm193, %v161, 0
  %v222 = vsel %vm193, %v162, 0
  %v225 = vsel %vm193, %v163, 0
  %v228 = vsel %vm193, %v164, 0
  %v231 = vsel %vm193, %v165, 0
  %v234 = vsel %vm193, %v166, 0
  %v237 = vsel %vm193, %v167, 0
  %v240 = vsel %vm193, %v168, 0
  %242 = vmatprep.subr.bf16.mxu0 0
  %243 = vmatpush1.bf16.msra.mxu0 %v185
  %244 = vmatprep.subr.bf16.mxu0 0
  %245 = vmatpush1.bf16.msra.mxu0 %v186
  %246 = vmatprep.subr.bf16.mxu0 0
  %247 = vmatpush1.bf16.msra.mxu0 %v187
  %248 = vmatprep.subr.bf16.mxu0 0
  %249 = vmatpush1.bf16.msra.mxu0 %v188
  %250 = vmatprep.subr.bf16.mxu0 0
  %251 = vmatpush1.bf16.msra.mxu0 0
  %252 = vmatprep.subr.bf16.mxu0 0
  %253 = vmatpush1.bf16.msra.mxu0 0
  %254 = vmatprep.subr.bf16.mxu0 0
  %255 = vmatpush1.bf16.msra.mxu0 0
  %256 = vmatprep.subr.bf16.mxu0 0
  %257 = vmatpush1.bf16.msra.mxu0 0
  %258 = vmatprep.subr.bf16.mxu0 0
  %259 = vmatpush1.bf16.msra.mxu0 0
  %260 = vmatprep.subr.bf16.mxu0 0
  %261 = vmatpush1.bf16.msra.mxu0 0
  %262 = vmatprep.subr.bf16.mxu0 0
  %263 = vmatpush1.bf16.msra.mxu0 0
  %264 = vmatprep.subr.bf16.mxu0 0
  %265 = vmatpush1.bf16.msra.mxu0 0
  %266 = vmatprep.subr.bf16.mxu0 0
  %267 = vmatpush1.bf16.msra.mxu0 0
  %268 = vmatprep.subr.bf16.mxu0 0
  %269 = vmatpush1.bf16.msra.mxu0 0
  %270 = vmatprep.subr.bf16.mxu0 0
  %271 = vmatpush1.bf16.msra.mxu0 0
  %272 = vmatprep.subr.bf16.mxu0 0
  %273 = vmatpush1.bf16.msra.mxu0 0
  %274 = vmatprep.mubr.bf16.mxu0 0
  %275 = vmatmul.mubr.bf16.gmra.mrb[0].mxu0 %v195
  %v276 = vpop.f32.mrb[0].mxu0
  %v277 = vadd.f32 %v87, %v276
  %v278 = vpop.f32.mrb[0].mxu0
  %v279 = vpop.f32.mrb[0].mxu0
  %v280 = vadd.f32 %v87, %v279
  %v281 = vpop.f32.mrb[0].mxu0
  %282 = vmatprep.mubr.bf16.mxu0 0
  %283 = vmatmul.mubr.bf16.gmra.mrb[0].mxu0 %v198
  %v284 = vpop.f32.mrb[0].mxu0
  %v285 = vadd.f32 %v87, %v284
  %v286 = vpop.f32.mrb[0].mxu0
  %v287 = vpop.f32.mrb[0].mxu0
  %v288 = vadd.f32 %v87, %v287
  %v289 = vpop.f32.mrb[0].mxu0
  %290 = vmatprep.mubr.bf16.mxu0 0
  %291 = vmatmul.mubr.bf16.gmra.mrb[0].mxu0 %v201
  %v292 = vpop.f32.mrb[0].mxu0
  %v293 = vadd.f32 %v87, %v292
  %v294 = vpop.f32.mrb[0].mxu0
  %v295 = vpop.f32.mrb[0].mxu0
  %v296 = vadd.f32 %v87, %v295
  %v297 = vpop.f32.mrb[0].mxu0
  %298 = vmatprep.mubr.bf16.mxu0 0
  %299 = vmatmul.mubr.bf16.gmra.mrb[0].mxu0 %v204
  %v300 = vpop.f32.mrb[0].mxu0
  %v301 = vadd.f32 %v87, %v300
  %v302 = vpop.f32.mrb[0].mxu0
  %v303 = vpop.f32.mrb[0].mxu0
  %v304 = vadd.f32 %v87, %v303
  %v305 = vpop.f32.mrb[0].mxu0
  %306 = vmatprep.mubr.bf16.mxu0 0
  %307 = vmatmul.mubr.bf16.gmra.mrb[0].mxu0 %v207
  %v308 = vpop.f32.mrb[0].mxu0
  %v309 = vadd.f32 %v87, %v308
  %v310 = vpop.f32.mrb[0].mxu0
  %v311 = vpop.f32.mrb[0].mxu0
  %v312 = vadd.f32 %v87, %v311
  %v313 = vpop.f32.mrb[0].mxu0
  %314 = vmatprep.mubr.bf16.mxu0 0
  %315 = vmatmul.mubr.bf16.gmra.mrb[0].mxu0 %v210
  %v316 = vpop.f32.mrb[0].mxu0
  %v317 = vadd.f32 %v87, %v316
  %v318 = vpop.f32.mrb[0].mxu0
  %v319 = vpop.f32.mrb[0].mxu0
  %v320 = vadd.f32 %v87, %v319
  %v321 = vpop.f32.mrb[0].mxu0
  %322 = vmatprep.mubr.bf16.mxu0 0
  %323 = vmatmul.mubr.bf16.gmra.mrb[0].mxu0 %v213
  %v324 = vpop.f32.mrb[0].mxu0
  %v325 = vadd.f32 %v87, %v324
  %v326 = vpop.f32.mrb[0].mxu0
  %v327 = vpop.f32.mrb[0].mxu0
  %v328 = vadd.f32 %v87, %v327
  %v329 = vpop.f32.mrb[0].mxu0
  %330 = vmatprep.mubr.bf16.mxu0 0
  %331 = vmatmul.mubr.bf16.gmra.mrb[0].mxu0 %v216
  %v332 = vpop.f32.mrb[0].mxu0
  %v333 = vadd.f32 %v87, %v332
  %v334 = vpop.f32.mrb[0].mxu0
  %v335 = vpop.f32.mrb[0].mxu0
  %v336 = vadd.f32 %v87, %v335
  %v337 = vpop.f32.mrb[0].mxu0
  %338 = vmatprep.mubr.bf16.mxu0 0
  %339 = vmatmul.mubr.bf16.gmra.mrb[0].mxu0 %v219
  %v340 = vpop.f32.mrb[0].mxu0
  %v341 = vadd.f32 %v87, %v340
  %v342 = vpop.f32.mrb[0].mxu0
  %v343 = vpop.f32.mrb[0].mxu0
  %v344 = vadd.f32 %v87, %v343
  %v345 = vpop.f32.mrb[0].mxu0
  %346 = vmatprep.mubr.bf16.mxu0 0
  %347 = vmatmul.mubr.bf16.gmra.mrb[0].mxu0 %v222
  %v348 = vpop.f32.mrb[0].mxu0
  %v349 = vadd.f32 %v87, %v348
  %v350 = vpop.f32.mrb[0].mxu0
  %v351 = vpop.f32.mrb[0].mxu0
  %v352 = vadd.f32 %v87, %v351
  %v353 = vpop.f32.mrb[0].mxu0
  %354 = vmatprep.mubr.bf16.mxu0 0
  %355 = vmatmul.mubr.bf16.gmra.mrb[0].mxu0 %v225
  %v356 = vpop.f32.mrb[0].mxu0
  %v357 = vadd.f32 %v87, %v356
  %v358 = vpop.f32.mrb[0].mxu0
  %v359 = vpop.f32.mrb[0].mxu0
  %v360 = vadd.f32 %v87, %v359
  %v361 = vpop.f32.mrb[0].mxu0
  %362 = vmatprep.mubr.bf16.mxu0 0
  %363 = vmatmul.mubr.bf16.gmra.mrb[0].mxu0 %v228
  %v364 = vpop.f32.mrb[0].mxu0
  %v365 = vadd.f32 %v87, %v364
  %v366 = vpop.f32.mrb[0].mxu0
  %v367 = vpop.f32.mrb[0].mxu0
  %v368 = vadd.f32 %v87, %v367
  %v369 = vpop.f32.mrb[0].mxu0
  %370 = vmatprep.mubr.bf16.mxu0 0
  %371 = vmatmul.mubr.bf16.gmra.mrb[0].mxu0 %v231
  %v372 = vpop.f32.mrb[0].mxu0
  %v373 = vadd.f32 %v87, %v372
  %v374 = vpop.f32.mrb[0].mxu0
  %v375 = vpop.f32.mrb[0].mxu0
  %v376 = vadd.f32 %v87, %v375
  %v377 = vpop.f32.mrb[0].mxu0
  %378 = vmatprep.mubr.bf16.mxu0 0
  %379 = vmatmul.mubr.bf16.gmra.mrb[0].mxu0 %v234
  %v380 = vpop.f32.mrb[0].mxu0
  %v381 = vadd.f32 %v87, %v380
  %v382 = vpop.f32.mrb[0].mxu0
  %v383 = vpop.f32.mrb[0].mxu0
  %v384 = vadd.f32 %v87, %v383
  %v385 = vpop.f32.mrb[0].mxu0
  %386 = vmatprep.mubr.bf16.mxu0 0
  %387 = vmatmul.mubr.bf16.gmra.mrb[0].mxu0 %v237
  %v388 = vpop.f32.mrb[0].mxu0
  %v389 = vadd.f32 %v87, %v388
  %v390 = vpop.f32.mrb[0].mxu0
  %v391 = vpop.f32.mrb[0].mxu0
  %v392 = vadd.f32 %v87, %v391
  %v393 = vpop.f32.mrb[0].mxu0
  %394 = vmatprep.mubr.bf16.mxu0 0
  %395 = vmatmul.mubr.bf16.gmra.mrb[0].mxu0 %v240
  %v396 = vpop.f32.mrb[0].mxu0
  %v397 = vadd.f32 %v87, %v396
  %v398 = vpop.f32.mrb[0].mxu0
  %v399 = vpop.f32.mrb[0].mxu0
  %v400 = vadd.f32 %v87, %v399
  %v401 = vpop.f32.mrb[0].mxu0
  %402 = vdwg.mxu0
  %v403 = vld [vmem:[%s3] sm:$0xf]
  %v404 = vld [vmem:[%s3 + $0x4] sm:$0xf]
  %v405 = vld [vmem:[%s3 + $0x8] sm:$0xf]
  %v406 = vld [vmem:[%s3 + $0xc] sm:$0xf]
  %v407 = vld [vmem:[%s3 + $0x10] sm:$0xf]
  %v408 = vld [vmem:[%s3 + $0x14] sm:$0xf]
  %v409 = vld [vmem:[%s3 + $0x18] sm:$0xf]
  %v410 = vld [vmem:[%s3 + $0x1c] sm:$0xf]
  %v411 = vld [vmem:[%s3 + $0x20] sm:$0xf]
  %v412 = vld [vmem:[%s3 + $0x24] sm:$0xf]
  %v413 = vld [vmem:[%s3 + $0x28] sm:$0xf]
  %v414 = vld [vmem:[%s3 + $0x2c] sm:$0xf]
  %v415 = vld [vmem:[%s3 + $0x30] sm:$0xf]
  %v416 = vld [vmem:[%s3 + $0x34] sm:$0xf]
  %v417 = vld [vmem:[%s3 + $0x38] sm:$0xf]
  %v418 = vld [vmem:[%s3 + $0x3c] sm:$0xf]
  %v419 = vld [vmem:[%s3 + $0x40] sm:$0xf]
  %v420 = vld [vmem:[%s3 + $0x44] sm:$0xf]
  %v421 = vld [vmem:[%s3 + $0x48] sm:$0xf]
  %v422 = vld [vmem:[%s3 + $0x4c] sm:$0xf]
  %v423 = vld [vmem:[%s3 + $0x50] sm:$0xf]
  %v424 = vld [vmem:[%s3 + $0x54] sm:$0xf]
  %v425 = vld [vmem:[%s3 + $0x58] sm:$0xf]
  %v426 = vld [vmem:[%s3 + $0x5c] sm:$0xf]
  %v427 = vld [vmem:[%s3 + $0x60] sm:$0xf]
  %v428 = vld [vmem:[%s3 + $0x64] sm:$0xf]
  %v429 = vld [vmem:[%s3 + $0x68] sm:$0xf]
  %v430 = vld [vmem:[%s3 + $0x6c] sm:$0xf]
  %v431 = vld [vmem:[%s3 + $0x70] sm:$0xf]
  %v432 = vld [vmem:[%s3 + $0x74] sm:$0xf]
  %v433 = vld [vmem:[%s3 + $0x78] sm:$0xf]
  %v434 = vld [vmem:[%s3 + $0x7c] sm:$0xf]
  %v435 = vunpack.c.l.bf16 %v403
  %v436 = vunpack.c.l.bf16 %v404
  %v437 = vunpack.c.l.bf16 %v405
  %v438 = vunpack.c.l.bf16 %v406
  %v439 = vunpack.c.l.bf16 %v407
  %v440 = vunpack.c.l.bf16 %v408
  %v441 = vunpack.c.l.bf16 %v409
  %v442 = vunpack.c.l.bf16 %v410
  %v443 = vunpack.c.l.bf16 %v411
  %v444 = vunpack.c.l.bf16 %v412
  %v445 = vunpack.c.l.bf16 %v413
  %v446 = vunpack.c.l.bf16 %v414
  %v447 = vunpack.c.l.bf16 %v415
  %v448 = vunpack.c.l.bf16 %v416
  %v449 = vunpack.c.l.bf16 %v417
  %v450 = vunpack.c.l.bf16 %v418
  %v451 = vunpack.c.l.bf16 %v419
  %v452 = vunpack.c.l.bf16 %v420
  %v453 = vunpack.c.l.bf16 %v421
  %v454 = vunpack.c.l.bf16 %v422
  %v455 = vunpack.c.l.bf16 %v423
  %v456 = vunpack.c.l.bf16 %v424
  %v457 = vunpack.c.l.bf16 %v425
  %v458 = vunpack.c.l.bf16 %v426
  %v459 = vunpack.c.l.bf16 %v427
  %v460 = vunpack.c.l.bf16 %v428
  %v461 = vunpack.c.l.bf16 %v429
  %v462 = vunpack.c.l.bf16 %v430
  %v463 = vunpack.c.l.bf16 %v431
  %v464 = vunpack.c.l.bf16 %v432
  %v465 = vunpack.c.l.bf16 %v433
  %v466 = vunpack.c.l.bf16 %v434
  %v467 = vadd.f32 %v277, %v435
  %v468 = vadd.f32 %v280, %v436
  %v469 = vadd.f32 %v285, %v437
  %v470 = vadd.f32 %v288, %v438
  %v471 = vadd.f32 %v293, %v439
  %v472 = vadd.f32 %v296, %v440
  %v473 = vadd.f32 %v301, %v441
  %v474 = vadd.f32 %v304, %v442
  %v475 = vadd.f32 %v309, %v443
  %v476 = vadd.f32 %v312, %v444
  %v477 = vadd.f32 %v317, %v445
  %v478 = vadd.f32 %v320, %v446
  %v479 = vadd.f32 %v325, %v447
  %v480 = vadd.f32 %v328, %v448
  %v481 = vadd.f32 %v333, %v449
  %v482 = vadd.f32 %v336, %v450
  %v483 = vadd.f32 %v341, %v451
  %v484 = vadd.f32 %v344, %v452
  %v485 = vadd.f32 %v349, %v453
  %v486 = vadd.f32 %v352, %v454
  %v487 = vadd.f32 %v357, %v455
  %v488 = vadd.f32 %v360, %v456
  %v489 = vadd.f32 %v365, %v457
  %v490 = vadd.f32 %v368, %v458
  %v491 = vadd.f32 %v373, %v459
  %v492 = vadd.f32 %v376, %v460
  %v493 = vadd.f32 %v381, %v461
  %v494 = vadd.f32 %v384, %v462
  %v495 = vadd.f32 %v389, %v463
  %v496 = vadd.f32 %v392, %v464
  %v497 = vadd.f32 %v397, %v465
  %v498 = vadd.f32 %v400, %v466
  %v499 = vld [vmem:[%s4] sm:$0x1]
  %v500 = vld [vmem:[%s5] sm:$0x1]
  %v501 = vsel %vm193, %v467, 0.0
  %502 = vadd.xlane.f32.xlu0 %v501
  %v503 = vpop.xlane.xlu0 %502
  %v504 = vsel %vm193, %v468, 0.0
  %505 = vadd.xlane.f32.xlu0 %v504
  %v506 = vpop.xlane.xlu0 %505
  %v507 = vsel %vm193, %v469, 0.0
  %508 = vadd.xlane.f32.xlu0 %v507
  %v509 = vpop.xlane.xlu0 %508
  %v510 = vsel %vm193, %v470, 0.0
  %511 = vadd.xlane.f32.xlu0 %v510
  %v512 = vpop.xlane.xlu0 %511
  %v513 = vsel %vm193, %v471, 0.0
  %514 = vadd.xlane.f32.xlu0 %v513
  %v515 = vpop.xlane.xlu0 %514
  %v516 = vsel %vm193, %v472, 0.0
  %517 = vadd.xlane.f32.xlu0 %v516
  %v518 = vpop.xlane.xlu0 %517
  %v519 = vsel %vm193, %v473, 0.0
  %520 = vadd.xlane.f32.xlu0 %v519
  %v521 = vpop.xlane.xlu0 %520
  %v522 = vsel %vm193, %v474, 0.0
  %523 = vadd.xlane.f32.xlu0 %v522
  %v524 = vpop.xlane.xlu0 %523
  %v525 = vsel %vm193, %v475, 0.0
  %526 = vadd.xlane.f32.xlu0 %v525
  %v527 = vpop.xlane.xlu0 %526
  %v528 = vsel %vm193, %v476, 0.0
  %529 = vadd.xlane.f32.xlu0 %v528
  %v530 = vpop.xlane.xlu0 %529
  %v531 = vsel %vm193, %v477, 0.0
  %532 = vadd.xlane.f32.xlu0 %v531
  %v533 = vpop.xlane.xlu0 %532
  %v534 = vsel %vm193, %v478, 0.0
  %535 = vadd.xlane.f32.xlu0 %v534
  %v536 = vpop.xlane.xlu0 %535
  %v537 = vsel %vm193, %v479, 0.0
  %538 = vadd.xlane.f32.xlu0 %v537
  %v539 = vpop.xlane.xlu0 %538
  %v540 = vsel %vm193, %v480, 0.0
  %541 = vadd.xlane.f32.xlu0 %v540
  %v542 = vpop.xlane.xlu0 %541
  %v543 = vsel %vm193, %v481, 0.0
  %544 = vadd.xlane.f32.xlu0 %v543
  %v545 = vpop.xlane.xlu0 %544
  %v546 = vsel %vm193, %v482, 0.0
  %547 = vadd.xlane.f32.xlu0 %v546
  %v548 = vpop.xlane.xlu0 %547
  %v549 = vsel %vm193, %v483, 0.0
  %550 = vadd.xlane.f32.xlu0 %v549
  %v551 = vpop.xlane.xlu0 %550
  %v552 = vsel %vm193, %v484, 0.0
  %553 = vadd.xlane.f32.xlu0 %v552
  %v554 = vpop.xlane.xlu0 %553
  %v555 = vsel %vm193, %v485, 0.0
  %556 = vadd.xlane.f32.xlu0 %v555
  %v557 = vpop.xlane.xlu0 %556
  %v558 = vsel %vm193, %v486, 0.0
  %559 = vadd.xlane.f32.xlu0 %v558
  %v560 = vpop.xlane.xlu0 %559
  %v561 = vsel %vm193, %v487, 0.0
  %562 = vadd.xlane.f32.xlu0 %v561
  %v563 = vpop.xlane.xlu0 %562
  %v564 = vsel %vm193, %v488, 0.0
  %565 = vadd.xlane.f32.xlu0 %v564
  %v566 = vpop.xlane.xlu0 %565
  %v567 = vsel %vm193, %v489, 0.0
  %568 = vadd.xlane.f32.xlu0 %v567
  %v569 = vpop.xlane.xlu0 %568
  %v570 = vsel %vm193, %v490, 0.0
  %571 = vadd.xlane.f32.xlu0 %v570
  %v572 = vpop.xlane.xlu0 %571
  %v573 = vsel %vm193, %v491, 0.0
  %574 = vadd.xlane.f32.xlu0 %v573
  %v575 = vpop.xlane.xlu0 %574
  %v576 = vsel %vm193, %v492, 0.0
  %577 = vadd.xlane.f32.xlu0 %v576
  %v578 = vpop.xlane.xlu0 %577
  %v579 = vsel %vm193, %v493, 0.0
  %580 = vadd.xlane.f32.xlu0 %v579
  %v581 = vpop.xlane.xlu0 %580
  %v582 = vsel %vm193, %v494, 0.0
  %583 = vadd.xlane.f32.xlu0 %v582
  %v584 = vpop.xlane.xlu0 %583
  %v585 = vsel %vm193, %v495, 0.0
  %586 = vadd.xlane.f32.xlu0 %v585
  %v587 = vpop.xlane.xlu0 %586
  %v588 = vsel %vm193, %v496, 0.0
  %589 = vadd.xlane.f32.xlu0 %v588
  %v590 = vpop.xlane.xlu0 %589
  %v591 = vsel %vm193, %v497, 0.0
  %592 = vadd.xlane.f32.xlu0 %v591
  %v593 = vpop.xlane.xlu0 %592
  %v594 = vsel %vm193, %v498, 0.0
  %595 = vadd.xlane.f32.xlu0 %v594
  %v596 = vpop.xlane.xlu0 %595
  %v597 = vrcp.pop 64.0
  %v598 = vmul.f32 %v503, %v597
  %v599 = vmul.f32 %v506, %v597
  %v600 = vmul.f32 %v509, %v597
  %v601 = vmul.f32 %v512, %v597
  %v602 = vmul.f32 %v515, %v597
  %v603 = vmul.f32 %v518, %v597
  %v604 = vmul.f32 %v521, %v597
  %v605 = vmul.f32 %v524, %v597
  %v606 = vmul.f32 %v527, %v597
  %v607 = vmul.f32 %v530, %v597
  %v608 = vmul.f32 %v533, %v597
  %v609 = vmul.f32 %v536, %v597
  %v610 = vmul.f32 %v539, %v597
  %v611 = vmul.f32 %v542, %v597
  %v612 = vmul.f32 %v545, %v597
  %v613 = vmul.f32 %v548, %v597
  %v614 = vmul.f32 %v551, %v597
  %v615 = vmul.f32 %v554, %v597
  %v616 = vmul.f32 %v557, %v597
  %v617 = vmul.f32 %v560, %v597
  %v618 = vmul.f32 %v563, %v597
  %v619 = vmul.f32 %v566, %v597
  %v620 = vmul.f32 %v569, %v597
  %v621 = vmul.f32 %v572, %v597
  %v622 = vmul.f32 %v575, %v597
  %v623 = vmul.f32 %v578, %v597
  %v624 = vmul.f32 %v581, %v597
  %v625 = vmul.f32 %v584, %v597
  %v626 = vmul.f32 %v587, %v597
  %v627 = vmul.f32 %v590, %v597
  %v628 = vmul.f32 %v593, %v597
  %v629 = vmul.f32 %v596, %v597
  %v630 = vsub.f32 %v467, %v598
  %v631 = vsub.f32 %v468, %v599
  %v632 = vsub.f32 %v469, %v600
  %v633 = vsub.f32 %v470, %v601
  %v634 = vsub.f32 %v471, %v602
  %v635 = vsub.f32 %v472, %v603
  %v636 = vsub.f32 %v473, %v604
  %v637 = vsub.f32 %v474, %v605
  %v638 = vsub.f32 %v475, %v606
  %v639 = vsub.f32 %v476, %v607
  %v640 = vsub.f32 %v477, %v608
  %v641 = vsub.f32 %v478, %v609
  %v642 = vsub.f32 %v479, %v610
  %v643 = vsub.f32 %v480, %v611
  %v644 = vsub.f32 %v481, %v612
  %v645 = vsub.f32 %v482, %v613
  %v646 = vsub.f32 %v483, %v614
  %v647 = vsub.f32 %v484, %v615
  %v648 = vsub.f32 %v485, %v616
  %v649 = vsub.f32 %v486, %v617
  %v650 = vsub.f32 %v487, %v618
  %v651 = vsub.f32 %v488, %v619
  %v652 = vsub.f32 %v489, %v620
  %v653 = vsub.f32 %v490, %v621
  %v654 = vsub.f32 %v491, %v622
  %v655 = vsub.f32 %v492, %v623
  %v656 = vsub.f32 %v493, %v624
  %v657 = vsub.f32 %v494, %v625
  %v658 = vsub.f32 %v495, %v626
  %v659 = vsub.f32 %v496, %v627
  %v660 = vsub.f32 %v497, %v628
  %v661 = vsub.f32 %v498, %v629
  %v662 = vmul.f32 %v630, %v630
  %v663 = vmul.f32 %v631, %v631
  %v664 = vmul.f32 %v632, %v632
  %v665 = vmul.f32 %v633, %v633
  %v666 = vmul.f32 %v634, %v634
  %v667 = vmul.f32 %v635, %v635
  %v668 = vmul.f32 %v636, %v636
  %v669 = vmul.f32 %v637, %v637
  %v670 = vmul.f32 %v638, %v638
  %v671 = vmul.f32 %v639, %v639
  %v672 = vmul.f32 %v640, %v640
  %v673 = vmul.f32 %v641, %v641
  %v674 = vmul.f32 %v642, %v642
  %v675 = vmul.f32 %v643, %v643
  %v676 = vmul.f32 %v644, %v644
  %v677 = vmul.f32 %v645, %v645
  %v678 = vmul.f32 %v646, %v646
  %v679 = vmul.f32 %v647, %v647
  %v680 = vmul.f32 %v648, %v648
  %v681 = vmul.f32 %v649, %v649
  %v682 = vmul.f32 %v650, %v650
  %v683 = vmul.f32 %v651, %v651
  %v684 = vmul.f32 %v652, %v652
  %v685 = vmul.f32 %v653, %v653
  %v686 = vmul.f32 %v654, %v654
  %v687 = vmul.f32 %v655, %v655
  %v688 = vmul.f32 %v656, %v656
  %v689 = vmul.f32 %v657, %v657
  %v690 = vmul.f32 %v658, %v658
  %v691 = vmul.f32 %v659, %v659
  %v692 = vmul.f32 %v660, %v660
  %v693 = vmul.f32 %v661, %v661
  %v694 = vsel %vm193, %v662, 0.0
  %695 = vadd.xlane.f32.xlu0 %v694
  %v696 = vpop.xlane.xlu0 %695
  %v697 = vsel %vm193, %v663, 0.0
  %698 = vadd.xlane.f32.xlu0 %v697
  %v699 = vpop.xlane.xlu0 %698
  %v700 = vsel %vm193, %v664, 0.0
  %701 = vadd.xlane.f32.xlu0 %v700
  %v702 = vpop.xlane.xlu0 %701
  %v703 = vsel %vm193, %v665, 0.0
  %704 = vadd.xlane.f32.xlu0 %v703
  %v705 = vpop.xlane.xlu0 %704
  %v706 = vsel %vm193, %v666, 0.0
  %707 = vadd.xlane.f32.xlu0 %v706
  %v708 = vpop.xlane.xlu0 %707
  %v709 = vsel %vm193, %v667, 0.0
  %710 = vadd.xlane.f32.xlu0 %v709
  %v711 = vpop.xlane.xlu0 %710
  %v712 = vsel %vm193, %v668, 0.0
  %713 = vadd.xlane.f32.xlu0 %v712
  %v714 = vpop.xlane.xlu0 %713
  %v715 = vsel %vm193, %v669, 0.0
  %716 = vadd.xlane.f32.xlu0 %v715
  %v717 = vpop.xlane.xlu0 %716
  %v718 = vsel %vm193, %v670, 0.0
  %719 = vadd.xlane.f32.xlu0 %v718
  %v720 = vpop.xlane.xlu0 %719
  %v721 = vsel %vm193, %v671, 0.0
  %722 = vadd.xlane.f32.xlu0 %v721
  %v723 = vpop.xlane.xlu0 %722
  %v724 = vsel %vm193, %v672, 0.0
  %725 = vadd.xlane.f32.xlu0 %v724
  %v726 = vpop.xlane.xlu0 %725
  %v727 = vsel %vm193, %v673, 0.0
  %728 = vadd.xlane.f32.xlu0 %v727
  %v729 = vpop.xlane.xlu0 %728
  %v730 = vsel %vm193, %v674, 0.0
  %731 = vadd.xlane.f32.xlu0 %v730
  %v732 = vpop.xlane.xlu0 %731
  %v733 = vsel %vm193, %v675, 0.0
  %734 = vadd.xlane.f32.xlu0 %v733
  %v735 = vpop.xlane.xlu0 %734
  %v736 = vsel %vm193, %v676, 0.0
  %737 = vadd.xlane.f32.xlu0 %v736
  %v738 = vpop.xlane.xlu0 %737
  %v739 = vsel %vm193, %v677, 0.0
  %740 = vadd.xlane.f32.xlu0 %v739
  %v741 = vpop.xlane.xlu0 %740
  %v742 = vsel %vm193, %v678, 0.0
  %743 = vadd.xlane.f32.xlu0 %v742
  %v744 = vpop.xlane.xlu0 %743
  %v745 = vsel %vm193, %v679, 0.0
  %746 = vadd.xlane.f32.xlu0 %v745
  %v747 = vpop.xlane.xlu0 %746
  %v748 = vsel %vm193, %v680, 0.0
  %749 = vadd.xlane.f32.xlu0 %v748
  %v750 = vpop.xlane.xlu0 %749
  %v751 = vsel %vm193, %v681, 0.0
  %752 = vadd.xlane.f32.xlu0 %v751
  %v753 = vpop.xlane.xlu0 %752
  %v754 = vsel %vm193, %v682, 0.0
  %755 = vadd.xlane.f32.xlu0 %v754
  %v756 = vpop.xlane.xlu0 %755
  %v757 = vsel %vm193, %v683, 0.0
  %758 = vadd.xlane.f32.xlu0 %v757
  %v759 = vpop.xlane.xlu0 %758
  %v760 = vsel %vm193, %v684, 0.0
  %761 = vadd.xlane.f32.xlu0 %v760
  %v762 = vpop.xlane.xlu0 %761
  %v763 = vsel %vm193, %v685, 0.0
  %764 = vadd.xlane.f32.xlu0 %v763
  %v765 = vpop.xlane.xlu0 %764
  %v766 = vsel %vm193, %v686, 0.0
  %767 = vadd.xlane.f32.xlu0 %v766
  %v768 = vpop.xlane.xlu0 %767
  %v769 = vsel %vm193, %v687, 0.0
  %770 = vadd.xlane.f32.xlu0 %v769
  %v771 = vpop.xlane.xlu0 %770
  %v772 = vsel %vm193, %v688, 0.0
  %773 = vadd.xlane.f32.xlu0 %v772
  %v774 = vpop.xlane.xlu0 %773
  %v775 = vsel %vm193, %v689, 0.0
  %776 = vadd.xlane.f32.xlu0 %v775
  %v777 = vpop.xlane.xlu0 %776
  %v778 = vsel %vm193, %v690, 0.0
  %779 = vadd.xlane.f32.xlu0 %v778
  %v780 = vpop.xlane.xlu0 %779
  %v781 = vsel %vm193, %v691, 0.0
  %782 = vadd.xlane.f32.xlu0 %v781
  %v783 = vpop.xlane.xlu0 %782
  %v784 = vsel %vm193, %v692, 0.0
  %785 = vadd.xlane.f32.xlu0 %v784
  %v786 = vpop.xlane.xlu0 %785
  %v787 = vsel %vm193, %v693, 0.0
  %788 = vadd.xlane.f32.xlu0 %v787
  %v789 = vpop.xlane.xlu0 %788
  %v790 = vmul.f32 %v696, %v597
  %v791 = vmul.f32 %v699, %v597
  %v792 = vmul.f32 %v702, %v597
  %v793 = vmul.f32 %v705, %v597
  %v794 = vmul.f32 %v708, %v597
  %v795 = vmul.f32 %v711, %v597
  %v796 = vmul.f32 %v714, %v597
  %v797 = vmul.f32 %v717, %v597
  %v798 = vmul.f32 %v720, %v597
  %v799 = vmul.f32 %v723, %v597
  %v800 = vmul.f32 %v726, %v597
  %v801 = vmul.f32 %v729, %v597
  %v802 = vmul.f32 %v732, %v597
  %v803 = vmul.f32 %v735, %v597
  %v804 = vmul.f32 %v738, %v597
  %v805 = vmul.f32 %v741, %v597
  %v806 = vmul.f32 %v744, %v597
  %v807 = vmul.f32 %v747, %v597
  %v808 = vmul.f32 %v750, %v597
  %v809 = vmul.f32 %v753, %v597
  %v810 = vmul.f32 %v756, %v597
  %v811 = vmul.f32 %v759, %v597
  %v812 = vmul.f32 %v762, %v597
  %v813 = vmul.f32 %v765, %v597
  %v814 = vmul.f32 %v768, %v597
  %v815 = vmul.f32 %v771, %v597
  %v816 = vmul.f32 %v774, %v597
  %v817 = vmul.f32 %v777, %v597
  %v818 = vmul.f32 %v780, %v597
  %v819 = vmul.f32 %v783, %v597
  %v820 = vmul.f32 %v786, %v597
  %v821 = vmul.f32 %v789, %v597
  %v822 = vadd.f32 %v790, 1e-05
  %v823 = vadd.f32 %v791, 1e-05
  %v824 = vadd.f32 %v792, 1e-05
  %v825 = vadd.f32 %v793, 1e-05
  %v826 = vadd.f32 %v794, 1e-05
  %v827 = vadd.f32 %v795, 1e-05
  %v828 = vadd.f32 %v796, 1e-05
  %v829 = vadd.f32 %v797, 1e-05
  %v830 = vadd.f32 %v798, 1e-05
  %v831 = vadd.f32 %v799, 1e-05
  %v832 = vadd.f32 %v800, 1e-05
  %v833 = vadd.f32 %v801, 1e-05
  %v834 = vadd.f32 %v802, 1e-05
  %v835 = vadd.f32 %v803, 1e-05
  %v836 = vadd.f32 %v804, 1e-05
  %v837 = vadd.f32 %v805, 1e-05
  %v838 = vadd.f32 %v806, 1e-05
  %v839 = vadd.f32 %v807, 1e-05
  %v840 = vadd.f32 %v808, 1e-05
  %v841 = vadd.f32 %v809, 1e-05
  %v842 = vadd.f32 %v810, 1e-05
  %v843 = vadd.f32 %v811, 1e-05
  %v844 = vadd.f32 %v812, 1e-05
  %v845 = vadd.f32 %v813, 1e-05
  %v846 = vadd.f32 %v814, 1e-05
  %v847 = vadd.f32 %v815, 1e-05
  %v848 = vadd.f32 %v816, 1e-05
  %v849 = vadd.f32 %v817, 1e-05
  %v850 = vadd.f32 %v818, 1e-05
  %v851 = vadd.f32 %v819, 1e-05
  %v852 = vadd.f32 %v820, 1e-05
  %v853 = vadd.f32 %v821, 1e-05
  %v854 = vrsqrt.pop %v822
  %v855 = vrsqrt.pop %v823
  %v856 = vrsqrt.pop %v824
  %v857 = vrsqrt.pop %v825
  %v858 = vrsqrt.pop %v826
  %v859 = vrsqrt.pop %v827
  %v860 = vrsqrt.pop %v828
  %v861 = vrsqrt.pop %v829
  %v862 = vrsqrt.pop %v830
  %v863 = vrsqrt.pop %v831
  %v864 = vrsqrt.pop %v832
  %v865 = vrsqrt.pop %v833
  %v866 = vrsqrt.pop %v834
  %v867 = vrsqrt.pop %v835
  %v868 = vrsqrt.pop %v836
  %v869 = vrsqrt.pop %v837
  %v870 = vrsqrt.pop %v838
  %v871 = vrsqrt.pop %v839
  %v872 = vrsqrt.pop %v840
  %v873 = vrsqrt.pop %v841
  %v874 = vrsqrt.pop %v842
  %v875 = vrsqrt.pop %v843
  %v876 = vrsqrt.pop %v844
  %v877 = vrsqrt.pop %v845
  %v878 = vrsqrt.pop %v846
  %v879 = vrsqrt.pop %v847
  %v880 = vrsqrt.pop %v848
  %v881 = vrsqrt.pop %v849
  %v882 = vrsqrt.pop %v850
  %v883 = vrsqrt.pop %v851
  %v884 = vrsqrt.pop %v852
  %v885 = vrsqrt.pop %v853
  %v886 = vmul.f32 %v630, %v854
  %v887 = vmul.f32 %v631, %v855
  %v888 = vmul.f32 %v632, %v856
  %v889 = vmul.f32 %v633, %v857
  %v890 = vmul.f32 %v634, %v858
  %v891 = vmul.f32 %v635, %v859
  %v892 = vmul.f32 %v636, %v860
  %v893 = vmul.f32 %v637, %v861
  %v894 = vmul.f32 %v638, %v862
  %v895 = vmul.f32 %v639, %v863
  %v896 = vmul.f32 %v640, %v864
  %v897 = vmul.f32 %v641, %v865
  %v898 = vmul.f32 %v642, %v866
  %v899 = vmul.f32 %v643, %v867
  %v900 = vmul.f32 %v644, %v868
  %v901 = vmul.f32 %v645, %v869
  %v902 = vmul.f32 %v646, %v870
  %v903 = vmul.f32 %v647, %v871
  %v904 = vmul.f32 %v648, %v872
  %v905 = vmul.f32 %v649, %v873
  %v906 = vmul.f32 %v650, %v874
  %v907 = vmul.f32 %v651, %v875
  %v908 = vmul.f32 %v652, %v876
  %v909 = vmul.f32 %v653, %v877
  %v910 = vmul.f32 %v654, %v878
  %v911 = vmul.f32 %v655, %v879
  %v912 = vmul.f32 %v656, %v880
  %v913 = vmul.f32 %v657, %v881
  %v914 = vmul.f32 %v658, %v882
  %v915 = vmul.f32 %v659, %v883
  %v916 = vmul.f32 %v660, %v884
  %v917 = vmul.f32 %v661, %v885
  %v919 = vlaneseq
  %v920 = vshrl.u32 %v919, 7
  %v921 = vsub.s32 0, %v920
  %v922 = vrot.slane %v499, %v921
  %v924 = vmul.f32 %v886, %v922
  %v925 = vmul.f32 %v887, %v922
  %v926 = vmul.f32 %v888, %v922
  %v927 = vmul.f32 %v889, %v922
  %v928 = vmul.f32 %v890, %v922
  %v929 = vmul.f32 %v891, %v922
  %v930 = vmul.f32 %v892, %v922
  %v931 = vmul.f32 %v893, %v922
  %v932 = vmul.f32 %v894, %v922
  %v933 = vmul.f32 %v895, %v922
  %v934 = vmul.f32 %v896, %v922
  %v935 = vmul.f32 %v897, %v922
  %v936 = vmul.f32 %v898, %v922
  %v937 = vmul.f32 %v899, %v922
  %v938 = vmul.f32 %v900, %v922
  %v939 = vmul.f32 %v901, %v922
  %v940 = vmul.f32 %v902, %v922
  %v941 = vmul.f32 %v903, %v922
  %v942 = vmul.f32 %v904, %v922
  %v943 = vmul.f32 %v905, %v922
  %v944 = vmul.f32 %v906, %v922
  %v945 = vmul.f32 %v907, %v922
  %v946 = vmul.f32 %v908, %v922
  %v947 = vmul.f32 %v909, %v922
  %v948 = vmul.f32 %v910, %v922
  %v949 = vmul.f32 %v911, %v922
  %v950 = vmul.f32 %v912, %v922
  %v951 = vmul.f32 %v913, %v922
  %v952 = vmul.f32 %v914, %v922
  %v953 = vmul.f32 %v915, %v922
  %v954 = vmul.f32 %v916, %v922
  %v955 = vmul.f32 %v917, %v922
  %v957 = vlaneseq
  %v958 = vshrl.u32 %v957, 7
  %v959 = vsub.s32 0, %v958
  %v960 = vrot.slane %v500, %v959
  %v962 = vadd.f32 %v924, %v960
  %v963 = vadd.f32 %v925, %v960
  %v964 = vadd.f32 %v926, %v960
  %v965 = vadd.f32 %v927, %v960
  %v966 = vadd.f32 %v928, %v960
  %v967 = vadd.f32 %v929, %v960
  %v968 = vadd.f32 %v930, %v960
  %v969 = vadd.f32 %v931, %v960
  %v970 = vadd.f32 %v932, %v960
  %v971 = vadd.f32 %v933, %v960
  %v972 = vadd.f32 %v934, %v960
  %v973 = vadd.f32 %v935, %v960
  %v974 = vadd.f32 %v936, %v960
  %v975 = vadd.f32 %v937, %v960
  %v976 = vadd.f32 %v938, %v960
  %v977 = vadd.f32 %v939, %v960
  %v978 = vadd.f32 %v940, %v960
  %v979 = vadd.f32 %v941, %v960
  %v980 = vadd.f32 %v942, %v960
  %v981 = vadd.f32 %v943, %v960
  %v982 = vadd.f32 %v944, %v960
  %v983 = vadd.f32 %v945, %v960
  %v984 = vadd.f32 %v946, %v960
  %v985 = vadd.f32 %v947, %v960
  %v986 = vadd.f32 %v948, %v960
  %v987 = vadd.f32 %v949, %v960
  %v988 = vadd.f32 %v950, %v960
  %v989 = vadd.f32 %v951, %v960
  %v990 = vadd.f32 %v952, %v960
  %v991 = vadd.f32 %v953, %v960
  %v992 = vadd.f32 %v954, %v960
  %v993 = vadd.f32 %v955, %v960
  %v994 = vpack.c.bf16 %v963, %v962
  %v995 = vpack.c.bf16 %v965, %v964
  %v996 = vpack.c.bf16 %v967, %v966
  %v997 = vpack.c.bf16 %v969, %v968
  %v998 = vpack.c.bf16 %v971, %v970
  %v999 = vpack.c.bf16 %v973, %v972
  %v1000 = vpack.c.bf16 %v975, %v974
  %v1001 = vpack.c.bf16 %v977, %v976
  %v1002 = vpack.c.bf16 %v979, %v978
  %v1003 = vpack.c.bf16 %v981, %v980
  %v1004 = vpack.c.bf16 %v983, %v982
  %v1005 = vpack.c.bf16 %v985, %v984
  %v1006 = vpack.c.bf16 %v987, %v986
  %v1007 = vpack.c.bf16 %v989, %v988
  %v1008 = vpack.c.bf16 %v991, %v990
  %v1009 = vpack.c.bf16 %v993, %v992
  %v1010 = vld [vmem:[%s6] sm:$0xf]
  %v1011 = vld [vmem:[%s6 + $0x4] sm:$0xf]
  %v1012 = vld [vmem:[%s6 + $0x8] sm:$0xf]
  %v1013 = vld [vmem:[%s6 + $0xc] sm:$0xf]
  %v1014 = vld [vmem:[%s6 + $0x10] sm:$0xf]
  %v1015 = vld [vmem:[%s6 + $0x14] sm:$0xf]
  %v1016 = vld [vmem:[%s6 + $0x18] sm:$0xf]
  %v1017 = vld [vmem:[%s6 + $0x1c] sm:$0xf]
  %v1018 = vld [vmem:[%s7] sm:$0x1]
  %v1020 = vlaneseq
  %v1021 = vshrl.u32 %v1020, 7
  %v1022 = vsub.s32 0, %v1021
  %v1023 = vrot.slane %v1018, %v1022
  %v1033 = vunpack.c.l.b16 %v1010
  %v1034 = vunpack.c.l.b16 %v1011
  %v1035 = vunpack.c.l.b16 %v1012
  %v1036 = vunpack.c.l.b16 %v1013
  %v1037 = vunpack.c.l.b16 %v1014
  %v1038 = vunpack.c.l.b16 %v1015
  %v1039 = vunpack.c.l.b16 %v1016
  %v1040 = vunpack.c.l.b16 %v1017
  %v1041 = vpack.c.b16 %v1034, %v1033
  %v1042 = vpack.c.b16 %v1036, %v1035
  %v1043 = vpack.c.b16 %v1038, %v1037
  %v1044 = vpack.c.b16 %v1040, %v1039
  %v1050 = vsel %vm193, %v994, 0
  %v1053 = vsel %vm193, %v995, 0
  %v1056 = vsel %vm193, %v996, 0
  %v1059 = vsel %vm193, %v997, 0
  %v1062 = vsel %vm193, %v998, 0
  %v1065 = vsel %vm193, %v999, 0
  %v1068 = vsel %vm193, %v1000, 0
  %v1071 = vsel %vm193, %v1001, 0
  %v1074 = vsel %vm193, %v1002, 0
  %v1077 = vsel %vm193, %v1003, 0
  %v1080 = vsel %vm193, %v1004, 0
  %v1083 = vsel %vm193, %v1005, 0
  %v1086 = vsel %vm193, %v1006, 0
  %v1089 = vsel %vm193, %v1007, 0
  %v1092 = vsel %vm193, %v1008, 0
  %v1095 = vsel %vm193, %v1009, 0
  %1097 = vmatprep.subr.bf16.mxu0 0
  %1098 = vmatpush1.bf16.msra.mxu0 %v1041
  %1099 = vmatprep.subr.bf16.mxu0 0
  %1100 = vmatpush1.bf16.msra.mxu0 %v1042
  %1101 = vmatprep.subr.bf16.mxu0 0
  %1102 = vmatpush1.bf16.msra.mxu0 %v1043
  %1103 = vmatprep.subr.bf16.mxu0 0
  %1104 = vmatpush1.bf16.msra.mxu0 %v1044
  %1105 = vmatprep.subr.bf16.mxu0 0
  %1106 = vmatpush1.bf16.msra.mxu0 0
  %1107 = vmatprep.subr.bf16.mxu0 0
  %1108 = vmatpush1.bf16.msra.mxu0 0
  %1109 = vmatprep.subr.bf16.mxu0 0
  %1110 = vmatpush1.bf16.msra.mxu0 0
  %1111 = vmatprep.subr.bf16.mxu0 0
  %1112 = vmatpush1.bf16.msra.mxu0 0
  %1113 = vmatprep.subr.bf16.mxu0 0
  %1114 = vmatpush1.bf16.msra.mxu0 0
  %1115 = vmatprep.subr.bf16.mxu0 0
  %1116 = vmatpush1.bf16.msra.mxu0 0
  %1117 = vmatprep.subr.bf16.mxu0 0
  %1118 = vmatpush1.bf16.msra.mxu0 0
  %1119 = vmatprep.subr.bf16.mxu0 0
  %1120 = vmatpush1.bf16.msra.mxu0 0
  %1121 = vmatprep.subr.bf16.mxu0 0
  %1122 = vmatpush1.bf16.msra.mxu0 0
  %1123 = vmatprep.subr.bf16.mxu0 0
  %1124 = vmatpush1.bf16.msra.mxu0 0
  %1125 = vmatprep.subr.bf16.mxu0 0
  %1126 = vmatpush1.bf16.msra.mxu0 0
  %1127 = vmatprep.subr.bf16.mxu0 0
  %1128 = vmatpush1.bf16.msra.mxu0 0
  %1129 = vmatprep.mubr.bf16.mxu0 0
  %1130 = vmatmul.mubr.bf16.gmra.mrb[0].mxu0 %v1050
  %v1131 = vpop.f32.mrb[0].mxu0
  %v1132 = vadd.f32 %v1023, %v1131
  %v1133 = vpop.f32.mrb[0].mxu0
  %v1134 = vpop.f32.mrb[0].mxu0
  %v1135 = vadd.f32 %v1023, %v1134
  %v1136 = vpop.f32.mrb[0].mxu0
  %1137 = vmatprep.mubr.bf16.mxu0 0
  %1138 = vmatmul.mubr.bf16.gmra.mrb[0].mxu0 %v1053
  %v1139 = vpop.f32.mrb[0].mxu0
  %v1140 = vadd.f32 %v1023, %v1139
  %v1141 = vpop.f32.mrb[0].mxu0
  %v1142 = vpop.f32.mrb[0].mxu0
  %v1143 = vadd.f32 %v1023, %v1142
  %v1144 = vpop.f32.mrb[0].mxu0
  %1145 = vmatprep.mubr.bf16.mxu0 0
  %1146 = vmatmul.mubr.bf16.gmra.mrb[0].mxu0 %v1056
  %v1147 = vpop.f32.mrb[0].mxu0
  %v1148 = vadd.f32 %v1023, %v1147
  %v1149 = vpop.f32.mrb[0].mxu0
  %v1150 = vpop.f32.mrb[0].mxu0
  %v1151 = vadd.f32 %v1023, %v1150
  %v1152 = vpop.f32.mrb[0].mxu0
  %1153 = vmatprep.mubr.bf16.mxu0 0
  %1154 = vmatmul.mubr.bf16.gmra.mrb[0].mxu0 %v1059
  %v1155 = vpop.f32.mrb[0].mxu0
  %v1156 = vadd.f32 %v1023, %v1155
  %v1157 = vpop.f32.mrb[0].mxu0
  %v1158 = vpop.f32.mrb[0].mxu0
  %v1159 = vadd.f32 %v1023, %v1158
  %v1160 = vpop.f32.mrb[0].mxu0
  %1161 = vmatprep.mubr.bf16.mxu0 0
  %1162 = vmatmul.mubr.bf16.gmra.mrb[0].mxu0 %v1062
  %v1163 = vpop.f32.mrb[0].mxu0
  %v1164 = vadd.f32 %v1023, %v1163
  %v1165 = vpop.f32.mrb[0].mxu0
  %v1166 = vpop.f32.mrb[0].mxu0
  %v1167 = vadd.f32 %v1023, %v1166
  %v1168 = vpop.f32.mrb[0].mxu0
  %1169 = vmatprep.mubr.bf16.mxu0 0
  %1170 = vmatmul.mubr.bf16.gmra.mrb[0].mxu0 %v1065
  %v1171 = vpop.f32.mrb[0].mxu0
  %v1172 = vadd.f32 %v1023, %v1171
  %v1173 = vpop.f32.mrb[0].mxu0
  %v1174 = vpop.f32.mrb[0].mxu0
  %v1175 = vadd.f32 %v1023, %v1174
  %v1176 = vpop.f32.mrb[0].mxu0
  %1177 = vmatprep.mubr.bf16.mxu0 0
  %1178 = vmatmul.mubr.bf16.gmra.mrb[0].mxu0 %v1068
  %v1179 = vpop.f32.mrb[0].mxu0
  %v1180 = vadd.f32 %v1023, %v1179
  %v1181 = vpop.f32.mrb[0].mxu0
  %v1182 = vpop.f32.mrb[0].mxu0
  %v1183 = vadd.f32 %v1023, %v1182
  %v1184 = vpop.f32.mrb[0].mxu0
  %1185 = vmatprep.mubr.bf16.mxu0 0
  %1186 = vmatmul.mubr.bf16.gmra.mrb[0].mxu0 %v1071
  %v1187 = vpop.f32.mrb[0].mxu0
  %v1188 = vadd.f32 %v1023, %v1187
  %v1189 = vpop.f32.mrb[0].mxu0
  %v1190 = vpop.f32.mrb[0].mxu0
  %v1191 = vadd.f32 %v1023, %v1190
  %v1192 = vpop.f32.mrb[0].mxu0
  %1193 = vmatprep.mubr.bf16.mxu0 0
  %1194 = vmatmul.mubr.bf16.gmra.mrb[0].mxu0 %v1074
  %v1195 = vpop.f32.mrb[0].mxu0
  %v1196 = vadd.f32 %v1023, %v1195
  %v1197 = vpop.f32.mrb[0].mxu0
  %v1198 = vpop.f32.mrb[0].mxu0
  %v1199 = vadd.f32 %v1023, %v1198
  %v1200 = vpop.f32.mrb[0].mxu0
  %1201 = vmatprep.mubr.bf16.mxu0 0
  %1202 = vmatmul.mubr.bf16.gmra.mrb[0].mxu0 %v1077
  %v1203 = vpop.f32.mrb[0].mxu0
  %v1204 = vadd.f32 %v1023, %v1203
  %v1205 = vpop.f32.mrb[0].mxu0
  %v1206 = vpop.f32.mrb[0].mxu0
  %v1207 = vadd.f32 %v1023, %v1206
  %v1208 = vpop.f32.mrb[0].mxu0
  %1209 = vmatprep.mubr.bf16.mxu0 0
  %1210 = vmatmul.mubr.bf16.gmra.mrb[0].mxu0 %v1080
  %v1211 = vpop.f32.mrb[0].mxu0
  %v1212 = vadd.f32 %v1023, %v1211
  %v1213 = vpop.f32.mrb[0].mxu0
  %v1214 = vpop.f32.mrb[0].mxu0
  %v1215 = vadd.f32 %v1023, %v1214
  %v1216 = vpop.f32.mrb[0].mxu0
  %1217 = vmatprep.mubr.bf16.mxu0 0
  %1218 = vmatmul.mubr.bf16.gmra.mrb[0].mxu0 %v1083
  %v1219 = vpop.f32.mrb[0].mxu0
  %v1220 = vadd.f32 %v1023, %v1219
  %v1221 = vpop.f32.mrb[0].mxu0
  %v1222 = vpop.f32.mrb[0].mxu0
  %v1223 = vadd.f32 %v1023, %v1222
  %v1224 = vpop.f32.mrb[0].mxu0
  %1225 = vmatprep.mubr.bf16.mxu0 0
  %1226 = vmatmul.mubr.bf16.gmra.mrb[0].mxu0 %v1086
  %v1227 = vpop.f32.mrb[0].mxu0
  %v1228 = vadd.f32 %v1023, %v1227
  %v1229 = vpop.f32.mrb[0].mxu0
  %v1230 = vpop.f32.mrb[0].mxu0
  %v1231 = vadd.f32 %v1023, %v1230
  %v1232 = vpop.f32.mrb[0].mxu0
  %1233 = vmatprep.mubr.bf16.mxu0 0
  %1234 = vmatmul.mubr.bf16.gmra.mrb[0].mxu0 %v1089
  %v1235 = vpop.f32.mrb[0].mxu0
  %v1236 = vadd.f32 %v1023, %v1235
  %v1237 = vpop.f32.mrb[0].mxu0
  %v1238 = vpop.f32.mrb[0].mxu0
  %v1239 = vadd.f32 %v1023, %v1238
  %v1240 = vpop.f32.mrb[0].mxu0
  %1241 = vmatprep.mubr.bf16.mxu0 0
  %1242 = vmatmul.mubr.bf16.gmra.mrb[0].mxu0 %v1092
  %v1243 = vpop.f32.mrb[0].mxu0
  %v1244 = vadd.f32 %v1023, %v1243
  %v1245 = vpop.f32.mrb[0].mxu0
  %v1246 = vpop.f32.mrb[0].mxu0
  %v1247 = vadd.f32 %v1023, %v1246
  %v1248 = vpop.f32.mrb[0].mxu0
  %1249 = vmatprep.mubr.bf16.mxu0 0
  %1250 = vmatmul.mubr.bf16.gmra.mrb[0].mxu0 %v1095
  %v1251 = vpop.f32.mrb[0].mxu0
  %v1252 = vadd.f32 %v1023, %v1251
  %v1253 = vpop.f32.mrb[0].mxu0
  %v1254 = vpop.f32.mrb[0].mxu0
  %v1255 = vadd.f32 %v1023, %v1254
  %v1256 = vpop.f32.mrb[0].mxu0
  %1257 = vdwg.mxu0
  %v1258 = vmul.f32 %v1132, 0.5
  %v1259 = vmul.f32 %v1135, 0.5
  %v1260 = vmul.f32 %v1140, 0.5
  %v1261 = vmul.f32 %v1143, 0.5
  %v1262 = vmul.f32 %v1148, 0.5
  %v1263 = vmul.f32 %v1151, 0.5
  %v1264 = vmul.f32 %v1156, 0.5
  %v1265 = vmul.f32 %v1159, 0.5
  %v1266 = vmul.f32 %v1164, 0.5
  %v1267 = vmul.f32 %v1167, 0.5
  %v1268 = vmul.f32 %v1172, 0.5
  %v1269 = vmul.f32 %v1175, 0.5
  %v1270 = vmul.f32 %v1180, 0.5
  %v1271 = vmul.f32 %v1183, 0.5
  %v1272 = vmul.f32 %v1188, 0.5
  %v1273 = vmul.f32 %v1191, 0.5
  %v1274 = vmul.f32 %v1196, 0.5
  %v1275 = vmul.f32 %v1199, 0.5
  %v1276 = vmul.f32 %v1204, 0.5
  %v1277 = vmul.f32 %v1207, 0.5
  %v1278 = vmul.f32 %v1212, 0.5
  %v1279 = vmul.f32 %v1215, 0.5
  %v1280 = vmul.f32 %v1220, 0.5
  %v1281 = vmul.f32 %v1223, 0.5
  %v1282 = vmul.f32 %v1228, 0.5
  %v1283 = vmul.f32 %v1231, 0.5
  %v1284 = vmul.f32 %v1236, 0.5
  %v1285 = vmul.f32 %v1239, 0.5
  %v1286 = vmul.f32 %v1244, 0.5
  %v1287 = vmul.f32 %v1247, 0.5
  %v1288 = vmul.f32 %v1252, 0.5
  %v1289 = vmul.f32 %v1255, 0.5
  %v1290 = vmul.f32 %v1132, 0.044715
  %v1291 = vmul.f32 %v1135, 0.044715
  %v1292 = vmul.f32 %v1140, 0.044715
  %v1293 = vmul.f32 %v1143, 0.044715
  %v1294 = vmul.f32 %v1148, 0.044715
  %v1295 = vmul.f32 %v1151, 0.044715
  %v1296 = vmul.f32 %v1156, 0.044715
  %v1297 = vmul.f32 %v1159, 0.044715
  %v1298 = vmul.f32 %v1164, 0.044715
  %v1299 = vmul.f32 %v1167, 0.044715
  %v1300 = vmul.f32 %v1172, 0.044715
  %v1301 = vmul.f32 %v1175, 0.044715
  %v1302 = vmul.f32 %v1180, 0.044715
  %v1303 = vmul.f32 %v1183, 0.044715
  %v1304 = vmul.f32 %v1188, 0.044715
  %v1305 = vmul.f32 %v1191, 0.044715
  %v1306 = vmul.f32 %v1196, 0.044715
  %v1307 = vmul.f32 %v1199, 0.044715
  %v1308 = vmul.f32 %v1204, 0.044715
  %v1309 = vmul.f32 %v1207, 0.044715
  %v1310 = vmul.f32 %v1212, 0.044715
  %v1311 = vmul.f32 %v1215, 0.044715
  %v1312 = vmul.f32 %v1220, 0.044715
  %v1313 = vmul.f32 %v1223, 0.044715
  %v1314 = vmul.f32 %v1228, 0.044715
  %v1315 = vmul.f32 %v1231, 0.044715
  %v1316 = vmul.f32 %v1236, 0.044715
  %v1317 = vmul.f32 %v1239, 0.044715
  %v1318 = vmul.f32 %v1244, 0.044715
  %v1319 = vmul.f32 %v1247, 0.044715
  %v1320 = vmul.f32 %v1252, 0.044715
  %v1321 = vmul.f32 %v1255, 0.044715
  %v1322 = vmul.f32 %v1290, %v1132
  %v1323 = vmul.f32 %v1291, %v1135
  %v1324 = vmul.f32 %v1292, %v1140
  %v1325 = vmul.f32 %v1293, %v1143
  %v1326 = vmul.f32 %v1294, %v1148
  %v1327 = vmul.f32 %v1295, %v1151
  %v1328 = vmul.f32 %v1296, %v1156
  %v1329 = vmul.f32 %v1297, %v1159
  %v1330 = vmul.f32 %v1298, %v1164
  %v1331 = vmul.f32 %v1299, %v1167
  %v1332 = vmul.f32 %v1300, %v1172
  %v1333 = vmul.f32 %v1301, %v1175
  %v1334 = vmul.f32 %v1302, %v1180
  %v1335 = vmul.f32 %v1303, %v1183
  %v1336 = vmul.f32 %v1304, %v1188
  %v1337 = vmul.f32 %v1305, %v1191
  %v1338 = vmul.f32 %v1306, %v1196
  %v1339 = vmul.f32 %v1307, %v1199
  %v1340 = vmul.f32 %v1308, %v1204
  %v1341 = vmul.f32 %v1309, %v1207
  %v1342 = vmul.f32 %v1310, %v1212
  %v1343 = vmul.f32 %v1311, %v1215
  %v1344 = vmul.f32 %v1312, %v1220
  %v1345 = vmul.f32 %v1313, %v1223
  %v1346 = vmul.f32 %v1314, %v1228
  %v1347 = vmul.f32 %v1315, %v1231
  %v1348 = vmul.f32 %v1316, %v1236
  %v1349 = vmul.f32 %v1317, %v1239
  %v1350 = vmul.f32 %v1318, %v1244
  %v1351 = vmul.f32 %v1319, %v1247
  %v1352 = vmul.f32 %v1320, %v1252
  %v1353 = vmul.f32 %v1321, %v1255
  %v1354 = vmul.f32 %v1322, %v1132
  %v1355 = vmul.f32 %v1323, %v1135
  %v1356 = vmul.f32 %v1324, %v1140
  %v1357 = vmul.f32 %v1325, %v1143
  %v1358 = vmul.f32 %v1326, %v1148
  %v1359 = vmul.f32 %v1327, %v1151
  %v1360 = vmul.f32 %v1328, %v1156
  %v1361 = vmul.f32 %v1329, %v1159
  %v1362 = vmul.f32 %v1330, %v1164
  %v1363 = vmul.f32 %v1331, %v1167
  %v1364 = vmul.f32 %v1332, %v1172
  %v1365 = vmul.f32 %v1333, %v1175
  %v1366 = vmul.f32 %v1334, %v1180
  %v1367 = vmul.f32 %v1335, %v1183
  %v1368 = vmul.f32 %v1336, %v1188
  %v1369 = vmul.f32 %v1337, %v1191
  %v1370 = vmul.f32 %v1338, %v1196
  %v1371 = vmul.f32 %v1339, %v1199
  %v1372 = vmul.f32 %v1340, %v1204
  %v1373 = vmul.f32 %v1341, %v1207
  %v1374 = vmul.f32 %v1342, %v1212
  %v1375 = vmul.f32 %v1343, %v1215
  %v1376 = vmul.f32 %v1344, %v1220
  %v1377 = vmul.f32 %v1345, %v1223
  %v1378 = vmul.f32 %v1346, %v1228
  %v1379 = vmul.f32 %v1347, %v1231
  %v1380 = vmul.f32 %v1348, %v1236
  %v1381 = vmul.f32 %v1349, %v1239
  %v1382 = vmul.f32 %v1350, %v1244
  %v1383 = vmul.f32 %v1351, %v1247
  %v1384 = vmul.f32 %v1352, %v1252
  %v1385 = vmul.f32 %v1353, %v1255
  %v1386 = vadd.f32 %v1132, %v1354
  %v1387 = vadd.f32 %v1135, %v1355
  %v1388 = vadd.f32 %v1140, %v1356
  %v1389 = vadd.f32 %v1143, %v1357
  %v1390 = vadd.f32 %v1148, %v1358
  %v1391 = vadd.f32 %v1151, %v1359
  %v1392 = vadd.f32 %v1156, %v1360
  %v1393 = vadd.f32 %v1159, %v1361
  %v1394 = vadd.f32 %v1164, %v1362
  %v1395 = vadd.f32 %v1167, %v1363
  %v1396 = vadd.f32 %v1172, %v1364
  %v1397 = vadd.f32 %v1175, %v1365
  %v1398 = vadd.f32 %v1180, %v1366
  %v1399 = vadd.f32 %v1183, %v1367
  %v1400 = vadd.f32 %v1188, %v1368
  %v1401 = vadd.f32 %v1191, %v1369
  %v1402 = vadd.f32 %v1196, %v1370
  %v1403 = vadd.f32 %v1199, %v1371
  %v1404 = vadd.f32 %v1204, %v1372
  %v1405 = vadd.f32 %v1207, %v1373
  %v1406 = vadd.f32 %v1212, %v1374
  %v1407 = vadd.f32 %v1215, %v1375
  %v1408 = vadd.f32 %v1220, %v1376
  %v1409 = vadd.f32 %v1223, %v1377
  %v1410 = vadd.f32 %v1228, %v1378
  %v1411 = vadd.f32 %v1231, %v1379
  %v1412 = vadd.f32 %v1236, %v1380
  %v1413 = vadd.f32 %v1239, %v1381
  %v1414 = vadd.f32 %v1244, %v1382
  %v1415 = vadd.f32 %v1247, %v1383
  %v1416 = vadd.f32 %v1252, %v1384
  %v1417 = vadd.f32 %v1255, %v1385
  %v1418 = vmul.f32 %v1386, 0.7978846
  %v1419 = vmul.f32 %v1387, 0.7978846
  %v1420 = vmul.f32 %v1388, 0.7978846
  %v1421 = vmul.f32 %v1389, 0.7978846
  %v1422 = vmul.f32 %v1390, 0.7978846
  %v1423 = vmul.f32 %v1391, 0.7978846
  %v1424 = vmul.f32 %v1392, 0.7978846
  %v1425 = vmul.f32 %v1393, 0.7978846
  %v1426 = vmul.f32 %v1394, 0.7978846
  %v1427 = vmul.f32 %v1395, 0.7978846
  %v1428 = vmul.f32 %v1396, 0.7978846
  %v1429 = vmul.f32 %v1397, 0.7978846
  %v1430 = vmul.f32 %v1398, 0.7978846
  %v1431 = vmul.f32 %v1399, 0.7978846
  %v1432 = vmul.f32 %v1400, 0.7978846
  %v1433 = vmul.f32 %v1401, 0.7978846
  %v1434 = vmul.f32 %v1402, 0.7978846
  %v1435 = vmul.f32 %v1403, 0.7978846
  %v1436 = vmul.f32 %v1404, 0.7978846
  %v1437 = vmul.f32 %v1405, 0.7978846
  %v1438 = vmul.f32 %v1406, 0.7978846
  %v1439 = vmul.f32 %v1407, 0.7978846
  %v1440 = vmul.f32 %v1408, 0.7978846
  %v1441 = vmul.f32 %v1409, 0.7978846
  %v1442 = vmul.f32 %v1410, 0.7978846
  %v1443 = vmul.f32 %v1411, 0.7978846
  %v1444 = vmul.f32 %v1412, 0.7978846
  %v1445 = vmul.f32 %v1413, 0.7978846
  %v1446 = vmul.f32 %v1414, 0.7978846
  %v1447 = vmul.f32 %v1415, 0.7978846
  %v1448 = vmul.f32 %v1416, 0.7978846
  %v1449 = vmul.f32 %v1417, 0.7978846
  %v1450 = vtanh.pop %v1418
  %v1451 = vtanh.pop %v1419
  %v1452 = vtanh.pop %v1420
  %v1453 = vtanh.pop %v1421
  %v1454 = vtanh.pop %v1422
  %v1455 = vtanh.pop %v1423
  %v1456 = vtanh.pop %v1424
  %v1457 = vtanh.pop %v1425
  %v1458 = vtanh.pop %v1426
  %v1459 = vtanh.pop %v1427
  %v1460 = vtanh.pop %v1428
  %v1461 = vtanh.pop %v1429
  %v1462 = vtanh.pop %v1430
  %v1463 = vtanh.pop %v1431
  %v1464 = vtanh.pop %v1432
  %v1465 = vtanh.pop %v1433
  %v1466 = vtanh.pop %v1434
  %v1467 = vtanh.pop %v1435
  %v1468 = vtanh.pop %v1436
  %v1469 = vtanh.pop %v1437
  %v1470 = vtanh.pop %v1438
  %v1471 = vtanh.pop %v1439
  %v1472 = vtanh.pop %v1440
  %v1473 = vtanh.pop %v1441
  %v1474 = vtanh.pop %v1442
  %v1475 = vtanh.pop %v1443
  %v1476 = vtanh.pop %v1444
  %v1477 = vtanh.pop %v1445
  %v1478 = vtanh.pop %v1446
  %v1479 = vtanh.pop %v1447
  %v1480 = vtanh.pop %v1448
  %v1481 = vtanh.pop %v1449
  %v1482 = vadd.f32 %v1450, 1.0
  %v1483 = vadd.f32 %v1451, 1.0
  %v1484 = vadd.f32 %v1452, 1.0
  %v1485 = vadd.f32 %v1453, 1.0
  %v1486 = vadd.f32 %v1454, 1.0
  %v1487 = vadd.f32 %v1455, 1.0
  %v1488 = vadd.f32 %v1456, 1.0
  %v1489 = vadd.f32 %v1457, 1.0
  %v1490 = vadd.f32 %v1458, 1.0
  %v1491 = vadd.f32 %v1459, 1.0
  %v1492 = vadd.f32 %v1460, 1.0
  %v1493 = vadd.f32 %v1461, 1.0
  %v1494 = vadd.f32 %v1462, 1.0
  %v1495 = vadd.f32 %v1463, 1.0
  %v1496 = vadd.f32 %v1464, 1.0
  %v1497 = vadd.f32 %v1465, 1.0
  %v1498 = vadd.f32 %v1466, 1.0
  %v1499 = vadd.f32 %v1467, 1.0
  %v1500 = vadd.f32 %v1468, 1.0
  %v1501 = vadd.f32 %v1469, 1.0
  %v1502 = vadd.f32 %v1470, 1.0
  %v1503 = vadd.f32 %v1471, 1.0
  %v1504 = vadd.f32 %v1472, 1.0
  %v1505 = vadd.f32 %v1473, 1.0
  %v1506 = vadd.f32 %v1474, 1.0
  %v1507 = vadd.f32 %v1475, 1.0
  %v1508 = vadd.f32 %v1476, 1.0
  %v1509 = vadd.f32 %v1477, 1.0
  %v1510 = vadd.f32 %v1478, 1.0
  %v1511 = vadd.f32 %v1479, 1.0
  %v1512 = vadd.f32 %v1480, 1.0
  %v1513 = vadd.f32 %v1481, 1.0
  %v1514 = vmul.f32 %v1258, %v1482
  %v1515 = vmul.f32 %v1259, %v1483
  %v1516 = vmul.f32 %v1260, %v1484
  %v1517 = vmul.f32 %v1261, %v1485
  %v1518 = vmul.f32 %v1262, %v1486
  %v1519 = vmul.f32 %v1263, %v1487
  %v1520 = vmul.f32 %v1264, %v1488
  %v1521 = vmul.f32 %v1265, %v1489
  %v1522 = vmul.f32 %v1266, %v1490
  %v1523 = vmul.f32 %v1267, %v1491
  %v1524 = vmul.f32 %v1268, %v1492
  %v1525 = vmul.f32 %v1269, %v1493
  %v1526 = vmul.f32 %v1270, %v1494
  %v1527 = vmul.f32 %v1271, %v1495
  %v1528 = vmul.f32 %v1272, %v1496
  %v1529 = vmul.f32 %v1273, %v1497
  %v1530 = vmul.f32 %v1274, %v1498
  %v1531 = vmul.f32 %v1275, %v1499
  %v1532 = vmul.f32 %v1276, %v1500
  %v1533 = vmul.f32 %v1277, %v1501
  %v1534 = vmul.f32 %v1278, %v1502
  %v1535 = vmul.f32 %v1279, %v1503
  %v1536 = vmul.f32 %v1280, %v1504
  %v1537 = vmul.f32 %v1281, %v1505
  %v1538 = vmul.f32 %v1282, %v1506
  %v1539 = vmul.f32 %v1283, %v1507
  %v1540 = vmul.f32 %v1284, %v1508
  %v1541 = vmul.f32 %v1285, %v1509
  %v1542 = vmul.f32 %v1286, %v1510
  %v1543 = vmul.f32 %v1287, %v1511
  %v1544 = vmul.f32 %v1288, %v1512
  %v1545 = vmul.f32 %v1289, %v1513
  %v1546 = vpack.c.bf16 %v1515, %v1514
  %v1547 = vpack.c.bf16 %v1517, %v1516
  %v1548 = vpack.c.bf16 %v1519, %v1518
  %v1549 = vpack.c.bf16 %v1521, %v1520
  %v1550 = vpack.c.bf16 %v1523, %v1522
  %v1551 = vpack.c.bf16 %v1525, %v1524
  %v1552 = vpack.c.bf16 %v1527, %v1526
  %v1553 = vpack.c.bf16 %v1529, %v1528
  %v1554 = vpack.c.bf16 %v1531, %v1530
  %v1555 = vpack.c.bf16 %v1533, %v1532
  %v1556 = vpack.c.bf16 %v1535, %v1534
  %v1557 = vpack.c.bf16 %v1537, %v1536
  %v1558 = vpack.c.bf16 %v1539, %v1538
  %v1559 = vpack.c.bf16 %v1541, %v1540
  %v1560 = vpack.c.bf16 %v1543, %v1542
  %v1561 = vpack.c.bf16 %v1545, %v1544
  %v1562 = vld [vmem:[%s8] sm:$0xf]
  %v1563 = vld [vmem:[%s8 + $0x4] sm:$0xf]
  %v1564 = vld [vmem:[%s8 + $0x8] sm:$0xf]
  %v1565 = vld [vmem:[%s8 + $0xc] sm:$0xf]
  %v1566 = vld [vmem:[%s8 + $0x10] sm:$0xf]
  %v1567 = vld [vmem:[%s8 + $0x14] sm:$0xf]
  %v1568 = vld [vmem:[%s8 + $0x18] sm:$0xf]
  %v1569 = vld [vmem:[%s8 + $0x1c] sm:$0xf]
  %v1570 = vld [vmem:[%s8 + $0x20] sm:$0xf]
  %v1571 = vld [vmem:[%s8 + $0x24] sm:$0xf]
  %v1572 = vld [vmem:[%s8 + $0x28] sm:$0xf]
  %v1573 = vld [vmem:[%s8 + $0x2c] sm:$0xf]
  %v1574 = vld [vmem:[%s8 + $0x30] sm:$0xf]
  %v1575 = vld [vmem:[%s8 + $0x34] sm:$0xf]
  %v1576 = vld [vmem:[%s8 + $0x38] sm:$0xf]
  %v1577 = vld [vmem:[%s8 + $0x3c] sm:$0xf]
  %v1578 = vld [vmem:[%s9] sm:$0x1]
  %v1580 = vlaneseq
  %v1581 = vshrl.u32 %v1580, 7
  %v1582 = vsub.s32 0, %v1581
  %v1583 = vrot.slane %v1578, %v1582
  %v1601 = vunpack.c.l.b16 %v1562
  %v1602 = vunpack.c.l.b16 %v1563
  %v1603 = vunpack.c.l.b16 %v1564
  %v1604 = vunpack.c.l.b16 %v1565
  %v1605 = vunpack.c.l.b16 %v1566
  %v1606 = vunpack.c.l.b16 %v1567
  %v1607 = vunpack.c.l.b16 %v1568
  %v1608 = vunpack.c.l.b16 %v1569
  %v1609 = vunpack.c.l.b16 %v1570
  %v1610 = vunpack.c.l.b16 %v1571
  %v1611 = vunpack.c.l.b16 %v1572
  %v1612 = vunpack.c.l.b16 %v1573
  %v1613 = vunpack.c.l.b16 %v1574
  %v1614 = vunpack.c.l.b16 %v1575
  %v1615 = vunpack.c.l.b16 %v1576
  %v1616 = vunpack.c.l.b16 %v1577
  %v1617 = vpack.c.b16 %v1602, %v1601
  %v1618 = vpack.c.b16 %v1604, %v1603
  %v1619 = vpack.c.b16 %v1606, %v1605
  %v1620 = vpack.c.b16 %v1608, %v1607
  %v1621 = vpack.c.b16 %v1610, %v1609
  %v1622 = vpack.c.b16 %v1612, %v1611
  %v1623 = vpack.c.b16 %v1614, %v1613
  %v1624 = vpack.c.b16 %v1616, %v1615
  %1633 = vmatprep.subr.bf16.mxu0 0
  %1634 = vmatpush1.bf16.msra.mxu0 %v1617
  %1635 = vmatprep.subr.bf16.mxu0 0
  %1636 = vmatpush1.bf16.msra.mxu0 %v1618
  %1637 = vmatprep.subr.bf16.mxu0 0
  %1638 = vmatpush1.bf16.msra.mxu0 %v1619
  %1639 = vmatprep.subr.bf16.mxu0 0
  %1640 = vmatpush1.bf16.msra.mxu0 %v1620
  %1641 = vmatprep.subr.bf16.mxu0 0
  %1642 = vmatpush1.bf16.msra.mxu0 %v1621
  %1643 = vmatprep.subr.bf16.mxu0 0
  %1644 = vmatpush1.bf16.msra.mxu0 %v1622
  %1645 = vmatprep.subr.bf16.mxu0 0
  %1646 = vmatpush1.bf16.msra.mxu0 %v1623
  %1647 = vmatprep.subr.bf16.mxu0 0
  %1648 = vmatpush1.bf16.msra.mxu0 %v1624
  %1649 = vmatprep.subr.bf16.mxu0 0
  %1650 = vmatpush1.bf16.msra.mxu0 0
  %1651 = vmatprep.subr.bf16.mxu0 0
  %1652 = vmatpush1.bf16.msra.mxu0 0
  %1653 = vmatprep.subr.bf16.mxu0 0
  %1654 = vmatpush1.bf16.msra.mxu0 0
  %1655 = vmatprep.subr.bf16.mxu0 0
  %1656 = vmatpush1.bf16.msra.mxu0 0
  %1657 = vmatprep.subr.bf16.mxu0 0
  %1658 = vmatpush1.bf16.msra.mxu0 0
  %1659 = vmatprep.subr.bf16.mxu0 0
  %1660 = vmatpush1.bf16.msra.mxu0 0
  %1661 = vmatprep.subr.bf16.mxu0 0
  %1662 = vmatpush1.bf16.msra.mxu0 0
  %1663 = vmatprep.subr.bf16.mxu0 0
  %1664 = vmatpush1.bf16.msra.mxu0 0
  %1665 = vmatprep.mubr.bf16.mxu0 0
  %1666 = vmatmul.mubr.bf16.gmra.mrb[0].mxu0 %v1546
  %v1667 = vpop.f32.mrb[0].mxu0
  %v1668 = vadd.f32 %v1583, %v1667
  %v1669 = vpop.f32.mrb[0].mxu0
  %v1670 = vpop.f32.mrb[0].mxu0
  %v1671 = vadd.f32 %v1583, %v1670
  %v1672 = vpop.f32.mrb[0].mxu0
  %1673 = vmatprep.mubr.bf16.mxu0 0
  %1674 = vmatmul.mubr.bf16.gmra.mrb[0].mxu0 %v1547
  %v1675 = vpop.f32.mrb[0].mxu0
  %v1676 = vadd.f32 %v1583, %v1675
  %v1677 = vpop.f32.mrb[0].mxu0
  %v1678 = vpop.f32.mrb[0].mxu0
  %v1679 = vadd.f32 %v1583, %v1678
  %v1680 = vpop.f32.mrb[0].mxu0
  %1681 = vmatprep.mubr.bf16.mxu0 0
  %1682 = vmatmul.mubr.bf16.gmra.mrb[0].mxu0 %v1548
  %v1683 = vpop.f32.mrb[0].mxu0
  %v1684 = vadd.f32 %v1583, %v1683
  %v1685 = vpop.f32.mrb[0].mxu0
  %v1686 = vpop.f32.mrb[0].mxu0
  %v1687 = vadd.f32 %v1583, %v1686
  %v1688 = vpop.f32.mrb[0].mxu0
  %1689 = vmatprep.mubr.bf16.mxu0 0
  %1690 = vmatmul.mubr.bf16.gmra.mrb[0].mxu0 %v1549
  %v1691 = vpop.f32.mrb[0].mxu0
  %v1692 = vadd.f32 %v1583, %v1691
  %v1693 = vpop.f32.mrb[0].mxu0
  %v1694 = vpop.f32.mrb[0].mxu0
  %v1695 = vadd.f32 %v1583, %v1694
  %v1696 = vpop.f32.mrb[0].mxu0
  %1697 = vmatprep.mubr.bf16.mxu0 0
  %1698 = vmatmul.mubr.bf16.gmra.mrb[0].mxu0 %v1550
  %v1699 = vpop.f32.mrb[0].mxu0
  %v1700 = vadd.f32 %v1583, %v1699
  %v1701 = vpop.f32.mrb[0].mxu0
  %v1702 = vpop.f32.mrb[0].mxu0
  %v1703 = vadd.f32 %v1583, %v1702
  %v1704 = vpop.f32.mrb[0].mxu0
  %1705 = vmatprep.mubr.bf16.mxu0 0
  %1706 = vmatmul.mubr.bf16.gmra.mrb[0].mxu0 %v1551
  %v1707 = vpop.f32.mrb[0].mxu0
  %v1708 = vadd.f32 %v1583, %v1707
  %v1709 = vpop.f32.mrb[0].mxu0
  %v1710 = vpop.f32.mrb[0].mxu0
  %v1711 = vadd.f32 %v1583, %v1710
  %v1712 = vpop.f32.mrb[0].mxu0
  %1713 = vmatprep.mubr.bf16.mxu0 0
  %1714 = vmatmul.mubr.bf16.gmra.mrb[0].mxu0 %v1552
  %v1715 = vpop.f32.mrb[0].mxu0
  %v1716 = vadd.f32 %v1583, %v1715
  %v1717 = vpop.f32.mrb[0].mxu0
  %v1718 = vpop.f32.mrb[0].mxu0
  %v1719 = vadd.f32 %v1583, %v1718
  %v1720 = vpop.f32.mrb[0].mxu0
  %1721 = vmatprep.mubr.bf16.mxu0 0
  %1722 = vmatmul.mubr.bf16.gmra.mrb[0].mxu0 %v1553
  %v1723 = vpop.f32.mrb[0].mxu0
  %v1724 = vadd.f32 %v1583, %v1723
  %v1725 = vpop.f32.mrb[0].mxu0
  %v1726 = vpop.f32.mrb[0].mxu0
  %v1727 = vadd.f32 %v1583, %v1726
  %v1728 = vpop.f32.mrb[0].mxu0
  %1729 = vmatprep.mubr.bf16.mxu0 0
  %1730 = vmatmul.mubr.bf16.gmra.mrb[0].mxu0 %v1554
  %v1731 = vpop.f32.mrb[0].mxu0
  %v1732 = vadd.f32 %v1583, %v1731
  %v1733 = vpop.f32.mrb[0].mxu0
  %v1734 = vpop.f32.mrb[0].mxu0
  %v1735 = vadd.f32 %v1583, %v1734
  %v1736 = vpop.f32.mrb[0].mxu0
  %1737 = vmatprep.mubr.bf16.mxu0 0
  %1738 = vmatmul.mubr.bf16.gmra.mrb[0].mxu0 %v1555
  %v1739 = vpop.f32.mrb[0].mxu0
  %v1740 = vadd.f32 %v1583, %v1739
  %v1741 = vpop.f32.mrb[0].mxu0
  %v1742 = vpop.f32.mrb[0].mxu0
  %v1743 = vadd.f32 %v1583, %v1742
  %v1744 = vpop.f32.mrb[0].mxu0
  %1745 = vmatprep.mubr.bf16.mxu0 0
  %1746 = vmatmul.mubr.bf16.gmra.mrb[0].mxu0 %v1556
  %v1747 = vpop.f32.mrb[0].mxu0
  %v1748 = vadd.f32 %v1583, %v1747
  %v1749 = vpop.f32.mrb[0].mxu0
  %v1750 = vpop.f32.mrb[0].mxu0
  %v1751 = vadd.f32 %v1583, %v1750
  %v1752 = vpop.f32.mrb[0].mxu0
  %1753 = vmatprep.mubr.bf16.mxu0 0
  %1754 = vmatmul.mubr.bf16.gmra.mrb[0].mxu0 %v1557
  %v1755 = vpop.f32.mrb[0].mxu0
  %v1756 = vadd.f32 %v1583, %v1755
  %v1757 = vpop.f32.mrb[0].mxu0
  %v1758 = vpop.f32.mrb[0].mxu0
  %v1759 = vadd.f32 %v1583, %v1758
  %v1760 = vpop.f32.mrb[0].mxu0
  %1761 = vmatprep.mubr.bf16.mxu0 0
  %1762 = vmatmul.mubr.bf16.gmra.mrb[0].mxu0 %v1558
  %v1763 = vpop.f32.mrb[0].mxu0
  %v1764 = vadd.f32 %v1583, %v1763
  %v1765 = vpop.f32.mrb[0].mxu0
  %v1766 = vpop.f32.mrb[0].mxu0
  %v1767 = vadd.f32 %v1583, %v1766
  %v1768 = vpop.f32.mrb[0].mxu0
  %1769 = vmatprep.mubr.bf16.mxu0 0
  %1770 = vmatmul.mubr.bf16.gmra.mrb[0].mxu0 %v1559
  %v1771 = vpop.f32.mrb[0].mxu0
  %v1772 = vadd.f32 %v1583, %v1771
  %v1773 = vpop.f32.mrb[0].mxu0
  %v1774 = vpop.f32.mrb[0].mxu0
  %v1775 = vadd.f32 %v1583, %v1774
  %v1776 = vpop.f32.mrb[0].mxu0
  %1777 = vmatprep.mubr.bf16.mxu0 0
  %1778 = vmatmul.mubr.bf16.gmra.mrb[0].mxu0 %v1560
  %v1779 = vpop.f32.mrb[0].mxu0
  %v1780 = vadd.f32 %v1583, %v1779
  %v1781 = vpop.f32.mrb[0].mxu0
  %v1782 = vpop.f32.mrb[0].mxu0
  %v1783 = vadd.f32 %v1583, %v1782
  %v1784 = vpop.f32.mrb[0].mxu0
  %1785 = vmatprep.mubr.bf16.mxu0 0
  %1786 = vmatmul.mubr.bf16.gmra.mrb[0].mxu0 %v1561
  %v1787 = vpop.f32.mrb[0].mxu0
  %v1788 = vadd.f32 %v1583, %v1787
  %v1789 = vpop.f32.mrb[0].mxu0
  %v1790 = vpop.f32.mrb[0].mxu0
  %v1791 = vadd.f32 %v1583, %v1790
  %v1792 = vpop.f32.mrb[0].mxu0
  %1793 = vdwg.mxu0
  %v1794 = vadd.f32 %v1668, %v962
  %v1795 = vadd.f32 %v1671, %v963
  %v1796 = vadd.f32 %v1676, %v964
  %v1797 = vadd.f32 %v1679, %v965
  %v1798 = vadd.f32 %v1684, %v966
  %v1799 = vadd.f32 %v1687, %v967
  %v1800 = vadd.f32 %v1692, %v968
  %v1801 = vadd.f32 %v1695, %v969
  %v1802 = vadd.f32 %v1700, %v970
  %v1803 = vadd.f32 %v1703, %v971
  %v1804 = vadd.f32 %v1708, %v972
  %v1805 = vadd.f32 %v1711, %v973
  %v1806 = vadd.f32 %v1716, %v974
  %v1807 = vadd.f32 %v1719, %v975
  %v1808 = vadd.f32 %v1724, %v976
  %v1809 = vadd.f32 %v1727, %v977
  %v1810 = vadd.f32 %v1732, %v978
  %v1811 = vadd.f32 %v1735, %v979
  %v1812 = vadd.f32 %v1740, %v980
  %v1813 = vadd.f32 %v1743, %v981
  %v1814 = vadd.f32 %v1748, %v982
  %v1815 = vadd.f32 %v1751, %v983
  %v1816 = vadd.f32 %v1756, %v984
  %v1817 = vadd.f32 %v1759, %v985
  %v1818 = vadd.f32 %v1764, %v986
  %v1819 = vadd.f32 %v1767, %v987
  %v1820 = vadd.f32 %v1772, %v988
  %v1821 = vadd.f32 %v1775, %v989
  %v1822 = vadd.f32 %v1780, %v990
  %v1823 = vadd.f32 %v1783, %v991
  %v1824 = vadd.f32 %v1788, %v992
  %v1825 = vadd.f32 %v1791, %v993
  %v1826 = vld [vmem:[%s10] sm:$0x1]
  %v1827 = vld [vmem:[%s11] sm:$0x1]
  %v1828 = vsel %vm193, %v1794, 0.0
  %1829 = vadd.xlane.f32.xlu0 %v1828
  %v1830 = vpop.xlane.xlu0 %1829
  %v1831 = vsel %vm193, %v1795, 0.0
  %1832 = vadd.xlane.f32.xlu0 %v1831
  %v1833 = vpop.xlane.xlu0 %1832
  %v1834 = vsel %vm193, %v1796, 0.0
  %1835 = vadd.xlane.f32.xlu0 %v1834
  %v1836 = vpop.xlane.xlu0 %1835
  %v1837 = vsel %vm193, %v1797, 0.0
  %1838 = vadd.xlane.f32.xlu0 %v1837
  %v1839 = vpop.xlane.xlu0 %1838
  %v1840 = vsel %vm193, %v1798, 0.0
  %1841 = vadd.xlane.f32.xlu0 %v1840
  %v1842 = vpop.xlane.xlu0 %1841
  %v1843 = vsel %vm193, %v1799, 0.0
  %1844 = vadd.xlane.f32.xlu0 %v1843
  %v1845 = vpop.xlane.xlu0 %1844
  %v1846 = vsel %vm193, %v1800, 0.0
  %1847 = vadd.xlane.f32.xlu0 %v1846
  %v1848 = vpop.xlane.xlu0 %1847
  %v1849 = vsel %vm193, %v1801, 0.0
  %1850 = vadd.xlane.f32.xlu0 %v1849
  %v1851 = vpop.xlane.xlu0 %1850
  %v1852 = vsel %vm193, %v1802, 0.0
  %1853 = vadd.xlane.f32.xlu0 %v1852
  %v1854 = vpop.xlane.xlu0 %1853
  %v1855 = vsel %vm193, %v1803, 0.0
  %1856 = vadd.xlane.f32.xlu0 %v1855
  %v1857 = vpop.xlane.xlu0 %1856
  %v1858 = vsel %vm193, %v1804, 0.0
  %1859 = vadd.xlane.f32.xlu0 %v1858
  %v1860 = vpop.xlane.xlu0 %1859
  %v1861 = vsel %vm193, %v1805, 0.0
  %1862 = vadd.xlane.f32.xlu0 %v1861
  %v1863 = vpop.xlane.xlu0 %1862
  %v1864 = vsel %vm193, %v1806, 0.0
  %1865 = vadd.xlane.f32.xlu0 %v1864
  %v1866 = vpop.xlane.xlu0 %1865
  %v1867 = vsel %vm193, %v1807, 0.0
  %1868 = vadd.xlane.f32.xlu0 %v1867
  %v1869 = vpop.xlane.xlu0 %1868
  %v1870 = vsel %vm193, %v1808, 0.0
  %1871 = vadd.xlane.f32.xlu0 %v1870
  %v1872 = vpop.xlane.xlu0 %1871
  %v1873 = vsel %vm193, %v1809, 0.0
  %1874 = vadd.xlane.f32.xlu0 %v1873
  %v1875 = vpop.xlane.xlu0 %1874
  %v1876 = vsel %vm193, %v1810, 0.0
  %1877 = vadd.xlane.f32.xlu0 %v1876
  %v1878 = vpop.xlane.xlu0 %1877
  %v1879 = vsel %vm193, %v1811, 0.0
  %1880 = vadd.xlane.f32.xlu0 %v1879
  %v1881 = vpop.xlane.xlu0 %1880
  %v1882 = vsel %vm193, %v1812, 0.0
  %1883 = vadd.xlane.f32.xlu0 %v1882
  %v1884 = vpop.xlane.xlu0 %1883
  %v1885 = vsel %vm193, %v1813, 0.0
  %1886 = vadd.xlane.f32.xlu0 %v1885
  %v1887 = vpop.xlane.xlu0 %1886
  %v1888 = vsel %vm193, %v1814, 0.0
  %1889 = vadd.xlane.f32.xlu0 %v1888
  %v1890 = vpop.xlane.xlu0 %1889
  %v1891 = vsel %vm193, %v1815, 0.0
  %1892 = vadd.xlane.f32.xlu0 %v1891
  %v1893 = vpop.xlane.xlu0 %1892
  %v1894 = vsel %vm193, %v1816, 0.0
  %1895 = vadd.xlane.f32.xlu0 %v1894
  %v1896 = vpop.xlane.xlu0 %1895
  %v1897 = vsel %vm193, %v1817, 0.0
  %1898 = vadd.xlane.f32.xlu0 %v1897
  %v1899 = vpop.xlane.xlu0 %1898
  %v1900 = vsel %vm193, %v1818, 0.0
  %1901 = vadd.xlane.f32.xlu0 %v1900
  %v1902 = vpop.xlane.xlu0 %1901
  %v1903 = vsel %vm193, %v1819, 0.0
  %1904 = vadd.xlane.f32.xlu0 %v1903
  %v1905 = vpop.xlane.xlu0 %1904
  %v1906 = vsel %vm193, %v1820, 0.0
  %1907 = vadd.xlane.f32.xlu0 %v1906
  %v1908 = vpop.xlane.xlu0 %1907
  %v1909 = vsel %vm193, %v1821, 0.0
  %1910 = vadd.xlane.f32.xlu0 %v1909
  %v1911 = vpop.xlane.xlu0 %1910
  %v1912 = vsel %vm193, %v1822, 0.0
  %1913 = vadd.xlane.f32.xlu0 %v1912
  %v1914 = vpop.xlane.xlu0 %1913
  %v1915 = vsel %vm193, %v1823, 0.0
  %1916 = vadd.xlane.f32.xlu0 %v1915
  %v1917 = vpop.xlane.xlu0 %1916
  %v1918 = vsel %vm193, %v1824, 0.0
  %1919 = vadd.xlane.f32.xlu0 %v1918
  %v1920 = vpop.xlane.xlu0 %1919
  %v1921 = vsel %vm193, %v1825, 0.0
  %1922 = vadd.xlane.f32.xlu0 %v1921
  %v1923 = vpop.xlane.xlu0 %1922
  %v1924 = vmul.f32 %v1830, %v597
  %v1925 = vmul.f32 %v1833, %v597
  %v1926 = vmul.f32 %v1836, %v597
  %v1927 = vmul.f32 %v1839, %v597
  %v1928 = vmul.f32 %v1842, %v597
  %v1929 = vmul.f32 %v1845, %v597
  %v1930 = vmul.f32 %v1848, %v597
  %v1931 = vmul.f32 %v1851, %v597
  %v1932 = vmul.f32 %v1854, %v597
  %v1933 = vmul.f32 %v1857, %v597
  %v1934 = vmul.f32 %v1860, %v597
  %v1935 = vmul.f32 %v1863, %v597
  %v1936 = vmul.f32 %v1866, %v597
  %v1937 = vmul.f32 %v1869, %v597
  %v1938 = vmul.f32 %v1872, %v597
  %v1939 = vmul.f32 %v1875, %v597
  %v1940 = vmul.f32 %v1878, %v597
  %v1941 = vmul.f32 %v1881, %v597
  %v1942 = vmul.f32 %v1884, %v597
  %v1943 = vmul.f32 %v1887, %v597
  %v1944 = vmul.f32 %v1890, %v597
  %v1945 = vmul.f32 %v1893, %v597
  %v1946 = vmul.f32 %v1896, %v597
  %v1947 = vmul.f32 %v1899, %v597
  %v1948 = vmul.f32 %v1902, %v597
  %v1949 = vmul.f32 %v1905, %v597
  %v1950 = vmul.f32 %v1908, %v597
  %v1951 = vmul.f32 %v1911, %v597
  %v1952 = vmul.f32 %v1914, %v597
  %v1953 = vmul.f32 %v1917, %v597
  %v1954 = vmul.f32 %v1920, %v597
  %v1955 = vmul.f32 %v1923, %v597
  %v1956 = vsub.f32 %v1794, %v1924
  %v1957 = vsub.f32 %v1795, %v1925
  %v1958 = vsub.f32 %v1796, %v1926
  %v1959 = vsub.f32 %v1797, %v1927
  %v1960 = vsub.f32 %v1798, %v1928
  %v1961 = vsub.f32 %v1799, %v1929
  %v1962 = vsub.f32 %v1800, %v1930
  %v1963 = vsub.f32 %v1801, %v1931
  %v1964 = vsub.f32 %v1802, %v1932
  %v1965 = vsub.f32 %v1803, %v1933
  %v1966 = vsub.f32 %v1804, %v1934
  %v1967 = vsub.f32 %v1805, %v1935
  %v1968 = vsub.f32 %v1806, %v1936
  %v1969 = vsub.f32 %v1807, %v1937
  %v1970 = vsub.f32 %v1808, %v1938
  %v1971 = vsub.f32 %v1809, %v1939
  %v1972 = vsub.f32 %v1810, %v1940
  %v1973 = vsub.f32 %v1811, %v1941
  %v1974 = vsub.f32 %v1812, %v1942
  %v1975 = vsub.f32 %v1813, %v1943
  %v1976 = vsub.f32 %v1814, %v1944
  %v1977 = vsub.f32 %v1815, %v1945
  %v1978 = vsub.f32 %v1816, %v1946
  %v1979 = vsub.f32 %v1817, %v1947
  %v1980 = vsub.f32 %v1818, %v1948
  %v1981 = vsub.f32 %v1819, %v1949
  %v1982 = vsub.f32 %v1820, %v1950
  %v1983 = vsub.f32 %v1821, %v1951
  %v1984 = vsub.f32 %v1822, %v1952
  %v1985 = vsub.f32 %v1823, %v1953
  %v1986 = vsub.f32 %v1824, %v1954
  %v1987 = vsub.f32 %v1825, %v1955
  %v1988 = vmul.f32 %v1956, %v1956
  %v1989 = vmul.f32 %v1957, %v1957
  %v1990 = vmul.f32 %v1958, %v1958
  %v1991 = vmul.f32 %v1959, %v1959
  %v1992 = vmul.f32 %v1960, %v1960
  %v1993 = vmul.f32 %v1961, %v1961
  %v1994 = vmul.f32 %v1962, %v1962
  %v1995 = vmul.f32 %v1963, %v1963
  %v1996 = vmul.f32 %v1964, %v1964
  %v1997 = vmul.f32 %v1965, %v1965
  %v1998 = vmul.f32 %v1966, %v1966
  %v1999 = vmul.f32 %v1967, %v1967
  %v2000 = vmul.f32 %v1968, %v1968
  %v2001 = vmul.f32 %v1969, %v1969
  %v2002 = vmul.f32 %v1970, %v1970
  %v2003 = vmul.f32 %v1971, %v1971
  %v2004 = vmul.f32 %v1972, %v1972
  %v2005 = vmul.f32 %v1973, %v1973
  %v2006 = vmul.f32 %v1974, %v1974
  %v2007 = vmul.f32 %v1975, %v1975
  %v2008 = vmul.f32 %v1976, %v1976
  %v2009 = vmul.f32 %v1977, %v1977
  %v2010 = vmul.f32 %v1978, %v1978
  %v2011 = vmul.f32 %v1979, %v1979
  %v2012 = vmul.f32 %v1980, %v1980
  %v2013 = vmul.f32 %v1981, %v1981
  %v2014 = vmul.f32 %v1982, %v1982
  %v2015 = vmul.f32 %v1983, %v1983
  %v2016 = vmul.f32 %v1984, %v1984
  %v2017 = vmul.f32 %v1985, %v1985
  %v2018 = vmul.f32 %v1986, %v1986
  %v2019 = vmul.f32 %v1987, %v1987
  %v2020 = vsel %vm193, %v1988, 0.0
  %2021 = vadd.xlane.f32.xlu0 %v2020
  %v2022 = vpop.xlane.xlu0 %2021
  %v2023 = vsel %vm193, %v1989, 0.0
  %2024 = vadd.xlane.f32.xlu0 %v2023
  %v2025 = vpop.xlane.xlu0 %2024
  %v2026 = vsel %vm193, %v1990, 0.0
  %2027 = vadd.xlane.f32.xlu0 %v2026
  %v2028 = vpop.xlane.xlu0 %2027
  %v2029 = vsel %vm193, %v1991, 0.0
  %2030 = vadd.xlane.f32.xlu0 %v2029
  %v2031 = vpop.xlane.xlu0 %2030
  %v2032 = vsel %vm193, %v1992, 0.0
  %2033 = vadd.xlane.f32.xlu0 %v2032
  %v2034 = vpop.xlane.xlu0 %2033
  %v2035 = vsel %vm193, %v1993, 0.0
  %2036 = vadd.xlane.f32.xlu0 %v2035
  %v2037 = vpop.xlane.xlu0 %2036
  %v2038 = vsel %vm193, %v1994, 0.0
  %2039 = vadd.xlane.f32.xlu0 %v2038
  %v2040 = vpop.xlane.xlu0 %2039
  %v2041 = vsel %vm193, %v1995, 0.0
  %2042 = vadd.xlane.f32.xlu0 %v2041
  %v2043 = vpop.xlane.xlu0 %2042
  %v2044 = vsel %vm193, %v1996, 0.0
  %2045 = vadd.xlane.f32.xlu0 %v2044
  %v2046 = vpop.xlane.xlu0 %2045
  %v2047 = vsel %vm193, %v1997, 0.0
  %2048 = vadd.xlane.f32.xlu0 %v2047
  %v2049 = vpop.xlane.xlu0 %2048
  %v2050 = vsel %vm193, %v1998, 0.0
  %2051 = vadd.xlane.f32.xlu0 %v2050
  %v2052 = vpop.xlane.xlu0 %2051
  %v2053 = vsel %vm193, %v1999, 0.0
  %2054 = vadd.xlane.f32.xlu0 %v2053
  %v2055 = vpop.xlane.xlu0 %2054
  %v2056 = vsel %vm193, %v2000, 0.0
  %2057 = vadd.xlane.f32.xlu0 %v2056
  %v2058 = vpop.xlane.xlu0 %2057
  %v2059 = vsel %vm193, %v2001, 0.0
  %2060 = vadd.xlane.f32.xlu0 %v2059
  %v2061 = vpop.xlane.xlu0 %2060
  %v2062 = vsel %vm193, %v2002, 0.0
  %2063 = vadd.xlane.f32.xlu0 %v2062
  %v2064 = vpop.xlane.xlu0 %2063
  %v2065 = vsel %vm193, %v2003, 0.0
  %2066 = vadd.xlane.f32.xlu0 %v2065
  %v2067 = vpop.xlane.xlu0 %2066
  %v2068 = vsel %vm193, %v2004, 0.0
  %2069 = vadd.xlane.f32.xlu0 %v2068
  %v2070 = vpop.xlane.xlu0 %2069
  %v2071 = vsel %vm193, %v2005, 0.0
  %2072 = vadd.xlane.f32.xlu0 %v2071
  %v2073 = vpop.xlane.xlu0 %2072
  %v2074 = vsel %vm193, %v2006, 0.0
  %2075 = vadd.xlane.f32.xlu0 %v2074
  %v2076 = vpop.xlane.xlu0 %2075
  %v2077 = vsel %vm193, %v2007, 0.0
  %2078 = vadd.xlane.f32.xlu0 %v2077
  %v2079 = vpop.xlane.xlu0 %2078
  %v2080 = vsel %vm193, %v2008, 0.0
  %2081 = vadd.xlane.f32.xlu0 %v2080
  %v2082 = vpop.xlane.xlu0 %2081
  %v2083 = vsel %vm193, %v2009, 0.0
  %2084 = vadd.xlane.f32.xlu0 %v2083
  %v2085 = vpop.xlane.xlu0 %2084
  %v2086 = vsel %vm193, %v2010, 0.0
  %2087 = vadd.xlane.f32.xlu0 %v2086
  %v2088 = vpop.xlane.xlu0 %2087
  %v2089 = vsel %vm193, %v2011, 0.0
  %2090 = vadd.xlane.f32.xlu0 %v2089
  %v2091 = vpop.xlane.xlu0 %2090
  %v2092 = vsel %vm193, %v2012, 0.0
  %2093 = vadd.xlane.f32.xlu0 %v2092
  %v2094 = vpop.xlane.xlu0 %2093
  %v2095 = vsel %vm193, %v2013, 0.0
  %2096 = vadd.xlane.f32.xlu0 %v2095
  %v2097 = vpop.xlane.xlu0 %2096
  %v2098 = vsel %vm193, %v2014, 0.0
  %2099 = vadd.xlane.f32.xlu0 %v2098
  %v2100 = vpop.xlane.xlu0 %2099
  %v2101 = vsel %vm193, %v2015, 0.0
  %2102 = vadd.xlane.f32.xlu0 %v2101
  %v2103 = vpop.xlane.xlu0 %2102
  %v2104 = vsel %vm193, %v2016, 0.0
  %2105 = vadd.xlane.f32.xlu0 %v2104
  %v2106 = vpop.xlane.xlu0 %2105
  %v2107 = vsel %vm193, %v2017, 0.0
  %2108 = vadd.xlane.f32.xlu0 %v2107
  %v2109 = vpop.xlane.xlu0 %2108
  %v2110 = vsel %vm193, %v2018, 0.0
  %2111 = vadd.xlane.f32.xlu0 %v2110
  %v2112 = vpop.xlane.xlu0 %2111
  %v2113 = vsel %vm193, %v2019, 0.0
  %2114 = vadd.xlane.f32.xlu0 %v2113
  %v2115 = vpop.xlane.xlu0 %2114
  %v2116 = vmul.f32 %v2022, %v597
  %v2117 = vmul.f32 %v2025, %v597
  %v2118 = vmul.f32 %v2028, %v597
  %v2119 = vmul.f32 %v2031, %v597
  %v2120 = vmul.f32 %v2034, %v597
  %v2121 = vmul.f32 %v2037, %v597
  %v2122 = vmul.f32 %v2040, %v597
  %v2123 = vmul.f32 %v2043, %v597
  %v2124 = vmul.f32 %v2046, %v597
  %v2125 = vmul.f32 %v2049, %v597
  %v2126 = vmul.f32 %v2052, %v597
  %v2127 = vmul.f32 %v2055, %v597
  %v2128 = vmul.f32 %v2058, %v597
  %v2129 = vmul.f32 %v2061, %v597
  %v2130 = vmul.f32 %v2064, %v597
  %v2131 = vmul.f32 %v2067, %v597
  %v2132 = vmul.f32 %v2070, %v597
  %v2133 = vmul.f32 %v2073, %v597
  %v2134 = vmul.f32 %v2076, %v597
  %v2135 = vmul.f32 %v2079, %v597
  %v2136 = vmul.f32 %v2082, %v597
  %v2137 = vmul.f32 %v2085, %v597
  %v2138 = vmul.f32 %v2088, %v597
  %v2139 = vmul.f32 %v2091, %v597
  %v2140 = vmul.f32 %v2094, %v597
  %v2141 = vmul.f32 %v2097, %v597
  %v2142 = vmul.f32 %v2100, %v597
  %v2143 = vmul.f32 %v2103, %v597
  %v2144 = vmul.f32 %v2106, %v597
  %v2145 = vmul.f32 %v2109, %v597
  %v2146 = vmul.f32 %v2112, %v597
  %v2147 = vmul.f32 %v2115, %v597
  %v2148 = vadd.f32 %v2116, 1e-05
  %v2149 = vadd.f32 %v2117, 1e-05
  %v2150 = vadd.f32 %v2118, 1e-05
  %v2151 = vadd.f32 %v2119, 1e-05
  %v2152 = vadd.f32 %v2120, 1e-05
  %v2153 = vadd.f32 %v2121, 1e-05
  %v2154 = vadd.f32 %v2122, 1e-05
  %v2155 = vadd.f32 %v2123, 1e-05
  %v2156 = vadd.f32 %v2124, 1e-05
  %v2157 = vadd.f32 %v2125, 1e-05
  %v2158 = vadd.f32 %v2126, 1e-05
  %v2159 = vadd.f32 %v2127, 1e-05
  %v2160 = vadd.f32 %v2128, 1e-05
  %v2161 = vadd.f32 %v2129, 1e-05
  %v2162 = vadd.f32 %v2130, 1e-05
  %v2163 = vadd.f32 %v2131, 1e-05
  %v2164 = vadd.f32 %v2132, 1e-05
  %v2165 = vadd.f32 %v2133, 1e-05
  %v2166 = vadd.f32 %v2134, 1e-05
  %v2167 = vadd.f32 %v2135, 1e-05
  %v2168 = vadd.f32 %v2136, 1e-05
  %v2169 = vadd.f32 %v2137, 1e-05
  %v2170 = vadd.f32 %v2138, 1e-05
  %v2171 = vadd.f32 %v2139, 1e-05
  %v2172 = vadd.f32 %v2140, 1e-05
  %v2173 = vadd.f32 %v2141, 1e-05
  %v2174 = vadd.f32 %v2142, 1e-05
  %v2175 = vadd.f32 %v2143, 1e-05
  %v2176 = vadd.f32 %v2144, 1e-05
  %v2177 = vadd.f32 %v2145, 1e-05
  %v2178 = vadd.f32 %v2146, 1e-05
  %v2179 = vadd.f32 %v2147, 1e-05
  %v2180 = vrsqrt.pop %v2148
  %v2181 = vrsqrt.pop %v2149
  %v2182 = vrsqrt.pop %v2150
  %v2183 = vrsqrt.pop %v2151
  %v2184 = vrsqrt.pop %v2152
  %v2185 = vrsqrt.pop %v2153
  %v2186 = vrsqrt.pop %v2154
  %v2187 = vrsqrt.pop %v2155
  %v2188 = vrsqrt.pop %v2156
  %v2189 = vrsqrt.pop %v2157
  %v2190 = vrsqrt.pop %v2158
  %v2191 = vrsqrt.pop %v2159
  %v2192 = vrsqrt.pop %v2160
  %v2193 = vrsqrt.pop %v2161
  %v2194 = vrsqrt.pop %v2162
  %v2195 = vrsqrt.pop %v2163
  %v2196 = vrsqrt.pop %v2164
  %v2197 = vrsqrt.pop %v2165
  %v2198 = vrsqrt.pop %v2166
  %v2199 = vrsqrt.pop %v2167
  %v2200 = vrsqrt.pop %v2168
  %v2201 = vrsqrt.pop %v2169
  %v2202 = vrsqrt.pop %v2170
  %v2203 = vrsqrt.pop %v2171
  %v2204 = vrsqrt.pop %v2172
  %v2205 = vrsqrt.pop %v2173
  %v2206 = vrsqrt.pop %v2174
  %v2207 = vrsqrt.pop %v2175
  %v2208 = vrsqrt.pop %v2176
  %v2209 = vrsqrt.pop %v2177
  %v2210 = vrsqrt.pop %v2178
  %v2211 = vrsqrt.pop %v2179
  %v2212 = vmul.f32 %v1956, %v2180
  %v2213 = vmul.f32 %v1957, %v2181
  %v2214 = vmul.f32 %v1958, %v2182
  %v2215 = vmul.f32 %v1959, %v2183
  %v2216 = vmul.f32 %v1960, %v2184
  %v2217 = vmul.f32 %v1961, %v2185
  %v2218 = vmul.f32 %v1962, %v2186
  %v2219 = vmul.f32 %v1963, %v2187
  %v2220 = vmul.f32 %v1964, %v2188
  %v2221 = vmul.f32 %v1965, %v2189
  %v2222 = vmul.f32 %v1966, %v2190
  %v2223 = vmul.f32 %v1967, %v2191
  %v2224 = vmul.f32 %v1968, %v2192
  %v2225 = vmul.f32 %v1969, %v2193
  %v2226 = vmul.f32 %v1970, %v2194
  %v2227 = vmul.f32 %v1971, %v2195
  %v2228 = vmul.f32 %v1972, %v2196
  %v2229 = vmul.f32 %v1973, %v2197
  %v2230 = vmul.f32 %v1974, %v2198
  %v2231 = vmul.f32 %v1975, %v2199
  %v2232 = vmul.f32 %v1976, %v2200
  %v2233 = vmul.f32 %v1977, %v2201
  %v2234 = vmul.f32 %v1978, %v2202
  %v2235 = vmul.f32 %v1979, %v2203
  %v2236 = vmul.f32 %v1980, %v2204
  %v2237 = vmul.f32 %v1981, %v2205
  %v2238 = vmul.f32 %v1982, %v2206
  %v2239 = vmul.f32 %v1983, %v2207
  %v2240 = vmul.f32 %v1984, %v2208
  %v2241 = vmul.f32 %v1985, %v2209
  %v2242 = vmul.f32 %v1986, %v2210
  %v2243 = vmul.f32 %v1987, %v2211
  %v2245 = vlaneseq
  %v2246 = vshrl.u32 %v2245, 7
  %v2247 = vsub.s32 0, %v2246
  %v2248 = vrot.slane %v1826, %v2247
  %v2250 = vmul.f32 %v2212, %v2248
  %v2251 = vmul.f32 %v2213, %v2248
  %v2252 = vmul.f32 %v2214, %v2248
  %v2253 = vmul.f32 %v2215, %v2248
  %v2254 = vmul.f32 %v2216, %v2248
  %v2255 = vmul.f32 %v2217, %v2248
  %v2256 = vmul.f32 %v2218, %v2248
  %v2257 = vmul.f32 %v2219, %v2248
  %v2258 = vmul.f32 %v2220, %v2248
  %v2259 = vmul.f32 %v2221, %v2248
  %v2260 = vmul.f32 %v2222, %v2248
  %v2261 = vmul.f32 %v2223, %v2248
  %v2262 = vmul.f32 %v2224, %v2248
  %v2263 = vmul.f32 %v2225, %v2248
  %v2264 = vmul.f32 %v2226, %v2248
  %v2265 = vmul.f32 %v2227, %v2248
  %v2266 = vmul.f32 %v2228, %v2248
  %v2267 = vmul.f32 %v2229, %v2248
  %v2268 = vmul.f32 %v2230, %v2248
  %v2269 = vmul.f32 %v2231, %v2248
  %v2270 = vmul.f32 %v2232, %v2248
  %v2271 = vmul.f32 %v2233, %v2248
  %v2272 = vmul.f32 %v2234, %v2248
  %v2273 = vmul.f32 %v2235, %v2248
  %v2274 = vmul.f32 %v2236, %v2248
  %v2275 = vmul.f32 %v2237, %v2248
  %v2276 = vmul.f32 %v2238, %v2248
  %v2277 = vmul.f32 %v2239, %v2248
  %v2278 = vmul.f32 %v2240, %v2248
  %v2279 = vmul.f32 %v2241, %v2248
  %v2280 = vmul.f32 %v2242, %v2248
  %v2281 = vmul.f32 %v2243, %v2248
  %v2283 = vlaneseq
  %v2284 = vshrl.u32 %v2283, 7
  %v2285 = vsub.s32 0, %v2284
  %v2286 = vrot.slane %v1827, %v2285
  %v2288 = vadd.f32 %v2250, %v2286
  %v2289 = vadd.f32 %v2251, %v2286
  %v2290 = vadd.f32 %v2252, %v2286
  %v2291 = vadd.f32 %v2253, %v2286
  %v2292 = vadd.f32 %v2254, %v2286
  %v2293 = vadd.f32 %v2255, %v2286
  %v2294 = vadd.f32 %v2256, %v2286
  %v2295 = vadd.f32 %v2257, %v2286
  %v2296 = vadd.f32 %v2258, %v2286
  %v2297 = vadd.f32 %v2259, %v2286
  %v2298 = vadd.f32 %v2260, %v2286
  %v2299 = vadd.f32 %v2261, %v2286
  %v2300 = vadd.f32 %v2262, %v2286
  %v2301 = vadd.f32 %v2263, %v2286
  %v2302 = vadd.f32 %v2264, %v2286
  %v2303 = vadd.f32 %v2265, %v2286
  %v2304 = vadd.f32 %v2266, %v2286
  %v2305 = vadd.f32 %v2267, %v2286
  %v2306 = vadd.f32 %v2268, %v2286
  %v2307 = vadd.f32 %v2269, %v2286
  %v2308 = vadd.f32 %v2270, %v2286
  %v2309 = vadd.f32 %v2271, %v2286
  %v2310 = vadd.f32 %v2272, %v2286
  %v2311 = vadd.f32 %v2273, %v2286
  %v2312 = vadd.f32 %v2274, %v2286
  %v2313 = vadd.f32 %v2275, %v2286
  %v2314 = vadd.f32 %v2276, %v2286
  %v2315 = vadd.f32 %v2277, %v2286
  %v2316 = vadd.f32 %v2278, %v2286
  %v2317 = vadd.f32 %v2279, %v2286
  %v2318 = vadd.f32 %v2280, %v2286
  %v2319 = vadd.f32 %v2281, %v2286
  %v2320 = vpack.c.bf16 %v2289, %v2288
  %v2321 = vpack.c.bf16 %v2291, %v2290
  %v2322 = vpack.c.bf16 %v2293, %v2292
  %v2323 = vpack.c.bf16 %v2295, %v2294
  %v2324 = vpack.c.bf16 %v2297, %v2296
  %v2325 = vpack.c.bf16 %v2299, %v2298
  %v2326 = vpack.c.bf16 %v2301, %v2300
  %v2327 = vpack.c.bf16 %v2303, %v2302
  %v2328 = vpack.c.bf16 %v2305, %v2304
  %v2329 = vpack.c.bf16 %v2307, %v2306
  %v2330 = vpack.c.bf16 %v2309, %v2308
  %v2331 = vpack.c.bf16 %v2311, %v2310
  %v2332 = vpack.c.bf16 %v2313, %v2312
  %v2333 = vpack.c.bf16 %v2315, %v2314
  %v2334 = vpack.c.bf16 %v2317, %v2316
  %v2335 = vpack.c.bf16 %v2319, %v2318
  %v2352 = vunpack.c.l.b16 %v2320
  %v2353 = vunpack.c.h.b16 %v2320
  %v2354 = vunpack.c.l.b16 %v2321
  %v2355 = vunpack.c.h.b16 %v2321
  %v2356 = vunpack.c.l.b16 %v2322
  %v2357 = vunpack.c.h.b16 %v2322
  %v2358 = vunpack.c.l.b16 %v2323
  %v2359 = vunpack.c.h.b16 %v2323
  %v2360 = vunpack.c.l.b16 %v2324
  %v2361 = vunpack.c.h.b16 %v2324
  %v2362 = vunpack.c.l.b16 %v2325
  %v2363 = vunpack.c.h.b16 %v2325
  %v2364 = vunpack.c.l.b16 %v2326
  %v2365 = vunpack.c.h.b16 %v2326
  %v2366 = vunpack.c.l.b16 %v2327
  %v2367 = vunpack.c.h.b16 %v2327
  %v2368 = vunpack.c.l.b16 %v2328
  %v2369 = vunpack.c.h.b16 %v2328
  %v2370 = vunpack.c.l.b16 %v2329
  %v2371 = vunpack.c.h.b16 %v2329
  %v2372 = vunpack.c.l.b16 %v2330
  %v2373 = vunpack.c.h.b16 %v2330
  %v2374 = vunpack.c.l.b16 %v2331
  %v2375 = vunpack.c.h.b16 %v2331
  %v2376 = vunpack.c.l.b16 %v2332
  %v2377 = vunpack.c.h.b16 %v2332
  %v2378 = vunpack.c.l.b16 %v2333
  %v2379 = vunpack.c.h.b16 %v2333
  %v2380 = vunpack.c.l.b16 %v2334
  %v2381 = vunpack.c.h.b16 %v2334
  %v2382 = vunpack.c.l.b16 %v2335
  %v2383 = vunpack.c.h.b16 %v2335
  %v2384 = vpack.c.b16 %v2352, %v2352
  %v2385 = vpack.c.b16 %v2353, %v2353
  %v2386 = vpack.c.b16 %v2354, %v2354
  %v2387 = vpack.c.b16 %v2355, %v2355
  %v2388 = vpack.c.b16 %v2356, %v2356
  %v2389 = vpack.c.b16 %v2357, %v2357
  %v2390 = vpack.c.b16 %v2358, %v2358
  %v2391 = vpack.c.b16 %v2359, %v2359
  %v2392 = vpack.c.b16 %v2360, %v2360
  %v2393 = vpack.c.b16 %v2361, %v2361
  %v2394 = vpack.c.b16 %v2362, %v2362
  %v2395 = vpack.c.b16 %v2363, %v2363
  %v2396 = vpack.c.b16 %v2364, %v2364
  %v2397 = vpack.c.b16 %v2365, %v2365
  %v2398 = vpack.c.b16 %v2366, %v2366
  %v2399 = vpack.c.b16 %v2367, %v2367
  %v2400 = vpack.c.b16 %v2368, %v2368
  %v2401 = vpack.c.b16 %v2369, %v2369
  %v2402 = vpack.c.b16 %v2370, %v2370
  %v2403 = vpack.c.b16 %v2371, %v2371
  %v2404 = vpack.c.b16 %v2372, %v2372
  %v2405 = vpack.c.b16 %v2373, %v2373
  %v2406 = vpack.c.b16 %v2374, %v2374
  %v2407 = vpack.c.b16 %v2375, %v2375
  %v2408 = vpack.c.b16 %v2376, %v2376
  %v2409 = vpack.c.b16 %v2377, %v2377
  %v2410 = vpack.c.b16 %v2378, %v2378
  %v2411 = vpack.c.b16 %v2379, %v2379
  %v2412 = vpack.c.b16 %v2380, %v2380
  %v2413 = vpack.c.b16 %v2381, %v2381
  %v2414 = vpack.c.b16 %v2382, %v2382
  %v2415 = vpack.c.b16 %v2383, %v2383
  %vm2448 = vcmask 519168
  %2449 = vst.msk [vmem:[%s12] sm:$0xf] %vm2448, %v2384
  %2450 = vst.msk [vmem:[%s12 + $0x4] sm:$0xf] %vm2448, %v2385
  %2451 = vst.msk [vmem:[%s12 + $0x8] sm:$0xf] %vm2448, %v2386
  %2452 = vst.msk [vmem:[%s12 + $0xc] sm:$0xf] %vm2448, %v2387
  %2453 = vst.msk [vmem:[%s12 + $0x10] sm:$0xf] %vm2448, %v2388
  %2454 = vst.msk [vmem:[%s12 + $0x14] sm:$0xf] %vm2448, %v2389
  %2455 = vst.msk [vmem:[%s12 + $0x18] sm:$0xf] %vm2448, %v2390
  %2456 = vst.msk [vmem:[%s12 + $0x1c] sm:$0xf] %vm2448, %v2391
  %2457 = vst.msk [vmem:[%s12 + $0x20] sm:$0xf] %vm2448, %v2392
  %2458 = vst.msk [vmem:[%s12 + $0x24] sm:$0xf] %vm2448, %v2393
  %2459 = vst.msk [vmem:[%s12 + $0x28] sm:$0xf] %vm2448, %v2394
  %2460 = vst.msk [vmem:[%s12 + $0x2c] sm:$0xf] %vm2448, %v2395
  %2461 = vst.msk [vmem:[%s12 + $0x30] sm:$0xf] %vm2448, %v2396
  %2462 = vst.msk [vmem:[%s12 + $0x34] sm:$0xf] %vm2448, %v2397
  %2463 = vst.msk [vmem:[%s12 + $0x38] sm:$0xf] %vm2448, %v2398
  %2464 = vst.msk [vmem:[%s12 + $0x3c] sm:$0xf] %vm2448, %v2399
  %2465 = vst.msk [vmem:[%s12 + $0x40] sm:$0xf] %vm2448, %v2400
  %2466 = vst.msk [vmem:[%s12 + $0x44] sm:$0xf] %vm2448, %v2401
  %2467 = vst.msk [vmem:[%s12 + $0x48] sm:$0xf] %vm2448, %v2402
  %2468 = vst.msk [vmem:[%s12 + $0x4c] sm:$0xf] %vm2448, %v2403
  %2469 = vst.msk [vmem:[%s12 + $0x50] sm:$0xf] %vm2448, %v2404
  %2470 = vst.msk [vmem:[%s12 + $0x54] sm:$0xf] %vm2448, %v2405
  %2471 = vst.msk [vmem:[%s12 + $0x58] sm:$0xf] %vm2448, %v2406
  %2472 = vst.msk [vmem:[%s12 + $0x5c] sm:$0xf] %vm2448, %v2407
  %2473 = vst.msk [vmem:[%s12 + $0x60] sm:$0xf] %vm2448, %v2408
  %2474 = vst.msk [vmem:[%s12 + $0x64] sm:$0xf] %vm2448, %v2409
  %2475 = vst.msk [vmem:[%s12 + $0x68] sm:$0xf] %vm2448, %v2410
  %2476 = vst.msk [vmem:[%s12 + $0x6c] sm:$0xf] %vm2448, %v2411
  %2477 = vst.msk [vmem:[%s12 + $0x70] sm:$0xf] %vm2448, %v2412
  %2478 = vst.msk [vmem:[%s12 + $0x74] sm:$0xf] %vm2448, %v2413
  %2479 = vst.msk [vmem:[%s12 + $0x78] sm:$0xf] %vm2448, %v2414
  %2480 = vst.msk [vmem:[%s12 + $0x7c] sm:$0xf] %vm2448, %v2415
  // Predicated region
  $region50: #{flash_roberta_forward.10} parent=0 // pred_check
    _
  $region51: #{flash_roberta_forward.10} parent=0 // pred_check_branch
    %2482 = sbr.rel (0) target = $region53
  $region52: #{flash_roberta_forward.10} parent=0 // pred_region
    _
  $region53: #{flash_roberta_forward.10} parent=0 // pred_fallthru
    _
  // Predicated region
  $region54: #{flash_roberta_forward.10} parent=0 // pred_check
    _
  $region55: #{flash_roberta_forward.10} parent=0 // pred_check_branch
    %2484 = sbr.rel (0) target = $region57
  $region56: #{flash_roberta_forward.10} parent=0 // pred_region
    _
  $region57: #{flash_roberta_forward.10} parent=0 // pred_fallthru
    _

// kernel: flash_roberta_forward.9
$region0: #{flash_roberta_forward.9}
  #allocation0 [shape = 'u32[]', space=smem, size = 0x4, offset = 0x4, fixed_abs, tag = 'smem constant byte address 0x4 - core index']
  #allocation1 [shape = 'u32[144,128]{1,0:T(1,128)}', space=vmem, size = 0x12000, scoped, tag = 'internal scratch']
  #allocation2 [shape = 'f32[2,256,1]{2,1,0:T(8,128)}', space=vmem, size = 0x40000, scoped, tag = 'scratch operand']
  #allocation3 [shape = 'f32[2,256,1]{2,1,0:T(8,128)}', space=vmem, size = 0x40000, scoped, tag = 'scratch operand']
  #allocation4 [shape = 'f32[2,256,32]{2,1,0:T(8,128)}', space=vmem, size = 0x40000, scoped, tag = 'scratch operand']
  #allocation5 [shape = 's32[1]{0}', space=sflag, size = 0x4, scoped, tag = 'scoped memory for flash_roberta_forward.9']
  #allocation6 [shape = 's32[1]{0:T(128)S(6)}', space=smem, size = 0x200, scoped, tag = 'prefetched SMEM operand 0']
  #allocation7 [shape = 's32[1]{0:T(128)S(6)}', space=smem, size = 0x200, scoped, tag = 'prefetched SMEM operand 1']
  %s0 = inlined_call_operand.<no memory space> [shape: s32[1], index: 0, kind: input, shape index: {}]
  %s1 = inlined_call_operand.<no memory space> [shape: s32[1], index: 1, kind: input, shape index: {}]
  %s2 = inlined_call_operand.vmem [shape: bf16[3,256,64], index: 2, kind: input, shape index: {}, may-alias: {2,3,4}]
  %s3 = inlined_call_operand.vmem [shape: bf16[3,256,64], index: 3, kind: input, shape index: {}, may-alias: {2,3,4}]
  %s4 = inlined_call_operand.vmem [shape: bf16[3,256,64], index: 4, kind: input, shape index: {}, may-alias: {2,3,4}]
  %s5 = inlined_call_operand.vmem [shape: s32[256,1], index: 5, kind: input, shape index: {}]
  %s6 = inlined_call_operand.vmem [shape: s32[1,256], index: 6, kind: input, shape index: {}]
  %s7 = inlined_call_operand.vmem [shape: bf16[256,64], index: 7, kind: output, shape index: {}]
  %s8 = sld [smem:[#allocation0]]
  $region42: #{flash_roberta_forward.9} parent=0
    _
  %s10 = ssub.s32 1, %s8
  %s11 = scalar_select 0, %s10, %s8
  %12 = sst [smem:[#allocation6]] %s0
  %13 = sst [smem:[#allocation7]] %s1
  // Predicated region
  $region2: #{flash_roberta_forward.9} parent=0 // pred_check
    _
  $region3: #{flash_roberta_forward.9} parent=0 // pred_check_branch
    %15 = sbr.rel (0) target = $region5
  $region4: #{flash_roberta_forward.9} parent=0 // pred_region
    _
  $region5: #{flash_roberta_forward.9} parent=0 // pred_fallthru
    _
  // Predicated region
  $region6: #{flash_roberta_forward.9} parent=0 // pred_check
    _
  $region7: #{flash_roberta_forward.9} parent=0 // pred_check_branch
    %17 = sbr.rel (0) target = $region9
  $region8: #{flash_roberta_forward.9} parent=0 // pred_region
    %s18 = scalar_lea.vmem %s3, 128
  $region9: #{flash_roberta_forward.9} parent=0 // pred_fallthru
    _
  // Predicated region
  $region10: #{flash_roberta_forward.9} parent=0 // pred_check
    _
  $region11: #{flash_roberta_forward.9} parent=0 // pred_check_branch
    %20 = sbr.rel (0) target = $region13
  $region12: #{flash_roberta_forward.9} parent=0 // pred_region
    %s21 = scalar_lea.vmem %s4, 256
  $region13: #{flash_roberta_forward.9} parent=0 // pred_fallthru
    _
  // Predicated region
  $region14: #{flash_roberta_forward.9} parent=0 // pred_check
    _
  $region15: #{flash_roberta_forward.9} parent=0 // pred_check_branch
    %23 = sbr.rel (0) target = $region17
  $region16: #{flash_roberta_forward.9} parent=0 // pred_region
    _
  $region17: #{flash_roberta_forward.9} parent=0 // pred_fallthru
    _
  // Predicated region
  $region18: #{flash_roberta_forward.9} parent=0 // pred_check
    _
  $region19: #{flash_roberta_forward.9} parent=0 // pred_check_branch
    %25 = sbr.rel (0) target = $region21
  $region20: #{flash_roberta_forward.9} parent=0 // pred_region
    _
  $region21: #{flash_roberta_forward.9} parent=0 // pred_fallthru
    _
  %s26 = scalar_lea.vmem %s3, 128
  %s27 = scalar_lea.vmem %s4, 256
  %s28 = scalar_lea.vmem %s3, 128
  %s29 = scalar_lea.vmem %s4, 256
  %p31 = scmp.eq.s32.totalorder 0, 0
  // Predicated region
  $region22: #{flash_roberta_forward.9} parent=0 // pred_check
    %p32 = pneg %p31
  $region23: #{flash_roberta_forward.9} parent=0 // pred_check_branch
    %34 = sbr.rel (%p32) target = $region25
  $region24: #{flash_roberta_forward.9} parent=0 // pred_region
    %vm35 = vcmask 7168
    %36 = vst.msk [vmem:[#allocation2] sm:$0xff] %vm35, -1e+30
    %37 = vst.msk [vmem:[#allocation2 + $0x8] sm:$0xff] %vm35, -1e+30
    %38 = vst.msk [vmem:[#allocation2 + $0x10] sm:$0xff] %vm35, -1e+30
    %39 = vst.msk [vmem:[#allocation2 + $0x18] sm:$0xff] %vm35, -1e+30
    %40 = vst.msk [vmem:[#allocation2 + $0x20] sm:$0xff] %vm35, -1e+30
    %41 = vst.msk [vmem:[#allocation2 + $0x28] sm:$0xff] %vm35, -1e+30
    %42 = vst.msk [vmem:[#allocation2 + $0x30] sm:$0xff] %vm35, -1e+30
    %43 = vst.msk [vmem:[#allocation2 + $0x38] sm:$0xff] %vm35, -1e+30
    %44 = vst.msk [vmem:[#allocation2 + $0x40] sm:$0xff] %vm35, -1e+30
    %45 = vst.msk [vmem:[#allocation2 + $0x48] sm:$0xff] %vm35, -1e+30
    %46 = vst.msk [vmem:[#allocation2 + $0x50] sm:$0xff] %vm35, -1e+30
    %47 = vst.msk [vmem:[#allocation2 + $0x58] sm:$0xff] %vm35, -1e+30
    %48 = vst.msk [vmem:[#allocation2 + $0x60] sm:$0xff] %vm35, -1e+30
    %49 = vst.msk [vmem:[#allocation2 + $0x68] sm:$0xff] %vm35, -1e+30
    %50 = vst.msk [vmem:[#allocation2 + $0x70] sm:$0xff] %vm35, -1e+30
    %51 = vst.msk [vmem:[#allocation2 + $0x78] sm:$0xff] %vm35, -1e+30
    %52 = vst.msk [vmem:[#allocation2 + $0x80] sm:$0xff] %vm35, -1e+30
    %53 = vst.msk [vmem:[#allocation2 + $0x88] sm:$0xff] %vm35, -1e+30
    %54 = vst.msk [vmem:[#allocation2 + $0x90] sm:$0xff] %vm35, -1e+30
    %55 = vst.msk [vmem:[#allocation2 + $0x98] sm:$0xff] %vm35, -1e+30
    %56 = vst.msk [vmem:[#allocation2 + $0xa0] sm:$0xff] %vm35, -1e+30
    %57 = vst.msk [vmem:[#allocation2 + $0xa8] sm:$0xff] %vm35, -1e+30
    %58 = vst.msk [vmem:[#allocation2 + $0xb0] sm:$0xff] %vm35, -1e+30
    %59 = vst.msk [vmem:[#allocation2 + $0xb8] sm:$0xff] %vm35, -1e+30
    %60 = vst.msk [vmem:[#allocation2 + $0xc0] sm:$0xff] %vm35, -1e+30
    %61 = vst.msk [vmem:[#allocation2 + $0xc8] sm:$0xff] %vm35, -1e+30
    %62 = vst.msk [vmem:[#allocation2 + $0xd0] sm:$0xff] %vm35, -1e+30
    %63 = vst.msk [vmem:[#allocation2 + $0xd8] sm:$0xff] %vm35, -1e+30
    %64 = vst.msk [vmem:[#allocation2 + $0xe0] sm:$0xff] %vm35, -1e+30
    %65 = vst.msk [vmem:[#allocation2 + $0xe8] sm:$0xff] %vm35, -1e+30
    %66 = vst.msk [vmem:[#allocation2 + $0xf0] sm:$0xff] %vm35, -1e+30
    %67 = vst.msk [vmem:[#allocation2 + $0xf8] sm:$0xff] %vm35, -1e+30
    %68 = vst.msk [vmem:[#allocation2 + $0x100] sm:$0xff] %vm35, -1e+30
    %69 = vst.msk [vmem:[#allocation2 + $0x108] sm:$0xff] %vm35, -1e+30
    %70 = vst.msk [vmem:[#allocation2 + $0x110] sm:$0xff] %vm35, -1e+30
    %71 = vst.msk [vmem:[#allocation2 + $0x118] sm:$0xff] %vm35, -1e+30
    %72 = vst.msk [vmem:[#allocation2 + $0x120] sm:$0xff] %vm35, -1e+30
    %73 = vst.msk [vmem:[#allocation2 + $0x128] sm:$0xff] %vm35, -1e+30
    %74 = vst.msk [vmem:[#allocation2 + $0x130] sm:$0xff] %vm35, -1e+30
    %75 = vst.msk [vmem:[#allocation2 + $0x138] sm:$0xff] %vm35, -1e+30
    %76 = vst.msk [vmem:[#allocation2 + $0x140] sm:$0xff] %vm35, -1e+30
    %77 = vst.msk [vmem:[#allocation2 + $0x148] sm:$0xff] %vm35, -1e+30
    %78 = vst.msk [vmem:[#allocation2 + $0x150] sm:$0xff] %vm35, -1e+30
    %79 = vst.msk [vmem:[#allocation2 + $0x158] sm:$0xff] %vm35, -1e+30
    %80 = vst.msk [vmem:[#allocation2 + $0x160] sm:$0xff] %vm35, -1e+30
    %81 = vst.msk [vmem:[#allocation2 + $0x168] sm:$0xff] %vm35, -1e+30
    %82 = vst.msk [vmem:[#allocation2 + $0x170] sm:$0xff] %vm35, -1e+30
    %83 = vst.msk [vmem:[#allocation2 + $0x178] sm:$0xff] %vm35, -1e+30
    %84 = vst.msk [vmem:[#allocation2 + $0x180] sm:$0xff] %vm35, -1e+30
    %85 = vst.msk [vmem:[#allocation2 + $0x188] sm:$0xff] %vm35, -1e+30
    %86 = vst.msk [vmem:[#allocation2 + $0x190] sm:$0xff] %vm35, -1e+30
    %87 = vst.msk [vmem:[#allocation2 + $0x198] sm:$0xff] %vm35, -1e+30
    %88 = vst.msk [vmem:[#allocation2 + $0x1a0] sm:$0xff] %vm35, -1e+30
    %89 = vst.msk [vmem:[#allocation2 + $0x1a8] sm:$0xff] %vm35, -1e+30
    %90 = vst.msk [vmem:[#allocation2 + $0x1b0] sm:$0xff] %vm35, -1e+30
    %91 = vst.msk [vmem:[#allocation2 + $0x1b8] sm:$0xff] %vm35, -1e+30
    %92 = vst.msk [vmem:[#allocation2 + $0x1c0] sm:$0xff] %vm35, -1e+30
    %93 = vst.msk [vmem:[#allocation2 + $0x1c8] sm:$0xff] %vm35, -1e+30
    %94 = vst.msk [vmem:[#allocation2 + $0x1d0] sm:$0xff] %vm35, -1e+30
    %95 = vst.msk [vmem:[#allocation2 + $0x1d8] sm:$0xff] %vm35, -1e+30
    %96 = vst.msk [vmem:[#allocation2 + $0x1e0] sm:$0xff] %vm35, -1e+30
    %97 = vst.msk [vmem:[#allocation2 + $0x1e8] sm:$0xff] %vm35, -1e+30
    %98 = vst.msk [vmem:[#allocation2 + $0x1f0] sm:$0xff] %vm35, -1e+30
    %99 = vst.msk [vmem:[#allocation2 + $0x1f8] sm:$0xff] %vm35, -1e+30
    %100 = vst.msk [vmem:[#allocation3] sm:$0xff] %vm35, 0.0
    %101 = vst.msk [vmem:[#allocation3 + $0x8] sm:$0xff] %vm35, 0.0
    %102 = vst.msk [vmem:[#allocation3 + $0x10] sm:$0xff] %vm35, 0.0
    %103 = vst.msk [vmem:[#allocation3 + $0x18] sm:$0xff] %vm35, 0.0
    %104 = vst.msk [vmem:[#allocation3 + $0x20] sm:$0xff] %vm35, 0.0
    %105 = vst.msk [vmem:[#allocation3 + $0x28] sm:$0xff] %vm35, 0.0
    %106 = vst.msk [vmem:[#allocation3 + $0x30] sm:$0xff] %vm35, 0.0
    %107 = vst.msk [vmem:[#allocation3 + $0x38] sm:$0xff] %vm35, 0.0
    %108 = vst.msk [vmem:[#allocation3 + $0x40] sm:$0xff] %vm35, 0.0
    %109 = vst.msk [vmem:[#allocation3 + $0x48] sm:$0xff] %vm35, 0.0
    %110 = vst.msk [vmem:[#allocation3 + $0x50] sm:$0xff] %vm35, 0.0
    %111 = vst.msk [vmem:[#allocation3 + $0x58] sm:$0xff] %vm35, 0.0
    %112 = vst.msk [vmem:[#allocation3 + $0x60] sm:$0xff] %vm35, 0.0
    %113 = vst.msk [vmem:[#allocation3 + $0x68] sm:$0xff] %vm35, 0.0
    %114 = vst.msk [vmem:[#allocation3 + $0x70] sm:$0xff] %vm35, 0.0
    %115 = vst.msk [vmem:[#allocation3 + $0x78] sm:$0xff] %vm35, 0.0
    %116 = vst.msk [vmem:[#allocation3 + $0x80] sm:$0xff] %vm35, 0.0
    %117 = vst.msk [vmem:[#allocation3 + $0x88] sm:$0xff] %vm35, 0.0
    %118 = vst.msk [vmem:[#allocation3 + $0x90] sm:$0xff] %vm35, 0.0
    %119 = vst.msk [vmem:[#allocation3 + $0x98] sm:$0xff] %vm35, 0.0
    %120 = vst.msk [vmem:[#allocation3 + $0xa0] sm:$0xff] %vm35, 0.0
    %121 = vst.msk [vmem:[#allocation3 + $0xa8] sm:$0xff] %vm35, 0.0
    %122 = vst.msk [vmem:[#allocation3 + $0xb0] sm:$0xff] %vm35, 0.0
    %123 = vst.msk [vmem:[#allocation3 + $0xb8] sm:$0xff] %vm35, 0.0
    %124 = vst.msk [vmem:[#allocation3 + $0xc0] sm:$0xff] %vm35, 0.0
    %125 = vst.msk [vmem:[#allocation3 + $0xc8] sm:$0xff] %vm35, 0.0
    %126 = vst.msk [vmem:[#allocation3 + $0xd0] sm:$0xff] %vm35, 0.0
    %127 = vst.msk [vmem:[#allocation3 + $0xd8] sm:$0xff] %vm35, 0.0
    %128 = vst.msk [vmem:[#allocation3 + $0xe0] sm:$0xff] %vm35, 0.0
    %129 = vst.msk [vmem:[#allocation3 + $0xe8] sm:$0xff] %vm35, 0.0
    %130 = vst.msk [vmem:[#allocation3 + $0xf0] sm:$0xff] %vm35, 0.0
    %131 = vst.msk [vmem:[#allocation3 + $0xf8] sm:$0xff] %vm35, 0.0
    %132 = vst.msk [vmem:[#allocation3 + $0x100] sm:$0xff] %vm35, 0.0
    %133 = vst.msk [vmem:[#allocation3 + $0x108] sm:$0xff] %vm35, 0.0
    %134 = vst.msk [vmem:[#allocation3 + $0x110] sm:$0xff] %vm35, 0.0
    %135 = vst.msk [vmem:[#allocation3 + $0x118] sm:$0xff] %vm35, 0.0
    %136 = vst.msk [vmem:[#allocation3 + $0x120] sm:$0xff] %vm35, 0.0
    %137 = vst.msk [vmem:[#allocation3 + $0x128] sm:$0xff] %vm35, 0.0
    %138 = vst.msk [vmem:[#allocation3 + $0x130] sm:$0xff] %vm35, 0.0
    %139 = vst.msk [vmem:[#allocation3 + $0x138] sm:$0xff] %vm35, 0.0
    %140 = vst.msk [vmem:[#allocation3 + $0x140] sm:$0xff] %vm35, 0.0
    %141 = vst.msk [vmem:[#allocation3 + $0x148] sm:$0xff] %vm35, 0.0
    %142 = vst.msk [vmem:[#allocation3 + $0x150] sm:$0xff] %vm35, 0.0
    %143 = vst.msk [vmem:[#allocation3 + $0x158] sm:$0xff] %vm35, 0.0
    %144 = vst.msk [vmem:[#allocation3 + $0x160] sm:$0xff] %vm35, 0.0
    %145 = vst.msk [vmem:[#allocation3 + $0x168] sm:$0xff] %vm35, 0.0
    %146 = vst.msk [vmem:[#allocation3 + $0x170] sm:$0xff] %vm35, 0.0
    %147 = vst.msk [vmem:[#allocation3 + $0x178] sm:$0xff] %vm35, 0.0
    %148 = vst.msk [vmem:[#allocation3 + $0x180] sm:$0xff] %vm35, 0.0
    %149 = vst.msk [vmem:[#allocation3 + $0x188] sm:$0xff] %vm35, 0.0
    %150 = vst.msk [vmem:[#allocation3 + $0x190] sm:$0xff] %vm35, 0.0
    %151 = vst.msk [vmem:[#allocation3 + $0x198] sm:$0xff] %vm35, 0.0
    %152 = vst.msk [vmem:[#allocation3 + $0x1a0] sm:$0xff] %vm35, 0.0
    %153 = vst.msk [vmem:[#allocation3 + $0x1a8] sm:$0xff] %vm35, 0.0
    %154 = vst.msk [vmem:[#allocation3 + $0x1b0] sm:$0xff] %vm35, 0.0
    %155 = vst.msk [vmem:[#allocation3 + $0x1b8] sm:$0xff] %vm35, 0.0
    %156 = vst.msk [vmem:[#allocation3 + $0x1c0] sm:$0xff] %vm35, 0.0
    %157 = vst.msk [vmem:[#allocation3 + $0x1c8] sm:$0xff] %vm35, 0.0
    %158 = vst.msk [vmem:[#allocation3 + $0x1d0] sm:$0xff] %vm35, 0.0
    %159 = vst.msk [vmem:[#allocation3 + $0x1d8] sm:$0xff] %vm35, 0.0
    %160 = vst.msk [vmem:[#allocation3 + $0x1e0] sm:$0xff] %vm35, 0.0
    %161 = vst.msk [vmem:[#allocation3 + $0x1e8] sm:$0xff] %vm35, 0.0
    %162 = vst.msk [vmem:[#allocation3 + $0x1f0] sm:$0xff] %vm35, 0.0
    %163 = vst.msk [vmem:[#allocation3 + $0x1f8] sm:$0xff] %vm35, 0.0
    %vm164 = vcmask 261120
    %165 = vst.msk [vmem:[#allocation4] sm:$0xff] %vm164, 0.0
    %166 = vst.msk [vmem:[#allocation4 + $0x8] sm:$0xff] %vm164, 0.0
    %167 = vst.msk [vmem:[#allocation4 + $0x10] sm:$0xff] %vm164, 0.0
    %168 = vst.msk [vmem:[#allocation4 + $0x18] sm:$0xff] %vm164, 0.0
    %169 = vst.msk [vmem:[#allocation4 + $0x20] sm:$0xff] %vm164, 0.0
    %170 = vst.msk [vmem:[#allocation4 + $0x28] sm:$0xff] %vm164, 0.0
    %171 = vst.msk [vmem:[#allocation4 + $0x30] sm:$0xff] %vm164, 0.0
    %172 = vst.msk [vmem:[#allocation4 + $0x38] sm:$0xff] %vm164, 0.0
    %173 = vst.msk [vmem:[#allocation4 + $0x40] sm:$0xff] %vm164, 0.0
    %174 = vst.msk [vmem:[#allocation4 + $0x48] sm:$0xff] %vm164, 0.0
    %175 = vst.msk [vmem:[#allocation4 + $0x50] sm:$0xff] %vm164, 0.0
    %176 = vst.msk [vmem:[#allocation4 + $0x58] sm:$0xff] %vm164, 0.0
    %177 = vst.msk [vmem:[#allocation4 + $0x60] sm:$0xff] %vm164, 0.0
    %178 = vst.msk [vmem:[#allocation4 + $0x68] sm:$0xff] %vm164, 0.0
    %179 = vst.msk [vmem:[#allocation4 + $0x70] sm:$0xff] %vm164, 0.0
    %180 = vst.msk [vmem:[#allocation4 + $0x78] sm:$0xff] %vm164, 0.0
    %181 = vst.msk [vmem:[#allocation4 + $0x80] sm:$0xff] %vm164, 0.0
    %182 = vst.msk [vmem:[#allocation4 + $0x88] sm:$0xff] %vm164, 0.0
    %183 = vst.msk [vmem:[#allocation4 + $0x90] sm:$0xff] %vm164, 0.0
    %184 = vst.msk [vmem:[#allocation4 + $0x98] sm:$0xff] %vm164, 0.0
    %185 = vst.msk [vmem:[#allocation4 + $0xa0] sm:$0xff] %vm164, 0.0
    %186 = vst.msk [vmem:[#allocation4 + $0xa8] sm:$0xff] %vm164, 0.0
    %187 = vst.msk [vmem:[#allocation4 + $0xb0] sm:$0xff] %vm164, 0.0
    %188 = vst.msk [vmem:[#allocation4 + $0xb8] sm:$0xff] %vm164, 0.0
    %189 = vst.msk [vmem:[#allocation4 + $0xc0] sm:$0xff] %vm164, 0.0
    %190 = vst.msk [vmem:[#allocation4 + $0xc8] sm:$0xff] %vm164, 0.0
    %191 = vst.msk [vmem:[#allocation4 + $0xd0] sm:$0xff] %vm164, 0.0
    %192 = vst.msk [vmem:[#allocation4 + $0xd8] sm:$0xff] %vm164, 0.0
    %193 = vst.msk [vmem:[#allocation4 + $0xe0] sm:$0xff] %vm164, 0.0
    %194 = vst.msk [vmem:[#allocation4 + $0xe8] sm:$0xff] %vm164, 0.0
    %195 = vst.msk [vmem:[#allocation4 + $0xf0] sm:$0xff] %vm164, 0.0
    %196 = vst.msk [vmem:[#allocation4 + $0xf8] sm:$0xff] %vm164, 0.0
    %197 = vst.msk [vmem:[#allocation4 + $0x100] sm:$0xff] %vm164, 0.0
    %198 = vst.msk [vmem:[#allocation4 + $0x108] sm:$0xff] %vm164, 0.0
    %199 = vst.msk [vmem:[#allocation4 + $0x110] sm:$0xff] %vm164, 0.0
    %200 = vst.msk [vmem:[#allocation4 + $0x118] sm:$0xff] %vm164, 0.0
    %201 = vst.msk [vmem:[#allocation4 + $0x120] sm:$0xff] %vm164, 0.0
    %202 = vst.msk [vmem:[#allocation4 + $0x128] sm:$0xff] %vm164, 0.0
    %203 = vst.msk [vmem:[#allocation4 + $0x130] sm:$0xff] %vm164, 0.0
    %204 = vst.msk [vmem:[#allocation4 + $0x138] sm:$0xff] %vm164, 0.0
    %205 = vst.msk [vmem:[#allocation4 + $0x140] sm:$0xff] %vm164, 0.0
    %206 = vst.msk [vmem:[#allocation4 + $0x148] sm:$0xff] %vm164, 0.0
    %207 = vst.msk [vmem:[#allocation4 + $0x150] sm:$0xff] %vm164, 0.0
    %208 = vst.msk [vmem:[#allocation4 + $0x158] sm:$0xff] %vm164, 0.0
    %209 = vst.msk [vmem:[#allocation4 + $0x160] sm:$0xff] %vm164, 0.0
    %210 = vst.msk [vmem:[#allocation4 + $0x168] sm:$0xff] %vm164, 0.0
    %211 = vst.msk [vmem:[#allocation4 + $0x170] sm:$0xff] %vm164, 0.0
    %212 = vst.msk [vmem:[#allocation4 + $0x178] sm:$0xff] %vm164, 0.0
    %213 = vst.msk [vmem:[#allocation4 + $0x180] sm:$0xff] %vm164, 0.0
    %214 = vst.msk [vmem:[#allocation4 + $0x188] sm:$0xff] %vm164, 0.0
    %215 = vst.msk [vmem:[#allocation4 + $0x190] sm:$0xff] %vm164, 0.0
    %216 = vst.msk [vmem:[#allocation4 + $0x198] sm:$0xff] %vm164, 0.0
    %217 = vst.msk [vmem:[#allocation4 + $0x1a0] sm:$0xff] %vm164, 0.0
    %218 = vst.msk [vmem:[#allocation4 + $0x1a8] sm:$0xff] %vm164, 0.0
    %219 = vst.msk [vmem:[#allocation4 + $0x1b0] sm:$0xff] %vm164, 0.0
    %220 = vst.msk [vmem:[#allocation4 + $0x1b8] sm:$0xff] %vm164, 0.0
    %221 = vst.msk [vmem:[#allocation4 + $0x1c0] sm:$0xff] %vm164, 0.0
    %222 = vst.msk [vmem:[#allocation4 + $0x1c8] sm:$0xff] %vm164, 0.0
    %223 = vst.msk [vmem:[#allocation4 + $0x1d0] sm:$0xff] %vm164, 0.0
    %224 = vst.msk [vmem:[#allocation4 + $0x1d8] sm:$0xff] %vm164, 0.0
    %225 = vst.msk [vmem:[#allocation4 + $0x1e0] sm:$0xff] %vm164, 0.0
    %226 = vst.msk [vmem:[#allocation4 + $0x1e8] sm:$0xff] %vm164, 0.0
    %227 = vst.msk [vmem:[#allocation4 + $0x1f0] sm:$0xff] %vm164, 0.0
    %228 = vst.msk [vmem:[#allocation4 + $0x1f8] sm:$0xff] %vm164, 0.0
  $region25: #{flash_roberta_forward.9} parent=0 // pred_fallthru
    _
  %s229 = sld [smem:[#allocation6]]
  %s230 = sld [smem:[#allocation7]]
  %p231 = scmp.le.s32.totalorder %s229, %s230
  %s232 = sld [smem:[#allocation6]]
  %s233 = sld [smem:[#allocation7]]
  %p234 = scmp.le.s32.totalorder %s232, %s233
  %p235 = pnand %p231, %p234
  %p236 = pneg %p235
  // Predicated region
  $region26: #{flash_roberta_forward.9} parent=0 // pred_check
    _
  $region27: #{flash_roberta_forward.9} parent=0 // pred_check_branch
    %238 = sbr.rel (%p235) target = $region29
  $region28: #{flash_roberta_forward.9} parent=0 // pred_region
    %v239 = vld [vmem:[%s2] sm:$0xf]
    %v240 = vld [vmem:[%s2 + $0x4] sm:$0xf]
    %v241 = vld [vmem:[%s2 + $0x8] sm:$0xf]
    %v242 = vld [vmem:[%s2 + $0xc] sm:$0xf]
    %v243 = vld [vmem:[%s2 + $0x10] sm:$0xf]
    %v244 = vld [vmem:[%s2 + $0x14] sm:$0xf]
    %v245 = vld [vmem:[%s2 + $0x18] sm:$0xf]
    %v246 = vld [vmem:[%s2 + $0x1c] sm:$0xf]
    %v247 = vld [vmem:[%s2 + $0x20] sm:$0xf]
    %v248 = vld [vmem:[%s2 + $0x24] sm:$0xf]
    %v249 = vld [vmem:[%s2 + $0x28] sm:$0xf]
    %v250 = vld [vmem:[%s2 + $0x2c] sm:$0xf]
    %v251 = vld [vmem:[%s2 + $0x30] sm:$0xf]
    %v252 = vld [vmem:[%s2 + $0x34] sm:$0xf]
    %v253 = vld [vmem:[%s2 + $0x38] sm:$0xf]
    %v254 = vld [vmem:[%s2 + $0x3c] sm:$0xf]
    %v255 = vld [vmem:[%s2 + $0x40] sm:$0xf]
    %v256 = vld [vmem:[%s2 + $0x44] sm:$0xf]
    %v257 = vld [vmem:[%s2 + $0x48] sm:$0xf]
    %v258 = vld [vmem:[%s2 + $0x4c] sm:$0xf]
    %v259 = vld [vmem:[%s2 + $0x50] sm:$0xf]
    %v260 = vld [vmem:[%s2 + $0x54] sm:$0xf]
    %v261 = vld [vmem:[%s2 + $0x58] sm:$0xf]
    %v262 = vld [vmem:[%s2 + $0x5c] sm:$0xf]
    %v263 = vld [vmem:[%s2 + $0x60] sm:$0xf]
    %v264 = vld [vmem:[%s2 + $0x64] sm:$0xf]
    %v265 = vld [vmem:[%s2 + $0x68] sm:$0xf]
    %v266 = vld [vmem:[%s2 + $0x6c] sm:$0xf]
    %v267 = vld [vmem:[%s2 + $0x70] sm:$0xf]
    %v268 = vld [vmem:[%s2 + $0x74] sm:$0xf]
    %v269 = vld [vmem:[%s2 + $0x78] sm:$0xf]
    %v270 = vld [vmem:[%s2 + $0x7c] sm:$0xf]
    %v271 = vld [vmem:[%s28] sm:$0xf]
    %v272 = vld [vmem:[%s28 + $0x4] sm:$0xf]
    %v273 = vld [vmem:[%s28 + $0x8] sm:$0xf]
    %v274 = vld [vmem:[%s28 + $0xc] sm:$0xf]
    %v275 = vld [vmem:[%s28 + $0x10] sm:$0xf]
    %v276 = vld [vmem:[%s28 + $0x14] sm:$0xf]
    %v277 = vld [vmem:[%s28 + $0x18] sm:$0xf]
    %v278 = vld [vmem:[%s28 + $0x1c] sm:$0xf]
    %v279 = vld [vmem:[%s28 + $0x20] sm:$0xf]
    %v280 = vld [vmem:[%s28 + $0x24] sm:$0xf]
    %v281 = vld [vmem:[%s28 + $0x28] sm:$0xf]
    %v282 = vld [vmem:[%s28 + $0x2c] sm:$0xf]
    %v283 = vld [vmem:[%s28 + $0x30] sm:$0xf]
    %v284 = vld [vmem:[%s28 + $0x34] sm:$0xf]
    %v285 = vld [vmem:[%s28 + $0x38] sm:$0xf]
    %v286 = vld [vmem:[%s28 + $0x3c] sm:$0xf]
    %v287 = vld [vmem:[%s28 + $0x40] sm:$0xf]
    %v288 = vld [vmem:[%s28 + $0x44] sm:$0xf]
    %v289 = vld [vmem:[%s28 + $0x48] sm:$0xf]
    %v290 = vld [vmem:[%s28 + $0x4c] sm:$0xf]
    %v291 = vld [vmem:[%s28 + $0x50] sm:$0xf]
    %v292 = vld [vmem:[%s28 + $0x54] sm:$0xf]
    %v293 = vld [vmem:[%s28 + $0x58] sm:$0xf]
    %v294 = vld [vmem:[%s28 + $0x5c] sm:$0xf]
    %v295 = vld [vmem:[%s28 + $0x60] sm:$0xf]
    %v296 = vld [vmem:[%s28 + $0x64] sm:$0xf]
    %v297 = vld [vmem:[%s28 + $0x68] sm:$0xf]
    %v298 = vld [vmem:[%s28 + $0x6c] sm:$0xf]
    %v299 = vld [vmem:[%s28 + $0x70] sm:$0xf]
    %v300 = vld [vmem:[%s28 + $0x74] sm:$0xf]
    %v301 = vld [vmem:[%s28 + $0x78] sm:$0xf]
    %v302 = vld [vmem:[%s28 + $0x7c] sm:$0xf]
    %v303 = vld [vmem:[%s29] sm:$0xf]
    %v304 = vld [vmem:[%s29 + $0x4] sm:$0xf]
    %v305 = vld [vmem:[%s29 + $0x8] sm:$0xf]
    %v306 = vld [vmem:[%s29 + $0xc] sm:$0xf]
    %v307 = vld [vmem:[%s29 + $0x10] sm:$0xf]
    %v308 = vld [vmem:[%s29 + $0x14] sm:$0xf]
    %v309 = vld [vmem:[%s29 + $0x18] sm:$0xf]
    %v310 = vld [vmem:[%s29 + $0x1c] sm:$0xf]
    %v311 = vld [vmem:[%s29 + $0x20] sm:$0xf]
    %v312 = vld [vmem:[%s29 + $0x24] sm:$0xf]
    %v313 = vld [vmem:[%s29 + $0x28] sm:$0xf]
    %v314 = vld [vmem:[%s29 + $0x2c] sm:$0xf]
    %v315 = vld [vmem:[%s29 + $0x30] sm:$0xf]
    %v316 = vld [vmem:[%s29 + $0x34] sm:$0xf]
    %v317 = vld [vmem:[%s29 + $0x38] sm:$0xf]
    %v318 = vld [vmem:[%s29 + $0x3c] sm:$0xf]
    %v319 = vld [vmem:[%s29 + $0x40] sm:$0xf]
    %v320 = vld [vmem:[%s29 + $0x44] sm:$0xf]
    %v321 = vld [vmem:[%s29 + $0x48] sm:$0xf]
    %v322 = vld [vmem:[%s29 + $0x4c] sm:$0xf]
    %v323 = vld [vmem:[%s29 + $0x50] sm:$0xf]
    %v324 = vld [vmem:[%s29 + $0x54] sm:$0xf]
    %v325 = vld [vmem:[%s29 + $0x58] sm:$0xf]
    %v326 = vld [vmem:[%s29 + $0x5c] sm:$0xf]
    %v327 = vld [vmem:[%s29 + $0x60] sm:$0xf]
    %v328 = vld [vmem:[%s29 + $0x64] sm:$0xf]
    %v329 = vld [vmem:[%s29 + $0x68] sm:$0xf]
    %v330 = vld [vmem:[%s29 + $0x6c] sm:$0xf]
    %v331 = vld [vmem:[%s29 + $0x70] sm:$0xf]
    %v332 = vld [vmem:[%s29 + $0x74] sm:$0xf]
    %v333 = vld [vmem:[%s29 + $0x78] sm:$0xf]
    %v334 = vld [vmem:[%s29 + $0x7c] sm:$0xf]
    %v335 = vld [vmem:[%s5] sm:$0xff]
    %v336 = vld [vmem:[%s5 + $0x8] sm:$0xff]
    %v337 = vld [vmem:[%s5 + $0x10] sm:$0xff]
    %v338 = vld [vmem:[%s5 + $0x18] sm:$0xff]
    %v339 = vld [vmem:[%s5 + $0x20] sm:$0xff]
    %v340 = vld [vmem:[%s5 + $0x28] sm:$0xff]
    %v341 = vld [vmem:[%s5 + $0x30] sm:$0xff]
    %v342 = vld [vmem:[%s5 + $0x38] sm:$0xff]
    %v343 = vld [vmem:[%s5 + $0x40] sm:$0xff]
    %v344 = vld [vmem:[%s5 + $0x48] sm:$0xff]
    %v345 = vld [vmem:[%s5 + $0x50] sm:$0xff]
    %v346 = vld [vmem:[%s5 + $0x58] sm:$0xff]
    %v347 = vld [vmem:[%s5 + $0x60] sm:$0xff]
    %v348 = vld [vmem:[%s5 + $0x68] sm:$0xff]
    %v349 = vld [vmem:[%s5 + $0x70] sm:$0xff]
    %v350 = vld [vmem:[%s5 + $0x78] sm:$0xff]
    %v351 = vld [vmem:[%s5 + $0x80] sm:$0xff]
    %v352 = vld [vmem:[%s5 + $0x88] sm:$0xff]
    %v353 = vld [vmem:[%s5 + $0x90] sm:$0xff]
    %v354 = vld [vmem:[%s5 + $0x98] sm:$0xff]
    %v355 = vld [vmem:[%s5 + $0xa0] sm:$0xff]
    %v356 = vld [vmem:[%s5 + $0xa8] sm:$0xff]
    %v357 = vld [vmem:[%s5 + $0xb0] sm:$0xff]
    %v358 = vld [vmem:[%s5 + $0xb8] sm:$0xff]
    %v359 = vld [vmem:[%s5 + $0xc0] sm:$0xff]
    %v360 = vld [vmem:[%s5 + $0xc8] sm:$0xff]
    %v361 = vld [vmem:[%s5 + $0xd0] sm:$0xff]
    %v362 = vld [vmem:[%s5 + $0xd8] sm:$0xff]
    %v363 = vld [vmem:[%s5 + $0xe0] sm:$0xff]
    %v364 = vld [vmem:[%s5 + $0xe8] sm:$0xff]
    %v365 = vld [vmem:[%s5 + $0xf0] sm:$0xff]
    %v366 = vld [vmem:[%s5 + $0xf8] sm:$0xff]
    %v367 = vld [vmem:[%s6] sm:$0x3]
    %368 = vset.pattern.permute.xlu0 0
    %369 = vperm.xlu0 %368, %v335
    %v370 = vpop.permute.xlu0 %369
    %371 = vset.pattern.permute.xlu0 0
    %372 = vperm.xlu0 %371, %v336
    %v373 = vpop.permute.xlu0 %372
    %374 = vset.pattern.permute.xlu0 0
    %375 = vperm.xlu0 %374, %v337
    %v376 = vpop.permute.xlu0 %375
    %377 = vset.pattern.permute.xlu0 0
    %378 = vperm.xlu0 %377, %v338
    %v379 = vpop.permute.xlu0 %378
    %380 = vset.pattern.permute.xlu0 0
    %381 = vperm.xlu0 %380, %v339
    %v382 = vpop.permute.xlu0 %381
    %383 = vset.pattern.permute.xlu0 0
    %384 = vperm.xlu0 %383, %v340
    %v385 = vpop.permute.xlu0 %384
    %386 = vset.pattern.permute.xlu0 0
    %387 = vperm.xlu0 %386, %v341
    %v388 = vpop.permute.xlu0 %387
    %389 = vset.pattern.permute.xlu0 0
    %390 = vperm.xlu0 %389, %v342
    %v391 = vpop.permute.xlu0 %390
    %392 = vset.pattern.permute.xlu0 0
    %393 = vperm.xlu0 %392, %v343
    %v394 = vpop.permute.xlu0 %393
    %395 = vset.pattern.permute.xlu0 0
    %396 = vperm.xlu0 %395, %v344
    %v397 = vpop.permute.xlu0 %396
    %398 = vset.pattern.permute.xlu0 0
    %399 = vperm.xlu0 %398, %v345
    %v400 = vpop.permute.xlu0 %399
    %401 = vset.pattern.permute.xlu0 0
    %402 = vperm.xlu0 %401, %v346
    %v403 = vpop.permute.xlu0 %402
    %404 = vset.pattern.permute.xlu0 0
    %405 = vperm.xlu0 %404, %v347
    %v406 = vpop.permute.xlu0 %405
    %407 = vset.pattern.permute.xlu0 0
    %408 = vperm.xlu0 %407, %v348
    %v409 = vpop.permute.xlu0 %408
    %410 = vset.pattern.permute.xlu0 0
    %411 = vperm.xlu0 %410, %v349
    %v412 = vpop.permute.xlu0 %411
    %413 = vset.pattern.permute.xlu0 0
    %414 = vperm.xlu0 %413, %v350
    %v415 = vpop.permute.xlu0 %414
    %416 = vset.pattern.permute.xlu0 0
    %417 = vperm.xlu0 %416, %v351
    %v418 = vpop.permute.xlu0 %417
    %419 = vset.pattern.permute.xlu0 0
    %420 = vperm.xlu0 %419, %v352
    %v421 = vpop.permute.xlu0 %420
    %422 = vset.pattern.permute.xlu0 0
    %423 = vperm.xlu0 %422, %v353
    %v424 = vpop.permute.xlu0 %423
    %425 = vset.pattern.permute.xlu0 0
    %426 = vperm.xlu0 %425, %v354
    %v427 = vpop.permute.xlu0 %426
    %428 = vset.pattern.permute.xlu0 0
    %429 = vperm.xlu0 %428, %v355
    %v430 = vpop.permute.xlu0 %429
    %431 = vset.pattern.permute.xlu0 0
    %432 = vperm.xlu0 %431, %v356
    %v433 = vpop.permute.xlu0 %432
    %434 = vset.pattern.permute.xlu0 0
    %435 = vperm.xlu0 %434, %v357
    %v436 = vpop.permute.xlu0 %435
    %437 = vset.pattern.permute.xlu0 0
    %438 = vperm.xlu0 %437, %v358
    %v439 = vpop.permute.xlu0 %438
    %440 = vset.pattern.permute.xlu0 0
    %441 = vperm.xlu0 %440, %v359
    %v442 = vpop.permute.xlu0 %441
    %443 = vset.pattern.permute.xlu0 0
    %444 = vperm.xlu0 %443, %v360
    %v445 = vpop.permute.xlu0 %444
    %446 = vset.pattern.permute.xlu0 0
    %447 = vperm.xlu0 %446, %v361
    %v448 = vpop.permute.xlu0 %447
    %449 = vset.pattern.permute.xlu0 0
    %450 = vperm.xlu0 %449, %v362
    %v451 = vpop.permute.xlu0 %450
    %452 = vset.pattern.permute.xlu0 0
    %453 = vperm.xlu0 %452, %v363
    %v454 = vpop.permute.xlu0 %453
    %455 = vset.pattern.permute.xlu0 0
    %456 = vperm.xlu0 %455, %v364
    %v457 = vpop.permute.xlu0 %456
    %458 = vset.pattern.permute.xlu0 0
    %459 = vperm.xlu0 %458, %v365
    %v460 = vpop.permute.xlu0 %459
    %461 = vset.pattern.permute.xlu0 0
    %462 = vperm.xlu0 %461, %v366
    %v463 = vpop.permute.xlu0 %462
    %v464 = vlaneseq
    %v465 = vshrl.u32 %v464, 7
    %v466 = vsub.s32 0, %v465
    %v467 = vrot.slane %v367, %v466
    %v468 = vlaneseq
    %v469 = vshrl.u32 %v468, 7
    %v470 = vsub.s32 1, %v469
    %v471 = vrot.slane %v367, %v470
    %vm472 = vcmp.eq.s32.totalorder %v370, %v467
    %vm473 = vcmp.eq.s32.totalorder %v370, %v471
    %vm474 = vcmp.eq.s32.totalorder %v373, %v467
    %vm475 = vcmp.eq.s32.totalorder %v373, %v471
    %vm476 = vcmp.eq.s32.totalorder %v376, %v467
    %vm477 = vcmp.eq.s32.totalorder %v376, %v471
    %vm478 = vcmp.eq.s32.totalorder %v379, %v467
    %vm479 = vcmp.eq.s32.totalorder %v379, %v471
    %vm480 = vcmp.eq.s32.totalorder %v382, %v467
    %vm481 = vcmp.eq.s32.totalorder %v382, %v471
    %vm482 = vcmp.eq.s32.totalorder %v385, %v467
    %vm483 = vcmp.eq.s32.totalorder %v385, %v471
    %vm484 = vcmp.eq.s32.totalorder %v388, %v467
    %vm485 = vcmp.eq.s32.totalorder %v388, %v471
    %vm486 = vcmp.eq.s32.totalorder %v391, %v467
    %vm487 = vcmp.eq.s32.totalorder %v391, %v471
    %vm488 = vcmp.eq.s32.totalorder %v394, %v467
    %vm489 = vcmp.eq.s32.totalorder %v394, %v471
    %vm490 = vcmp.eq.s32.totalorder %v397, %v467
    %vm491 = vcmp.eq.s32.totalorder %v397, %v471
    %vm492 = vcmp.eq.s32.totalorder %v400, %v467
    %vm493 = vcmp.eq.s32.totalorder %v400, %v471
    %vm494 = vcmp.eq.s32.totalorder %v403, %v467
    %vm495 = vcmp.eq.s32.totalorder %v403, %v471
    %vm496 = vcmp.eq.s32.totalorder %v406, %v467
    %vm497 = vcmp.eq.s32.totalorder %v406, %v471
    %vm498 = vcmp.eq.s32.totalorder %v409, %v467
    %vm499 = vcmp.eq.s32.totalorder %v409, %v471
    %vm500 = vcmp.eq.s32.totalorder %v412, %v467
    %vm501 = vcmp.eq.s32.totalorder %v412, %v471
    %vm502 = vcmp.eq.s32.totalorder %v415, %v467
    %vm503 = vcmp.eq.s32.totalorder %v415, %v471
    %vm504 = vcmp.eq.s32.totalorder %v418, %v467
    %vm505 = vcmp.eq.s32.totalorder %v418, %v471
    %vm506 = vcmp.eq.s32.totalorder %v421, %v467
    %vm507 = vcmp.eq.s32.totalorder %v421, %v471
    %vm508 = vcmp.eq.s32.totalorder %v424, %v467
    %vm509 = vcmp.eq.s32.totalorder %v424, %v471
    %vm510 = vcmp.eq.s32.totalorder %v427, %v467
    %vm511 = vcmp.eq.s32.totalorder %v427, %v471
    %vm512 = vcmp.eq.s32.totalorder %v430, %v467
    %vm513 = vcmp.eq.s32.totalorder %v430, %v471
    %vm514 = vcmp.eq.s32.totalorder %v433, %v467
    %vm515 = vcmp.eq.s32.totalorder %v433, %v471
    %vm516 = vcmp.eq.s32.totalorder %v436, %v467
    %vm517 = vcmp.eq.s32.totalorder %v436, %v471
    %vm518 = vcmp.eq.s32.totalorder %v439, %v467
    %vm519 = vcmp.eq.s32.totalorder %v439, %v471
    %vm520 = vcmp.eq.s32.totalorder %v442, %v467
    %vm521 = vcmp.eq.s32.totalorder %v442, %v471
    %vm522 = vcmp.eq.s32.totalorder %v445, %v467
    %vm523 = vcmp.eq.s32.totalorder %v445, %v471
    %vm524 = vcmp.eq.s32.totalorder %v448, %v467
    %vm525 = vcmp.eq.s32.totalorder %v448, %v471
    %vm526 = vcmp.eq.s32.totalorder %v451, %v467
    %vm527 = vcmp.eq.s32.totalorder %v451, %v471
    %vm528 = vcmp.eq.s32.totalorder %v454, %v467
    %vm529 = vcmp.eq.s32.totalorder %v454, %v471
    %vm530 = vcmp.eq.s32.totalorder %v457, %v467
    %vm531 = vcmp.eq.s32.totalorder %v457, %v471
    %vm532 = vcmp.eq.s32.totalorder %v460, %v467
    %vm533 = vcmp.eq.s32.totalorder %v460, %v471
    %vm534 = vcmp.eq.s32.totalorder %v463, %v467
    %vm535 = vcmp.eq.s32.totalorder %v463, %v471
    %v568 = vunpack.c.l.b16 %v239
    %v569 = vunpack.c.l.b16 %v240
    %v570 = vunpack.c.l.b16 %v241
    %v571 = vunpack.c.l.b16 %v242
    %v572 = vunpack.c.l.b16 %v243
    %v573 = vunpack.c.l.b16 %v244
    %v574 = vunpack.c.l.b16 %v245
    %v575 = vunpack.c.l.b16 %v246
    %v576 = vunpack.c.l.b16 %v247
    %v577 = vunpack.c.l.b16 %v248
    %v578 = vunpack.c.l.b16 %v249
    %v579 = vunpack.c.l.b16 %v250
    %v580 = vunpack.c.l.b16 %v251
    %v581 = vunpack.c.l.b16 %v252
    %v582 = vunpack.c.l.b16 %v253
    %v583 = vunpack.c.l.b16 %v254
    %v584 = vunpack.c.l.b16 %v255
    %v585 = vunpack.c.l.b16 %v256
    %v586 = vunpack.c.l.b16 %v257
    %v587 = vunpack.c.l.b16 %v258
    %v588 = vunpack.c.l.b16 %v259
    %v589 = vunpack.c.l.b16 %v260
    %v590 = vunpack.c.l.b16 %v261
    %v591 = vunpack.c.l.b16 %v262
    %v592 = vunpack.c.l.b16 %v263
    %v593 = vunpack.c.l.b16 %v264
    %v594 = vunpack.c.l.b16 %v265
    %v595 = vunpack.c.l.b16 %v266
    %v596 = vunpack.c.l.b16 %v267
    %v597 = vunpack.c.l.b16 %v268
    %v598 = vunpack.c.l.b16 %v269
    %v599 = vunpack.c.l.b16 %v270
    %v600 = vpack.c.b16 %v569, %v568
    %v601 = vpack.c.b16 %v571, %v570
    %v602 = vpack.c.b16 %v573, %v572
    %v603 = vpack.c.b16 %v575, %v574
    %v604 = vpack.c.b16 %v577, %v576
    %v605 = vpack.c.b16 %v579, %v578
    %v606 = vpack.c.b16 %v581, %v580
    %v607 = vpack.c.b16 %v583, %v582
    %v608 = vpack.c.b16 %v585, %v584
    %v609 = vpack.c.b16 %v587, %v586
    %v610 = vpack.c.b16 %v589, %v588
    %v611 = vpack.c.b16 %v591, %v590
    %v612 = vpack.c.b16 %v593, %v592
    %v613 = vpack.c.b16 %v595, %v594
    %v614 = vpack.c.b16 %v597, %v596
    %v615 = vpack.c.b16 %v599, %v598
    %v648 = vunpack.c.l.b16 %v271
    %v649 = vunpack.c.l.b16 %v272
    %v650 = vunpack.c.l.b16 %v273
    %v651 = vunpack.c.l.b16 %v274
    %v652 = vunpack.c.l.b16 %v275
    %v653 = vunpack.c.l.b16 %v276
    %v654 = vunpack.c.l.b16 %v277
    %v655 = vunpack.c.l.b16 %v278
    %v656 = vunpack.c.l.b16 %v279
    %v657 = vunpack.c.l.b16 %v280
    %v658 = vunpack.c.l.b16 %v281
    %v659 = vunpack.c.l.b16 %v282
    %v660 = vunpack.c.l.b16 %v283
    %v661 = vunpack.c.l.b16 %v284
    %v662 = vunpack.c.l.b16 %v285
    %v663 = vunpack.c.l.b16 %v286
    %v664 = vunpack.c.l.b16 %v287
    %v665 = vunpack.c.l.b16 %v288
    %v666 = vunpack.c.l.b16 %v289
    %v667 = vunpack.c.l.b16 %v290
    %v668 = vunpack.c.l.b16 %v291
    %v669 = vunpack.c.l.b16 %v292
    %v670 = vunpack.c.l.b16 %v293
    %v671 = vunpack.c.l.b16 %v294
    %v672 = vunpack.c.l.b16 %v295
    %v673 = vunpack.c.l.b16 %v296
    %v674 = vunpack.c.l.b16 %v297
    %v675 = vunpack.c.l.b16 %v298
    %v676 = vunpack.c.l.b16 %v299
    %v677 = vunpack.c.l.b16 %v300
    %v678 = vunpack.c.l.b16 %v301
    %v679 = vunpack.c.l.b16 %v302
    %v680 = vpack.c.b16 %v649, %v648
    %v681 = vpack.c.b16 %v651, %v650
    %v682 = vpack.c.b16 %v653, %v652
    %v683 = vpack.c.b16 %v655, %v654
    %v684 = vpack.c.b16 %v657, %v656
    %v685 = vpack.c.b16 %v659, %v658
    %v686 = vpack.c.b16 %v661, %v660
    %v687 = vpack.c.b16 %v663, %v662
    %v688 = vpack.c.b16 %v665, %v664
    %v689 = vpack.c.b16 %v667, %v666
    %v690 = vpack.c.b16 %v669, %v668
    %v691 = vpack.c.b16 %v671, %v670
    %v692 = vpack.c.b16 %v673, %v672
    %v693 = vpack.c.b16 %v675, %v674
    %v694 = vpack.c.b16 %v677, %v676
    %v695 = vpack.c.b16 %v679, %v678
    %vm696 = vcmask 261120
    %v698 = vsel %vm696, %v600, 0
    %v701 = vsel %vm696, %v601, 0
    %v704 = vsel %vm696, %v602, 0
    %v707 = vsel %vm696, %v603, 0
    %v710 = vsel %vm696, %v604, 0
    %v713 = vsel %vm696, %v605, 0
    %v716 = vsel %vm696, %v606, 0
    %v719 = vsel %vm696, %v607, 0
    %v722 = vsel %vm696, %v608, 0
    %v725 = vsel %vm696, %v609, 0
    %v728 = vsel %vm696, %v610, 0
    %v731 = vsel %vm696, %v611, 0
    %v734 = vsel %vm696, %v612, 0
    %v737 = vsel %vm696, %v613, 0
    %v740 = vsel %vm696, %v614, 0
    %v743 = vsel %vm696, %v615, 0
    %v746 = vsel %vm696, %v680, 0
    %v749 = vsel %vm696, %v681, 0
    %v752 = vsel %vm696, %v682, 0
    %v755 = vsel %vm696, %v683, 0
    %v758 = vsel %vm696, %v684, 0
    %v761 = vsel %vm696, %v685, 0
    %v764 = vsel %vm696, %v686, 0
    %v767 = vsel %vm696, %v687, 0
    %v770 = vsel %vm696, %v688, 0
    %v773 = vsel %vm696, %v689, 0
    %v776 = vsel %vm696, %v690, 0
    %v779 = vsel %vm696, %v691, 0
    %v782 = vsel %vm696, %v692, 0
    %v785 = vsel %vm696, %v693, 0
    %v788 = vsel %vm696, %v694, 0
    %v791 = vsel %vm696, %v695, 0
    %793 = vmatprep.subr.bf16.mxu0 0
    %794 = vmatpush1.bf16.xpose.msra.mxu0 %v746
    %795 = vmatprep.subr.bf16.mxu0 0
    %796 = vmatpush1.bf16.xpose.msra.mxu0 %v749
    %797 = vmatprep.subr.bf16.mxu0 0
    %798 = vmatpush1.bf16.xpose.msra.mxu0 %v752
    %799 = vmatprep.subr.bf16.mxu0 0
    %800 = vmatpush1.bf16.xpose.msra.mxu0 %v755
    %801 = vmatprep.subr.bf16.mxu0 0
    %802 = vmatpush1.bf16.xpose.msra.mxu0 %v758
    %803 = vmatprep.subr.bf16.mxu0 0
    %804 = vmatpush1.bf16.xpose.msra.mxu0 %v761
    %805 = vmatprep.subr.bf16.mxu0 0
    %806 = vmatpush1.bf16.xpose.msra.mxu0 %v764
    %807 = vmatprep.subr.bf16.mxu0 0
    %808 = vmatpush1.bf16.xpose.msra.mxu0 %v767
    %809 = vmatprep.subr.bf16.mxu0 0
    %810 = vmatpush1.bf16.xpose.msra.mxu0 %v770
    %811 = vmatprep.subr.bf16.mxu0 0
    %812 = vmatpush1.bf16.xpose.msra.mxu0 %v773
    %813 = vmatprep.subr.bf16.mxu0 0
    %814 = vmatpush1.bf16.xpose.msra.mxu0 %v776
    %815 = vmatprep.subr.bf16.mxu0 0
    %816 = vmatpush1.bf16.xpose.msra.mxu0 %v779
    %817 = vmatprep.subr.bf16.mxu0 0
    %818 = vmatpush1.bf16.xpose.msra.mxu0 %v782
    %819 = vmatprep.subr.bf16.mxu0 0
    %820 = vmatpush1.bf16.xpose.msra.mxu0 %v785
    %821 = vmatprep.subr.bf16.mxu0 0
    %822 = vmatpush1.bf16.xpose.msra.mxu0 %v788
    %823 = vmatprep.subr.bf16.mxu0 0
    %824 = vmatpush1.bf16.xpose.msra.mxu0 %v791
    %825 = vmatprep.mubr.bf16.mxu0 0
    %826 = vmatmul.mubr.bf16.gmra.mrb[0].mxu0 %v698
    %v827 = vpop.f32.mrb[0].mxu0
    %v828 = vadd.f32 0.0, %v827
    %v829 = vpop.f32.mrb[0].mxu0
    %v830 = vadd.f32 0.0, %v829
    %v831 = vpop.f32.mrb[0].mxu0
    %v832 = vadd.f32 0.0, %v831
    %v833 = vpop.f32.mrb[0].mxu0
    %v834 = vadd.f32 0.0, %v833
    %835 = vmatprep.mubr.bf16.mxu0 0
    %836 = vmatmul.mubr.bf16.gmra.mrb[0].mxu0 %v701
    %v837 = vpop.f32.mrb[0].mxu0
    %v838 = vadd.f32 0.0, %v837
    %v839 = vpop.f32.mrb[0].mxu0
    %v840 = vadd.f32 0.0, %v839
    %v841 = vpop.f32.mrb[0].mxu0
    %v842 = vadd.f32 0.0, %v841
    %v843 = vpop.f32.mrb[0].mxu0
    %v844 = vadd.f32 0.0, %v843
    %845 = vmatprep.mubr.bf16.mxu0 0
    %846 = vmatmul.mubr.bf16.gmra.mrb[0].mxu0 %v704
    %v847 = vpop.f32.mrb[0].mxu0
    %v848 = vadd.f32 0.0, %v847
    %v849 = vpop.f32.mrb[0].mxu0
    %v850 = vadd.f32 0.0, %v849
    %v851 = vpop.f32.mrb[0].mxu0
    %v852 = vadd.f32 0.0, %v851
    %v853 = vpop.f32.mrb[0].mxu0
    %v854 = vadd.f32 0.0, %v853
    %855 = vmatprep.mubr.bf16.mxu0 0
    %856 = vmatmul.mubr.bf16.gmra.mrb[0].mxu0 %v707
    %v857 = vpop.f32.mrb[0].mxu0
    %v858 = vadd.f32 0.0, %v857
    %v859 = vpop.f32.mrb[0].mxu0
    %v860 = vadd.f32 0.0, %v859
    %v861 = vpop.f32.mrb[0].mxu0
    %v862 = vadd.f32 0.0, %v861
    %v863 = vpop.f32.mrb[0].mxu0
    %v864 = vadd.f32 0.0, %v863
    %865 = vmatprep.mubr.bf16.mxu0 0
    %866 = vmatmul.mubr.bf16.gmra.mrb[0].mxu0 %v710
    %v867 = vpop.f32.mrb[0].mxu0
    %v868 = vadd.f32 0.0, %v867
    %v869 = vpop.f32.mrb[0].mxu0
    %v870 = vadd.f32 0.0, %v869
    %v871 = vpop.f32.mrb[0].mxu0
    %v872 = vadd.f32 0.0, %v871
    %v873 = vpop.f32.mrb[0].mxu0
    %v874 = vadd.f32 0.0, %v873
    %875 = vmatprep.mubr.bf16.mxu0 0
    %876 = vmatmul.mubr.bf16.gmra.mrb[0].mxu0 %v713
    %v877 = vpop.f32.mrb[0].mxu0
    %v878 = vadd.f32 0.0, %v877
    %v879 = vpop.f32.mrb[0].mxu0
    %v880 = vadd.f32 0.0, %v879
    %v881 = vpop.f32.mrb[0].mxu0
    %v882 = vadd.f32 0.0, %v881
    %v883 = vpop.f32.mrb[0].mxu0
    %v884 = vadd.f32 0.0, %v883
    %885 = vmatprep.mubr.bf16.mxu0 0
    %886 = vmatmul.mubr.bf16.gmra.mrb[0].mxu0 %v716
    %v887 = vpop.f32.mrb[0].mxu0
    %v888 = vadd.f32 0.0, %v887
    %v889 = vpop.f32.mrb[0].mxu0
    %v890 = vadd.f32 0.0, %v889
    %v891 = vpop.f32.mrb[0].mxu0
    %v892 = vadd.f32 0.0, %v891
    %v893 = vpop.f32.mrb[0].mxu0
    %v894 = vadd.f32 0.0, %v893
    %895 = vmatprep.mubr.bf16.mxu0 0
    %896 = vmatmul.mubr.bf16.gmra.mrb[0].mxu0 %v719
    %v897 = vpop.f32.mrb[0].mxu0
    %v898 = vadd.f32 0.0, %v897
    %v899 = vpop.f32.mrb[0].mxu0
    %v900 = vadd.f32 0.0, %v899
    %v901 = vpop.f32.mrb[0].mxu0
    %v902 = vadd.f32 0.0, %v901
    %v903 = vpop.f32.mrb[0].mxu0
    %v904 = vadd.f32 0.0, %v903
    %905 = vmatprep.mubr.bf16.mxu0 0
    %906 = vmatmul.mubr.bf16.gmra.mrb[0].mxu0 %v722
    %v907 = vpop.f32.mrb[0].mxu0
    %v908 = vadd.f32 0.0, %v907
    %v909 = vpop.f32.mrb[0].mxu0
    %v910 = vadd.f32 0.0, %v909
    %v911 = vpop.f32.mrb[0].mxu0
    %v912 = vadd.f32 0.0, %v911
    %v913 = vpop.f32.mrb[0].mxu0
    %v914 = vadd.f32 0.0, %v913
    %915 = vmatprep.mubr.bf16.mxu0 0
    %916 = vmatmul.mubr.bf16.gmra.mrb[0].mxu0 %v725
    %v917 = vpop.f32.mrb[0].mxu0
    %v918 = vadd.f32 0.0, %v917
    %v919 = vpop.f32.mrb[0].mxu0
    %v920 = vadd.f32 0.0, %v919
    %v921 = vpop.f32.mrb[0].mxu0
    %v922 = vadd.f32 0.0, %v921
    %v923 = vpop.f32.mrb[0].mxu0
    %v924 = vadd.f32 0.0, %v923
    %925 = vmatprep.mubr.bf16.mxu0 0
    %926 = vmatmul.mubr.bf16.gmra.mrb[0].mxu0 %v728
    %v927 = vpop.f32.mrb[0].mxu0
    %v928 = vadd.f32 0.0, %v927
    %v929 = vpop.f32.mrb[0].mxu0
    %v930 = vadd.f32 0.0, %v929
    %v931 = vpop.f32.mrb[0].mxu0
    %v932 = vadd.f32 0.0, %v931
    %v933 = vpop.f32.mrb[0].mxu0
    %v934 = vadd.f32 0.0, %v933
    %935 = vmatprep.mubr.bf16.mxu0 0
    %936 = vmatmul.mubr.bf16.gmra.mrb[0].mxu0 %v731
    %v937 = vpop.f32.mrb[0].mxu0
    %v938 = vadd.f32 0.0, %v937
    %v939 = vpop.f32.mrb[0].mxu0
    %v940 = vadd.f32 0.0, %v939
    %v941 = vpop.f32.mrb[0].mxu0
    %v942 = vadd.f32 0.0, %v941
    %v943 = vpop.f32.mrb[0].mxu0
    %v944 = vadd.f32 0.0, %v943
    %945 = vmatprep.mubr.bf16.mxu0 0
    %946 = vmatmul.mubr.bf16.gmra.mrb[0].mxu0 %v734
    %v947 = vpop.f32.mrb[0].mxu0
    %v948 = vadd.f32 0.0, %v947
    %v949 = vpop.f32.mrb[0].mxu0
    %v950 = vadd.f32 0.0, %v949
    %v951 = vpop.f32.mrb[0].mxu0
    %v952 = vadd.f32 0.0, %v951
    %v953 = vpop.f32.mrb[0].mxu0
    %v954 = vadd.f32 0.0, %v953
    %955 = vmatprep.mubr.bf16.mxu0 0
    %956 = vmatmul.mubr.bf16.gmra.mrb[0].mxu0 %v737
    %v957 = vpop.f32.mrb[0].mxu0
    %v958 = vadd.f32 0.0, %v957
    %v959 = vpop.f32.mrb[0].mxu0
    %v960 = vadd.f32 0.0, %v959
    %v961 = vpop.f32.mrb[0].mxu0
    %v962 = vadd.f32 0.0, %v961
    %v963 = vpop.f32.mrb[0].mxu0
    %v964 = vadd.f32 0.0, %v963
    %965 = vmatprep.mubr.bf16.mxu0 0
    %966 = vmatmul.mubr.bf16.gmra.mrb[0].mxu0 %v740
    %v967 = vpop.f32.mrb[0].mxu0
    %v968 = vadd.f32 0.0, %v967
    %v969 = vpop.f32.mrb[0].mxu0
    %v970 = vadd.f32 0.0, %v969
    %v971 = vpop.f32.mrb[0].mxu0
    %v972 = vadd.f32 0.0, %v971
    %v973 = vpop.f32.mrb[0].mxu0
    %v974 = vadd.f32 0.0, %v973
    %975 = vmatprep.mubr.bf16.mxu0 0
    %976 = vmatmul.mubr.bf16.gmra.mrb[0].mxu0 %v743
    %v977 = vpop.f32.mrb[0].mxu0
    %v978 = vadd.f32 0.0, %v977
    %v979 = vpop.f32.mrb[0].mxu0
    %v980 = vadd.f32 0.0, %v979
    %v981 = vpop.f32.mrb[0].mxu0
    %v982 = vadd.f32 0.0, %v981
    %v983 = vpop.f32.mrb[0].mxu0
    %v984 = vadd.f32 0.0, %v983
    %985 = vdwg.mxu0
    %v986 = vsel %vm472, %v828, -1e+30
    %v987 = vsel %vm473, %v830, -1e+30
    %v988 = vsel %vm474, %v832, -1e+30
    %v989 = vsel %vm475, %v834, -1e+30
    %v990 = vsel %vm476, %v838, -1e+30
    %v991 = vsel %vm477, %v840, -1e+30
    %v992 = vsel %vm478, %v842, -1e+30
    %v993 = vsel %vm479, %v844, -1e+30
    %v994 = vsel %vm480, %v848, -1e+30
    %v995 = vsel %vm481, %v850, -1e+30
    %v996 = vsel %vm482, %v852, -1e+30
    %v997 = vsel %vm483, %v854, -1e+30
    %v998 = vsel %vm484, %v858, -1e+30
    %v999 = vsel %vm485, %v860, -1e+30
    %v1000 = vsel %vm486, %v862, -1e+30
    %v1001 = vsel %vm487, %v864, -1e+30
    %v1002 = vsel %vm488, %v868, -1e+30
    %v1003 = vsel %vm489, %v870, -1e+30
    %v1004 = vsel %vm490, %v872, -1e+30
    %v1005 = vsel %vm491, %v874, -1e+30
    %v1006 = vsel %vm492, %v878, -1e+30
    %v1007 = vsel %vm493, %v880, -1e+30
    %v1008 = vsel %vm494, %v882, -1e+30
    %v1009 = vsel %vm495, %v884, -1e+30
    %v1010 = vsel %vm496, %v888, -1e+30
    %v1011 = vsel %vm497, %v890, -1e+30
    %v1012 = vsel %vm498, %v892, -1e+30
    %v1013 = vsel %vm499, %v894, -1e+30
    %v1014 = vsel %vm500, %v898, -1e+30
    %v1015 = vsel %vm501, %v900, -1e+30
    %v1016 = vsel %vm502, %v902, -1e+30
    %v1017 = vsel %vm503, %v904, -1e+30
    %v1018 = vsel %vm504, %v908, -1e+30
    %v1019 = vsel %vm505, %v910, -1e+30
    %v1020 = vsel %vm506, %v912, -1e+30
    %v1021 = vsel %vm507, %v914, -1e+30
    %v1022 = vsel %vm508, %v918, -1e+30
    %v1023 = vsel %vm509, %v920, -1e+30
    %v1024 = vsel %vm510, %v922, -1e+30
    %v1025 = vsel %vm511, %v924, -1e+30
    %v1026 = vsel %vm512, %v928, -1e+30
    %v1027 = vsel %vm513, %v930, -1e+30
    %v1028 = vsel %vm514, %v932, -1e+30
    %v1029 = vsel %vm515, %v934, -1e+30
    %v1030 = vsel %vm516, %v938, -1e+30
    %v1031 = vsel %vm517, %v940, -1e+30
    %v1032 = vsel %vm518, %v942, -1e+30
    %v1033 = vsel %vm519, %v944, -1e+30
    %v1034 = vsel %vm520, %v948, -1e+30
    %v1035 = vsel %vm521, %v950, -1e+30
    %v1036 = vsel %vm522, %v952, -1e+30
    %v1037 = vsel %vm523, %v954, -1e+30
    %v1038 = vsel %vm524, %v958, -1e+30
    %v1039 = vsel %vm525, %v960, -1e+30
    %v1040 = vsel %vm526, %v962, -1e+30
    %v1041 = vsel %vm527, %v964, -1e+30
    %v1042 = vsel %vm528, %v968, -1e+30
    %v1043 = vsel %vm529, %v970, -1e+30
    %v1044 = vsel %vm530, %v972, -1e+30
    %v1045 = vsel %vm531, %v974, -1e+30
    %v1046 = vsel %vm532, %v978, -1e+30
    %v1047 = vsel %vm533, %v980, -1e+30
    %v1048 = vsel %vm534, %v982, -1e+30
    %v1049 = vsel %vm535, %v984, -1e+30
    %v1050 = vld [vmem:[#allocation2] sm:$0xff]
    %v1051 = vld [vmem:[#allocation2 + $0x8] sm:$0xff]
    %v1052 = vld [vmem:[#allocation2 + $0x10] sm:$0xff]
    %v1053 = vld [vmem:[#allocation2 + $0x18] sm:$0xff]
    %v1054 = vld [vmem:[#allocation2 + $0x20] sm:$0xff]
    %v1055 = vld [vmem:[#allocation2 + $0x28] sm:$0xff]
    %v1056 = vld [vmem:[#allocation2 + $0x30] sm:$0xff]
    %v1057 = vld [vmem:[#allocation2 + $0x38] sm:$0xff]
    %v1058 = vld [vmem:[#allocation2 + $0x40] sm:$0xff]
    %v1059 = vld [vmem:[#allocation2 + $0x48] sm:$0xff]
    %v1060 = vld [vmem:[#allocation2 + $0x50] sm:$0xff]
    %v1061 = vld [vmem:[#allocation2 + $0x58] sm:$0xff]
    %v1062 = vld [vmem:[#allocation2 + $0x60] sm:$0xff]
    %v1063 = vld [vmem:[#allocation2 + $0x68] sm:$0xff]
    %v1064 = vld [vmem:[#allocation2 + $0x70] sm:$0xff]
    %v1065 = vld [vmem:[#allocation2 + $0x78] sm:$0xff]
    %v1066 = vld [vmem:[#allocation2 + $0x80] sm:$0xff]
    %v1067 = vld [vmem:[#allocation2 + $0x88] sm:$0xff]
    %v1068 = vld [vmem:[#allocation2 + $0x90] sm:$0xff]
    %v1069 = vld [vmem:[#allocation2 + $0x98] sm:$0xff]
    %v1070 = vld [vmem:[#allocation2 + $0xa0] sm:$0xff]
    %v1071 = vld [vmem:[#allocation2 + $0xa8] sm:$0xff]
    %v1072 = vld [vmem:[#allocation2 + $0xb0] sm:$0xff]
    %v1073 = vld [vmem:[#allocation2 + $0xb8] sm:$0xff]
    %v1074 = vld [vmem:[#allocation2 + $0xc0] sm:$0xff]
    %v1075 = vld [vmem:[#allocation2 + $0xc8] sm:$0xff]
    %v1076 = vld [vmem:[#allocation2 + $0xd0] sm:$0xff]
    %v1077 = vld [vmem:[#allocation2 + $0xd8] sm:$0xff]
    %v1078 = vld [vmem:[#allocation2 + $0xe0] sm:$0xff]
    %v1079 = vld [vmem:[#allocation2 + $0xe8] sm:$0xff]
    %v1080 = vld [vmem:[#allocation2 + $0xf0] sm:$0xff]
    %v1081 = vld [vmem:[#allocation2 + $0xf8] sm:$0xff]
    %v1082 = vmax.f32 %v986, %v987
    %1083 = vmax.xlane.f32.xlu0 %v1082
    %v1084 = vpop.xlane.xlu0 %1083
    %v1085 = vmax.f32 %v988, %v989
    %1086 = vmax.xlane.f32.xlu0 %v1085
    %v1087 = vpop.xlane.xlu0 %1086
    %v1088 = vmax.f32 %v990, %v991
    %1089 = vmax.xlane.f32.xlu0 %v1088
    %v1090 = vpop.xlane.xlu0 %1089
    %v1091 = vmax.f32 %v992, %v993
    %1092 = vmax.xlane.f32.xlu0 %v1091
    %v1093 = vpop.xlane.xlu0 %1092
    %v1094 = vmax.f32 %v994, %v995
    %1095 = vmax.xlane.f32.xlu0 %v1094
    %v1096 = vpop.xlane.xlu0 %1095
    %v1097 = vmax.f32 %v996, %v997
    %1098 = vmax.xlane.f32.xlu0 %v1097
    %v1099 = vpop.xlane.xlu0 %1098
    %v1100 = vmax.f32 %v998, %v999
    %1101 = vmax.xlane.f32.xlu0 %v1100
    %v1102 = vpop.xlane.xlu0 %1101
    %v1103 = vmax.f32 %v1000, %v1001
    %1104 = vmax.xlane.f32.xlu0 %v1103
    %v1105 = vpop.xlane.xlu0 %1104
    %v1106 = vmax.f32 %v1002, %v1003
    %1107 = vmax.xlane.f32.xlu0 %v1106
    %v1108 = vpop.xlane.xlu0 %1107
    %v1109 = vmax.f32 %v1004, %v1005
    %1110 = vmax.xlane.f32.xlu0 %v1109
    %v1111 = vpop.xlane.xlu0 %1110
    %v1112 = vmax.f32 %v1006, %v1007
    %1113 = vmax.xlane.f32.xlu0 %v1112
    %v1114 = vpop.xlane.xlu0 %1113
    %v1115 = vmax.f32 %v1008, %v1009
    %1116 = vmax.xlane.f32.xlu0 %v1115
    %v1117 = vpop.xlane.xlu0 %1116
    %v1118 = vmax.f32 %v1010, %v1011
    %1119 = vmax.xlane.f32.xlu0 %v1118
    %v1120 = vpop.xlane.xlu0 %1119
    %v1121 = vmax.f32 %v1012, %v1013
    %1122 = vmax.xlane.f32.xlu0 %v1121
    %v1123 = vpop.xlane.xlu0 %1122
    %v1124 = vmax.f32 %v1014, %v1015
    %1125 = vmax.xlane.f32.xlu0 %v1124
    %v1126 = vpop.xlane.xlu0 %1125
    %v1127 = vmax.f32 %v1016, %v1017
    %1128 = vmax.xlane.f32.xlu0 %v1127
    %v1129 = vpop.xlane.xlu0 %1128
    %v1130 = vmax.f32 %v1018, %v1019
    %1131 = vmax.xlane.f32.xlu0 %v1130
    %v1132 = vpop.xlane.xlu0 %1131
    %v1133 = vmax.f32 %v1020, %v1021
    %1134 = vmax.xlane.f32.xlu0 %v1133
    %v1135 = vpop.xlane.xlu0 %1134
    %v1136 = vmax.f32 %v1022, %v1023
    %1137 = vmax.xlane.f32.xlu0 %v1136
    %v1138 = vpop.xlane.xlu0 %1137
    %v1139 = vmax.f32 %v1024, %v1025
    %1140 = vmax.xlane.f32.xlu0 %v1139
    %v1141 = vpop.xlane.xlu0 %1140
    %v1142 = vmax.f32 %v1026, %v1027
    %1143 = vmax.xlane.f32.xlu0 %v1142
    %v1144 = vpop.xlane.xlu0 %1143
    %v1145 = vmax.f32 %v1028, %v1029
    %1146 = vmax.xlane.f32.xlu0 %v1145
    %v1147 = vpop.xlane.xlu0 %1146
    %v1148 = vmax.f32 %v1030, %v1031
    %1149 = vmax.xlane.f32.xlu0 %v1148
    %v1150 = vpop.xlane.xlu0 %1149
    %v1151 = vmax.f32 %v1032, %v1033
    %1152 = vmax.xlane.f32.xlu0 %v1151
    %v1153 = vpop.xlane.xlu0 %1152
    %v1154 = vmax.f32 %v1034, %v1035
    %1155 = vmax.xlane.f32.xlu0 %v1154
    %v1156 = vpop.xlane.xlu0 %1155
    %v1157 = vmax.f32 %v1036, %v1037
    %1158 = vmax.xlane.f32.xlu0 %v1157
    %v1159 = vpop.xlane.xlu0 %1158
    %v1160 = vmax.f32 %v1038, %v1039
    %1161 = vmax.xlane.f32.xlu0 %v1160
    %v1162 = vpop.xlane.xlu0 %1161
    %v1163 = vmax.f32 %v1040, %v1041
    %1164 = vmax.xlane.f32.xlu0 %v1163
    %v1165 = vpop.xlane.xlu0 %1164
    %v1166 = vmax.f32 %v1042, %v1043
    %1167 = vmax.xlane.f32.xlu0 %v1166
    %v1168 = vpop.xlane.xlu0 %1167
    %v1169 = vmax.f32 %v1044, %v1045
    %1170 = vmax.xlane.f32.xlu0 %v1169
    %v1171 = vpop.xlane.xlu0 %1170
    %v1172 = vmax.f32 %v1046, %v1047
    %1173 = vmax.xlane.f32.xlu0 %v1172
    %v1174 = vpop.xlane.xlu0 %1173
    %v1175 = vmax.f32 %v1048, %v1049
    %1176 = vmax.xlane.f32.xlu0 %v1175
    %v1177 = vpop.xlane.xlu0 %1176
    %v1178 = vmax.f32 %v1050, %v1084
    %v1179 = vmax.f32 %v1051, %v1087
    %v1180 = vmax.f32 %v1052, %v1090
    %v1181 = vmax.f32 %v1053, %v1093
    %v1182 = vmax.f32 %v1054, %v1096
    %v1183 = vmax.f32 %v1055, %v1099
    %v1184 = vmax.f32 %v1056, %v1102
    %v1185 = vmax.f32 %v1057, %v1105
    %v1186 = vmax.f32 %v1058, %v1108
    %v1187 = vmax.f32 %v1059, %v1111
    %v1188 = vmax.f32 %v1060, %v1114
    %v1189 = vmax.f32 %v1061, %v1117
    %v1190 = vmax.f32 %v1062, %v1120
    %v1191 = vmax.f32 %v1063, %v1123
    %v1192 = vmax.f32 %v1064, %v1126
    %v1193 = vmax.f32 %v1065, %v1129
    %v1194 = vmax.f32 %v1066, %v1132
    %v1195 = vmax.f32 %v1067, %v1135
    %v1196 = vmax.f32 %v1068, %v1138
    %v1197 = vmax.f32 %v1069, %v1141
    %v1198 = vmax.f32 %v1070, %v1144
    %v1199 = vmax.f32 %v1071, %v1147
    %v1200 = vmax.f32 %v1072, %v1150
    %v1201 = vmax.f32 %v1073, %v1153
    %v1202 = vmax.f32 %v1074, %v1156
    %v1203 = vmax.f32 %v1075, %v1159
    %v1204 = vmax.f32 %v1076, %v1162
    %v1205 = vmax.f32 %v1077, %v1165
    %v1206 = vmax.f32 %v1078, %v1168
    %v1207 = vmax.f32 %v1079, %v1171
    %v1208 = vmax.f32 %v1080, %v1174
    %v1209 = vmax.f32 %v1081, %v1177
    %v1210 = vsub.f32 %v1050, %v1178
    %v1211 = vsub.f32 %v1051, %v1179
    %v1212 = vsub.f32 %v1052, %v1180
    %v1213 = vsub.f32 %v1053, %v1181
    %v1214 = vsub.f32 %v1054, %v1182
    %v1215 = vsub.f32 %v1055, %v1183
    %v1216 = vsub.f32 %v1056, %v1184
    %v1217 = vsub.f32 %v1057, %v1185
    %v1218 = vsub.f32 %v1058, %v1186
    %v1219 = vsub.f32 %v1059, %v1187
    %v1220 = vsub.f32 %v1060, %v1188
    %v1221 = vsub.f32 %v1061, %v1189
    %v1222 = vsub.f32 %v1062, %v1190
    %v1223 = vsub.f32 %v1063, %v1191
    %v1224 = vsub.f32 %v1064, %v1192
    %v1225 = vsub.f32 %v1065, %v1193
    %v1226 = vsub.f32 %v1066, %v1194
    %v1227 = vsub.f32 %v1067, %v1195
    %v1228 = vsub.f32 %v1068, %v1196
    %v1229 = vsub.f32 %v1069, %v1197
    %v1230 = vsub.f32 %v1070, %v1198
    %v1231 = vsub.f32 %v1071, %v1199
    %v1232 = vsub.f32 %v1072, %v1200
    %v1233 = vsub.f32 %v1073, %v1201
    %v1234 = vsub.f32 %v1074, %v1202
    %v1235 = vsub.f32 %v1075, %v1203
    %v1236 = vsub.f32 %v1076, %v1204
    %v1237 = vsub.f32 %v1077, %v1205
    %v1238 = vsub.f32 %v1078, %v1206
    %v1239 = vsub.f32 %v1079, %v1207
    %v1240 = vsub.f32 %v1080, %v1208
    %v1241 = vsub.f32 %v1081, %v1209
    %v1242 = vmul.f32 %v1210, 1.442695
    %v1243 = vpow.pop %v1242
    %v1244 = vmul.f32 %v1211, 1.442695
    %v1245 = vpow.pop %v1244
    %v1246 = vmul.f32 %v1212, 1.442695
    %v1247 = vpow.pop %v1246
    %v1248 = vmul.f32 %v1213, 1.442695
    %v1249 = vpow.pop %v1248
    %v1250 = vmul.f32 %v1214, 1.442695
    %v1251 = vpow.pop %v1250
    %v1252 = vmul.f32 %v1215, 1.442695
    %v1253 = vpow.pop %v1252
    %v1254 = vmul.f32 %v1216, 1.442695
    %v1255 = vpow.pop %v1254
    %v1256 = vmul.f32 %v1217, 1.442695
    %v1257 = vpow.pop %v1256
    %v1258 = vmul.f32 %v1218, 1.442695
    %v1259 = vpow.pop %v1258
    %v1260 = vmul.f32 %v1219, 1.442695
    %v1261 = vpow.pop %v1260
    %v1262 = vmul.f32 %v1220, 1.442695
    %v1263 = vpow.pop %v1262
    %v1264 = vmul.f32 %v1221, 1.442695
    %v1265 = vpow.pop %v1264
    %v1266 = vmul.f32 %v1222, 1.442695
    %v1267 = vpow.pop %v1266
    %v1268 = vmul.f32 %v1223, 1.442695
    %v1269 = vpow.pop %v1268
    %v1270 = vmul.f32 %v1224, 1.442695
    %v1271 = vpow.pop %v1270
    %v1272 = vmul.f32 %v1225, 1.442695
    %v1273 = vpow.pop %v1272
    %v1274 = vmul.f32 %v1226, 1.442695
    %v1275 = vpow.pop %v1274
    %v1276 = vmul.f32 %v1227, 1.442695
    %v1277 = vpow.pop %v1276
    %v1278 = vmul.f32 %v1228, 1.442695
    %v1279 = vpow.pop %v1278
    %v1280 = vmul.f32 %v1229, 1.442695
    %v1281 = vpow.pop %v1280
    %v1282 = vmul.f32 %v1230, 1.442695
    %v1283 = vpow.pop %v1282
    %v1284 = vmul.f32 %v1231, 1.442695
    %v1285 = vpow.pop %v1284
    %v1286 = vmul.f32 %v1232, 1.442695
    %v1287 = vpow.pop %v1286
    %v1288 = vmul.f32 %v1233, 1.442695
    %v1289 = vpow.pop %v1288
    %v1290 = vmul.f32 %v1234, 1.442695
    %v1291 = vpow.pop %v1290
    %v1292 = vmul.f32 %v1235, 1.442695
    %v1293 = vpow.pop %v1292
    %v1294 = vmul.f32 %v1236, 1.442695
    %v1295 = vpow.pop %v1294
    %v1296 = vmul.f32 %v1237, 1.442695
    %v1297 = vpow.pop %v1296
    %v1298 = vmul.f32 %v1238, 1.442695
    %v1299 = vpow.pop %v1298
    %v1300 = vmul.f32 %v1239, 1.442695
    %v1301 = vpow.pop %v1300
    %v1302 = vmul.f32 %v1240, 1.442695
    %v1303 = vpow.pop %v1302
    %v1304 = vmul.f32 %v1241, 1.442695
    %v1305 = vpow.pop %v1304
    %1307 = vset.pattern.permute.xlu0 0
    %1308 = vperm.xlu0 %1307, %v1178
    %v1309 = vpop.permute.xlu0 %1308
    %1312 = vset.pattern.permute.xlu0 0
    %1313 = vperm.xlu0 %1312, %v1179
    %v1314 = vpop.permute.xlu0 %1313
    %1317 = vset.pattern.permute.xlu0 0
    %1318 = vperm.xlu0 %1317, %v1180
    %v1319 = vpop.permute.xlu0 %1318
    %1322 = vset.pattern.permute.xlu0 0
    %1323 = vperm.xlu0 %1322, %v1181
    %v1324 = vpop.permute.xlu0 %1323
    %1327 = vset.pattern.permute.xlu0 0
    %1328 = vperm.xlu0 %1327, %v1182
    %v1329 = vpop.permute.xlu0 %1328
    %1332 = vset.pattern.permute.xlu0 0
    %1333 = vperm.xlu0 %1332, %v1183
    %v1334 = vpop.permute.xlu0 %1333
    %1337 = vset.pattern.permute.xlu0 0
    %1338 = vperm.xlu0 %1337, %v1184
    %v1339 = vpop.permute.xlu0 %1338
    %1342 = vset.pattern.permute.xlu0 0
    %1343 = vperm.xlu0 %1342, %v1185
    %v1344 = vpop.permute.xlu0 %1343
    %1347 = vset.pattern.permute.xlu0 0
    %1348 = vperm.xlu0 %1347, %v1186
    %v1349 = vpop.permute.xlu0 %1348
    %1352 = vset.pattern.permute.xlu0 0
    %1353 = vperm.xlu0 %1352, %v1187
    %v1354 = vpop.permute.xlu0 %1353
    %1357 = vset.pattern.permute.xlu0 0
    %1358 = vperm.xlu0 %1357, %v1188
    %v1359 = vpop.permute.xlu0 %1358
    %1362 = vset.pattern.permute.xlu0 0
    %1363 = vperm.xlu0 %1362, %v1189
    %v1364 = vpop.permute.xlu0 %1363
    %1367 = vset.pattern.permute.xlu0 0
    %1368 = vperm.xlu0 %1367, %v1190
    %v1369 = vpop.permute.xlu0 %1368
    %1372 = vset.pattern.permute.xlu0 0
    %1373 = vperm.xlu0 %1372, %v1191
    %v1374 = vpop.permute.xlu0 %1373
    %1377 = vset.pattern.permute.xlu0 0
    %1378 = vperm.xlu0 %1377, %v1192
    %v1379 = vpop.permute.xlu0 %1378
    %1382 = vset.pattern.permute.xlu0 0
    %1383 = vperm.xlu0 %1382, %v1193
    %v1384 = vpop.permute.xlu0 %1383
    %1387 = vset.pattern.permute.xlu0 0
    %1388 = vperm.xlu0 %1387, %v1194
    %v1389 = vpop.permute.xlu0 %1388
    %1392 = vset.pattern.permute.xlu0 0
    %1393 = vperm.xlu0 %1392, %v1195
    %v1394 = vpop.permute.xlu0 %1393
    %1397 = vset.pattern.permute.xlu0 0
    %1398 = vperm.xlu0 %1397, %v1196
    %v1399 = vpop.permute.xlu0 %1398
    %1402 = vset.pattern.permute.xlu0 0
    %1403 = vperm.xlu0 %1402, %v1197
    %v1404 = vpop.permute.xlu0 %1403
    %1407 = vset.pattern.permute.xlu0 0
    %1408 = vperm.xlu0 %1407, %v1198
    %v1409 = vpop.permute.xlu0 %1408
    %1412 = vset.pattern.permute.xlu0 0
    %1413 = vperm.xlu0 %1412, %v1199
    %v1414 = vpop.permute.xlu0 %1413
    %1417 = vset.pattern.permute.xlu0 0
    %1418 = vperm.xlu0 %1417, %v1200
    %v1419 = vpop.permute.xlu0 %1418
    %1422 = vset.pattern.permute.xlu0 0
    %1423 = vperm.xlu0 %1422, %v1201
    %v1424 = vpop.permute.xlu0 %1423
    %1427 = vset.pattern.permute.xlu0 0
    %1428 = vperm.xlu0 %1427, %v1202
    %v1429 = vpop.permute.xlu0 %1428
    %1432 = vset.pattern.permute.xlu0 0
    %1433 = vperm.xlu0 %1432, %v1203
    %v1434 = vpop.permute.xlu0 %1433
    %1437 = vset.pattern.permute.xlu0 0
    %1438 = vperm.xlu0 %1437, %v1204
    %v1439 = vpop.permute.xlu0 %1438
    %1442 = vset.pattern.permute.xlu0 0
    %1443 = vperm.xlu0 %1442, %v1205
    %v1444 = vpop.permute.xlu0 %1443
    %1447 = vset.pattern.permute.xlu0 0
    %1448 = vperm.xlu0 %1447, %v1206
    %v1449 = vpop.permute.xlu0 %1448
    %1452 = vset.pattern.permute.xlu0 0
    %1453 = vperm.xlu0 %1452, %v1207
    %v1454 = vpop.permute.xlu0 %1453
    %1457 = vset.pattern.permute.xlu0 0
    %1458 = vperm.xlu0 %1457, %v1208
    %v1459 = vpop.permute.xlu0 %1458
    %1462 = vset.pattern.permute.xlu0 0
    %1463 = vperm.xlu0 %1462, %v1209
    %v1464 = vpop.permute.xlu0 %1463
    %v1466 = vsub.f32 %v986, %v1309
    %v1467 = vsub.f32 %v987, %v1309
    %v1468 = vsub.f32 %v988, %v1314
    %v1469 = vsub.f32 %v989, %v1314
    %v1470 = vsub.f32 %v990, %v1319
    %v1471 = vsub.f32 %v991, %v1319
    %v1472 = vsub.f32 %v992, %v1324
    %v1473 = vsub.f32 %v993, %v1324
    %v1474 = vsub.f32 %v994, %v1329
    %v1475 = vsub.f32 %v995, %v1329
    %v1476 = vsub.f32 %v996, %v1334
    %v1477 = vsub.f32 %v997, %v1334
    %v1478 = vsub.f32 %v998, %v1339
    %v1479 = vsub.f32 %v999, %v1339
    %v1480 = vsub.f32 %v1000, %v1344
    %v1481 = vsub.f32 %v1001, %v1344
    %v1482 = vsub.f32 %v1002, %v1349
    %v1483 = vsub.f32 %v1003, %v1349
    %v1484 = vsub.f32 %v1004, %v1354
    %v1485 = vsub.f32 %v1005, %v1354
    %v1486 = vsub.f32 %v1006, %v1359
    %v1487 = vsub.f32 %v1007, %v1359
    %v1488 = vsub.f32 %v1008, %v1364
    %v1489 = vsub.f32 %v1009, %v1364
    %v1490 = vsub.f32 %v1010, %v1369
    %v1491 = vsub.f32 %v1011, %v1369
    %v1492 = vsub.f32 %v1012, %v1374
    %v1493 = vsub.f32 %v1013, %v1374
    %v1494 = vsub.f32 %v1014, %v1379
    %v1495 = vsub.f32 %v1015, %v1379
    %v1496 = vsub.f32 %v1016, %v1384
    %v1497 = vsub.f32 %v1017, %v1384
    %v1498 = vsub.f32 %v1018, %v1389
    %v1499 = vsub.f32 %v1019, %v1389
    %v1500 = vsub.f32 %v1020, %v1394
    %v1501 = vsub.f32 %v1021, %v1394
    %v1502 = vsub.f32 %v1022, %v1399
    %v1503 = vsub.f32 %v1023, %v1399
    %v1504 = vsub.f32 %v1024, %v1404
    %v1505 = vsub.f32 %v1025, %v1404
    %v1506 = vsub.f32 %v1026, %v1409
    %v1507 = vsub.f32 %v1027, %v1409
    %v1508 = vsub.f32 %v1028, %v1414
    %v1509 = vsub.f32 %v1029, %v1414
    %v1510 = vsub.f32 %v1030, %v1419
    %v1511 = vsub.f32 %v1031, %v1419
    %v1512 = vsub.f32 %v1032, %v1424
    %v1513 = vsub.f32 %v1033, %v1424
    %v1514 = vsub.f32 %v1034, %v1429
    %v1515 = vsub.f32 %v1035, %v1429
    %v1516 = vsub.f32 %v1036, %v1434
    %v1517 = vsub.f32 %v1037, %v1434
    %v1518 = vsub.f32 %v1038, %v1439
    %v1519 = vsub.f32 %v1039, %v1439
    %v1520 = vsub.f32 %v1040, %v1444
    %v1521 = vsub.f32 %v1041, %v1444
    %v1522 = vsub.f32 %v1042, %v1449
    %v1523 = vsub.f32 %v1043, %v1449
    %v1524 = vsub.f32 %v1044, %v1454
    %v1525 = vsub.f32 %v1045, %v1454
    %v1526 = vsub.f32 %v1046, %v1459
    %v1527 = vsub.f32 %v1047, %v1459
    %v1528 = vsub.f32 %v1048, %v1464
    %v1529 = vsub.f32 %v1049, %v1464
    %v1530 = vmul.f32 %v1466, 1.442695
    %v1531 = vpow.pop %v1530
    %v1532 = vmul.f32 %v1467, 1.442695
    %v1533 = vpow.pop %v1532
    %v1534 = vmul.f32 %v1468, 1.442695
    %v1535 = vpow.pop %v1534
    %v1536 = vmul.f32 %v1469, 1.442695
    %v1537 = vpow.pop %v1536
    %v1538 = vmul.f32 %v1470, 1.442695
    %v1539 = vpow.pop %v1538
    %v1540 = vmul.f32 %v1471, 1.442695
    %v1541 = vpow.pop %v1540
    %v1542 = vmul.f32 %v1472, 1.442695
    %v1543 = vpow.pop %v1542
    %v1544 = vmul.f32 %v1473, 1.442695
    %v1545 = vpow.pop %v1544
    %v1546 = vmul.f32 %v1474, 1.442695
    %v1547 = vpow.pop %v1546
    %v1548 = vmul.f32 %v1475, 1.442695
    %v1549 = vpow.pop %v1548
    %v1550 = vmul.f32 %v1476, 1.442695
    %v1551 = vpow.pop %v1550
    %v1552 = vmul.f32 %v1477, 1.442695
    %v1553 = vpow.pop %v1552
    %v1554 = vmul.f32 %v1478, 1.442695
    %v1555 = vpow.pop %v1554
    %v1556 = vmul.f32 %v1479, 1.442695
    %v1557 = vpow.pop %v1556
    %v1558 = vmul.f32 %v1480, 1.442695
    %v1559 = vpow.pop %v1558
    %v1560 = vmul.f32 %v1481, 1.442695
    %v1561 = vpow.pop %v1560
    %v1562 = vmul.f32 %v1482, 1.442695
    %v1563 = vpow.pop %v1562
    %v1564 = vmul.f32 %v1483, 1.442695
    %v1565 = vpow.pop %v1564
    %v1566 = vmul.f32 %v1484, 1.442695
    %v1567 = vpow.pop %v1566
    %v1568 = vmul.f32 %v1485, 1.442695
    %v1569 = vpow.pop %v1568
    %v1570 = vmul.f32 %v1486, 1.442695
    %v1571 = vpow.pop %v1570
    %v1572 = vmul.f32 %v1487, 1.442695
    %v1573 = vpow.pop %v1572
    %v1574 = vmul.f32 %v1488, 1.442695
    %v1575 = vpow.pop %v1574
    %v1576 = vmul.f32 %v1489, 1.442695
    %v1577 = vpow.pop %v1576
    %v1578 = vmul.f32 %v1490, 1.442695
    %v1579 = vpow.pop %v1578
    %v1580 = vmul.f32 %v1491, 1.442695
    %v1581 = vpow.pop %v1580
    %v1582 = vmul.f32 %v1492, 1.442695
    %v1583 = vpow.pop %v1582
    %v1584 = vmul.f32 %v1493, 1.442695
    %v1585 = vpow.pop %v1584
    %v1586 = vmul.f32 %v1494, 1.442695
    %v1587 = vpow.pop %v1586
    %v1588 = vmul.f32 %v1495, 1.442695
    %v1589 = vpow.pop %v1588
    %v1590 = vmul.f32 %v1496, 1.442695
    %v1591 = vpow.pop %v1590
    %v1592 = vmul.f32 %v1497, 1.442695
    %v1593 = vpow.pop %v1592
    %v1594 = vmul.f32 %v1498, 1.442695
    %v1595 = vpow.pop %v1594
    %v1596 = vmul.f32 %v1499, 1.442695
    %v1597 = vpow.pop %v1596
    %v1598 = vmul.f32 %v1500, 1.442695
    %v1599 = vpow.pop %v1598
    %v1600 = vmul.f32 %v1501, 1.442695
    %v1601 = vpow.pop %v1600
    %v1602 = vmul.f32 %v1502, 1.442695
    %v1603 = vpow.pop %v1602
    %v1604 = vmul.f32 %v1503, 1.442695
    %v1605 = vpow.pop %v1604
    %v1606 = vmul.f32 %v1504, 1.442695
    %v1607 = vpow.pop %v1606
    %v1608 = vmul.f32 %v1505, 1.442695
    %v1609 = vpow.pop %v1608
    %v1610 = vmul.f32 %v1506, 1.442695
    %v1611 = vpow.pop %v1610
    %v1612 = vmul.f32 %v1507, 1.442695
    %v1613 = vpow.pop %v1612
    %v1614 = vmul.f32 %v1508, 1.442695
    %v1615 = vpow.pop %v1614
    %v1616 = vmul.f32 %v1509, 1.442695
    %v1617 = vpow.pop %v1616
    %v1618 = vmul.f32 %v1510, 1.442695
    %v1619 = vpow.pop %v1618
    %v1620 = vmul.f32 %v1511, 1.442695
    %v1621 = vpow.pop %v1620
    %v1622 = vmul.f32 %v1512, 1.442695
    %v1623 = vpow.pop %v1622
    %v1624 = vmul.f32 %v1513, 1.442695
    %v1625 = vpow.pop %v1624
    %v1626 = vmul.f32 %v1514, 1.442695
    %v1627 = vpow.pop %v1626
    %v1628 = vmul.f32 %v1515, 1.442695
    %v1629 = vpow.pop %v1628
    %v1630 = vmul.f32 %v1516, 1.442695
    %v1631 = vpow.pop %v1630
    %v1632 = vmul.f32 %v1517, 1.442695
    %v1633 = vpow.pop %v1632
    %v1634 = vmul.f32 %v1518, 1.442695
    %v1635 = vpow.pop %v1634
    %v1636 = vmul.f32 %v1519, 1.442695
    %v1637 = vpow.pop %v1636
    %v1638 = vmul.f32 %v1520, 1.442695
    %v1639 = vpow.pop %v1638
    %v1640 = vmul.f32 %v1521, 1.442695
    %v1641 = vpow.pop %v1640
    %v1642 = vmul.f32 %v1522, 1.442695
    %v1643 = vpow.pop %v1642
    %v1644 = vmul.f32 %v1523, 1.442695
    %v1645 = vpow.pop %v1644
    %v1646 = vmul.f32 %v1524, 1.442695
    %v1647 = vpow.pop %v1646
    %v1648 = vmul.f32 %v1525, 1.442695
    %v1649 = vpow.pop %v1648
    %v1650 = vmul.f32 %v1526, 1.442695
    %v1651 = vpow.pop %v1650
    %v1652 = vmul.f32 %v1527, 1.442695
    %v1653 = vpow.pop %v1652
    %v1654 = vmul.f32 %v1528, 1.442695
    %v1655 = vpow.pop %v1654
    %v1656 = vmul.f32 %v1529, 1.442695
    %v1657 = vpow.pop %v1656
    %v1658 = vsel %vm472, %v1531, 0.0
    %v1659 = vsel %vm473, %v1533, 0.0
    %v1660 = vsel %vm474, %v1535, 0.0
    %v1661 = vsel %vm475, %v1537, 0.0
    %v1662 = vsel %vm476, %v1539, 0.0
    %v1663 = vsel %vm477, %v1541, 0.0
    %v1664 = vsel %vm478, %v1543, 0.0
    %v1665 = vsel %vm479, %v1545, 0.0
    %v1666 = vsel %vm480, %v1547, 0.0
    %v1667 = vsel %vm481, %v1549, 0.0
    %v1668 = vsel %vm482, %v1551, 0.0
    %v1669 = vsel %vm483, %v1553, 0.0
    %v1670 = vsel %vm484, %v1555, 0.0
    %v1671 = vsel %vm485, %v1557, 0.0
    %v1672 = vsel %vm486, %v1559, 0.0
    %v1673 = vsel %vm487, %v1561, 0.0
    %v1674 = vsel %vm488, %v1563, 0.0
    %v1675 = vsel %vm489, %v1565, 0.0
    %v1676 = vsel %vm490, %v1567, 0.0
    %v1677 = vsel %vm491, %v1569, 0.0
    %v1678 = vsel %vm492, %v1571, 0.0
    %v1679 = vsel %vm493, %v1573, 0.0
    %v1680 = vsel %vm494, %v1575, 0.0
    %v1681 = vsel %vm495, %v1577, 0.0
    %v1682 = vsel %vm496, %v1579, 0.0
    %v1683 = vsel %vm497, %v1581, 0.0
    %v1684 = vsel %vm498, %v1583, 0.0
    %v1685 = vsel %vm499, %v1585, 0.0
    %v1686 = vsel %vm500, %v1587, 0.0
    %v1687 = vsel %vm501, %v1589, 0.0
    %v1688 = vsel %vm502, %v1591, 0.0
    %v1689 = vsel %vm503, %v1593, 0.0
    %v1690 = vsel %vm504, %v1595, 0.0
    %v1691 = vsel %vm505, %v1597, 0.0
    %v1692 = vsel %vm506, %v1599, 0.0
    %v1693 = vsel %vm507, %v1601, 0.0
    %v1694 = vsel %vm508, %v1603, 0.0
    %v1695 = vsel %vm509, %v1605, 0.0
    %v1696 = vsel %vm510, %v1607, 0.0
    %v1697 = vsel %vm511, %v1609, 0.0
    %v1698 = vsel %vm512, %v1611, 0.0
    %v1699 = vsel %vm513, %v1613, 0.0
    %v1700 = vsel %vm514, %v1615, 0.0
    %v1701 = vsel %vm515, %v1617, 0.0
    %v1702 = vsel %vm516, %v1619, 0.0
    %v1703 = vsel %vm517, %v1621, 0.0
    %v1704 = vsel %vm518, %v1623, 0.0
    %v1705 = vsel %vm519, %v1625, 0.0
    %v1706 = vsel %vm520, %v1627, 0.0
    %v1707 = vsel %vm521, %v1629, 0.0
    %v1708 = vsel %vm522, %v1631, 0.0
    %v1709 = vsel %vm523, %v1633, 0.0
    %v1710 = vsel %vm524, %v1635, 0.0
    %v1711 = vsel %vm525, %v1637, 0.0
    %v1712 = vsel %vm526, %v1639, 0.0
    %v1713 = vsel %vm527, %v1641, 0.0
    %v1714 = vsel %vm528, %v1643, 0.0
    %v1715 = vsel %vm529, %v1645, 0.0
    %v1716 = vsel %vm530, %v1647, 0.0
    %v1717 = vsel %vm531, %v1649, 0.0
    %v1718 = vsel %vm532, %v1651, 0.0
    %v1719 = vsel %vm533, %v1653, 0.0
    %v1720 = vsel %vm534, %v1655, 0.0
    %v1721 = vsel %vm535, %v1657, 0.0
    %v1722 = vld [vmem:[#allocation3] sm:$0xff]
    %v1723 = vld [vmem:[#allocation3 + $0x8] sm:$0xff]
    %v1724 = vld [vmem:[#allocation3 + $0x10] sm:$0xff]
    %v1725 = vld [vmem:[#allocation3 + $0x18] sm:$0xff]
    %v1726 = vld [vmem:[#allocation3 + $0x20] sm:$0xff]
    %v1727 = vld [vmem:[#allocation3 + $0x28] sm:$0xff]
    %v1728 = vld [vmem:[#allocation3 + $0x30] sm:$0xff]
    %v1729 = vld [vmem:[#allocation3 + $0x38] sm:$0xff]
    %v1730 = vld [vmem:[#allocation3 + $0x40] sm:$0xff]
    %v1731 = vld [vmem:[#allocation3 + $0x48] sm:$0xff]
    %v1732 = vld [vmem:[#allocation3 + $0x50] sm:$0xff]
    %v1733 = vld [vmem:[#allocation3 + $0x58] sm:$0xff]
    %v1734 = vld [vmem:[#allocation3 + $0x60] sm:$0xff]
    %v1735 = vld [vmem:[#allocation3 + $0x68] sm:$0xff]
    %v1736 = vld [vmem:[#allocation3 + $0x70] sm:$0xff]
    %v1737 = vld [vmem:[#allocation3 + $0x78] sm:$0xff]
    %v1738 = vld [vmem:[#allocation3 + $0x80] sm:$0xff]
    %v1739 = vld [vmem:[#allocation3 + $0x88] sm:$0xff]
    %v1740 = vld [vmem:[#allocation3 + $0x90] sm:$0xff]
    %v1741 = vld [vmem:[#allocation3 + $0x98] sm:$0xff]
    %v1742 = vld [vmem:[#allocation3 + $0xa0] sm:$0xff]
    %v1743 = vld [vmem:[#allocation3 + $0xa8] sm:$0xff]
    %v1744 = vld [vmem:[#allocation3 + $0xb0] sm:$0xff]
    %v1745 = vld [vmem:[#allocation3 + $0xb8] sm:$0xff]
    %v1746 = vld [vmem:[#allocation3 + $0xc0] sm:$0xff]
    %v1747 = vld [vmem:[#allocation3 + $0xc8] sm:$0xff]
    %v1748 = vld [vmem:[#allocation3 + $0xd0] sm:$0xff]
    %v1749 = vld [vmem:[#allocation3 + $0xd8] sm:$0xff]
    %v1750 = vld [vmem:[#allocation3 + $0xe0] sm:$0xff]
    %v1751 = vld [vmem:[#allocation3 + $0xe8] sm:$0xff]
    %v1752 = vld [vmem:[#allocation3 + $0xf0] sm:$0xff]
    %v1753 = vld [vmem:[#allocation3 + $0xf8] sm:$0xff]
    %v1754 = vmul.f32 %v1243, %v1722
    %v1755 = vmul.f32 %v1245, %v1723
    %v1756 = vmul.f32 %v1247, %v1724
    %v1757 = vmul.f32 %v1249, %v1725
    %v1758 = vmul.f32 %v1251, %v1726
    %v1759 = vmul.f32 %v1253, %v1727
    %v1760 = vmul.f32 %v1255, %v1728
    %v1761 = vmul.f32 %v1257, %v1729
    %v1762 = vmul.f32 %v1259, %v1730
    %v1763 = vmul.f32 %v1261, %v1731
    %v1764 = vmul.f32 %v1263, %v1732
    %v1765 = vmul.f32 %v1265, %v1733
    %v1766 = vmul.f32 %v1267, %v1734
    %v1767 = vmul.f32 %v1269, %v1735
    %v1768 = vmul.f32 %v1271, %v1736
    %v1769 = vmul.f32 %v1273, %v1737
    %v1770 = vmul.f32 %v1275, %v1738
    %v1771 = vmul.f32 %v1277, %v1739
    %v1772 = vmul.f32 %v1279, %v1740
    %v1773 = vmul.f32 %v1281, %v1741
    %v1774 = vmul.f32 %v1283, %v1742
    %v1775 = vmul.f32 %v1285, %v1743
    %v1776 = vmul.f32 %v1287, %v1744
    %v1777 = vmul.f32 %v1289, %v1745
    %v1778 = vmul.f32 %v1291, %v1746
    %v1779 = vmul.f32 %v1293, %v1747
    %v1780 = vmul.f32 %v1295, %v1748
    %v1781 = vmul.f32 %v1297, %v1749
    %v1782 = vmul.f32 %v1299, %v1750
    %v1783 = vmul.f32 %v1301, %v1751
    %v1784 = vmul.f32 %v1303, %v1752
    %v1785 = vmul.f32 %v1305, %v1753
    %v1786 = vadd.f32 %v1658, %v1659
    %1787 = vadd.xlane.f32.xlu0 %v1786
    %v1788 = vpop.xlane.xlu0 %1787
    %v1789 = vadd.f32 %v1660, %v1661
    %1790 = vadd.xlane.f32.xlu0 %v1789
    %v1791 = vpop.xlane.xlu0 %1790
    %v1792 = vadd.f32 %v1662, %v1663
    %1793 = vadd.xlane.f32.xlu0 %v1792
    %v1794 = vpop.xlane.xlu0 %1793
    %v1795 = vadd.f32 %v1664, %v1665
    %1796 = vadd.xlane.f32.xlu0 %v1795
    %v1797 = vpop.xlane.xlu0 %1796
    %v1798 = vadd.f32 %v1666, %v1667
    %1799 = vadd.xlane.f32.xlu0 %v1798
    %v1800 = vpop.xlane.xlu0 %1799
    %v1801 = vadd.f32 %v1668, %v1669
    %1802 = vadd.xlane.f32.xlu0 %v1801
    %v1803 = vpop.xlane.xlu0 %1802
    %v1804 = vadd.f32 %v1670, %v1671
    %1805 = vadd.xlane.f32.xlu0 %v1804
    %v1806 = vpop.xlane.xlu0 %1805
    %v1807 = vadd.f32 %v1672, %v1673
    %1808 = vadd.xlane.f32.xlu0 %v1807
    %v1809 = vpop.xlane.xlu0 %1808
    %v1810 = vadd.f32 %v1674, %v1675
    %1811 = vadd.xlane.f32.xlu0 %v1810
    %v1812 = vpop.xlane.xlu0 %1811
    %v1813 = vadd.f32 %v1676, %v1677
    %1814 = vadd.xlane.f32.xlu0 %v1813
    %v1815 = vpop.xlane.xlu0 %1814
    %v1816 = vadd.f32 %v1678, %v1679
    %1817 = vadd.xlane.f32.xlu0 %v1816
    %v1818 = vpop.xlane.xlu0 %1817
    %v1819 = vadd.f32 %v1680, %v1681
    %1820 = vadd.xlane.f32.xlu0 %v1819
    %v1821 = vpop.xlane.xlu0 %1820
    %v1822 = vadd.f32 %v1682, %v1683
    %1823 = vadd.xlane.f32.xlu0 %v1822
    %v1824 = vpop.xlane.xlu0 %1823
    %v1825 = vadd.f32 %v1684, %v1685
    %1826 = vadd.xlane.f32.xlu0 %v1825
    %v1827 = vpop.xlane.xlu0 %1826
    %v1828 = vadd.f32 %v1686, %v1687
    %1829 = vadd.xlane.f32.xlu0 %v1828
    %v1830 = vpop.xlane.xlu0 %1829
    %v1831 = vadd.f32 %v1688, %v1689
    %1832 = vadd.xlane.f32.xlu0 %v1831
    %v1833 = vpop.xlane.xlu0 %1832
    %v1834 = vadd.f32 %v1690, %v1691
    %1835 = vadd.xlane.f32.xlu0 %v1834
    %v1836 = vpop.xlane.xlu0 %1835
    %v1837 = vadd.f32 %v1692, %v1693
    %1838 = vadd.xlane.f32.xlu0 %v1837
    %v1839 = vpop.xlane.xlu0 %1838
    %v1840 = vadd.f32 %v1694, %v1695
    %1841 = vadd.xlane.f32.xlu0 %v1840
    %v1842 = vpop.xlane.xlu0 %1841
    %v1843 = vadd.f32 %v1696, %v1697
    %1844 = vadd.xlane.f32.xlu0 %v1843
    %v1845 = vpop.xlane.xlu0 %1844
    %v1846 = vadd.f32 %v1698, %v1699
    %1847 = vadd.xlane.f32.xlu0 %v1846
    %v1848 = vpop.xlane.xlu0 %1847
    %v1849 = vadd.f32 %v1700, %v1701
    %1850 = vadd.xlane.f32.xlu0 %v1849
    %v1851 = vpop.xlane.xlu0 %1850
    %v1852 = vadd.f32 %v1702, %v1703
    %1853 = vadd.xlane.f32.xlu0 %v1852
    %v1854 = vpop.xlane.xlu0 %1853
    %v1855 = vadd.f32 %v1704, %v1705
    %1856 = vadd.xlane.f32.xlu0 %v1855
    %v1857 = vpop.xlane.xlu0 %1856
    %v1858 = vadd.f32 %v1706, %v1707
    %1859 = vadd.xlane.f32.xlu0 %v1858
    %v1860 = vpop.xlane.xlu0 %1859
    %v1861 = vadd.f32 %v1708, %v1709
    %1862 = vadd.xlane.f32.xlu0 %v1861
    %v1863 = vpop.xlane.xlu0 %1862
    %v1864 = vadd.f32 %v1710, %v1711
    %1865 = vadd.xlane.f32.xlu0 %v1864
    %v1866 = vpop.xlane.xlu0 %1865
    %v1867 = vadd.f32 %v1712, %v1713
    %1868 = vadd.xlane.f32.xlu0 %v1867
    %v1869 = vpop.xlane.xlu0 %1868
    %v1870 = vadd.f32 %v1714, %v1715
    %1871 = vadd.xlane.f32.xlu0 %v1870
    %v1872 = vpop.xlane.xlu0 %1871
    %v1873 = vadd.f32 %v1716, %v1717
    %1874 = vadd.xlane.f32.xlu0 %v1873
    %v1875 = vpop.xlane.xlu0 %1874
    %v1876 = vadd.f32 %v1718, %v1719
    %1877 = vadd.xlane.f32.xlu0 %v1876
    %v1878 = vpop.xlane.xlu0 %1877
    %v1879 = vadd.f32 %v1720, %v1721
    %1880 = vadd.xlane.f32.xlu0 %v1879
    %v1881 = vpop.xlane.xlu0 %1880
    %v1882 = vadd.f32 %v1754, %v1788
    %v1883 = vadd.f32 %v1755, %v1791
    %v1884 = vadd.f32 %v1756, %v1794
    %v1885 = vadd.f32 %v1757, %v1797
    %v1886 = vadd.f32 %v1758, %v1800
    %v1887 = vadd.f32 %v1759, %v1803
    %v1888 = vadd.f32 %v1760, %v1806
    %v1889 = vadd.f32 %v1761, %v1809
    %v1890 = vadd.f32 %v1762, %v1812
    %v1891 = vadd.f32 %v1763, %v1815
    %v1892 = vadd.f32 %v1764, %v1818
    %v1893 = vadd.f32 %v1765, %v1821
    %v1894 = vadd.f32 %v1766, %v1824
    %v1895 = vadd.f32 %v1767, %v1827
    %v1896 = vadd.f32 %v1768, %v1830
    %v1897 = vadd.f32 %v1769, %v1833
    %v1898 = vadd.f32 %v1770, %v1836
    %v1899 = vadd.f32 %v1771, %v1839
    %v1900 = vadd.f32 %v1772, %v1842
    %v1901 = vadd.f32 %v1773, %v1845
    %v1902 = vadd.f32 %v1774, %v1848
    %v1903 = vadd.f32 %v1775, %v1851
    %v1904 = vadd.f32 %v1776, %v1854
    %v1905 = vadd.f32 %v1777, %v1857
    %v1906 = vadd.f32 %v1778, %v1860
    %v1907 = vadd.f32 %v1779, %v1863
    %v1908 = vadd.f32 %v1780, %v1866
    %v1909 = vadd.f32 %v1781, %v1869
    %v1910 = vadd.f32 %v1782, %v1872
    %v1911 = vadd.f32 %v1783, %v1875
    %v1912 = vadd.f32 %v1784, %v1878
    %v1913 = vadd.f32 %v1785, %v1881
    %vm1914 = vcmask 7168
    %1915 = vst.msk [vmem:[#allocation3] sm:$0xff] %vm1914, %v1882
    %1916 = vst.msk [vmem:[#allocation3 + $0x8] sm:$0xff] %vm1914, %v1883
    %1917 = vst.msk [vmem:[#allocation3 + $0x10] sm:$0xff] %vm1914, %v1884
    %1918 = vst.msk [vmem:[#allocation3 + $0x18] sm:$0xff] %vm1914, %v1885
    %1919 = vst.msk [vmem:[#allocation3 + $0x20] sm:$0xff] %vm1914, %v1886
    %1920 = vst.msk [vmem:[#allocation3 + $0x28] sm:$0xff] %vm1914, %v1887
    %1921 = vst.msk [vmem:[#allocation3 + $0x30] sm:$0xff] %vm1914, %v1888
    %1922 = vst.msk [vmem:[#allocation3 + $0x38] sm:$0xff] %vm1914, %v1889
    %1923 = vst.msk [vmem:[#allocation3 + $0x40] sm:$0xff] %vm1914, %v1890
    %1924 = vst.msk [vmem:[#allocation3 + $0x48] sm:$0xff] %vm1914, %v1891
    %1925 = vst.msk [vmem:[#allocation3 + $0x50] sm:$0xff] %vm1914, %v1892
    %1926 = vst.msk [vmem:[#allocation3 + $0x58] sm:$0xff] %vm1914, %v1893
    %1927 = vst.msk [vmem:[#allocation3 + $0x60] sm:$0xff] %vm1914, %v1894
    %1928 = vst.msk [vmem:[#allocation3 + $0x68] sm:$0xff] %vm1914, %v1895
    %1929 = vst.msk [vmem:[#allocation3 + $0x70] sm:$0xff] %vm1914, %v1896
    %1930 = vst.msk [vmem:[#allocation3 + $0x78] sm:$0xff] %vm1914, %v1897
    %1931 = vst.msk [vmem:[#allocation3 + $0x80] sm:$0xff] %vm1914, %v1898
    %1932 = vst.msk [vmem:[#allocation3 + $0x88] sm:$0xff] %vm1914, %v1899
    %1933 = vst.msk [vmem:[#allocation3 + $0x90] sm:$0xff] %vm1914, %v1900
    %1934 = vst.msk [vmem:[#allocation3 + $0x98] sm:$0xff] %vm1914, %v1901
    %1935 = vst.msk [vmem:[#allocation3 + $0xa0] sm:$0xff] %vm1914, %v1902
    %1936 = vst.msk [vmem:[#allocation3 + $0xa8] sm:$0xff] %vm1914, %v1903
    %1937 = vst.msk [vmem:[#allocation3 + $0xb0] sm:$0xff] %vm1914, %v1904
    %1938 = vst.msk [vmem:[#allocation3 + $0xb8] sm:$0xff] %vm1914, %v1905
    %1939 = vst.msk [vmem:[#allocation3 + $0xc0] sm:$0xff] %vm1914, %v1906
    %1940 = vst.msk [vmem:[#allocation3 + $0xc8] sm:$0xff] %vm1914, %v1907
    %1941 = vst.msk [vmem:[#allocation3 + $0xd0] sm:$0xff] %vm1914, %v1908
    %1942 = vst.msk [vmem:[#allocation3 + $0xd8] sm:$0xff] %vm1914, %v1909
    %1943 = vst.msk [vmem:[#allocation3 + $0xe0] sm:$0xff] %vm1914, %v1910
    %1944 = vst.msk [vmem:[#allocation3 + $0xe8] sm:$0xff] %vm1914, %v1911
    %1945 = vst.msk [vmem:[#allocation3 + $0xf0] sm:$0xff] %vm1914, %v1912
    %1946 = vst.msk [vmem:[#allocation3 + $0xf8] sm:$0xff] %vm1914, %v1913
    %v1947 = vld [vmem:[#allocation4] sm:$0xff]
    %v1948 = vld [vmem:[#allocation4 + $0x8] sm:$0xff]
    %v1949 = vld [vmem:[#allocation4 + $0x10] sm:$0xff]
    %v1950 = vld [vmem:[#allocation4 + $0x18] sm:$0xff]
    %v1951 = vld [vmem:[#allocation4 + $0x20] sm:$0xff]
    %v1952 = vld [vmem:[#allocation4 + $0x28] sm:$0xff]
    %v1953 = vld [vmem:[#allocation4 + $0x30] sm:$0xff]
    %v1954 = vld [vmem:[#allocation4 + $0x38] sm:$0xff]
    %v1955 = vld [vmem:[#allocation4 + $0x40] sm:$0xff]
    %v1956 = vld [vmem:[#allocation4 + $0x48] sm:$0xff]
    %v1957 = vld [vmem:[#allocation4 + $0x50] sm:$0xff]
    %v1958 = vld [vmem:[#allocation4 + $0x58] sm:$0xff]
    %v1959 = vld [vmem:[#allocation4 + $0x60] sm:$0xff]
    %v1960 = vld [vmem:[#allocation4 + $0x68] sm:$0xff]
    %v1961 = vld [vmem:[#allocation4 + $0x70] sm:$0xff]
    %v1962 = vld [vmem:[#allocation4 + $0x78] sm:$0xff]
    %v1963 = vld [vmem:[#allocation4 + $0x80] sm:$0xff]
    %v1964 = vld [vmem:[#allocation4 + $0x88] sm:$0xff]
    %v1965 = vld [vmem:[#allocation4 + $0x90] sm:$0xff]
    %v1966 = vld [vmem:[#allocation4 + $0x98] sm:$0xff]
    %v1967 = vld [vmem:[#allocation4 + $0xa0] sm:$0xff]
    %v1968 = vld [vmem:[#allocation4 + $0xa8] sm:$0xff]
    %v1969 = vld [vmem:[#allocation4 + $0xb0] sm:$0xff]
    %v1970 = vld [vmem:[#allocation4 + $0xb8] sm:$0xff]
    %v1971 = vld [vmem:[#allocation4 + $0xc0] sm:$0xff]
    %v1972 = vld [vmem:[#allocation4 + $0xc8] sm:$0xff]
    %v1973 = vld [vmem:[#allocation4 + $0xd0] sm:$0xff]
    %v1974 = vld [vmem:[#allocation4 + $0xd8] sm:$0xff]
    %v1975 = vld [vmem:[#allocation4 + $0xe0] sm:$0xff]
    %v1976 = vld [vmem:[#allocation4 + $0xe8] sm:$0xff]
    %v1977 = vld [vmem:[#allocation4 + $0xf0] sm:$0xff]
    %v1978 = vld [vmem:[#allocation4 + $0xf8] sm:$0xff]
    %1980 = vset.pattern.permute.xlu0 0
    %1981 = vperm.xlu0 %1980, %v1243
    %v1982 = vpop.permute.xlu0 %1981
    %1985 = vset.pattern.permute.xlu0 0
    %1986 = vperm.xlu0 %1985, %v1245
    %v1987 = vpop.permute.xlu0 %1986
    %1990 = vset.pattern.permute.xlu0 0
    %1991 = vperm.xlu0 %1990, %v1247
    %v1992 = vpop.permute.xlu0 %1991
    %1995 = vset.pattern.permute.xlu0 0
    %1996 = vperm.xlu0 %1995, %v1249
    %v1997 = vpop.permute.xlu0 %1996
    %2000 = vset.pattern.permute.xlu0 0
    %2001 = vperm.xlu0 %2000, %v1251
    %v2002 = vpop.permute.xlu0 %2001
    %2005 = vset.pattern.permute.xlu0 0
    %2006 = vperm.xlu0 %2005, %v1253
    %v2007 = vpop.permute.xlu0 %2006
    %2010 = vset.pattern.permute.xlu0 0
    %2011 = vperm.xlu0 %2010, %v1255
    %v2012 = vpop.permute.xlu0 %2011
    %2015 = vset.pattern.permute.xlu0 0
    %2016 = vperm.xlu0 %2015, %v1257
    %v2017 = vpop.permute.xlu0 %2016
    %2020 = vset.pattern.permute.xlu0 0
    %2021 = vperm.xlu0 %2020, %v1259
    %v2022 = vpop.permute.xlu0 %2021
    %2025 = vset.pattern.permute.xlu0 0
    %2026 = vperm.xlu0 %2025, %v1261
    %v2027 = vpop.permute.xlu0 %2026
    %2030 = vset.pattern.permute.xlu0 0
    %2031 = vperm.xlu0 %2030, %v1263
    %v2032 = vpop.permute.xlu0 %2031
    %2035 = vset.pattern.permute.xlu0 0
    %2036 = vperm.xlu0 %2035, %v1265
    %v2037 = vpop.permute.xlu0 %2036
    %2040 = vset.pattern.permute.xlu0 0
    %2041 = vperm.xlu0 %2040, %v1267
    %v2042 = vpop.permute.xlu0 %2041
    %2045 = vset.pattern.permute.xlu0 0
    %2046 = vperm.xlu0 %2045, %v1269
    %v2047 = vpop.permute.xlu0 %2046
    %2050 = vset.pattern.permute.xlu0 0
    %2051 = vperm.xlu0 %2050, %v1271
    %v2052 = vpop.permute.xlu0 %2051
    %2055 = vset.pattern.permute.xlu0 0
    %2056 = vperm.xlu0 %2055, %v1273
    %v2057 = vpop.permute.xlu0 %2056
    %2060 = vset.pattern.permute.xlu0 0
    %2061 = vperm.xlu0 %2060, %v1275
    %v2062 = vpop.permute.xlu0 %2061
    %2065 = vset.pattern.permute.xlu0 0
    %2066 = vperm.xlu0 %2065, %v1277
    %v2067 = vpop.permute.xlu0 %2066
    %2070 = vset.pattern.permute.xlu0 0
    %2071 = vperm.xlu0 %2070, %v1279
    %v2072 = vpop.permute.xlu0 %2071
    %2075 = vset.pattern.permute.xlu0 0
    %2076 = vperm.xlu0 %2075, %v1281
    %v2077 = vpop.permute.xlu0 %2076
    %2080 = vset.pattern.permute.xlu0 0
    %2081 = vperm.xlu0 %2080, %v1283
    %v2082 = vpop.permute.xlu0 %2081
    %2085 = vset.pattern.permute.xlu0 0
    %2086 = vperm.xlu0 %2085, %v1285
    %v2087 = vpop.permute.xlu0 %2086
    %2090 = vset.pattern.permute.xlu0 0
    %2091 = vperm.xlu0 %2090, %v1287
    %v2092 = vpop.permute.xlu0 %2091
    %2095 = vset.pattern.permute.xlu0 0
    %2096 = vperm.xlu0 %2095, %v1289
    %v2097 = vpop.permute.xlu0 %2096
    %2100 = vset.pattern.permute.xlu0 0
    %2101 = vperm.xlu0 %2100, %v1291
    %v2102 = vpop.permute.xlu0 %2101
    %2105 = vset.pattern.permute.xlu0 0
    %2106 = vperm.xlu0 %2105, %v1293
    %v2107 = vpop.permute.xlu0 %2106
    %2110 = vset.pattern.permute.xlu0 0
    %2111 = vperm.xlu0 %2110, %v1295
    %v2112 = vpop.permute.xlu0 %2111
    %2115 = vset.pattern.permute.xlu0 0
    %2116 = vperm.xlu0 %2115, %v1297
    %v2117 = vpop.permute.xlu0 %2116
    %2120 = vset.pattern.permute.xlu0 0
    %2121 = vperm.xlu0 %2120, %v1299
    %v2122 = vpop.permute.xlu0 %2121
    %2125 = vset.pattern.permute.xlu0 0
    %2126 = vperm.xlu0 %2125, %v1301
    %v2127 = vpop.permute.xlu0 %2126
    %2130 = vset.pattern.permute.xlu0 0
    %2131 = vperm.xlu0 %2130, %v1303
    %v2132 = vpop.permute.xlu0 %2131
    %2135 = vset.pattern.permute.xlu0 0
    %2136 = vperm.xlu0 %2135, %v1305
    %v2137 = vpop.permute.xlu0 %2136
    %v2139 = vmul.f32 %v1982, %v1947
    %v2140 = vmul.f32 %v1987, %v1948
    %v2141 = vmul.f32 %v1992, %v1949
    %v2142 = vmul.f32 %v1997, %v1950
    %v2143 = vmul.f32 %v2002, %v1951
    %v2144 = vmul.f32 %v2007, %v1952
    %v2145 = vmul.f32 %v2012, %v1953
    %v2146 = vmul.f32 %v2017, %v1954
    %v2147 = vmul.f32 %v2022, %v1955
    %v2148 = vmul.f32 %v2027, %v1956
    %v2149 = vmul.f32 %v2032, %v1957
    %v2150 = vmul.f32 %v2037, %v1958
    %v2151 = vmul.f32 %v2042, %v1959
    %v2152 = vmul.f32 %v2047, %v1960
    %v2153 = vmul.f32 %v2052, %v1961
    %v2154 = vmul.f32 %v2057, %v1962
    %v2155 = vmul.f32 %v2062, %v1963
    %v2156 = vmul.f32 %v2067, %v1964
    %v2157 = vmul.f32 %v2072, %v1965
    %v2158 = vmul.f32 %v2077, %v1966
    %v2159 = vmul.f32 %v2082, %v1967
    %v2160 = vmul.f32 %v2087, %v1968
    %v2161 = vmul.f32 %v2092, %v1969
    %v2162 = vmul.f32 %v2097, %v1970
    %v2163 = vmul.f32 %v2102, %v1971
    %v2164 = vmul.f32 %v2107, %v1972
    %v2165 = vmul.f32 %v2112, %v1973
    %v2166 = vmul.f32 %v2117, %v1974
    %v2167 = vmul.f32 %v2122, %v1975
    %v2168 = vmul.f32 %v2127, %v1976
    %v2169 = vmul.f32 %v2132, %v1977
    %v2170 = vmul.f32 %v2137, %v1978
    %v2171 = vpack.c.bf16 %v1660, %v1658
    %v2172 = vpack.c.bf16 %v1661, %v1659
    %v2173 = vpack.c.bf16 %v1664, %v1662
    %v2174 = vpack.c.bf16 %v1665, %v1663
    %v2175 = vpack.c.bf16 %v1668, %v1666
    %v2176 = vpack.c.bf16 %v1669, %v1667
    %v2177 = vpack.c.bf16 %v1672, %v1670
    %v2178 = vpack.c.bf16 %v1673, %v1671
    %v2179 = vpack.c.bf16 %v1676, %v1674
    %v2180 = vpack.c.bf16 %v1677, %v1675
    %v2181 = vpack.c.bf16 %v1680, %v1678
    %v2182 = vpack.c.bf16 %v1681, %v1679
    %v2183 = vpack.c.bf16 %v1684, %v1682
    %v2184 = vpack.c.bf16 %v1685, %v1683
    %v2185 = vpack.c.bf16 %v1688, %v1686
    %v2186 = vpack.c.bf16 %v1689, %v1687
    %v2187 = vpack.c.bf16 %v1692, %v1690
    %v2188 = vpack.c.bf16 %v1693, %v1691
    %v2189 = vpack.c.bf16 %v1696, %v1694
    %v2190 = vpack.c.bf16 %v1697, %v1695
    %v2191 = vpack.c.bf16 %v1700, %v1698
    %v2192 = vpack.c.bf16 %v1701, %v1699
    %v2193 = vpack.c.bf16 %v1704, %v1702
    %v2194 = vpack.c.bf16 %v1705, %v1703
    %v2195 = vpack.c.bf16 %v1708, %v1706
    %v2196 = vpack.c.bf16 %v1709, %v1707
    %v2197 = vpack.c.bf16 %v1712, %v1710
    %v2198 = vpack.c.bf16 %v1713, %v1711
    %v2199 = vpack.c.bf16 %v1716, %v1714
    %v2200 = vpack.c.bf16 %v1717, %v1715
    %v2201 = vpack.c.bf16 %v1720, %v1718
    %v2202 = vpack.c.bf16 %v1721, %v1719
    %v2235 = vunpack.c.l.b16 %v303
    %v2236 = vunpack.c.l.b16 %v304
    %v2237 = vunpack.c.l.b16 %v305
    %v2238 = vunpack.c.l.b16 %v306
    %v2239 = vunpack.c.l.b16 %v307
    %v2240 = vunpack.c.l.b16 %v308
    %v2241 = vunpack.c.l.b16 %v309
    %v2242 = vunpack.c.l.b16 %v310
    %v2243 = vunpack.c.l.b16 %v311
    %v2244 = vunpack.c.l.b16 %v312
    %v2245 = vunpack.c.l.b16 %v313
    %v2246 = vunpack.c.l.b16 %v314
    %v2247 = vunpack.c.l.b16 %v315
    %v2248 = vunpack.c.l.b16 %v316
    %v2249 = vunpack.c.l.b16 %v317
    %v2250 = vunpack.c.l.b16 %v318
    %v2251 = vunpack.c.l.b16 %v319
    %v2252 = vunpack.c.l.b16 %v320
    %v2253 = vunpack.c.l.b16 %v321
    %v2254 = vunpack.c.l.b16 %v322
    %v2255 = vunpack.c.l.b16 %v323
    %v2256 = vunpack.c.l.b16 %v324
    %v2257 = vunpack.c.l.b16 %v325
    %v2258 = vunpack.c.l.b16 %v326
    %v2259 = vunpack.c.l.b16 %v327
    %v2260 = vunpack.c.l.b16 %v328
    %v2261 = vunpack.c.l.b16 %v329
    %v2262 = vunpack.c.l.b16 %v330
    %v2263 = vunpack.c.l.b16 %v331
    %v2264 = vunpack.c.l.b16 %v332
    %v2265 = vunpack.c.l.b16 %v333
    %v2266 = vunpack.c.l.b16 %v334
    %v2267 = vpack.c.b16 %v2236, %v2235
    %v2268 = vpack.c.b16 %v2238, %v2237
    %v2269 = vpack.c.b16 %v2240, %v2239
    %v2270 = vpack.c.b16 %v2242, %v2241
    %v2271 = vpack.c.b16 %v2244, %v2243
    %v2272 = vpack.c.b16 %v2246, %v2245
    %v2273 = vpack.c.b16 %v2248, %v2247
    %v2274 = vpack.c.b16 %v2250, %v2249
    %v2275 = vpack.c.b16 %v2252, %v2251
    %v2276 = vpack.c.b16 %v2254, %v2253
    %v2277 = vpack.c.b16 %v2256, %v2255
    %v2278 = vpack.c.b16 %v2258, %v2257
    %v2279 = vpack.c.b16 %v2260, %v2259
    %v2280 = vpack.c.b16 %v2262, %v2261
    %v2281 = vpack.c.b16 %v2264, %v2263
    %v2282 = vpack.c.b16 %v2266, %v2265
    %2299 = vmatprep.subr.bf16.mxu0 0
    %2300 = vmatpush1.bf16.msra.mxu0 %v2267
    %2301 = vmatprep.subr.bf16.mxu0 0
    %2302 = vmatpush1.bf16.msra.mxu0 %v2268
    %2303 = vmatprep.subr.bf16.mxu0 0
    %2304 = vmatpush1.bf16.msra.mxu0 %v2269
    %2305 = vmatprep.subr.bf16.mxu0 0
    %2306 = vmatpush1.bf16.msra.mxu0 %v2270
    %2307 = vmatprep.subr.bf16.mxu0 0
    %2308 = vmatpush1.bf16.msra.mxu0 %v2271
    %2309 = vmatprep.subr.bf16.mxu0 0
    %2310 = vmatpush1.bf16.msra.mxu0 %v2272
    %2311 = vmatprep.subr.bf16.mxu0 0
    %2312 = vmatpush1.bf16.msra.mxu0 %v2273
    %2313 = vmatprep.subr.bf16.mxu0 0
    %2314 = vmatpush1.bf16.msra.mxu0 %v2274
    %2315 = vmatprep.subr.bf16.mxu0 0
    %2316 = vmatpush1.bf16.msra.mxu0 %v2275
    %2317 = vmatprep.subr.bf16.mxu0 0
    %2318 = vmatpush1.bf16.msra.mxu0 %v2276
    %2319 = vmatprep.subr.bf16.mxu0 0
    %2320 = vmatpush1.bf16.msra.mxu0 %v2277
    %2321 = vmatprep.subr.bf16.mxu0 0
    %2322 = vmatpush1.bf16.msra.mxu0 %v2278
    %2323 = vmatprep.subr.bf16.mxu0 0
    %2324 = vmatpush1.bf16.msra.mxu0 %v2279
    %2325 = vmatprep.subr.bf16.mxu0 0
    %2326 = vmatpush1.bf16.msra.mxu0 %v2280
    %2327 = vmatprep.subr.bf16.mxu0 0
    %2328 = vmatpush1.bf16.msra.mxu0 %v2281
    %2329 = vmatprep.subr.bf16.mxu0 0
    %2330 = vmatpush1.bf16.msra.mxu0 %v2282
    %2331 = vmatprep.mubr.bf16.mxu0 %v2172
    %2332 = vmatmul.mubr.bf16.gmra.mrb[0].mxu0 %v2171
    %v2333 = vpop.f32.mrb[0].mxu0
    %v2334 = vadd.f32 0.0, %v2333
    %v2335 = vpop.f32.mrb[0].mxu0
    %v2336 = vpop.f32.mrb[0].mxu0
    %v2337 = vadd.f32 0.0, %v2336
    %v2338 = vpop.f32.mrb[0].mxu0
    %2339 = vmatprep.mubr.bf16.mxu0 %v2174
    %2340 = vmatmul.mubr.bf16.gmra.mrb[0].mxu0 %v2173
    %v2341 = vpop.f32.mrb[0].mxu0
    %v2342 = vadd.f32 0.0, %v2341
    %v2343 = vpop.f32.mrb[0].mxu0
    %v2344 = vpop.f32.mrb[0].mxu0
    %v2345 = vadd.f32 0.0, %v2344
    %v2346 = vpop.f32.mrb[0].mxu0
    %2347 = vmatprep.mubr.bf16.mxu0 %v2176
    %2348 = vmatmul.mubr.bf16.gmra.mrb[0].mxu0 %v2175
    %v2349 = vpop.f32.mrb[0].mxu0
    %v2350 = vadd.f32 0.0, %v2349
    %v2351 = vpop.f32.mrb[0].mxu0
    %v2352 = vpop.f32.mrb[0].mxu0
    %v2353 = vadd.f32 0.0, %v2352
    %v2354 = vpop.f32.mrb[0].mxu0
    %2355 = vmatprep.mubr.bf16.mxu0 %v2178
    %2356 = vmatmul.mubr.bf16.gmra.mrb[0].mxu0 %v2177
    %v2357 = vpop.f32.mrb[0].mxu0
    %v2358 = vadd.f32 0.0, %v2357
    %v2359 = vpop.f32.mrb[0].mxu0
    %v2360 = vpop.f32.mrb[0].mxu0
    %v2361 = vadd.f32 0.0, %v2360
    %v2362 = vpop.f32.mrb[0].mxu0
    %2363 = vmatprep.mubr.bf16.mxu0 %v2180
    %2364 = vmatmul.mubr.bf16.gmra.mrb[0].mxu0 %v2179
    %v2365 = vpop.f32.mrb[0].mxu0
    %v2366 = vadd.f32 0.0, %v2365
    %v2367 = vpop.f32.mrb[0].mxu0
    %v2368 = vpop.f32.mrb[0].mxu0
    %v2369 = vadd.f32 0.0, %v2368
    %v2370 = vpop.f32.mrb[0].mxu0
    %2371 = vmatprep.mubr.bf16.mxu0 %v2182
    %2372 = vmatmul.mubr.bf16.gmra.mrb[0].mxu0 %v2181
    %v2373 = vpop.f32.mrb[0].mxu0
    %v2374 = vadd.f32 0.0, %v2373
    %v2375 = vpop.f32.mrb[0].mxu0
    %v2376 = vpop.f32.mrb[0].mxu0
    %v2377 = vadd.f32 0.0, %v2376
    %v2378 = vpop.f32.mrb[0].mxu0
    %2379 = vmatprep.mubr.bf16.mxu0 %v2184
    %2380 = vmatmul.mubr.bf16.gmra.mrb[0].mxu0 %v2183
    %v2381 = vpop.f32.mrb[0].mxu0
    %v2382 = vadd.f32 0.0, %v2381
    %v2383 = vpop.f32.mrb[0].mxu0
    %v2384 = vpop.f32.mrb[0].mxu0
    %v2385 = vadd.f32 0.0, %v2384
    %v2386 = vpop.f32.mrb[0].mxu0
    %2387 = vmatprep.mubr.bf16.mxu0 %v2186
    %2388 = vmatmul.mubr.bf16.gmra.mrb[0].mxu0 %v2185
    %v2389 = vpop.f32.mrb[0].mxu0
    %v2390 = vadd.f32 0.0, %v2389
    %v2391 = vpop.f32.mrb[0].mxu0
    %v2392 = vpop.f32.mrb[0].mxu0
    %v2393 = vadd.f32 0.0, %v2392
    %v2394 = vpop.f32.mrb[0].mxu0
    %2395 = vmatprep.mubr.bf16.mxu0 %v2188
    %2396 = vmatmul.mubr.bf16.gmra.mrb[0].mxu0 %v2187
    %v2397 = vpop.f32.mrb[0].mxu0
    %v2398 = vadd.f32 0.0, %v2397
    %v2399 = vpop.f32.mrb[0].mxu0
    %v2400 = vpop.f32.mrb[0].mxu0
    %v2401 = vadd.f32 0.0, %v2400
    %v2402 = vpop.f32.mrb[0].mxu0
    %2403 = vmatprep.mubr.bf16.mxu0 %v2190
    %2404 = vmatmul.mubr.bf16.gmra.mrb[0].mxu0 %v2189
    %v2405 = vpop.f32.mrb[0].mxu0
    %v2406 = vadd.f32 0.0, %v2405
    %v2407 = vpop.f32.mrb[0].mxu0
    %v2408 = vpop.f32.mrb[0].mxu0
    %v2409 = vadd.f32 0.0, %v2408
    %v2410 = vpop.f32.mrb[0].mxu0
    %2411 = vmatprep.mubr.bf16.mxu0 %v2192
    %2412 = vmatmul.mubr.bf16.gmra.mrb[0].mxu0 %v2191
    %v2413 = vpop.f32.mrb[0].mxu0
    %v2414 = vadd.f32 0.0, %v2413
    %v2415 = vpop.f32.mrb[0].mxu0
    %v2416 = vpop.f32.mrb[0].mxu0
    %v2417 = vadd.f32 0.0, %v2416
    %v2418 = vpop.f32.mrb[0].mxu0
    %2419 = vmatprep.mubr.bf16.mxu0 %v2194
    %2420 = vmatmul.mubr.bf16.gmra.mrb[0].mxu0 %v2193
    %v2421 = vpop.f32.mrb[0].mxu0
    %v2422 = vadd.f32 0.0, %v2421
    %v2423 = vpop.f32.mrb[0].mxu0
    %v2424 = vpop.f32.mrb[0].mxu0
    %v2425 = vadd.f32 0.0, %v2424
    %v2426 = vpop.f32.mrb[0].mxu0
    %2427 = vmatprep.mubr.bf16.mxu0 %v2196
    %2428 = vmatmul.mubr.bf16.gmra.mrb[0].mxu0 %v2195
    %v2429 = vpop.f32.mrb[0].mxu0
    %v2430 = vadd.f32 0.0, %v2429
    %v2431 = vpop.f32.mrb[0].mxu0
    %v2432 = vpop.f32.mrb[0].mxu0
    %v2433 = vadd.f32 0.0, %v2432
    %v2434 = vpop.f32.mrb[0].mxu0
    %2435 = vmatprep.mubr.bf16.mxu0 %v2198
    %2436 = vmatmul.mubr.bf16.gmra.mrb[0].mxu0 %v2197
    %v2437 = vpop.f32.mrb[0].mxu0
    %v2438 = vadd.f32 0.0, %v2437
    %v2439 = vpop.f32.mrb[0].mxu0
    %v2440 = vpop.f32.mrb[0].mxu0
    %v2441 = vadd.f32 0.0, %v2440
    %v2442 = vpop.f32.mrb[0].mxu0
    %2443 = vmatprep.mubr.bf16.mxu0 %v2200
    %2444 = vmatmul.mubr.bf16.gmra.mrb[0].mxu0 %v2199
    %v2445 = vpop.f32.mrb[0].mxu0
    %v2446 = vadd.f32 0.0, %v2445
    %v2447 = vpop.f32.mrb[0].mxu0
    %v2448 = vpop.f32.mrb[0].mxu0
    %v2449 = vadd.f32 0.0, %v2448
    %v2450 = vpop.f32.mrb[0].mxu0
    %2451 = vmatprep.mubr.bf16.mxu0 %v2202
    %2452 = vmatmul.mubr.bf16.gmra.mrb[0].mxu0 %v2201
    %v2453 = vpop.f32.mrb[0].mxu0
    %v2454 = vadd.f32 0.0, %v2453
    %v2455 = vpop.f32.mrb[0].mxu0
    %v2456 = vpop.f32.mrb[0].mxu0
    %v2457 = vadd.f32 0.0, %v2456
    %v2458 = vpop.f32.mrb[0].mxu0
    %2459 = vdwg.mxu0
    %v2460 = vadd.f32 %v2139, %v2334
    %v2461 = vadd.f32 %v2140, %v2337
    %v2462 = vadd.f32 %v2141, %v2342
    %v2463 = vadd.f32 %v2142, %v2345
    %v2464 = vadd.f32 %v2143, %v2350
    %v2465 = vadd.f32 %v2144, %v2353
    %v2466 = vadd.f32 %v2145, %v2358
    %v2467 = vadd.f32 %v2146, %v2361
    %v2468 = vadd.f32 %v2147, %v2366
    %v2469 = vadd.f32 %v2148, %v2369
    %v2470 = vadd.f32 %v2149, %v2374
    %v2471 = vadd.f32 %v2150, %v2377
    %v2472 = vadd.f32 %v2151, %v2382
    %v2473 = vadd.f32 %v2152, %v2385
    %v2474 = vadd.f32 %v2153, %v2390
    %v2475 = vadd.f32 %v2154, %v2393
    %v2476 = vadd.f32 %v2155, %v2398
    %v2477 = vadd.f32 %v2156, %v2401
    %v2478 = vadd.f32 %v2157, %v2406
    %v2479 = vadd.f32 %v2158, %v2409
    %v2480 = vadd.f32 %v2159, %v2414
    %v2481 = vadd.f32 %v2160, %v2417
    %v2482 = vadd.f32 %v2161, %v2422
    %v2483 = vadd.f32 %v2162, %v2425
    %v2484 = vadd.f32 %v2163, %v2430
    %v2485 = vadd.f32 %v2164, %v2433
    %v2486 = vadd.f32 %v2165, %v2438
    %v2487 = vadd.f32 %v2166, %v2441
    %v2488 = vadd.f32 %v2167, %v2446
    %v2489 = vadd.f32 %v2168, %v2449
    %v2490 = vadd.f32 %v2169, %v2454
    %v2491 = vadd.f32 %v2170, %v2457
    %2492 = vst.msk [vmem:[#allocation4] sm:$0xff] %vm696, %v2460
    %2493 = vst.msk [vmem:[#allocation4 + $0x8] sm:$0xff] %vm696, %v2461
    %2494 = vst.msk [vmem:[#allocation4 + $0x10] sm:$0xff] %vm696, %v2462
    %2495 = vst.msk [vmem:[#allocation4 + $0x18] sm:$0xff] %vm696, %v2463
    %2496 = vst.msk [vmem:[#allocation4 + $0x20] sm:$0xff] %vm696, %v2464
    %2497 = vst.msk [vmem:[#allocation4 + $0x28] sm:$0xff] %vm696, %v2465
    %2498 = vst.msk [vmem:[#allocation4 + $0x30] sm:$0xff] %vm696, %v2466
    %2499 = vst.msk [vmem:[#allocation4 + $0x38] sm:$0xff] %vm696, %v2467
    %2500 = vst.msk [vmem:[#allocation4 + $0x40] sm:$0xff] %vm696, %v2468
    %2501 = vst.msk [vmem:[#allocation4 + $0x48] sm:$0xff] %vm696, %v2469
    %2502 = vst.msk [vmem:[#allocation4 + $0x50] sm:$0xff] %vm696, %v2470
    %2503 = vst.msk [vmem:[#allocation4 + $0x58] sm:$0xff] %vm696, %v2471
    %2504 = vst.msk [vmem:[#allocation4 + $0x60] sm:$0xff] %vm696, %v2472
    %2505 = vst.msk [vmem:[#allocation4 + $0x68] sm:$0xff] %vm696, %v2473
    %2506 = vst.msk [vmem:[#allocation4 + $0x70] sm:$0xff] %vm696, %v2474
    %2507 = vst.msk [vmem:[#allocation4 + $0x78] sm:$0xff] %vm696, %v2475
    %2508 = vst.msk [vmem:[#allocation4 + $0x80] sm:$0xff] %vm696, %v2476
    %2509 = vst.msk [vmem:[#allocation4 + $0x88] sm:$0xff] %vm696, %v2477
    %2510 = vst.msk [vmem:[#allocation4 + $0x90] sm:$0xff] %vm696, %v2478
    %2511 = vst.msk [vmem:[#allocation4 + $0x98] sm:$0xff] %vm696, %v2479
    %2512 = vst.msk [vmem:[#allocation4 + $0xa0] sm:$0xff] %vm696, %v2480
    %2513 = vst.msk [vmem:[#allocation4 + $0xa8] sm:$0xff] %vm696, %v2481
    %2514 = vst.msk [vmem:[#allocation4 + $0xb0] sm:$0xff] %vm696, %v2482
    %2515 = vst.msk [vmem:[#allocation4 + $0xb8] sm:$0xff] %vm696, %v2483
    %2516 = vst.msk [vmem:[#allocation4 + $0xc0] sm:$0xff] %vm696, %v2484
    %2517 = vst.msk [vmem:[#allocation4 + $0xc8] sm:$0xff] %vm696, %v2485
    %2518 = vst.msk [vmem:[#allocation4 + $0xd0] sm:$0xff] %vm696, %v2486
    %2519 = vst.msk [vmem:[#allocation4 + $0xd8] sm:$0xff] %vm696, %v2487
    %2520 = vst.msk [vmem:[#allocation4 + $0xe0] sm:$0xff] %vm696, %v2488
    %2521 = vst.msk [vmem:[#allocation4 + $0xe8] sm:$0xff] %vm696, %v2489
    %2522 = vst.msk [vmem:[#allocation4 + $0xf0] sm:$0xff] %vm696, %v2490
    %2523 = vst.msk [vmem:[#allocation4 + $0xf8] sm:$0xff] %vm696, %v2491
    %2524 = vst.msk [vmem:[#allocation2] sm:$0xff] %vm1914, %v1178
    %2525 = vst.msk [vmem:[#allocation2 + $0x8] sm:$0xff] %vm1914, %v1179
    %2526 = vst.msk [vmem:[#allocation2 + $0x10] sm:$0xff] %vm1914, %v1180
    %2527 = vst.msk [vmem:[#allocation2 + $0x18] sm:$0xff] %vm1914, %v1181
    %2528 = vst.msk [vmem:[#allocation2 + $0x20] sm:$0xff] %vm1914, %v1182
    %2529 = vst.msk [vmem:[#allocation2 + $0x28] sm:$0xff] %vm1914, %v1183
    %2530 = vst.msk [vmem:[#allocation2 + $0x30] sm:$0xff] %vm1914, %v1184
    %2531 = vst.msk [vmem:[#allocation2 + $0x38] sm:$0xff] %vm1914, %v1185
    %2532 = vst.msk [vmem:[#allocation2 + $0x40] sm:$0xff] %vm1914, %v1186
    %2533 = vst.msk [vmem:[#allocation2 + $0x48] sm:$0xff] %vm1914, %v1187
    %2534 = vst.msk [vmem:[#allocation2 + $0x50] sm:$0xff] %vm1914, %v1188
    %2535 = vst.msk [vmem:[#allocation2 + $0x58] sm:$0xff] %vm1914, %v1189
    %2536 = vst.msk [vmem:[#allocation2 + $0x60] sm:$0xff] %vm1914, %v1190
    %2537 = vst.msk [vmem:[#allocation2 + $0x68] sm:$0xff] %vm1914, %v1191
    %2538 = vst.msk [vmem:[#allocation2 + $0x70] sm:$0xff] %vm1914, %v1192
    %2539 = vst.msk [vmem:[#allocation2 + $0x78] sm:$0xff] %vm1914, %v1193
    %2540 = vst.msk [vmem:[#allocation2 + $0x80] sm:$0xff] %vm1914, %v1194
    %2541 = vst.msk [vmem:[#allocation2 + $0x88] sm:$0xff] %vm1914, %v1195
    %2542 = vst.msk [vmem:[#allocation2 + $0x90] sm:$0xff] %vm1914, %v1196
    %2543 = vst.msk [vmem:[#allocation2 + $0x98] sm:$0xff] %vm1914, %v1197
    %2544 = vst.msk [vmem:[#allocation2 + $0xa0] sm:$0xff] %vm1914, %v1198
    %2545 = vst.msk [vmem:[#allocation2 + $0xa8] sm:$0xff] %vm1914, %v1199
    %2546 = vst.msk [vmem:[#allocation2 + $0xb0] sm:$0xff] %vm1914, %v1200
    %2547 = vst.msk [vmem:[#allocation2 + $0xb8] sm:$0xff] %vm1914, %v1201
    %2548 = vst.msk [vmem:[#allocation2 + $0xc0] sm:$0xff] %vm1914, %v1202
    %2549 = vst.msk [vmem:[#allocation2 + $0xc8] sm:$0xff] %vm1914, %v1203
    %2550 = vst.msk [vmem:[#allocation2 + $0xd0] sm:$0xff] %vm1914, %v1204
    %2551 = vst.msk [vmem:[#allocation2 + $0xd8] sm:$0xff] %vm1914, %v1205
    %2552 = vst.msk [vmem:[#allocation2 + $0xe0] sm:$0xff] %vm1914, %v1206
    %2553 = vst.msk [vmem:[#allocation2 + $0xe8] sm:$0xff] %vm1914, %v1207
    %2554 = vst.msk [vmem:[#allocation2 + $0xf0] sm:$0xff] %vm1914, %v1208
    %2555 = vst.msk [vmem:[#allocation2 + $0xf8] sm:$0xff] %vm1914, %v1209
    %2556 = vrot.lane.b32.xlu0 %v600, 96
    %v2557 = vpop.permute.xlu0 %2556
    %2558 = vrot.lane.b32.xlu0 %v601, 96
    %v2559 = vpop.permute.xlu0 %2558
    %2560 = vrot.lane.b32.xlu0 %v602, 96
    %v2561 = vpop.permute.xlu0 %2560
    %2562 = vrot.lane.b32.xlu0 %v603, 96
    %v2563 = vpop.permute.xlu0 %2562
    %2564 = vrot.lane.b32.xlu0 %v604, 96
    %v2565 = vpop.permute.xlu0 %2564
    %2566 = vrot.lane.b32.xlu0 %v605, 96
    %v2567 = vpop.permute.xlu0 %2566
    %2568 = vrot.lane.b32.xlu0 %v606, 96
    %v2569 = vpop.permute.xlu0 %2568
    %2570 = vrot.lane.b32.xlu0 %v607, 96
    %v2571 = vpop.permute.xlu0 %2570
    %2572 = vrot.lane.b32.xlu0 %v608, 96
    %v2573 = vpop.permute.xlu0 %2572
    %2574 = vrot.lane.b32.xlu0 %v609, 96
    %v2575 = vpop.permute.xlu0 %2574
    %2576 = vrot.lane.b32.xlu0 %v610, 96
    %v2577 = vpop.permute.xlu0 %2576
    %2578 = vrot.lane.b32.xlu0 %v611, 96
    %v2579 = vpop.permute.xlu0 %2578
    %2580 = vrot.lane.b32.xlu0 %v612, 96
    %v2581 = vpop.permute.xlu0 %2580
    %2582 = vrot.lane.b32.xlu0 %v613, 96
    %v2583 = vpop.permute.xlu0 %2582
    %2584 = vrot.lane.b32.xlu0 %v614, 96
    %v2585 = vpop.permute.xlu0 %2584
    %2586 = vrot.lane.b32.xlu0 %v615, 96
    %v2587 = vpop.permute.xlu0 %2586
    %2588 = vrot.lane.b32.xlu0 %v680, 96
    %v2589 = vpop.permute.xlu0 %2588
    %2590 = vrot.lane.b32.xlu0 %v681, 96
    %v2591 = vpop.permute.xlu0 %2590
    %2592 = vrot.lane.b32.xlu0 %v682, 96
    %v2593 = vpop.permute.xlu0 %2592
    %2594 = vrot.lane.b32.xlu0 %v683, 96
    %v2595 = vpop.permute.xlu0 %2594
    %2596 = vrot.lane.b32.xlu0 %v684, 96
    %v2597 = vpop.permute.xlu0 %2596
    %2598 = vrot.lane.b32.xlu0 %v685, 96
    %v2599 = vpop.permute.xlu0 %2598
    %2600 = vrot.lane.b32.xlu0 %v686, 96
    %v2601 = vpop.permute.xlu0 %2600
    %2602 = vrot.lane.b32.xlu0 %v687, 96
    %v2603 = vpop.permute.xlu0 %2602
    %2604 = vrot.lane.b32.xlu0 %v688, 96
    %v2605 = vpop.permute.xlu0 %2604
    %2606 = vrot.lane.b32.xlu0 %v689, 96
    %v2607 = vpop.permute.xlu0 %2606
    %2608 = vrot.lane.b32.xlu0 %v690, 96
    %v2609 = vpop.permute.xlu0 %2608
    %2610 = vrot.lane.b32.xlu0 %v691, 96
    %v2611 = vpop.permute.xlu0 %2610
    %2612 = vrot.lane.b32.xlu0 %v692, 96
    %v2613 = vpop.permute.xlu0 %2612
    %2614 = vrot.lane.b32.xlu0 %v693, 96
    %v2615 = vpop.permute.xlu0 %2614
    %2616 = vrot.lane.b32.xlu0 %v694, 96
    %v2617 = vpop.permute.xlu0 %2616
    %2618 = vrot.lane.b32.xlu0 %v695, 96
    %v2619 = vpop.permute.xlu0 %2618
    %v2621 = vsel %vm696, %v2557, 0
    %v2624 = vsel %vm696, %v2559, 0
    %v2627 = vsel %vm696, %v2561, 0
    %v2630 = vsel %vm696, %v2563, 0
    %v2633 = vsel %vm696, %v2565, 0
    %v2636 = vsel %vm696, %v2567, 0
    %v2639 = vsel %vm696, %v2569, 0
    %v2642 = vsel %vm696, %v2571, 0
    %v2645 = vsel %vm696, %v2573, 0
    %v2648 = vsel %vm696, %v2575, 0
    %v2651 = vsel %vm696, %v2577, 0
    %v2654 = vsel %vm696, %v2579, 0
    %v2657 = vsel %vm696, %v2581, 0
    %v2660 = vsel %vm696, %v2583, 0
    %v2663 = vsel %vm696, %v2585, 0
    %v2666 = vsel %vm696, %v2587, 0
    %v2669 = vsel %vm696, %v2589, 0
    %v2672 = vsel %vm696, %v2591, 0
    %v2675 = vsel %vm696, %v2593, 0
    %v2678 = vsel %vm696, %v2595, 0
    %v2681 = vsel %vm696, %v2597, 0
    %v2684 = vsel %vm696, %v2599, 0
    %v2687 = vsel %vm696, %v2601, 0
    %v2690 = vsel %vm696, %v2603, 0
    %v2693 = vsel %vm696, %v2605, 0
    %v2696 = vsel %vm696, %v2607, 0
    %v2699 = vsel %vm696, %v2609, 0
    %v2702 = vsel %vm696, %v2611, 0
    %v2705 = vsel %vm696, %v2613, 0
    %v2708 = vsel %vm696, %v2615, 0
    %v2711 = vsel %vm696, %v2617, 0
    %v2714 = vsel %vm696, %v2619, 0
    %2716 = vmatprep.subr.bf16.mxu0 0
    %2717 = vmatpush1.bf16.xpose.msra.mxu0 %v2669
    %2718 = vmatprep.subr.bf16.mxu0 0
    %2719 = vmatpush1.bf16.xpose.msra.mxu0 %v2672
    %2720 = vmatprep.subr.bf16.mxu0 0
    %2721 = vmatpush1.bf16.xpose.msra.mxu0 %v2675
    %2722 = vmatprep.subr.bf16.mxu0 0
    %2723 = vmatpush1.bf16.xpose.msra.mxu0 %v2678
    %2724 = vmatprep.subr.bf16.mxu0 0
    %2725 = vmatpush1.bf16.xpose.msra.mxu0 %v2681
    %2726 = vmatprep.subr.bf16.mxu0 0
    %2727 = vmatpush1.bf16.xpose.msra.mxu0 %v2684
    %2728 = vmatprep.subr.bf16.mxu0 0
    %2729 = vmatpush1.bf16.xpose.msra.mxu0 %v2687
    %2730 = vmatprep.subr.bf16.mxu0 0
    %2731 = vmatpush1.bf16.xpose.msra.mxu0 %v2690
    %2732 = vmatprep.subr.bf16.mxu0 0
    %2733 = vmatpush1.bf16.xpose.msra.mxu0 %v2693
    %2734 = vmatprep.subr.bf16.mxu0 0
    %2735 = vmatpush1.bf16.xpose.msra.mxu0 %v2696
    %2736 = vmatprep.subr.bf16.mxu0 0
    %2737 = vmatpush1.bf16.xpose.msra.mxu0 %v2699
    %2738 = vmatprep.subr.bf16.mxu0 0
    %2739 = vmatpush1.bf16.xpose.msra.mxu0 %v2702
    %2740 = vmatprep.subr.bf16.mxu0 0
    %2741 = vmatpush1.bf16.xpose.msra.mxu0 %v2705
    %2742 = vmatprep.subr.bf16.mxu0 0
    %2743 = vmatpush1.bf16.xpose.msra.mxu0 %v2708
    %2744 = vmatprep.subr.bf16.mxu0 0
    %2745 = vmatpush1.bf16.xpose.msra.mxu0 %v2711
    %2746 = vmatprep.subr.bf16.mxu0 0
    %2747 = vmatpush1.bf16.xpose.msra.mxu0 %v2714
    %2748 = vmatprep.mubr.bf16.mxu0 0
    %2749 = vmatmul.mubr.bf16.gmra.mrb[0].mxu0 %v2621
    %v2750 = vpop.f32.mrb[0].mxu0
    %v2751 = vadd.f32 0.0, %v2750
    %v2752 = vpop.f32.mrb[0].mxu0
    %v2753 = vadd.f32 0.0, %v2752
    %v2754 = vpop.f32.mrb[0].mxu0
    %v2755 = vadd.f32 0.0, %v2754
    %v2756 = vpop.f32.mrb[0].mxu0
    %v2757 = vadd.f32 0.0, %v2756
    %2758 = vmatprep.mubr.bf16.mxu0 0
    %2759 = vmatmul.mubr.bf16.gmra.mrb[0].mxu0 %v2624
    %v2760 = vpop.f32.mrb[0].mxu0
    %v2761 = vadd.f32 0.0, %v2760
    %v2762 = vpop.f32.mrb[0].mxu0
    %v2763 = vadd.f32 0.0, %v2762
    %v2764 = vpop.f32.mrb[0].mxu0
    %v2765 = vadd.f32 0.0, %v2764
    %v2766 = vpop.f32.mrb[0].mxu0
    %v2767 = vadd.f32 0.0, %v2766
    %2768 = vmatprep.mubr.bf16.mxu0 0
    %2769 = vmatmul.mubr.bf16.gmra.mrb[0].mxu0 %v2627
    %v2770 = vpop.f32.mrb[0].mxu0
    %v2771 = vadd.f32 0.0, %v2770
    %v2772 = vpop.f32.mrb[0].mxu0
    %v2773 = vadd.f32 0.0, %v2772
    %v2774 = vpop.f32.mrb[0].mxu0
    %v2775 = vadd.f32 0.0, %v2774
    %v2776 = vpop.f32.mrb[0].mxu0
    %v2777 = vadd.f32 0.0, %v2776
    %2778 = vmatprep.mubr.bf16.mxu0 0
    %2779 = vmatmul.mubr.bf16.gmra.mrb[0].mxu0 %v2630
    %v2780 = vpop.f32.mrb[0].mxu0
    %v2781 = vadd.f32 0.0, %v2780
    %v2782 = vpop.f32.mrb[0].mxu0
    %v2783 = vadd.f32 0.0, %v2782
    %v2784 = vpop.f32.mrb[0].mxu0
    %v2785 = vadd.f32 0.0, %v2784
    %v2786 = vpop.f32.mrb[0].mxu0
    %v2787 = vadd.f32 0.0, %v2786
    %2788 = vmatprep.mubr.bf16.mxu0 0
    %2789 = vmatmul.mubr.bf16.gmra.mrb[0].mxu0 %v2633
    %v2790 = vpop.f32.mrb[0].mxu0
    %v2791 = vadd.f32 0.0, %v2790
    %v2792 = vpop.f32.mrb[0].mxu0
    %v2793 = vadd.f32 0.0, %v2792
    %v2794 = vpop.f32.mrb[0].mxu0
    %v2795 = vadd.f32 0.0, %v2794
    %v2796 = vpop.f32.mrb[0].mxu0
    %v2797 = vadd.f32 0.0, %v2796
    %2798 = vmatprep.mubr.bf16.mxu0 0
    %2799 = vmatmul.mubr.bf16.gmra.mrb[0].mxu0 %v2636
    %v2800 = vpop.f32.mrb[0].mxu0
    %v2801 = vadd.f32 0.0, %v2800
    %v2802 = vpop.f32.mrb[0].mxu0
    %v2803 = vadd.f32 0.0, %v2802
    %v2804 = vpop.f32.mrb[0].mxu0
    %v2805 = vadd.f32 0.0, %v2804
    %v2806 = vpop.f32.mrb[0].mxu0
    %v2807 = vadd.f32 0.0, %v2806
    %2808 = vmatprep.mubr.bf16.mxu0 0
    %2809 = vmatmul.mubr.bf16.gmra.mrb[0].mxu0 %v2639
    %v2810 = vpop.f32.mrb[0].mxu0
    %v2811 = vadd.f32 0.0, %v2810
    %v2812 = vpop.f32.mrb[0].mxu0
    %v2813 = vadd.f32 0.0, %v2812
    %v2814 = vpop.f32.mrb[0].mxu0
    %v2815 = vadd.f32 0.0, %v2814
    %v2816 = vpop.f32.mrb[0].mxu0
    %v2817 = vadd.f32 0.0, %v2816
    %2818 = vmatprep.mubr.bf16.mxu0 0
    %2819 = vmatmul.mubr.bf16.gmra.mrb[0].mxu0 %v2642
    %v2820 = vpop.f32.mrb[0].mxu0
    %v2821 = vadd.f32 0.0, %v2820
    %v2822 = vpop.f32.mrb[0].mxu0
    %v2823 = vadd.f32 0.0, %v2822
    %v2824 = vpop.f32.mrb[0].mxu0
    %v2825 = vadd.f32 0.0, %v2824
    %v2826 = vpop.f32.mrb[0].mxu0
    %v2827 = vadd.f32 0.0, %v2826
    %2828 = vmatprep.mubr.bf16.mxu0 0
    %2829 = vmatmul.mubr.bf16.gmra.mrb[0].mxu0 %v2645
    %v2830 = vpop.f32.mrb[0].mxu0
    %v2831 = vadd.f32 0.0, %v2830
    %v2832 = vpop.f32.mrb[0].mxu0
    %v2833 = vadd.f32 0.0, %v2832
    %v2834 = vpop.f32.mrb[0].mxu0
    %v2835 = vadd.f32 0.0, %v2834
    %v2836 = vpop.f32.mrb[0].mxu0
    %v2837 = vadd.f32 0.0, %v2836
    %2838 = vmatprep.mubr.bf16.mxu0 0
    %2839 = vmatmul.mubr.bf16.gmra.mrb[0].mxu0 %v2648
    %v2840 = vpop.f32.mrb[0].mxu0
    %v2841 = vadd.f32 0.0, %v2840
    %v2842 = vpop.f32.mrb[0].mxu0
    %v2843 = vadd.f32 0.0, %v2842
    %v2844 = vpop.f32.mrb[0].mxu0
    %v2845 = vadd.f32 0.0, %v2844
    %v2846 = vpop.f32.mrb[0].mxu0
    %v2847 = vadd.f32 0.0, %v2846
    %2848 = vmatprep.mubr.bf16.mxu0 0
    %2849 = vmatmul.mubr.bf16.gmra.mrb[0].mxu0 %v2651
    %v2850 = vpop.f32.mrb[0].mxu0
    %v2851 = vadd.f32 0.0, %v2850
    %v2852 = vpop.f32.mrb[0].mxu0
    %v2853 = vadd.f32 0.0, %v2852
    %v2854 = vpop.f32.mrb[0].mxu0
    %v2855 = vadd.f32 0.0, %v2854
    %v2856 = vpop.f32.mrb[0].mxu0
    %v2857 = vadd.f32 0.0, %v2856
    %2858 = vmatprep.mubr.bf16.mxu0 0
    %2859 = vmatmul.mubr.bf16.gmra.mrb[0].mxu0 %v2654
    %v2860 = vpop.f32.mrb[0].mxu0
    %v2861 = vadd.f32 0.0, %v2860
    %v2862 = vpop.f32.mrb[0].mxu0
    %v2863 = vadd.f32 0.0, %v2862
    %v2864 = vpop.f32.mrb[0].mxu0
    %v2865 = vadd.f32 0.0, %v2864
    %v2866 = vpop.f32.mrb[0].mxu0
    %v2867 = vadd.f32 0.0, %v2866
    %2868 = vmatprep.mubr.bf16.mxu0 0
    %2869 = vmatmul.mubr.bf16.gmra.mrb[0].mxu0 %v2657
    %v2870 = vpop.f32.mrb[0].mxu0
    %v2871 = vadd.f32 0.0, %v2870
    %v2872 = vpop.f32.mrb[0].mxu0
    %v2873 = vadd.f32 0.0, %v2872
    %v2874 = vpop.f32.mrb[0].mxu0
    %v2875 = vadd.f32 0.0, %v2874
    %v2876 = vpop.f32.mrb[0].mxu0
    %v2877 = vadd.f32 0.0, %v2876
    %2878 = vmatprep.mubr.bf16.mxu0 0
    %2879 = vmatmul.mubr.bf16.gmra.mrb[0].mxu0 %v2660
    %v2880 = vpop.f32.mrb[0].mxu0
    %v2881 = vadd.f32 0.0, %v2880
    %v2882 = vpop.f32.mrb[0].mxu0
    %v2883 = vadd.f32 0.0, %v2882
    %v2884 = vpop.f32.mrb[0].mxu0
    %v2885 = vadd.f32 0.0, %v2884
    %v2886 = vpop.f32.mrb[0].mxu0
    %v2887 = vadd.f32 0.0, %v2886
    %2888 = vmatprep.mubr.bf16.mxu0 0
    %2889 = vmatmul.mubr.bf16.gmra.mrb[0].mxu0 %v2663
    %v2890 = vpop.f32.mrb[0].mxu0
    %v2891 = vadd.f32 0.0, %v2890
    %v2892 = vpop.f32.mrb[0].mxu0
    %v2893 = vadd.f32 0.0, %v2892
    %v2894 = vpop.f32.mrb[0].mxu0
    %v2895 = vadd.f32 0.0, %v2894
    %v2896 = vpop.f32.mrb[0].mxu0
    %v2897 = vadd.f32 0.0, %v2896
    %2898 = vmatprep.mubr.bf16.mxu0 0
    %2899 = vmatmul.mubr.bf16.gmra.mrb[0].mxu0 %v2666
    %v2900 = vpop.f32.mrb[0].mxu0
    %v2901 = vadd.f32 0.0, %v2900
    %v2902 = vpop.f32.mrb[0].mxu0
    %v2903 = vadd.f32 0.0, %v2902
    %v2904 = vpop.f32.mrb[0].mxu0
    %v2905 = vadd.f32 0.0, %v2904
    %v2906 = vpop.f32.mrb[0].mxu0
    %v2907 = vadd.f32 0.0, %v2906
    %2908 = vdwg.mxu0
    %v2909 = vsel %vm472, %v2751, -1e+30
    %v2910 = vsel %vm473, %v2753, -1e+30
    %v2911 = vsel %vm474, %v2755, -1e+30
    %v2912 = vsel %vm475, %v2757, -1e+30
    %v2913 = vsel %vm476, %v2761, -1e+30
    %v2914 = vsel %vm477, %v2763, -1e+30
    %v2915 = vsel %vm478, %v2765, -1e+30
    %v2916 = vsel %vm479, %v2767, -1e+30
    %v2917 = vsel %vm480, %v2771, -1e+30
    %v2918 = vsel %vm481, %v2773, -1e+30
    %v2919 = vsel %vm482, %v2775, -1e+30
    %v2920 = vsel %vm483, %v2777, -1e+30
    %v2921 = vsel %vm484, %v2781, -1e+30
    %v2922 = vsel %vm485, %v2783, -1e+30
    %v2923 = vsel %vm486, %v2785, -1e+30
    %v2924 = vsel %vm487, %v2787, -1e+30
    %v2925 = vsel %vm488, %v2791, -1e+30
    %v2926 = vsel %vm489, %v2793, -1e+30
    %v2927 = vsel %vm490, %v2795, -1e+30
    %v2928 = vsel %vm491, %v2797, -1e+30
    %v2929 = vsel %vm492, %v2801, -1e+30
    %v2930 = vsel %vm493, %v2803, -1e+30
    %v2931 = vsel %vm494, %v2805, -1e+30
    %v2932 = vsel %vm495, %v2807, -1e+30
    %v2933 = vsel %vm496, %v2811, -1e+30
    %v2934 = vsel %vm497, %v2813, -1e+30
    %v2935 = vsel %vm498, %v2815, -1e+30
    %v2936 = vsel %vm499, %v2817, -1e+30
    %v2937 = vsel %vm500, %v2821, -1e+30
    %v2938 = vsel %vm501, %v2823, -1e+30
    %v2939 = vsel %vm502, %v2825, -1e+30
    %v2940 = vsel %vm503, %v2827, -1e+30
    %v2941 = vsel %vm504, %v2831, -1e+30
    %v2942 = vsel %vm505, %v2833, -1e+30
    %v2943 = vsel %vm506, %v2835, -1e+30
    %v2944 = vsel %vm507, %v2837, -1e+30
    %v2945 = vsel %vm508, %v2841, -1e+30
    %v2946 = vsel %vm509, %v2843, -1e+30
    %v2947 = vsel %vm510, %v2845, -1e+30
    %v2948 = vsel %vm511, %v2847, -1e+30
    %v2949 = vsel %vm512, %v2851, -1e+30
    %v2950 = vsel %vm513, %v2853, -1e+30
    %v2951 = vsel %vm514, %v2855, -1e+30
    %v2952 = vsel %vm515, %v2857, -1e+30
    %v2953 = vsel %vm516, %v2861, -1e+30
    %v2954 = vsel %vm517, %v2863, -1e+30
    %v2955 = vsel %vm518, %v2865, -1e+30
    %v2956 = vsel %vm519, %v2867, -1e+30
    %v2957 = vsel %vm520, %v2871, -1e+30
    %v2958 = vsel %vm521, %v2873, -1e+30
    %v2959 = vsel %vm522, %v2875, -1e+30
    %v2960 = vsel %vm523, %v2877, -1e+30
    %v2961 = vsel %vm524, %v2881, -1e+30
    %v2962 = vsel %vm525, %v2883, -1e+30
    %v2963 = vsel %vm526, %v2885, -1e+30
    %v2964 = vsel %vm527, %v2887, -1e+30
    %v2965 = vsel %vm528, %v2891, -1e+30
    %v2966 = vsel %vm529, %v2893, -1e+30
    %v2967 = vsel %vm530, %v2895, -1e+30
    %v2968 = vsel %vm531, %v2897, -1e+30
    %v2969 = vsel %vm532, %v2901, -1e+30
    %v2970 = vsel %vm533, %v2903, -1e+30
    %v2971 = vsel %vm534, %v2905, -1e+30
    %v2972 = vsel %vm535, %v2907, -1e+30
    %s2973 = scalar_lea.vmem [#allocation2], 256
    %v2974 = vld [vmem:[%s2973] sm:$0xff]
    %v2975 = vld [vmem:[%s2973 + $0x8] sm:$0xff]
    %v2976 = vld [vmem:[%s2973 + $0x10] sm:$0xff]
    %v2977 = vld [vmem:[%s2973 + $0x18] sm:$0xff]
    %v2978 = vld [vmem:[%s2973 + $0x20] sm:$0xff]
    %v2979 = vld [vmem:[%s2973 + $0x28] sm:$0xff]
    %v2980 = vld [vmem:[%s2973 + $0x30] sm:$0xff]
    %v2981 = vld [vmem:[%s2973 + $0x38] sm:$0xff]
    %v2982 = vld [vmem:[%s2973 + $0x40] sm:$0xff]
    %v2983 = vld [vmem:[%s2973 + $0x48] sm:$0xff]
    %v2984 = vld [vmem:[%s2973 + $0x50] sm:$0xff]
    %v2985 = vld [vmem:[%s2973 + $0x58] sm:$0xff]
    %v2986 = vld [vmem:[%s2973 + $0x60] sm:$0xff]
    %v2987 = vld [vmem:[%s2973 + $0x68] sm:$0xff]
    %v2988 = vld [vmem:[%s2973 + $0x70] sm:$0xff]
    %v2989 = vld [vmem:[%s2973 + $0x78] sm:$0xff]
    %v2990 = vld [vmem:[%s2973 + $0x80] sm:$0xff]
    %v2991 = vld [vmem:[%s2973 + $0x88] sm:$0xff]
    %v2992 = vld [vmem:[%s2973 + $0x90] sm:$0xff]
    %v2993 = vld [vmem:[%s2973 + $0x98] sm:$0xff]
    %v2994 = vld [vmem:[%s2973 + $0xa0] sm:$0xff]
    %v2995 = vld [vmem:[%s2973 + $0xa8] sm:$0xff]
    %v2996 = vld [vmem:[%s2973 + $0xb0] sm:$0xff]
    %v2997 = vld [vmem:[%s2973 + $0xb8] sm:$0xff]
    %v2998 = vld [vmem:[%s2973 + $0xc0] sm:$0xff]
    %v2999 = vld [vmem:[%s2973 + $0xc8] sm:$0xff]
    %v3000 = vld [vmem:[%s2973 + $0xd0] sm:$0xff]
    %v3001 = vld [vmem:[%s2973 + $0xd8] sm:$0xff]
    %v3002 = vld [vmem:[%s2973 + $0xe0] sm:$0xff]
    %v3003 = vld [vmem:[%s2973 + $0xe8] sm:$0xff]
    %v3004 = vld [vmem:[%s2973 + $0xf0] sm:$0xff]
    %v3005 = vld [vmem:[%s2973 + $0xf8] sm:$0xff]
    %v3006 = vmax.f32 %v2909, %v2910
    %3007 = vmax.xlane.f32.xlu0 %v3006
    %v3008 = vpop.xlane.xlu0 %3007
    %v3009 = vmax.f32 %v2911, %v2912
    %3010 = vmax.xlane.f32.xlu0 %v3009
    %v3011 = vpop.xlane.xlu0 %3010
    %v3012 = vmax.f32 %v2913, %v2914
    %3013 = vmax.xlane.f32.xlu0 %v3012
    %v3014 = vpop.xlane.xlu0 %3013
    %v3015 = vmax.f32 %v2915, %v2916
    %3016 = vmax.xlane.f32.xlu0 %v3015
    %v3017 = vpop.xlane.xlu0 %3016
    %v3018 = vmax.f32 %v2917, %v2918
    %3019 = vmax.xlane.f32.xlu0 %v3018
    %v3020 = vpop.xlane.xlu0 %3019
    %v3021 = vmax.f32 %v2919, %v2920
    %3022 = vmax.xlane.f32.xlu0 %v3021
    %v3023 = vpop.xlane.xlu0 %3022
    %v3024 = vmax.f32 %v2921, %v2922
    %3025 = vmax.xlane.f32.xlu0 %v3024
    %v3026 = vpop.xlane.xlu0 %3025
    %v3027 = vmax.f32 %v2923, %v2924
    %3028 = vmax.xlane.f32.xlu0 %v3027
    %v3029 = vpop.xlane.xlu0 %3028
    %v3030 = vmax.f32 %v2925, %v2926
    %3031 = vmax.xlane.f32.xlu0 %v3030
    %v3032 = vpop.xlane.xlu0 %3031
    %v3033 = vmax.f32 %v2927, %v2928
    %3034 = vmax.xlane.f32.xlu0 %v3033
    %v3035 = vpop.xlane.xlu0 %3034
    %v3036 = vmax.f32 %v2929, %v2930
    %3037 = vmax.xlane.f32.xlu0 %v3036
    %v3038 = vpop.xlane.xlu0 %3037
    %v3039 = vmax.f32 %v2931, %v2932
    %3040 = vmax.xlane.f32.xlu0 %v3039
    %v3041 = vpop.xlane.xlu0 %3040
    %v3042 = vmax.f32 %v2933, %v2934
    %3043 = vmax.xlane.f32.xlu0 %v3042
    %v3044 = vpop.xlane.xlu0 %3043
    %v3045 = vmax.f32 %v2935, %v2936
    %3046 = vmax.xlane.f32.xlu0 %v3045
    %v3047 = vpop.xlane.xlu0 %3046
    %v3048 = vmax.f32 %v2937, %v2938
    %3049 = vmax.xlane.f32.xlu0 %v3048
    %v3050 = vpop.xlane.xlu0 %3049
    %v3051 = vmax.f32 %v2939, %v2940
    %3052 = vmax.xlane.f32.xlu0 %v3051
    %v3053 = vpop.xlane.xlu0 %3052
    %v3054 = vmax.f32 %v2941, %v2942
    %3055 = vmax.xlane.f32.xlu0 %v3054
    %v3056 = vpop.xlane.xlu0 %3055
    %v3057 = vmax.f32 %v2943, %v2944
    %3058 = vmax.xlane.f32.xlu0 %v3057
    %v3059 = vpop.xlane.xlu0 %3058
    %v3060 = vmax.f32 %v2945, %v2946
    %3061 = vmax.xlane.f32.xlu0 %v3060
    %v3062 = vpop.xlane.xlu0 %3061
    %v3063 = vmax.f32 %v2947, %v2948
    %3064 = vmax.xlane.f32.xlu0 %v3063
    %v3065 = vpop.xlane.xlu0 %3064
    %v3066 = vmax.f32 %v2949, %v2950
    %3067 = vmax.xlane.f32.xlu0 %v3066
    %v3068 = vpop.xlane.xlu0 %3067
    %v3069 = vmax.f32 %v2951, %v2952
    %3070 = vmax.xlane.f32.xlu0 %v3069
    %v3071 = vpop.xlane.xlu0 %3070
    %v3072 = vmax.f32 %v2953, %v2954
    %3073 = vmax.xlane.f32.xlu0 %v3072
    %v3074 = vpop.xlane.xlu0 %3073
    %v3075 = vmax.f32 %v2955, %v2956
    %3076 = vmax.xlane.f32.xlu0 %v3075
    %v3077 = vpop.xlane.xlu0 %3076
    %v3078 = vmax.f32 %v2957, %v2958
    %3079 = vmax.xlane.f32.xlu0 %v3078
    %v3080 = vpop.xlane.xlu0 %3079
    %v3081 = vmax.f32 %v2959, %v2960
    %3082 = vmax.xlane.f32.xlu0 %v3081
    %v3083 = vpop.xlane.xlu0 %3082
    %v3084 = vmax.f32 %v2961, %v2962
    %3085 = vmax.xlane.f32.xlu0 %v3084
    %v3086 = vpop.xlane.xlu0 %3085
    %v3087 = vmax.f32 %v2963, %v2964
    %3088 = vmax.xlane.f32.xlu0 %v3087
    %v3089 = vpop.xlane.xlu0 %3088
    %v3090 = vmax.f32 %v2965, %v2966
    %3091 = vmax.xlane.f32.xlu0 %v3090
    %v3092 = vpop.xlane.xlu0 %3091
    %v3093 = vmax.f32 %v2967, %v2968
    %3094 = vmax.xlane.f32.xlu0 %v3093
    %v3095 = vpop.xlane.xlu0 %3094
    %v3096 = vmax.f32 %v2969, %v2970
    %3097 = vmax.xlane.f32.xlu0 %v3096
    %v3098 = vpop.xlane.xlu0 %3097
    %v3099 = vmax.f32 %v2971, %v2972
    %3100 = vmax.xlane.f32.xlu0 %v3099
    %v3101 = vpop.xlane.xlu0 %3100
    %v3102 = vmax.f32 %v2974, %v3008
    %v3103 = vmax.f32 %v2975, %v3011
    %v3104 = vmax.f32 %v2976, %v3014
    %v3105 = vmax.f32 %v2977, %v3017
    %v3106 = vmax.f32 %v2978, %v3020
    %v3107 = vmax.f32 %v2979, %v3023
    %v3108 = vmax.f32 %v2980, %v3026
    %v3109 = vmax.f32 %v2981, %v3029
    %v3110 = vmax.f32 %v2982, %v3032
    %v3111 = vmax.f32 %v2983, %v3035
    %v3112 = vmax.f32 %v2984, %v3038
    %v3113 = vmax.f32 %v2985, %v3041
    %v3114 = vmax.f32 %v2986, %v3044
    %v3115 = vmax.f32 %v2987, %v3047
    %v3116 = vmax.f32 %v2988, %v3050
    %v3117 = vmax.f32 %v2989, %v3053
    %v3118 = vmax.f32 %v2990, %v3056
    %v3119 = vmax.f32 %v2991, %v3059
    %v3120 = vmax.f32 %v2992, %v3062
    %v3121 = vmax.f32 %v2993, %v3065
    %v3122 = vmax.f32 %v2994, %v3068
    %v3123 = vmax.f32 %v2995, %v3071
    %v3124 = vmax.f32 %v2996, %v3074
    %v3125 = vmax.f32 %v2997, %v3077
    %v3126 = vmax.f32 %v2998, %v3080
    %v3127 = vmax.f32 %v2999, %v3083
    %v3128 = vmax.f32 %v3000, %v3086
    %v3129 = vmax.f32 %v3001, %v3089
    %v3130 = vmax.f32 %v3002, %v3092
    %v3131 = vmax.f32 %v3003, %v3095
    %v3132 = vmax.f32 %v3004, %v3098
    %v3133 = vmax.f32 %v3005, %v3101
    %v3134 = vsub.f32 %v2974, %v3102
    %v3135 = vsub.f32 %v2975, %v3103
    %v3136 = vsub.f32 %v2976, %v3104
    %v3137 = vsub.f32 %v2977, %v3105
    %v3138 = vsub.f32 %v2978, %v3106
    %v3139 = vsub.f32 %v2979, %v3107
    %v3140 = vsub.f32 %v2980, %v3108
    %v3141 = vsub.f32 %v2981, %v3109
    %v3142 = vsub.f32 %v2982, %v3110
    %v3143 = vsub.f32 %v2983, %v3111
    %v3144 = vsub.f32 %v2984, %v3112
    %v3145 = vsub.f32 %v2985, %v3113
    %v3146 = vsub.f32 %v2986, %v3114
    %v3147 = vsub.f32 %v2987, %v3115
    %v3148 = vsub.f32 %v2988, %v3116
    %v3149 = vsub.f32 %v2989, %v3117
    %v3150 = vsub.f32 %v2990, %v3118
    %v3151 = vsub.f32 %v2991, %v3119
    %v3152 = vsub.f32 %v2992, %v3120
    %v3153 = vsub.f32 %v2993, %v3121
    %v3154 = vsub.f32 %v2994, %v3122
    %v3155 = vsub.f32 %v2995, %v3123
    %v3156 = vsub.f32 %v2996, %v3124
    %v3157 = vsub.f32 %v2997, %v3125
    %v3158 = vsub.f32 %v2998, %v3126
    %v3159 = vsub.f32 %v2999, %v3127
    %v3160 = vsub.f32 %v3000, %v3128
    %v3161 = vsub.f32 %v3001, %v3129
    %v3162 = vsub.f32 %v3002, %v3130
    %v3163 = vsub.f32 %v3003, %v3131
    %v3164 = vsub.f32 %v3004, %v3132
    %v3165 = vsub.f32 %v3005, %v3133
    %v3166 = vmul.f32 %v3134, 1.442695
    %v3167 = vpow.pop %v3166
    %v3168 = vmul.f32 %v3135, 1.442695
    %v3169 = vpow.pop %v3168
    %v3170 = vmul.f32 %v3136, 1.442695
    %v3171 = vpow.pop %v3170
    %v3172 = vmul.f32 %v3137, 1.442695
    %v3173 = vpow.pop %v3172
    %v3174 = vmul.f32 %v3138, 1.442695
    %v3175 = vpow.pop %v3174
    %v3176 = vmul.f32 %v3139, 1.442695
    %v3177 = vpow.pop %v3176
    %v3178 = vmul.f32 %v3140, 1.442695
    %v3179 = vpow.pop %v3178
    %v3180 = vmul.f32 %v3141, 1.442695
    %v3181 = vpow.pop %v3180
    %v3182 = vmul.f32 %v3142, 1.442695
    %v3183 = vpow.pop %v3182
    %v3184 = vmul.f32 %v3143, 1.442695
    %v3185 = vpow.pop %v3184
    %v3186 = vmul.f32 %v3144, 1.442695
    %v3187 = vpow.pop %v3186
    %v3188 = vmul.f32 %v3145, 1.442695
    %v3189 = vpow.pop %v3188
    %v3190 = vmul.f32 %v3146, 1.442695
    %v3191 = vpow.pop %v3190
    %v3192 = vmul.f32 %v3147, 1.442695
    %v3193 = vpow.pop %v3192
    %v3194 = vmul.f32 %v3148, 1.442695
    %v3195 = vpow.pop %v3194
    %v3196 = vmul.f32 %v3149, 1.442695
    %v3197 = vpow.pop %v3196
    %v3198 = vmul.f32 %v3150, 1.442695
    %v3199 = vpow.pop %v3198
    %v3200 = vmul.f32 %v3151, 1.442695
    %v3201 = vpow.pop %v3200
    %v3202 = vmul.f32 %v3152, 1.442695
    %v3203 = vpow.pop %v3202
    %v3204 = vmul.f32 %v3153, 1.442695
    %v3205 = vpow.pop %v3204
    %v3206 = vmul.f32 %v3154, 1.442695
    %v3207 = vpow.pop %v3206
    %v3208 = vmul.f32 %v3155, 1.442695
    %v3209 = vpow.pop %v3208
    %v3210 = vmul.f32 %v3156, 1.442695
    %v3211 = vpow.pop %v3210
    %v3212 = vmul.f32 %v3157, 1.442695
    %v3213 = vpow.pop %v3212
    %v3214 = vmul.f32 %v3158, 1.442695
    %v3215 = vpow.pop %v3214
    %v3216 = vmul.f32 %v3159, 1.442695
    %v3217 = vpow.pop %v3216
    %v3218 = vmul.f32 %v3160, 1.442695
    %v3219 = vpow.pop %v3218
    %v3220 = vmul.f32 %v3161, 1.442695
    %v3221 = vpow.pop %v3220
    %v3222 = vmul.f32 %v3162, 1.442695
    %v3223 = vpow.pop %v3222
    %v3224 = vmul.f32 %v3163, 1.442695
    %v3225 = vpow.pop %v3224
    %v3226 = vmul.f32 %v3164, 1.442695
    %v3227 = vpow.pop %v3226
    %v3228 = vmul.f32 %v3165, 1.442695
    %v3229 = vpow.pop %v3228
    %3231 = vset.pattern.permute.xlu0 0
    %3232 = vperm.xlu0 %3231, %v3102
    %v3233 = vpop.permute.xlu0 %3232
    %3236 = vset.pattern.permute.xlu0 0
    %3237 = vperm.xlu0 %3236, %v3103
    %v3238 = vpop.permute.xlu0 %3237
    %3241 = vset.pattern.permute.xlu0 0
    %3242 = vperm.xlu0 %3241, %v3104
    %v3243 = vpop.permute.xlu0 %3242
    %3246 = vset.pattern.permute.xlu0 0
    %3247 = vperm.xlu0 %3246, %v3105
    %v3248 = vpop.permute.xlu0 %3247
    %3251 = vset.pattern.permute.xlu0 0
    %3252 = vperm.xlu0 %3251, %v3106
    %v3253 = vpop.permute.xlu0 %3252
    %3256 = vset.pattern.permute.xlu0 0
    %3257 = vperm.xlu0 %3256, %v3107
    %v3258 = vpop.permute.xlu0 %3257
    %3261 = vset.pattern.permute.xlu0 0
    %3262 = vperm.xlu0 %3261, %v3108
    %v3263 = vpop.permute.xlu0 %3262
    %3266 = vset.pattern.permute.xlu0 0
    %3267 = vperm.xlu0 %3266, %v3109
    %v3268 = vpop.permute.xlu0 %3267
    %3271 = vset.pattern.permute.xlu0 0
    %3272 = vperm.xlu0 %3271, %v3110
    %v3273 = vpop.permute.xlu0 %3272
    %3276 = vset.pattern.permute.xlu0 0
    %3277 = vperm.xlu0 %3276, %v3111
    %v3278 = vpop.permute.xlu0 %3277
    %3281 = vset.pattern.permute.xlu0 0
    %3282 = vperm.xlu0 %3281, %v3112
    %v3283 = vpop.permute.xlu0 %3282
    %3286 = vset.pattern.permute.xlu0 0
    %3287 = vperm.xlu0 %3286, %v3113
    %v3288 = vpop.permute.xlu0 %3287
    %3291 = vset.pattern.permute.xlu0 0
    %3292 = vperm.xlu0 %3291, %v3114
    %v3293 = vpop.permute.xlu0 %3292
    %3296 = vset.pattern.permute.xlu0 0
    %3297 = vperm.xlu0 %3296, %v3115
    %v3298 = vpop.permute.xlu0 %3297
    %3301 = vset.pattern.permute.xlu0 0
    %3302 = vperm.xlu0 %3301, %v3116
    %v3303 = vpop.permute.xlu0 %3302
    %3306 = vset.pattern.permute.xlu0 0
    %3307 = vperm.xlu0 %3306, %v3117
    %v3308 = vpop.permute.xlu0 %3307
    %3311 = vset.pattern.permute.xlu0 0
    %3312 = vperm.xlu0 %3311, %v3118
    %v3313 = vpop.permute.xlu0 %3312
    %3316 = vset.pattern.permute.xlu0 0
    %3317 = vperm.xlu0 %3316, %v3119
    %v3318 = vpop.permute.xlu0 %3317
    %3321 = vset.pattern.permute.xlu0 0
    %3322 = vperm.xlu0 %3321, %v3120
    %v3323 = vpop.permute.xlu0 %3322
    %3326 = vset.pattern.permute.xlu0 0
    %3327 = vperm.xlu0 %3326, %v3121
    %v3328 = vpop.permute.xlu0 %3327
    %3331 = vset.pattern.permute.xlu0 0
    %3332 = vperm.xlu0 %3331, %v3122
    %v3333 = vpop.permute.xlu0 %3332
    %3336 = vset.pattern.permute.xlu0 0
    %3337 = vperm.xlu0 %3336, %v3123
    %v3338 = vpop.permute.xlu0 %3337
    %3341 = vset.pattern.permute.xlu0 0
    %3342 = vperm.xlu0 %3341, %v3124
    %v3343 = vpop.permute.xlu0 %3342
    %3346 = vset.pattern.permute.xlu0 0
    %3347 = vperm.xlu0 %3346, %v3125
    %v3348 = vpop.permute.xlu0 %3347
    %3351 = vset.pattern.permute.xlu0 0
    %3352 = vperm.xlu0 %3351, %v3126
    %v3353 = vpop.permute.xlu0 %3352
    %3356 = vset.pattern.permute.xlu0 0
    %3357 = vperm.xlu0 %3356, %v3127
    %v3358 = vpop.permute.xlu0 %3357
    %3361 = vset.pattern.permute.xlu0 0
    %3362 = vperm.xlu0 %3361, %v3128
    %v3363 = vpop.permute.xlu0 %3362
    %3366 = vset.pattern.permute.xlu0 0
    %3367 = vperm.xlu0 %3366, %v3129
    %v3368 = vpop.permute.xlu0 %3367
    %3371 = vset.pattern.permute.xlu0 0
    %3372 = vperm.xlu0 %3371, %v3130
    %v3373 = vpop.permute.xlu0 %3372
    %3376 = vset.pattern.permute.xlu0 0
    %3377 = vperm.xlu0 %3376, %v3131
    %v3378 = vpop.permute.xlu0 %3377
    %3381 = vset.pattern.permute.xlu0 0
    %3382 = vperm.xlu0 %3381, %v3132
    %v3383 = vpop.permute.xlu0 %3382
    %3386 = vset.pattern.permute.xlu0 0
    %3387 = vperm.xlu0 %3386, %v3133
    %v3388 = vpop.permute.xlu0 %3387
    %v3390 = vsub.f32 %v2909, %v3233
    %v3391 = vsub.f32 %v2910, %v3233
    %v3392 = vsub.f32 %v2911, %v3238
    %v3393 = vsub.f32 %v2912, %v3238
    %v3394 = vsub.f32 %v2913, %v3243
    %v3395 = vsub.f32 %v2914, %v3243
    %v3396 = vsub.f32 %v2915, %v3248
    %v3397 = vsub.f32 %v2916, %v3248
    %v3398 = vsub.f32 %v2917, %v3253
    %v3399 = vsub.f32 %v2918, %v3253
    %v3400 = vsub.f32 %v2919, %v3258
    %v3401 = vsub.f32 %v2920, %v3258
    %v3402 = vsub.f32 %v2921, %v3263
    %v3403 = vsub.f32 %v2922, %v3263
    %v3404 = vsub.f32 %v2923, %v3268
    %v3405 = vsub.f32 %v2924, %v3268
    %v3406 = vsub.f32 %v2925, %v3273
    %v3407 = vsub.f32 %v2926, %v3273
    %v3408 = vsub.f32 %v2927, %v3278
    %v3409 = vsub.f32 %v2928, %v3278
    %v3410 = vsub.f32 %v2929, %v3283
    %v3411 = vsub.f32 %v2930, %v3283
    %v3412 = vsub.f32 %v2931, %v3288
    %v3413 = vsub.f32 %v2932, %v3288
    %v3414 = vsub.f32 %v2933, %v3293
    %v3415 = vsub.f32 %v2934, %v3293
    %v3416 = vsub.f32 %v2935, %v3298
    %v3417 = vsub.f32 %v2936, %v3298
    %v3418 = vsub.f32 %v2937, %v3303
    %v3419 = vsub.f32 %v2938, %v3303
    %v3420 = vsub.f32 %v2939, %v3308
    %v3421 = vsub.f32 %v2940, %v3308
    %v3422 = vsub.f32 %v2941, %v3313
    %v3423 = vsub.f32 %v2942, %v3313
    %v3424 = vsub.f32 %v2943, %v3318
    %v3425 = vsub.f32 %v2944, %v3318
    %v3426 = vsub.f32 %v2945, %v3323
    %v3427 = vsub.f32 %v2946, %v3323
    %v3428 = vsub.f32 %v2947, %v3328
    %v3429 = vsub.f32 %v2948, %v3328
    %v3430 = vsub.f32 %v2949, %v3333
    %v3431 = vsub.f32 %v2950, %v3333
    %v3432 = vsub.f32 %v2951, %v3338
    %v3433 = vsub.f32 %v2952, %v3338
    %v3434 = vsub.f32 %v2953, %v3343
    %v3435 = vsub.f32 %v2954, %v3343
    %v3436 = vsub.f32 %v2955, %v3348
    %v3437 = vsub.f32 %v2956, %v3348
    %v3438 = vsub.f32 %v2957, %v3353
    %v3439 = vsub.f32 %v2958, %v3353
    %v3440 = vsub.f32 %v2959, %v3358
    %v3441 = vsub.f32 %v2960, %v3358
    %v3442 = vsub.f32 %v2961, %v3363
    %v3443 = vsub.f32 %v2962, %v3363
    %v3444 = vsub.f32 %v2963, %v3368
    %v3445 = vsub.f32 %v2964, %v3368
    %v3446 = vsub.f32 %v2965, %v3373
    %v3447 = vsub.f32 %v2966, %v3373
    %v3448 = vsub.f32 %v2967, %v3378
    %v3449 = vsub.f32 %v2968, %v3378
    %v3450 = vsub.f32 %v2969, %v3383
    %v3451 = vsub.f32 %v2970, %v3383
    %v3452 = vsub.f32 %v2971, %v3388
    %v3453 = vsub.f32 %v2972, %v3388
    %v3454 = vmul.f32 %v3390, 1.442695
    %v3455 = vpow.pop %v3454
    %v3456 = vmul.f32 %v3391, 1.442695
    %v3457 = vpow.pop %v3456
    %v3458 = vmul.f32 %v3392, 1.442695
    %v3459 = vpow.pop %v3458
    %v3460 = vmul.f32 %v3393, 1.442695
    %v3461 = vpow.pop %v3460
    %v3462 = vmul.f32 %v3394, 1.442695
    %v3463 = vpow.pop %v3462
    %v3464 = vmul.f32 %v3395, 1.442695
    %v3465 = vpow.pop %v3464
    %v3466 = vmul.f32 %v3396, 1.442695
    %v3467 = vpow.pop %v3466
    %v3468 = vmul.f32 %v3397, 1.442695
    %v3469 = vpow.pop %v3468
    %v3470 = vmul.f32 %v3398, 1.442695
    %v3471 = vpow.pop %v3470
    %v3472 = vmul.f32 %v3399, 1.442695
    %v3473 = vpow.pop %v3472
    %v3474 = vmul.f32 %v3400, 1.442695
    %v3475 = vpow.pop %v3474
    %v3476 = vmul.f32 %v3401, 1.442695
    %v3477 = vpow.pop %v3476
    %v3478 = vmul.f32 %v3402, 1.442695
    %v3479 = vpow.pop %v3478
    %v3480 = vmul.f32 %v3403, 1.442695
    %v3481 = vpow.pop %v3480
    %v3482 = vmul.f32 %v3404, 1.442695
    %v3483 = vpow.pop %v3482
    %v3484 = vmul.f32 %v3405, 1.442695
    %v3485 = vpow.pop %v3484
    %v3486 = vmul.f32 %v3406, 1.442695
    %v3487 = vpow.pop %v3486
    %v3488 = vmul.f32 %v3407, 1.442695
    %v3489 = vpow.pop %v3488
    %v3490 = vmul.f32 %v3408, 1.442695
    %v3491 = vpow.pop %v3490
    %v3492 = vmul.f32 %v3409, 1.442695
    %v3493 = vpow.pop %v3492
    %v3494 = vmul.f32 %v3410, 1.442695
    %v3495 = vpow.pop %v3494
    %v3496 = vmul.f32 %v3411, 1.442695
    %v3497 = vpow.pop %v3496
    %v3498 = vmul.f32 %v3412, 1.442695
    %v3499 = vpow.pop %v3498
    %v3500 = vmul.f32 %v3413, 1.442695
    %v3501 = vpow.pop %v3500
    %v3502 = vmul.f32 %v3414, 1.442695
    %v3503 = vpow.pop %v3502
    %v3504 = vmul.f32 %v3415, 1.442695
    %v3505 = vpow.pop %v3504
    %v3506 = vmul.f32 %v3416, 1.442695
    %v3507 = vpow.pop %v3506
    %v3508 = vmul.f32 %v3417, 1.442695
    %v3509 = vpow.pop %v3508
    %v3510 = vmul.f32 %v3418, 1.442695
    %v3511 = vpow.pop %v3510
    %v3512 = vmul.f32 %v3419, 1.442695
    %v3513 = vpow.pop %v3512
    %v3514 = vmul.f32 %v3420, 1.442695
    %v3515 = vpow.pop %v3514
    %v3516 = vmul.f32 %v3421, 1.442695
    %v3517 = vpow.pop %v3516
    %v3518 = vmul.f32 %v3422, 1.442695
    %v3519 = vpow.pop %v3518
    %v3520 = vmul.f32 %v3423, 1.442695
    %v3521 = vpow.pop %v3520
    %v3522 = vmul.f32 %v3424, 1.442695
    %v3523 = vpow.pop %v3522
    %v3524 = vmul.f32 %v3425, 1.442695
    %v3525 = vpow.pop %v3524
    %v3526 = vmul.f32 %v3426, 1.442695
    %v3527 = vpow.pop %v3526
    %v3528 = vmul.f32 %v3427, 1.442695
    %v3529 = vpow.pop %v3528
    %v3530 = vmul.f32 %v3428, 1.442695
    %v3531 = vpow.pop %v3530
    %v3532 = vmul.f32 %v3429, 1.442695
    %v3533 = vpow.pop %v3532
    %v3534 = vmul.f32 %v3430, 1.442695
    %v3535 = vpow.pop %v3534
    %v3536 = vmul.f32 %v3431, 1.442695
    %v3537 = vpow.pop %v3536
    %v3538 = vmul.f32 %v3432, 1.442695
    %v3539 = vpow.pop %v3538
    %v3540 = vmul.f32 %v3433, 1.442695
    %v3541 = vpow.pop %v3540
    %v3542 = vmul.f32 %v3434, 1.442695
    %v3543 = vpow.pop %v3542
    %v3544 = vmul.f32 %v3435, 1.442695
    %v3545 = vpow.pop %v3544
    %v3546 = vmul.f32 %v3436, 1.442695
    %v3547 = vpow.pop %v3546
    %v3548 = vmul.f32 %v3437, 1.442695
    %v3549 = vpow.pop %v3548
    %v3550 = vmul.f32 %v3438, 1.442695
    %v3551 = vpow.pop %v3550
    %v3552 = vmul.f32 %v3439, 1.442695
    %v3553 = vpow.pop %v3552
    %v3554 = vmul.f32 %v3440, 1.442695
    %v3555 = vpow.pop %v3554
    %v3556 = vmul.f32 %v3441, 1.442695
    %v3557 = vpow.pop %v3556
    %v3558 = vmul.f32 %v3442, 1.442695
    %v3559 = vpow.pop %v3558
    %v3560 = vmul.f32 %v3443, 1.442695
    %v3561 = vpow.pop %v3560
    %v3562 = vmul.f32 %v3444, 1.442695
    %v3563 = vpow.pop %v3562
    %v3564 = vmul.f32 %v3445, 1.442695
    %v3565 = vpow.pop %v3564
    %v3566 = vmul.f32 %v3446, 1.442695
    %v3567 = vpow.pop %v3566
    %v3568 = vmul.f32 %v3447, 1.442695
    %v3569 = vpow.pop %v3568
    %v3570 = vmul.f32 %v3448, 1.442695
    %v3571 = vpow.pop %v3570
    %v3572 = vmul.f32 %v3449, 1.442695
    %v3573 = vpow.pop %v3572
    %v3574 = vmul.f32 %v3450, 1.442695
    %v3575 = vpow.pop %v3574
    %v3576 = vmul.f32 %v3451, 1.442695
    %v3577 = vpow.pop %v3576
    %v3578 = vmul.f32 %v3452, 1.442695
    %v3579 = vpow.pop %v3578
    %v3580 = vmul.f32 %v3453, 1.442695
    %v3581 = vpow.pop %v3580
    %v3582 = vsel %vm472, %v3455, 0.0
    %v3583 = vsel %vm473, %v3457, 0.0
    %v3584 = vsel %vm474, %v3459, 0.0
    %v3585 = vsel %vm475, %v3461, 0.0
    %v3586 = vsel %vm476, %v3463, 0.0
    %v3587 = vsel %vm477, %v3465, 0.0
    %v3588 = vsel %vm478, %v3467, 0.0
    %v3589 = vsel %vm479, %v3469, 0.0
    %v3590 = vsel %vm480, %v3471, 0.0
    %v3591 = vsel %vm481, %v3473, 0.0
    %v3592 = vsel %vm482, %v3475, 0.0
    %v3593 = vsel %vm483, %v3477, 0.0
    %v3594 = vsel %vm484, %v3479, 0.0
    %v3595 = vsel %vm485, %v3481, 0.0
    %v3596 = vsel %vm486, %v3483, 0.0
    %v3597 = vsel %vm487, %v3485, 0.0
    %v3598 = vsel %vm488, %v3487, 0.0
    %v3599 = vsel %vm489, %v3489, 0.0
    %v3600 = vsel %vm490, %v3491, 0.0
    %v3601 = vsel %vm491, %v3493, 0.0
    %v3602 = vsel %vm492, %v3495, 0.0
    %v3603 = vsel %vm493, %v3497, 0.0
    %v3604 = vsel %vm494, %v3499, 0.0
    %v3605 = vsel %vm495, %v3501, 0.0
    %v3606 = vsel %vm496, %v3503, 0.0
    %v3607 = vsel %vm497, %v3505, 0.0
    %v3608 = vsel %vm498, %v3507, 0.0
    %v3609 = vsel %vm499, %v3509, 0.0
    %v3610 = vsel %vm500, %v3511, 0.0
    %v3611 = vsel %vm501, %v3513, 0.0
    %v3612 = vsel %vm502, %v3515, 0.0
    %v3613 = vsel %vm503, %v3517, 0.0
    %v3614 = vsel %vm504, %v3519, 0.0
    %v3615 = vsel %vm505, %v3521, 0.0
    %v3616 = vsel %vm506, %v3523, 0.0
    %v3617 = vsel %vm507, %v3525, 0.0
    %v3618 = vsel %vm508, %v3527, 0.0
    %v3619 = vsel %vm509, %v3529, 0.0
    %v3620 = vsel %vm510, %v3531, 0.0
    %v3621 = vsel %vm511, %v3533, 0.0
    %v3622 = vsel %vm512, %v3535, 0.0
    %v3623 = vsel %vm513, %v3537, 0.0
    %v3624 = vsel %vm514, %v3539, 0.0
    %v3625 = vsel %vm515, %v3541, 0.0
    %v3626 = vsel %vm516, %v3543, 0.0
    %v3627 = vsel %vm517, %v3545, 0.0
    %v3628 = vsel %vm518, %v3547, 0.0
    %v3629 = vsel %vm519, %v3549, 0.0
    %v3630 = vsel %vm520, %v3551, 0.0
    %v3631 = vsel %vm521, %v3553, 0.0
    %v3632 = vsel %vm522, %v3555, 0.0
    %v3633 = vsel %vm523, %v3557, 0.0
    %v3634 = vsel %vm524, %v3559, 0.0
    %v3635 = vsel %vm525, %v3561, 0.0
    %v3636 = vsel %vm526, %v3563, 0.0
    %v3637 = vsel %vm527, %v3565, 0.0
    %v3638 = vsel %vm528, %v3567, 0.0
    %v3639 = vsel %vm529, %v3569, 0.0
    %v3640 = vsel %vm530, %v3571, 0.0
    %v3641 = vsel %vm531, %v3573, 0.0
    %v3642 = vsel %vm532, %v3575, 0.0
    %v3643 = vsel %vm533, %v3577, 0.0
    %v3644 = vsel %vm534, %v3579, 0.0
    %v3645 = vsel %vm535, %v3581, 0.0
    %s3646 = scalar_lea.vmem [#allocation3], 256
    %v3647 = vld [vmem:[%s3646] sm:$0xff]
    %v3648 = vld [vmem:[%s3646 + $0x8] sm:$0xff]
    %v3649 = vld [vmem:[%s3646 + $0x10] sm:$0xff]
    %v3650 = vld [vmem:[%s3646 + $0x18] sm:$0xff]
    %v3651 = vld [vmem:[%s3646 + $0x20] sm:$0xff]
    %v3652 = vld [vmem:[%s3646 + $0x28] sm:$0xff]
    %v3653 = vld [vmem:[%s3646 + $0x30] sm:$0xff]
    %v3654 = vld [vmem:[%s3646 + $0x38] sm:$0xff]
    %v3655 = vld [vmem:[%s3646 + $0x40] sm:$0xff]
    %v3656 = vld [vmem:[%s3646 + $0x48] sm:$0xff]
    %v3657 = vld [vmem:[%s3646 + $0x50] sm:$0xff]
    %v3658 = vld [vmem:[%s3646 + $0x58] sm:$0xff]
    %v3659 = vld [vmem:[%s3646 + $0x60] sm:$0xff]
    %v3660 = vld [vmem:[%s3646 + $0x68] sm:$0xff]
    %v3661 = vld [vmem:[%s3646 + $0x70] sm:$0xff]
    %v3662 = vld [vmem:[%s3646 + $0x78] sm:$0xff]
    %v3663 = vld [vmem:[%s3646 + $0x80] sm:$0xff]
    %v3664 = vld [vmem:[%s3646 + $0x88] sm:$0xff]
    %v3665 = vld [vmem:[%s3646 + $0x90] sm:$0xff]
    %v3666 = vld [vmem:[%s3646 + $0x98] sm:$0xff]
    %v3667 = vld [vmem:[%s3646 + $0xa0] sm:$0xff]
    %v3668 = vld [vmem:[%s3646 + $0xa8] sm:$0xff]
    %v3669 = vld [vmem:[%s3646 + $0xb0] sm:$0xff]
    %v3670 = vld [vmem:[%s3646 + $0xb8] sm:$0xff]
    %v3671 = vld [vmem:[%s3646 + $0xc0] sm:$0xff]
    %v3672 = vld [vmem:[%s3646 + $0xc8] sm:$0xff]
    %v3673 = vld [vmem:[%s3646 + $0xd0] sm:$0xff]
    %v3674 = vld [vmem:[%s3646 + $0xd8] sm:$0xff]
    %v3675 = vld [vmem:[%s3646 + $0xe0] sm:$0xff]
    %v3676 = vld [vmem:[%s3646 + $0xe8] sm:$0xff]
    %v3677 = vld [vmem:[%s3646 + $0xf0] sm:$0xff]
    %v3678 = vld [vmem:[%s3646 + $0xf8] sm:$0xff]
    %v3679 = vmul.f32 %v3167, %v3647
    %v3680 = vmul.f32 %v3169, %v3648
    %v3681 = vmul.f32 %v3171, %v3649
    %v3682 = vmul.f32 %v3173, %v3650
    %v3683 = vmul.f32 %v3175, %v3651
    %v3684 = vmul.f32 %v3177, %v3652
    %v3685 = vmul.f32 %v3179, %v3653
    %v3686 = vmul.f32 %v3181, %v3654
    %v3687 = vmul.f32 %v3183, %v3655
    %v3688 = vmul.f32 %v3185, %v3656
    %v3689 = vmul.f32 %v3187, %v3657
    %v3690 = vmul.f32 %v3189, %v3658
    %v3691 = vmul.f32 %v3191, %v3659
    %v3692 = vmul.f32 %v3193, %v3660
    %v3693 = vmul.f32 %v3195, %v3661
    %v3694 = vmul.f32 %v3197, %v3662
    %v3695 = vmul.f32 %v3199, %v3663
    %v3696 = vmul.f32 %v3201, %v3664
    %v3697 = vmul.f32 %v3203, %v3665
    %v3698 = vmul.f32 %v3205, %v3666
    %v3699 = vmul.f32 %v3207, %v3667
    %v3700 = vmul.f32 %v3209, %v3668
    %v3701 = vmul.f32 %v3211, %v3669
    %v3702 = vmul.f32 %v3213, %v3670
    %v3703 = vmul.f32 %v3215, %v3671
    %v3704 = vmul.f32 %v3217, %v3672
    %v3705 = vmul.f32 %v3219, %v3673
    %v3706 = vmul.f32 %v3221, %v3674
    %v3707 = vmul.f32 %v3223, %v3675
    %v3708 = vmul.f32 %v3225, %v3676
    %v3709 = vmul.f32 %v3227, %v3677
    %v3710 = vmul.f32 %v3229, %v3678
    %v3711 = vadd.f32 %v3582, %v3583
    %3712 = vadd.xlane.f32.xlu0 %v3711
    %v3713 = vpop.xlane.xlu0 %3712
    %v3714 = vadd.f32 %v3584, %v3585
    %3715 = vadd.xlane.f32.xlu0 %v3714
    %v3716 = vpop.xlane.xlu0 %3715
    %v3717 = vadd.f32 %v3586, %v3587
    %3718 = vadd.xlane.f32.xlu0 %v3717
    %v3719 = vpop.xlane.xlu0 %3718
    %v3720 = vadd.f32 %v3588, %v3589
    %3721 = vadd.xlane.f32.xlu0 %v3720
    %v3722 = vpop.xlane.xlu0 %3721
    %v3723 = vadd.f32 %v3590, %v3591
    %3724 = vadd.xlane.f32.xlu0 %v3723
    %v3725 = vpop.xlane.xlu0 %3724
    %v3726 = vadd.f32 %v3592, %v3593
    %3727 = vadd.xlane.f32.xlu0 %v3726
    %v3728 = vpop.xlane.xlu0 %3727
    %v3729 = vadd.f32 %v3594, %v3595
    %3730 = vadd.xlane.f32.xlu0 %v3729
    %v3731 = vpop.xlane.xlu0 %3730
    %v3732 = vadd.f32 %v3596, %v3597
    %3733 = vadd.xlane.f32.xlu0 %v3732
    %v3734 = vpop.xlane.xlu0 %3733
    %v3735 = vadd.f32 %v3598, %v3599
    %3736 = vadd.xlane.f32.xlu0 %v3735
    %v3737 = vpop.xlane.xlu0 %3736
    %v3738 = vadd.f32 %v3600, %v3601
    %3739 = vadd.xlane.f32.xlu0 %v3738
    %v3740 = vpop.xlane.xlu0 %3739
    %v3741 = vadd.f32 %v3602, %v3603
    %3742 = vadd.xlane.f32.xlu0 %v3741
    %v3743 = vpop.xlane.xlu0 %3742
    %v3744 = vadd.f32 %v3604, %v3605
    %3745 = vadd.xlane.f32.xlu0 %v3744
    %v3746 = vpop.xlane.xlu0 %3745
    %v3747 = vadd.f32 %v3606, %v3607
    %3748 = vadd.xlane.f32.xlu0 %v3747
    %v3749 = vpop.xlane.xlu0 %3748
    %v3750 = vadd.f32 %v3608, %v3609
    %3751 = vadd.xlane.f32.xlu0 %v3750
    %v3752 = vpop.xlane.xlu0 %3751
    %v3753 = vadd.f32 %v3610, %v3611
    %3754 = vadd.xlane.f32.xlu0 %v3753
    %v3755 = vpop.xlane.xlu0 %3754
    %v3756 = vadd.f32 %v3612, %v3613
    %3757 = vadd.xlane.f32.xlu0 %v3756
    %v3758 = vpop.xlane.xlu0 %3757
    %v3759 = vadd.f32 %v3614, %v3615
    %3760 = vadd.xlane.f32.xlu0 %v3759
    %v3761 = vpop.xlane.xlu0 %3760
    %v3762 = vadd.f32 %v3616, %v3617
    %3763 = vadd.xlane.f32.xlu0 %v3762
    %v3764 = vpop.xlane.xlu0 %3763
    %v3765 = vadd.f32 %v3618, %v3619
    %3766 = vadd.xlane.f32.xlu0 %v3765
    %v3767 = vpop.xlane.xlu0 %3766
    %v3768 = vadd.f32 %v3620, %v3621
    %3769 = vadd.xlane.f32.xlu0 %v3768
    %v3770 = vpop.xlane.xlu0 %3769
    %v3771 = vadd.f32 %v3622, %v3623
    %3772 = vadd.xlane.f32.xlu0 %v3771
    %v3773 = vpop.xlane.xlu0 %3772
    %v3774 = vadd.f32 %v3624, %v3625
    %3775 = vadd.xlane.f32.xlu0 %v3774
    %v3776 = vpop.xlane.xlu0 %3775
    %v3777 = vadd.f32 %v3626, %v3627
    %3778 = vadd.xlane.f32.xlu0 %v3777
    %v3779 = vpop.xlane.xlu0 %3778
    %v3780 = vadd.f32 %v3628, %v3629
    %3781 = vadd.xlane.f32.xlu0 %v3780
    %v3782 = vpop.xlane.xlu0 %3781
    %v3783 = vadd.f32 %v3630, %v3631
    %3784 = vadd.xlane.f32.xlu0 %v3783
    %v3785 = vpop.xlane.xlu0 %3784
    %v3786 = vadd.f32 %v3632, %v3633
    %3787 = vadd.xlane.f32.xlu0 %v3786
    %v3788 = vpop.xlane.xlu0 %3787
    %v3789 = vadd.f32 %v3634, %v3635
    %3790 = vadd.xlane.f32.xlu0 %v3789
    %v3791 = vpop.xlane.xlu0 %3790
    %v3792 = vadd.f32 %v3636, %v3637
    %3793 = vadd.xlane.f32.xlu0 %v3792
    %v3794 = vpop.xlane.xlu0 %3793
    %v3795 = vadd.f32 %v3638, %v3639
    %3796 = vadd.xlane.f32.xlu0 %v3795
    %v3797 = vpop.xlane.xlu0 %3796
    %v3798 = vadd.f32 %v3640, %v3641
    %3799 = vadd.xlane.f32.xlu0 %v3798
    %v3800 = vpop.xlane.xlu0 %3799
    %v3801 = vadd.f32 %v3642, %v3643
    %3802 = vadd.xlane.f32.xlu0 %v3801
    %v3803 = vpop.xlane.xlu0 %3802
    %v3804 = vadd.f32 %v3644, %v3645
    %3805 = vadd.xlane.f32.xlu0 %v3804
    %v3806 = vpop.xlane.xlu0 %3805
    %v3807 = vadd.f32 %v3679, %v3713
    %v3808 = vadd.f32 %v3680, %v3716
    %v3809 = vadd.f32 %v3681, %v3719
    %v3810 = vadd.f32 %v3682, %v3722
    %v3811 = vadd.f32 %v3683, %v3725
    %v3812 = vadd.f32 %v3684, %v3728
    %v3813 = vadd.f32 %v3685, %v3731
    %v3814 = vadd.f32 %v3686, %v3734
    %v3815 = vadd.f32 %v3687, %v3737
    %v3816 = vadd.f32 %v3688, %v3740
    %v3817 = vadd.f32 %v3689, %v3743
    %v3818 = vadd.f32 %v3690, %v3746
    %v3819 = vadd.f32 %v3691, %v3749
    %v3820 = vadd.f32 %v3692, %v3752
    %v3821 = vadd.f32 %v3693, %v3755
    %v3822 = vadd.f32 %v3694, %v3758
    %v3823 = vadd.f32 %v3695, %v3761
    %v3824 = vadd.f32 %v3696, %v3764
    %v3825 = vadd.f32 %v3697, %v3767
    %v3826 = vadd.f32 %v3698, %v3770
    %v3827 = vadd.f32 %v3699, %v3773
    %v3828 = vadd.f32 %v3700, %v3776
    %v3829 = vadd.f32 %v3701, %v3779
    %v3830 = vadd.f32 %v3702, %v3782
    %v3831 = vadd.f32 %v3703, %v3785
    %v3832 = vadd.f32 %v3704, %v3788
    %v3833 = vadd.f32 %v3705, %v3791
    %v3834 = vadd.f32 %v3706, %v3794
    %v3835 = vadd.f32 %v3707, %v3797
    %v3836 = vadd.f32 %v3708, %v3800
    %v3837 = vadd.f32 %v3709, %v3803
    %v3838 = vadd.f32 %v3710, %v3806
    %3839 = vst.msk [vmem:[%s3646] sm:$0xff] %vm1914, %v3807
    %3840 = vst.msk [vmem:[%s3646 + $0x8] sm:$0xff] %vm1914, %v3808
    %3841 = vst.msk [vmem:[%s3646 + $0x10] sm:$0xff] %vm1914, %v3809
    %3842 = vst.msk [vmem:[%s3646 + $0x18] sm:$0xff] %vm1914, %v3810
    %3843 = vst.msk [vmem:[%s3646 + $0x20] sm:$0xff] %vm1914, %v3811
    %3844 = vst.msk [vmem:[%s3646 + $0x28] sm:$0xff] %vm1914, %v3812
    %3845 = vst.msk [vmem:[%s3646 + $0x30] sm:$0xff] %vm1914, %v3813
    %3846 = vst.msk [vmem:[%s3646 + $0x38] sm:$0xff] %vm1914, %v3814
    %3847 = vst.msk [vmem:[%s3646 + $0x40] sm:$0xff] %vm1914, %v3815
    %3848 = vst.msk [vmem:[%s3646 + $0x48] sm:$0xff] %vm1914, %v3816
    %3849 = vst.msk [vmem:[%s3646 + $0x50] sm:$0xff] %vm1914, %v3817
    %3850 = vst.msk [vmem:[%s3646 + $0x58] sm:$0xff] %vm1914, %v3818
    %3851 = vst.msk [vmem:[%s3646 + $0x60] sm:$0xff] %vm1914, %v3819
    %3852 = vst.msk [vmem:[%s3646 + $0x68] sm:$0xff] %vm1914, %v3820
    %3853 = vst.msk [vmem:[%s3646 + $0x70] sm:$0xff] %vm1914, %v3821
    %3854 = vst.msk [vmem:[%s3646 + $0x78] sm:$0xff] %vm1914, %v3822
    %3855 = vst.msk [vmem:[%s3646 + $0x80] sm:$0xff] %vm1914, %v3823
    %3856 = vst.msk [vmem:[%s3646 + $0x88] sm:$0xff] %vm1914, %v3824
    %3857 = vst.msk [vmem:[%s3646 + $0x90] sm:$0xff] %vm1914, %v3825
    %3858 = vst.msk [vmem:[%s3646 + $0x98] sm:$0xff] %vm1914, %v3826
    %3859 = vst.msk [vmem:[%s3646 + $0xa0] sm:$0xff] %vm1914, %v3827
    %3860 = vst.msk [vmem:[%s3646 + $0xa8] sm:$0xff] %vm1914, %v3828
    %3861 = vst.msk [vmem:[%s3646 + $0xb0] sm:$0xff] %vm1914, %v3829
    %3862 = vst.msk [vmem:[%s3646 + $0xb8] sm:$0xff] %vm1914, %v3830
    %3863 = vst.msk [vmem:[%s3646 + $0xc0] sm:$0xff] %vm1914, %v3831
    %3864 = vst.msk [vmem:[%s3646 + $0xc8] sm:$0xff] %vm1914, %v3832
    %3865 = vst.msk [vmem:[%s3646 + $0xd0] sm:$0xff] %vm1914, %v3833
    %3866 = vst.msk [vmem:[%s3646 + $0xd8] sm:$0xff] %vm1914, %v3834
    %3867 = vst.msk [vmem:[%s3646 + $0xe0] sm:$0xff] %vm1914, %v3835
    %3868 = vst.msk [vmem:[%s3646 + $0xe8] sm:$0xff] %vm1914, %v3836
    %3869 = vst.msk [vmem:[%s3646 + $0xf0] sm:$0xff] %vm1914, %v3837
    %3870 = vst.msk [vmem:[%s3646 + $0xf8] sm:$0xff] %vm1914, %v3838
    %s3871 = scalar_lea.vmem [#allocation4], 256
    %v3872 = vld [vmem:[%s3871] sm:$0xff]
    %v3873 = vld [vmem:[%s3871 + $0x8] sm:$0xff]
    %v3874 = vld [vmem:[%s3871 + $0x10] sm:$0xff]
    %v3875 = vld [vmem:[%s3871 + $0x18] sm:$0xff]
    %v3876 = vld [vmem:[%s3871 + $0x20] sm:$0xff]
    %v3877 = vld [vmem:[%s3871 + $0x28] sm:$0xff]
    %v3878 = vld [vmem:[%s3871 + $0x30] sm:$0xff]
    %v3879 = vld [vmem:[%s3871 + $0x38] sm:$0xff]
    %v3880 = vld [vmem:[%s3871 + $0x40] sm:$0xff]
    %v3881 = vld [vmem:[%s3871 + $0x48] sm:$0xff]
    %v3882 = vld [vmem:[%s3871 + $0x50] sm:$0xff]
    %v3883 = vld [vmem:[%s3871 + $0x58] sm:$0xff]
    %v3884 = vld [vmem:[%s3871 + $0x60] sm:$0xff]
    %v3885 = vld [vmem:[%s3871 + $0x68] sm:$0xff]
    %v3886 = vld [vmem:[%s3871 + $0x70] sm:$0xff]
    %v3887 = vld [vmem:[%s3871 + $0x78] sm:$0xff]
    %v3888 = vld [vmem:[%s3871 + $0x80] sm:$0xff]
    %v3889 = vld [vmem:[%s3871 + $0x88] sm:$0xff]
    %v3890 = vld [vmem:[%s3871 + $0x90] sm:$0xff]
    %v3891 = vld [vmem:[%s3871 + $0x98] sm:$0xff]
    %v3892 = vld [vmem:[%s3871 + $0xa0] sm:$0xff]
    %v3893 = vld [vmem:[%s3871 + $0xa8] sm:$0xff]
    %v3894 = vld [vmem:[%s3871 + $0xb0] sm:$0xff]
    %v3895 = vld [vmem:[%s3871 + $0xb8] sm:$0xff]
    %v3896 = vld [vmem:[%s3871 + $0xc0] sm:$0xff]
    %v3897 = vld [vmem:[%s3871 + $0xc8] sm:$0xff]
    %v3898 = vld [vmem:[%s3871 + $0xd0] sm:$0xff]
    %v3899 = vld [vmem:[%s3871 + $0xd8] sm:$0xff]
    %v3900 = vld [vmem:[%s3871 + $0xe0] sm:$0xff]
    %v3901 = vld [vmem:[%s3871 + $0xe8] sm:$0xff]
    %v3902 = vld [vmem:[%s3871 + $0xf0] sm:$0xff]
    %v3903 = vld [vmem:[%s3871 + $0xf8] sm:$0xff]
    %3905 = vset.pattern.permute.xlu0 0
    %3906 = vperm.xlu0 %3905, %v3167
    %v3907 = vpop.permute.xlu0 %3906
    %3910 = vset.pattern.permute.xlu0 0
    %3911 = vperm.xlu0 %3910, %v3169
    %v3912 = vpop.permute.xlu0 %3911
    %3915 = vset.pattern.permute.xlu0 0
    %3916 = vperm.xlu0 %3915, %v3171
    %v3917 = vpop.permute.xlu0 %3916
    %3920 = vset.pattern.permute.xlu0 0
    %3921 = vperm.xlu0 %3920, %v3173
    %v3922 = vpop.permute.xlu0 %3921
    %3925 = vset.pattern.permute.xlu0 0
    %3926 = vperm.xlu0 %3925, %v3175
    %v3927 = vpop.permute.xlu0 %3926
    %3930 = vset.pattern.permute.xlu0 0
    %3931 = vperm.xlu0 %3930, %v3177
    %v3932 = vpop.permute.xlu0 %3931
    %3935 = vset.pattern.permute.xlu0 0
    %3936 = vperm.xlu0 %3935, %v3179
    %v3937 = vpop.permute.xlu0 %3936
    %3940 = vset.pattern.permute.xlu0 0
    %3941 = vperm.xlu0 %3940, %v3181
    %v3942 = vpop.permute.xlu0 %3941
    %3945 = vset.pattern.permute.xlu0 0
    %3946 = vperm.xlu0 %3945, %v3183
    %v3947 = vpop.permute.xlu0 %3946
    %3950 = vset.pattern.permute.xlu0 0
    %3951 = vperm.xlu0 %3950, %v3185
    %v3952 = vpop.permute.xlu0 %3951
    %3955 = vset.pattern.permute.xlu0 0
    %3956 = vperm.xlu0 %3955, %v3187
    %v3957 = vpop.permute.xlu0 %3956
    %3960 = vset.pattern.permute.xlu0 0
    %3961 = vperm.xlu0 %3960, %v3189
    %v3962 = vpop.permute.xlu0 %3961
    %3965 = vset.pattern.permute.xlu0 0
    %3966 = vperm.xlu0 %3965, %v3191
    %v3967 = vpop.permute.xlu0 %3966
    %3970 = vset.pattern.permute.xlu0 0
    %3971 = vperm.xlu0 %3970, %v3193
    %v3972 = vpop.permute.xlu0 %3971
    %3975 = vset.pattern.permute.xlu0 0
    %3976 = vperm.xlu0 %3975, %v3195
    %v3977 = vpop.permute.xlu0 %3976
    %3980 = vset.pattern.permute.xlu0 0
    %3981 = vperm.xlu0 %3980, %v3197
    %v3982 = vpop.permute.xlu0 %3981
    %3985 = vset.pattern.permute.xlu0 0
    %3986 = vperm.xlu0 %3985, %v3199
    %v3987 = vpop.permute.xlu0 %3986
    %3990 = vset.pattern.permute.xlu0 0
    %3991 = vperm.xlu0 %3990, %v3201
    %v3992 = vpop.permute.xlu0 %3991
    %3995 = vset.pattern.permute.xlu0 0
    %3996 = vperm.xlu0 %3995, %v3203
    %v3997 = vpop.permute.xlu0 %3996
    %4000 = vset.pattern.permute.xlu0 0
    %4001 = vperm.xlu0 %4000, %v3205
    %v4002 = vpop.permute.xlu0 %4001
    %4005 = vset.pattern.permute.xlu0 0
    %4006 = vperm.xlu0 %4005, %v3207
    %v4007 = vpop.permute.xlu0 %4006
    %4010 = vset.pattern.permute.xlu0 0
    %4011 = vperm.xlu0 %4010, %v3209
    %v4012 = vpop.permute.xlu0 %4011
    %4015 = vset.pattern.permute.xlu0 0
    %4016 = vperm.xlu0 %4015, %v3211
    %v4017 = vpop.permute.xlu0 %4016
    %4020 = vset.pattern.permute.xlu0 0
    %4021 = vperm.xlu0 %4020, %v3213
    %v4022 = vpop.permute.xlu0 %4021
    %4025 = vset.pattern.permute.xlu0 0
    %4026 = vperm.xlu0 %4025, %v3215
    %v4027 = vpop.permute.xlu0 %4026
    %4030 = vset.pattern.permute.xlu0 0
    %4031 = vperm.xlu0 %4030, %v3217
    %v4032 = vpop.permute.xlu0 %4031
    %4035 = vset.pattern.permute.xlu0 0
    %4036 = vperm.xlu0 %4035, %v3219
    %v4037 = vpop.permute.xlu0 %4036
    %4040 = vset.pattern.permute.xlu0 0
    %4041 = vperm.xlu0 %4040, %v3221
    %v4042 = vpop.permute.xlu0 %4041
    %4045 = vset.pattern.permute.xlu0 0
    %4046 = vperm.xlu0 %4045, %v3223
    %v4047 = vpop.permute.xlu0 %4046
    %4050 = vset.pattern.permute.xlu0 0
    %4051 = vperm.xlu0 %4050, %v3225
    %v4052 = vpop.permute.xlu0 %4051
    %4055 = vset.pattern.permute.xlu0 0
    %4056 = vperm.xlu0 %4055, %v3227
    %v4057 = vpop.permute.xlu0 %4056
    %4060 = vset.pattern.permute.xlu0 0
    %4061 = vperm.xlu0 %4060, %v3229
    %v4062 = vpop.permute.xlu0 %4061
    %v4064 = vmul.f32 %v3907, %v3872
    %v4065 = vmul.f32 %v3912, %v3873
    %v4066 = vmul.f32 %v3917, %v3874
    %v4067 = vmul.f32 %v3922, %v3875
    %v4068 = vmul.f32 %v3927, %v3876
    %v4069 = vmul.f32 %v3932, %v3877
    %v4070 = vmul.f32 %v3937, %v3878
    %v4071 = vmul.f32 %v3942, %v3879
    %v4072 = vmul.f32 %v3947, %v3880
    %v4073 = vmul.f32 %v3952, %v3881
    %v4074 = vmul.f32 %v3957, %v3882
    %v4075 = vmul.f32 %v3962, %v3883
    %v4076 = vmul.f32 %v3967, %v3884
    %v4077 = vmul.f32 %v3972, %v3885
    %v4078 = vmul.f32 %v3977, %v3886
    %v4079 = vmul.f32 %v3982, %v3887
    %v4080 = vmul.f32 %v3987, %v3888
    %v4081 = vmul.f32 %v3992, %v3889
    %v4082 = vmul.f32 %v3997, %v3890
    %v4083 = vmul.f32 %v4002, %v3891
    %v4084 = vmul.f32 %v4007, %v3892
    %v4085 = vmul.f32 %v4012, %v3893
    %v4086 = vmul.f32 %v4017, %v3894
    %v4087 = vmul.f32 %v4022, %v3895
    %v4088 = vmul.f32 %v4027, %v3896
    %v4089 = vmul.f32 %v4032, %v3897
    %v4090 = vmul.f32 %v4037, %v3898
    %v4091 = vmul.f32 %v4042, %v3899
    %v4092 = vmul.f32 %v4047, %v3900
    %v4093 = vmul.f32 %v4052, %v3901
    %v4094 = vmul.f32 %v4057, %v3902
    %v4095 = vmul.f32 %v4062, %v3903
    %v4096 = vpack.c.bf16 %v3584, %v3582
    %v4097 = vpack.c.bf16 %v3585, %v3583
    %v4098 = vpack.c.bf16 %v3588, %v3586
    %v4099 = vpack.c.bf16 %v3589, %v3587
    %v4100 = vpack.c.bf16 %v3592, %v3590
    %v4101 = vpack.c.bf16 %v3593, %v3591
    %v4102 = vpack.c.bf16 %v3596, %v3594
    %v4103 = vpack.c.bf16 %v3597, %v3595
    %v4104 = vpack.c.bf16 %v3600, %v3598
    %v4105 = vpack.c.bf16 %v3601, %v3599
    %v4106 = vpack.c.bf16 %v3604, %v3602
    %v4107 = vpack.c.bf16 %v3605, %v3603
    %v4108 = vpack.c.bf16 %v3608, %v3606
    %v4109 = vpack.c.bf16 %v3609, %v3607
    %v4110 = vpack.c.bf16 %v3612, %v3610
    %v4111 = vpack.c.bf16 %v3613, %v3611
    %v4112 = vpack.c.bf16 %v3616, %v3614
    %v4113 = vpack.c.bf16 %v3617, %v3615
    %v4114 = vpack.c.bf16 %v3620, %v3618
    %v4115 = vpack.c.bf16 %v3621, %v3619
    %v4116 = vpack.c.bf16 %v3624, %v3622
    %v4117 = vpack.c.bf16 %v3625, %v3623
    %v4118 = vpack.c.bf16 %v3628, %v3626
    %v4119 = vpack.c.bf16 %v3629, %v3627
    %v4120 = vpack.c.bf16 %v3632, %v3630
    %v4121 = vpack.c.bf16 %v3633, %v3631
    %v4122 = vpack.c.bf16 %v3636, %v3634
    %v4123 = vpack.c.bf16 %v3637, %v3635
    %v4124 = vpack.c.bf16 %v3640, %v3638
    %v4125 = vpack.c.bf16 %v3641, %v3639
    %v4126 = vpack.c.bf16 %v3644, %v3642
    %v4127 = vpack.c.bf16 %v3645, %v3643
    %4128 = vrot.lane.b32.xlu0 %v2267, 96
    %v4129 = vpop.permute.xlu0 %4128
    %4130 = vrot.lane.b32.xlu0 %v2268, 96
    %v4131 = vpop.permute.xlu0 %4130
    %4132 = vrot.lane.b32.xlu0 %v2269, 96
    %v4133 = vpop.permute.xlu0 %4132
    %4134 = vrot.lane.b32.xlu0 %v2270, 96
    %v4135 = vpop.permute.xlu0 %4134
    %4136 = vrot.lane.b32.xlu0 %v2271, 96
    %v4137 = vpop.permute.xlu0 %4136
    %4138 = vrot.lane.b32.xlu0 %v2272, 96
    %v4139 = vpop.permute.xlu0 %4138
    %4140 = vrot.lane.b32.xlu0 %v2273, 96
    %v4141 = vpop.permute.xlu0 %4140
    %4142 = vrot.lane.b32.xlu0 %v2274, 96
    %v4143 = vpop.permute.xlu0 %4142
    %4144 = vrot.lane.b32.xlu0 %v2275, 96
    %v4145 = vpop.permute.xlu0 %4144
    %4146 = vrot.lane.b32.xlu0 %v2276, 96
    %v4147 = vpop.permute.xlu0 %4146
    %4148 = vrot.lane.b32.xlu0 %v2277, 96
    %v4149 = vpop.permute.xlu0 %4148
    %4150 = vrot.lane.b32.xlu0 %v2278, 96
    %v4151 = vpop.permute.xlu0 %4150
    %4152 = vrot.lane.b32.xlu0 %v2279, 96
    %v4153 = vpop.permute.xlu0 %4152
    %4154 = vrot.lane.b32.xlu0 %v2280, 96
    %v4155 = vpop.permute.xlu0 %4154
    %4156 = vrot.lane.b32.xlu0 %v2281, 96
    %v4157 = vpop.permute.xlu0 %4156
    %4158 = vrot.lane.b32.xlu0 %v2282, 96
    %v4159 = vpop.permute.xlu0 %4158
    %4176 = vmatprep.subr.bf16.mxu0 0
    %4177 = vmatpush1.bf16.msra.mxu0 %v4129
    %4178 = vmatprep.subr.bf16.mxu0 0
    %4179 = vmatpush1.bf16.msra.mxu0 %v4131
    %4180 = vmatprep.subr.bf16.mxu0 0
    %4181 = vmatpush1.bf16.msra.mxu0 %v4133
    %4182 = vmatprep.subr.bf16.mxu0 0
    %4183 = vmatpush1.bf16.msra.mxu0 %v4135
    %4184 = vmatprep.subr.bf16.mxu0 0
    %4185 = vmatpush1.bf16.msra.mxu0 %v4137
    %4186 = vmatprep.subr.bf16.mxu0 0
    %4187 = vmatpush1.bf16.msra.mxu0 %v4139
    %4188 = vmatprep.subr.bf16.mxu0 0
    %4189 = vmatpush1.bf16.msra.mxu0 %v4141
    %4190 = vmatprep.subr.bf16.mxu0 0
    %4191 = vmatpush1.bf16.msra.mxu0 %v4143
    %4192 = vmatprep.subr.bf16.mxu0 0
    %4193 = vmatpush1.bf16.msra.mxu0 %v4145
    %4194 = vmatprep.subr.bf16.mxu0 0
    %4195 = vmatpush1.bf16.msra.mxu0 %v4147
    %4196 = vmatprep.subr.bf16.mxu0 0
    %4197 = vmatpush1.bf16.msra.mxu0 %v4149
    %4198 = vmatprep.subr.bf16.mxu0 0
    %4199 = vmatpush1.bf16.msra.mxu0 %v4151
    %4200 = vmatprep.subr.bf16.mxu0 0
    %4201 = vmatpush1.bf16.msra.mxu0 %v4153
    %4202 = vmatprep.subr.bf16.mxu0 0
    %4203 = vmatpush1.bf16.msra.mxu0 %v4155
    %4204 = vmatprep.subr.bf16.mxu0 0
    %4205 = vmatpush1.bf16.msra.mxu0 %v4157
    %4206 = vmatprep.subr.bf16.mxu0 0
    %4207 = vmatpush1.bf16.msra.mxu0 %v4159
    %4208 = vmatprep.mubr.bf16.mxu0 %v4097
    %4209 = vmatmul.mubr.bf16.gmra.mrb[0].mxu0 %v4096
    %v4210 = vpop.f32.mrb[0].mxu0
    %v4211 = vadd.f32 0.0, %v4210
    %v4212 = vpop.f32.mrb[0].mxu0
    %v4213 = vpop.f32.mrb[0].mxu0
    %v4214 = vadd.f32 0.0, %v4213
    %v4215 = vpop.f32.mrb[0].mxu0
    %4216 = vmatprep.mubr.bf16.mxu0 %v4099
    %4217 = vmatmul.mubr.bf16.gmra.mrb[0].mxu0 %v4098
    %v4218 = vpop.f32.mrb[0].mxu0
    %v4219 = vadd.f32 0.0, %v4218
    %v4220 = vpop.f32.mrb[0].mxu0
    %v4221 = vpop.f32.mrb[0].mxu0
    %v4222 = vadd.f32 0.0, %v4221
    %v4223 = vpop.f32.mrb[0].mxu0
    %4224 = vmatprep.mubr.bf16.mxu0 %v4101
    %4225 = vmatmul.mubr.bf16.gmra.mrb[0].mxu0 %v4100
    %v4226 = vpop.f32.mrb[0].mxu0
    %v4227 = vadd.f32 0.0, %v4226
    %v4228 = vpop.f32.mrb[0].mxu0
    %v4229 = vpop.f32.mrb[0].mxu0
    %v4230 = vadd.f32 0.0, %v4229
    %v4231 = vpop.f32.mrb[0].mxu0
    %4232 = vmatprep.mubr.bf16.mxu0 %v4103
    %4233 = vmatmul.mubr.bf16.gmra.mrb[0].mxu0 %v4102
    %v4234 = vpop.f32.mrb[0].mxu0
    %v4235 = vadd.f32 0.0, %v4234
    %v4236 = vpop.f32.mrb[0].mxu0
    %v4237 = vpop.f32.mrb[0].mxu0
    %v4238 = vadd.f32 0.0, %v4237
    %v4239 = vpop.f32.mrb[0].mxu0
    %4240 = vmatprep.mubr.bf16.mxu0 %v4105
    %4241 = vmatmul.mubr.bf16.gmra.mrb[0].mxu0 %v4104
    %v4242 = vpop.f32.mrb[0].mxu0
    %v4243 = vadd.f32 0.0, %v4242
    %v4244 = vpop.f32.mrb[0].mxu0
    %v4245 = vpop.f32.mrb[0].mxu0
    %v4246 = vadd.f32 0.0, %v4245
    %v4247 = vpop.f32.mrb[0].mxu0
    %4248 = vmatprep.mubr.bf16.mxu0 %v4107
    %4249 = vmatmul.mubr.bf16.gmra.mrb[0].mxu0 %v4106
    %v4250 = vpop.f32.mrb[0].mxu0
    %v4251 = vadd.f32 0.0, %v4250
    %v4252 = vpop.f32.mrb[0].mxu0
    %v4253 = vpop.f32.mrb[0].mxu0
    %v4254 = vadd.f32 0.0, %v4253
    %v4255 = vpop.f32.mrb[0].mxu0
    %4256 = vmatprep.mubr.bf16.mxu0 %v4109
    %4257 = vmatmul.mubr.bf16.gmra.mrb[0].mxu0 %v4108
    %v4258 = vpop.f32.mrb[0].mxu0
    %v4259 = vadd.f32 0.0, %v4258
    %v4260 = vpop.f32.mrb[0].mxu0
    %v4261 = vpop.f32.mrb[0].mxu0
    %v4262 = vadd.f32 0.0, %v4261
    %v4263 = vpop.f32.mrb[0].mxu0
    %4264 = vmatprep.mubr.bf16.mxu0 %v4111
    %4265 = vmatmul.mubr.bf16.gmra.mrb[0].mxu0 %v4110
    %v4266 = vpop.f32.mrb[0].mxu0
    %v4267 = vadd.f32 0.0, %v4266
    %v4268 = vpop.f32.mrb[0].mxu0
    %v4269 = vpop.f32.mrb[0].mxu0
    %v4270 = vadd.f32 0.0, %v4269
    %v4271 = vpop.f32.mrb[0].mxu0
    %4272 = vmatprep.mubr.bf16.mxu0 %v4113
    %4273 = vmatmul.mubr.bf16.gmra.mrb[0].mxu0 %v4112
    %v4274 = vpop.f32.mrb[0].mxu0
    %v4275 = vadd.f32 0.0, %v4274
    %v4276 = vpop.f32.mrb[0].mxu0
    %v4277 = vpop.f32.mrb[0].mxu0
    %v4278 = vadd.f32 0.0, %v4277
    %v4279 = vpop.f32.mrb[0].mxu0
    %4280 = vmatprep.mubr.bf16.mxu0 %v4115
    %4281 = vmatmul.mubr.bf16.gmra.mrb[0].mxu0 %v4114
    %v4282 = vpop.f32.mrb[0].mxu0
    %v4283 = vadd.f32 0.0, %v4282
    %v4284 = vpop.f32.mrb[0].mxu0
    %v4285 = vpop.f32.mrb[0].mxu0
    %v4286 = vadd.f32 0.0, %v4285
    %v4287 = vpop.f32.mrb[0].mxu0
    %4288 = vmatprep.mubr.bf16.mxu0 %v4117
    %4289 = vmatmul.mubr.bf16.gmra.mrb[0].mxu0 %v4116
    %v4290 = vpop.f32.mrb[0].mxu0
    %v4291 = vadd.f32 0.0, %v4290
    %v4292 = vpop.f32.mrb[0].mxu0
    %v4293 = vpop.f32.mrb[0].mxu0
    %v4294 = vadd.f32 0.0, %v4293
    %v4295 = vpop.f32.mrb[0].mxu0
    %4296 = vmatprep.mubr.bf16.mxu0 %v4119
    %4297 = vmatmul.mubr.bf16.gmra.mrb[0].mxu0 %v4118
    %v4298 = vpop.f32.mrb[0].mxu0
    %v4299 = vadd.f32 0.0, %v4298
    %v4300 = vpop.f32.mrb[0].mxu0
    %v4301 = vpop.f32.mrb[0].mxu0
    %v4302 = vadd.f32 0.0, %v4301
    %v4303 = vpop.f32.mrb[0].mxu0
    %4304 = vmatprep.mubr.bf16.mxu0 %v4121
    %4305 = vmatmul.mubr.bf16.gmra.mrb[0].mxu0 %v4120
    %v4306 = vpop.f32.mrb[0].mxu0
    %v4307 = vadd.f32 0.0, %v4306
    %v4308 = vpop.f32.mrb[0].mxu0
    %v4309 = vpop.f32.mrb[0].mxu0
    %v4310 = vadd.f32 0.0, %v4309
    %v4311 = vpop.f32.mrb[0].mxu0
    %4312 = vmatprep.mubr.bf16.mxu0 %v4123
    %4313 = vmatmul.mubr.bf16.gmra.mrb[0].mxu0 %v4122
    %v4314 = vpop.f32.mrb[0].mxu0
    %v4315 = vadd.f32 0.0, %v4314
    %v4316 = vpop.f32.mrb[0].mxu0
    %v4317 = vpop.f32.mrb[0].mxu0
    %v4318 = vadd.f32 0.0, %v4317
    %v4319 = vpop.f32.mrb[0].mxu0
    %4320 = vmatprep.mubr.bf16.mxu0 %v4125
    %4321 = vmatmul.mubr.bf16.gmra.mrb[0].mxu0 %v4124
    %v4322 = vpop.f32.mrb[0].mxu0
    %v4323 = vadd.f32 0.0, %v4322
    %v4324 = vpop.f32.mrb[0].mxu0
    %v4325 = vpop.f32.mrb[0].mxu0
    %v4326 = vadd.f32 0.0, %v4325
    %v4327 = vpop.f32.mrb[0].mxu0
    %4328 = vmatprep.mubr.bf16.mxu0 %v4127
    %4329 = vmatmul.mubr.bf16.gmra.mrb[0].mxu0 %v4126
    %v4330 = vpop.f32.mrb[0].mxu0
    %v4331 = vadd.f32 0.0, %v4330
    %v4332 = vpop.f32.mrb[0].mxu0
    %v4333 = vpop.f32.mrb[0].mxu0
    %v4334 = vadd.f32 0.0, %v4333
    %v4335 = vpop.f32.mrb[0].mxu0
    %4336 = vdwg.mxu0
    %v4337 = vadd.f32 %v4064, %v4211
    %v4338 = vadd.f32 %v4065, %v4214
    %v4339 = vadd.f32 %v4066, %v4219
    %v4340 = vadd.f32 %v4067, %v4222
    %v4341 = vadd.f32 %v4068, %v4227
    %v4342 = vadd.f32 %v4069, %v4230
    %v4343 = vadd.f32 %v4070, %v4235
    %v4344 = vadd.f32 %v4071, %v4238
    %v4345 = vadd.f32 %v4072, %v4243
    %v4346 = vadd.f32 %v4073, %v4246
    %v4347 = vadd.f32 %v4074, %v4251
    %v4348 = vadd.f32 %v4075, %v4254
    %v4349 = vadd.f32 %v4076, %v4259
    %v4350 = vadd.f32 %v4077, %v4262
    %v4351 = vadd.f32 %v4078, %v4267
    %v4352 = vadd.f32 %v4079, %v4270
    %v4353 = vadd.f32 %v4080, %v4275
    %v4354 = vadd.f32 %v4081, %v4278
    %v4355 = vadd.f32 %v4082, %v4283
    %v4356 = vadd.f32 %v4083, %v4286
    %v4357 = vadd.f32 %v4084, %v4291
    %v4358 = vadd.f32 %v4085, %v4294
    %v4359 = vadd.f32 %v4086, %v4299
    %v4360 = vadd.f32 %v4087, %v4302
    %v4361 = vadd.f32 %v4088, %v4307
    %v4362 = vadd.f32 %v4089, %v4310
    %v4363 = vadd.f32 %v4090, %v4315
    %v4364 = vadd.f32 %v4091, %v4318
    %v4365 = vadd.f32 %v4092, %v4323
    %v4366 = vadd.f32 %v4093, %v4326
    %v4367 = vadd.f32 %v4094, %v4331
    %v4368 = vadd.f32 %v4095, %v4334
    %4369 = vst.msk [vmem:[%s3871] sm:$0xff] %vm696, %v4337
    %4370 = vst.msk [vmem:[%s3871 + $0x8] sm:$0xff] %vm696, %v4338
    %4371 = vst.msk [vmem:[%s3871 + $0x10] sm:$0xff] %vm696, %v4339
    %4372 = vst.msk [vmem:[%s3871 + $0x18] sm:$0xff] %vm696, %v4340
    %4373 = vst.msk [vmem:[%s3871 + $0x20] sm:$0xff] %vm696, %v4341
    %4374 = vst.msk [vmem:[%s3871 + $0x28] sm:$0xff] %vm696, %v4342
    %4375 = vst.msk [vmem:[%s3871 + $0x30] sm:$0xff] %vm696, %v4343
    %4376 = vst.msk [vmem:[%s3871 + $0x38] sm:$0xff] %vm696, %v4344
    %4377 = vst.msk [vmem:[%s3871 + $0x40] sm:$0xff] %vm696, %v4345
    %4378 = vst.msk [vmem:[%s3871 + $0x48] sm:$0xff] %vm696, %v4346
    %4379 = vst.msk [vmem:[%s3871 + $0x50] sm:$0xff] %vm696, %v4347
    %4380 = vst.msk [vmem:[%s3871 + $0x58] sm:$0xff] %vm696, %v4348
    %4381 = vst.msk [vmem:[%s3871 + $0x60] sm:$0xff] %vm696, %v4349
    %4382 = vst.msk [vmem:[%s3871 + $0x68] sm:$0xff] %vm696, %v4350
    %4383 = vst.msk [vmem:[%s3871 + $0x70] sm:$0xff] %vm696, %v4351
    %4384 = vst.msk [vmem:[%s3871 + $0x78] sm:$0xff] %vm696, %v4352
    %4385 = vst.msk [vmem:[%s3871 + $0x80] sm:$0xff] %vm696, %v4353
    %4386 = vst.msk [vmem:[%s3871 + $0x88] sm:$0xff] %vm696, %v4354
    %4387 = vst.msk [vmem:[%s3871 + $0x90] sm:$0xff] %vm696, %v4355
    %4388 = vst.msk [vmem:[%s3871 + $0x98] sm:$0xff] %vm696, %v4356
    %4389 = vst.msk [vmem:[%s3871 + $0xa0] sm:$0xff] %vm696, %v4357
    %4390 = vst.msk [vmem:[%s3871 + $0xa8] sm:$0xff] %vm696, %v4358
    %4391 = vst.msk [vmem:[%s3871 + $0xb0] sm:$0xff] %vm696, %v4359
    %4392 = vst.msk [vmem:[%s3871 + $0xb8] sm:$0xff] %vm696, %v4360
    %4393 = vst.msk [vmem:[%s3871 + $0xc0] sm:$0xff] %vm696, %v4361
    %4394 = vst.msk [vmem:[%s3871 + $0xc8] sm:$0xff] %vm696, %v4362
    %4395 = vst.msk [vmem:[%s3871 + $0xd0] sm:$0xff] %vm696, %v4363
    %4396 = vst.msk [vmem:[%s3871 + $0xd8] sm:$0xff] %vm696, %v4364
    %4397 = vst.msk [vmem:[%s3871 + $0xe0] sm:$0xff] %vm696, %v4365
    %4398 = vst.msk [vmem:[%s3871 + $0xe8] sm:$0xff] %vm696, %v4366
    %4399 = vst.msk [vmem:[%s3871 + $0xf0] sm:$0xff] %vm696, %v4367
    %4400 = vst.msk [vmem:[%s3871 + $0xf8] sm:$0xff] %vm696, %v4368
    %4401 = vst.msk [vmem:[%s2973] sm:$0xff] %vm1914, %v3102
    %4402 = vst.msk [vmem:[%s2973 + $0x8] sm:$0xff] %vm1914, %v3103
    %4403 = vst.msk [vmem:[%s2973 + $0x10] sm:$0xff] %vm1914, %v3104
    %4404 = vst.msk [vmem:[%s2973 + $0x18] sm:$0xff] %vm1914, %v3105
    %4405 = vst.msk [vmem:[%s2973 + $0x20] sm:$0xff] %vm1914, %v3106
    %4406 = vst.msk [vmem:[%s2973 + $0x28] sm:$0xff] %vm1914, %v3107
    %4407 = vst.msk [vmem:[%s2973 + $0x30] sm:$0xff] %vm1914, %v3108
    %4408 = vst.msk [vmem:[%s2973 + $0x38] sm:$0xff] %vm1914, %v3109
    %4409 = vst.msk [vmem:[%s2973 + $0x40] sm:$0xff] %vm1914, %v3110
    %4410 = vst.msk [vmem:[%s2973 + $0x48] sm:$0xff] %vm1914, %v3111
    %4411 = vst.msk [vmem:[%s2973 + $0x50] sm:$0xff] %vm1914, %v3112
    %4412 = vst.msk [vmem:[%s2973 + $0x58] sm:$0xff] %vm1914, %v3113
    %4413 = vst.msk [vmem:[%s2973 + $0x60] sm:$0xff] %vm1914, %v3114
    %4414 = vst.msk [vmem:[%s2973 + $0x68] sm:$0xff] %vm1914, %v3115
    %4415 = vst.msk [vmem:[%s2973 + $0x70] sm:$0xff] %vm1914, %v3116
    %4416 = vst.msk [vmem:[%s2973 + $0x78] sm:$0xff] %vm1914, %v3117
    %4417 = vst.msk [vmem:[%s2973 + $0x80] sm:$0xff] %vm1914, %v3118
    %4418 = vst.msk [vmem:[%s2973 + $0x88] sm:$0xff] %vm1914, %v3119
    %4419 = vst.msk [vmem:[%s2973 + $0x90] sm:$0xff] %vm1914, %v3120
    %4420 = vst.msk [vmem:[%s2973 + $0x98] sm:$0xff] %vm1914, %v3121
    %4421 = vst.msk [vmem:[%s2973 + $0xa0] sm:$0xff] %vm1914, %v3122
    %4422 = vst.msk [vmem:[%s2973 + $0xa8] sm:$0xff] %vm1914, %v3123
    %4423 = vst.msk [vmem:[%s2973 + $0xb0] sm:$0xff] %vm1914, %v3124
    %4424 = vst.msk [vmem:[%s2973 + $0xb8] sm:$0xff] %vm1914, %v3125
    %4425 = vst.msk [vmem:[%s2973 + $0xc0] sm:$0xff] %vm1914, %v3126
    %4426 = vst.msk [vmem:[%s2973 + $0xc8] sm:$0xff] %vm1914, %v3127
    %4427 = vst.msk [vmem:[%s2973 + $0xd0] sm:$0xff] %vm1914, %v3128
    %4428 = vst.msk [vmem:[%s2973 + $0xd8] sm:$0xff] %vm1914, %v3129
    %4429 = vst.msk [vmem:[%s2973 + $0xe0] sm:$0xff] %vm1914, %v3130
    %4430 = vst.msk [vmem:[%s2973 + $0xe8] sm:$0xff] %vm1914, %v3131
    %4431 = vst.msk [vmem:[%s2973 + $0xf0] sm:$0xff] %vm1914, %v3132
    %4432 = vst.msk [vmem:[%s2973 + $0xf8] sm:$0xff] %vm1914, %v3133
  $region29: #{flash_roberta_forward.9} parent=0 // pred_fallthru
    _
  // Predicated region
  $region30: #{flash_roberta_forward.9} parent=0 // pred_check
    %p4433 = pneg %p31
  $region31: #{flash_roberta_forward.9} parent=0 // pred_check_branch
    %4435 = sbr.rel (%p4433) target = $region33
  $region32: #{flash_roberta_forward.9} parent=0 // pred_region
    %v4436 = vld [vmem:[#allocation3] sm:$0xff]
    %v4437 = vld [vmem:[#allocation3 + $0x8] sm:$0xff]
    %v4438 = vld [vmem:[#allocation3 + $0x10] sm:$0xff]
    %v4439 = vld [vmem:[#allocation3 + $0x18] sm:$0xff]
    %v4440 = vld [vmem:[#allocation3 + $0x20] sm:$0xff]
    %v4441 = vld [vmem:[#allocation3 + $0x28] sm:$0xff]
    %v4442 = vld [vmem:[#allocation3 + $0x30] sm:$0xff]
    %v4443 = vld [vmem:[#allocation3 + $0x38] sm:$0xff]
    %v4444 = vld [vmem:[#allocation3 + $0x40] sm:$0xff]
    %v4445 = vld [vmem:[#allocation3 + $0x48] sm:$0xff]
    %v4446 = vld [vmem:[#allocation3 + $0x50] sm:$0xff]
    %v4447 = vld [vmem:[#allocation3 + $0x58] sm:$0xff]
    %v4448 = vld [vmem:[#allocation3 + $0x60] sm:$0xff]
    %v4449 = vld [vmem:[#allocation3 + $0x68] sm:$0xff]
    %v4450 = vld [vmem:[#allocation3 + $0x70] sm:$0xff]
    %v4451 = vld [vmem:[#allocation3 + $0x78] sm:$0xff]
    %v4452 = vld [vmem:[#allocation3 + $0x80] sm:$0xff]
    %v4453 = vld [vmem:[#allocation3 + $0x88] sm:$0xff]
    %v4454 = vld [vmem:[#allocation3 + $0x90] sm:$0xff]
    %v4455 = vld [vmem:[#allocation3 + $0x98] sm:$0xff]
    %v4456 = vld [vmem:[#allocation3 + $0xa0] sm:$0xff]
    %v4457 = vld [vmem:[#allocation3 + $0xa8] sm:$0xff]
    %v4458 = vld [vmem:[#allocation3 + $0xb0] sm:$0xff]
    %v4459 = vld [vmem:[#allocation3 + $0xb8] sm:$0xff]
    %v4460 = vld [vmem:[#allocation3 + $0xc0] sm:$0xff]
    %v4461 = vld [vmem:[#allocation3 + $0xc8] sm:$0xff]
    %v4462 = vld [vmem:[#allocation3 + $0xd0] sm:$0xff]
    %v4463 = vld [vmem:[#allocation3 + $0xd8] sm:$0xff]
    %v4464 = vld [vmem:[#allocation3 + $0xe0] sm:$0xff]
    %v4465 = vld [vmem:[#allocation3 + $0xe8] sm:$0xff]
    %v4466 = vld [vmem:[#allocation3 + $0xf0] sm:$0xff]
    %v4467 = vld [vmem:[#allocation3 + $0xf8] sm:$0xff]
    %v4468 = vld [vmem:[#allocation3 + $0x100] sm:$0xff]
    %v4469 = vld [vmem:[#allocation3 + $0x108] sm:$0xff]
    %v4470 = vld [vmem:[#allocation3 + $0x110] sm:$0xff]
    %v4471 = vld [vmem:[#allocation3 + $0x118] sm:$0xff]
    %v4472 = vld [vmem:[#allocation3 + $0x120] sm:$0xff]
    %v4473 = vld [vmem:[#allocation3 + $0x128] sm:$0xff]
    %v4474 = vld [vmem:[#allocation3 + $0x130] sm:$0xff]
    %v4475 = vld [vmem:[#allocation3 + $0x138] sm:$0xff]
    %v4476 = vld [vmem:[#allocation3 + $0x140] sm:$0xff]
    %v4477 = vld [vmem:[#allocation3 + $0x148] sm:$0xff]
    %v4478 = vld [vmem:[#allocation3 + $0x150] sm:$0xff]
    %v4479 = vld [vmem:[#allocation3 + $0x158] sm:$0xff]
    %v4480 = vld [vmem:[#allocation3 + $0x160] sm:$0xff]
    %v4481 = vld [vmem:[#allocation3 + $0x168] sm:$0xff]
    %v4482 = vld [vmem:[#allocation3 + $0x170] sm:$0xff]
    %v4483 = vld [vmem:[#allocation3 + $0x178] sm:$0xff]
    %v4484 = vld [vmem:[#allocation3 + $0x180] sm:$0xff]
    %v4485 = vld [vmem:[#allocation3 + $0x188] sm:$0xff]
    %v4486 = vld [vmem:[#allocation3 + $0x190] sm:$0xff]
    %v4487 = vld [vmem:[#allocation3 + $0x198] sm:$0xff]
    %v4488 = vld [vmem:[#allocation3 + $0x1a0] sm:$0xff]
    %v4489 = vld [vmem:[#allocation3 + $0x1a8] sm:$0xff]
    %v4490 = vld [vmem:[#allocation3 + $0x1b0] sm:$0xff]
    %v4491 = vld [vmem:[#allocation3 + $0x1b8] sm:$0xff]
    %v4492 = vld [vmem:[#allocation3 + $0x1c0] sm:$0xff]
    %v4493 = vld [vmem:[#allocation3 + $0x1c8] sm:$0xff]
    %v4494 = vld [vmem:[#allocation3 + $0x1d0] sm:$0xff]
    %v4495 = vld [vmem:[#allocation3 + $0x1d8] sm:$0xff]
    %v4496 = vld [vmem:[#allocation3 + $0x1e0] sm:$0xff]
    %v4497 = vld [vmem:[#allocation3 + $0x1e8] sm:$0xff]
    %v4498 = vld [vmem:[#allocation3 + $0x1f0] sm:$0xff]
    %v4499 = vld [vmem:[#allocation3 + $0x1f8] sm:$0xff]
    %v4500 = vrcp.pop %v4436
    %v4501 = vrcp.pop %v4437
    %v4502 = vrcp.pop %v4438
    %v4503 = vrcp.pop %v4439
    %v4504 = vrcp.pop %v4440
    %v4505 = vrcp.pop %v4441
    %v4506 = vrcp.pop %v4442
    %v4507 = vrcp.pop %v4443
    %v4508 = vrcp.pop %v4444
    %v4509 = vrcp.pop %v4445
    %v4510 = vrcp.pop %v4446
    %v4511 = vrcp.pop %v4447
    %v4512 = vrcp.pop %v4448
    %v4513 = vrcp.pop %v4449
    %v4514 = vrcp.pop %v4450
    %v4515 = vrcp.pop %v4451
    %v4516 = vrcp.pop %v4452
    %v4517 = vrcp.pop %v4453
    %v4518 = vrcp.pop %v4454
    %v4519 = vrcp.pop %v4455
    %v4520 = vrcp.pop %v4456
    %v4521 = vrcp.pop %v4457
    %v4522 = vrcp.pop %v4458
    %v4523 = vrcp.pop %v4459
    %v4524 = vrcp.pop %v4460
    %v4525 = vrcp.pop %v4461
    %v4526 = vrcp.pop %v4462
    %v4527 = vrcp.pop %v4463
    %v4528 = vrcp.pop %v4464
    %v4529 = vrcp.pop %v4465
    %v4530 = vrcp.pop %v4466
    %v4531 = vrcp.pop %v4467
    %v4532 = vrcp.pop %v4468
    %v4533 = vrcp.pop %v4469
    %v4534 = vrcp.pop %v4470
    %v4535 = vrcp.pop %v4471
    %v4536 = vrcp.pop %v4472
    %v4537 = vrcp.pop %v4473
    %v4538 = vrcp.pop %v4474
    %v4539 = vrcp.pop %v4475
    %v4540 = vrcp.pop %v4476
    %v4541 = vrcp.pop %v4477
    %v4542 = vrcp.pop %v4478
    %v4543 = vrcp.pop %v4479
    %v4544 = vrcp.pop %v4480
    %v4545 = vrcp.pop %v4481
    %v4546 = vrcp.pop %v4482
    %v4547 = vrcp.pop %v4483
    %v4548 = vrcp.pop %v4484
    %v4549 = vrcp.pop %v4485
    %v4550 = vrcp.pop %v4486
    %v4551 = vrcp.pop %v4487
    %v4552 = vrcp.pop %v4488
    %v4553 = vrcp.pop %v4489
    %v4554 = vrcp.pop %v4490
    %v4555 = vrcp.pop %v4491
    %v4556 = vrcp.pop %v4492
    %v4557 = vrcp.pop %v4493
    %v4558 = vrcp.pop %v4494
    %v4559 = vrcp.pop %v4495
    %v4560 = vrcp.pop %v4496
    %v4561 = vrcp.pop %v4497
    %v4562 = vrcp.pop %v4498
    %v4563 = vrcp.pop %v4499
    %v4564 = vld [vmem:[#allocation4] sm:$0xff]
    %v4565 = vld [vmem:[#allocation4 + $0x8] sm:$0xff]
    %v4566 = vld [vmem:[#allocation4 + $0x10] sm:$0xff]
    %v4567 = vld [vmem:[#allocation4 + $0x18] sm:$0xff]
    %v4568 = vld [vmem:[#allocation4 + $0x20] sm:$0xff]
    %v4569 = vld [vmem:[#allocation4 + $0x28] sm:$0xff]
    %v4570 = vld [vmem:[#allocation4 + $0x30] sm:$0xff]
    %v4571 = vld [vmem:[#allocation4 + $0x38] sm:$0xff]
    %v4572 = vld [vmem:[#allocation4 + $0x40] sm:$0xff]
    %v4573 = vld [vmem:[#allocation4 + $0x48] sm:$0xff]
    %v4574 = vld [vmem:[#allocation4 + $0x50] sm:$0xff]
    %v4575 = vld [vmem:[#allocation4 + $0x58] sm:$0xff]
    %v4576 = vld [vmem:[#allocation4 + $0x60] sm:$0xff]
    %v4577 = vld [vmem:[#allocation4 + $0x68] sm:$0xff]
    %v4578 = vld [vmem:[#allocation4 + $0x70] sm:$0xff]
    %v4579 = vld [vmem:[#allocation4 + $0x78] sm:$0xff]
    %v4580 = vld [vmem:[#allocation4 + $0x80] sm:$0xff]
    %v4581 = vld [vmem:[#allocation4 + $0x88] sm:$0xff]
    %v4582 = vld [vmem:[#allocation4 + $0x90] sm:$0xff]
    %v4583 = vld [vmem:[#allocation4 + $0x98] sm:$0xff]
    %v4584 = vld [vmem:[#allocation4 + $0xa0] sm:$0xff]
    %v4585 = vld [vmem:[#allocation4 + $0xa8] sm:$0xff]
    %v4586 = vld [vmem:[#allocation4 + $0xb0] sm:$0xff]
    %v4587 = vld [vmem:[#allocation4 + $0xb8] sm:$0xff]
    %v4588 = vld [vmem:[#allocation4 + $0xc0] sm:$0xff]
    %v4589 = vld [vmem:[#allocation4 + $0xc8] sm:$0xff]
    %v4590 = vld [vmem:[#allocation4 + $0xd0] sm:$0xff]
    %v4591 = vld [vmem:[#allocation4 + $0xd8] sm:$0xff]
    %v4592 = vld [vmem:[#allocation4 + $0xe0] sm:$0xff]
    %v4593 = vld [vmem:[#allocation4 + $0xe8] sm:$0xff]
    %v4594 = vld [vmem:[#allocation4 + $0xf0] sm:$0xff]
    %v4595 = vld [vmem:[#allocation4 + $0xf8] sm:$0xff]
    %v4596 = vld [vmem:[#allocation4 + $0x100] sm:$0xff]
    %v4597 = vld [vmem:[#allocation4 + $0x108] sm:$0xff]
    %v4598 = vld [vmem:[#allocation4 + $0x110] sm:$0xff]
    %v4599 = vld [vmem:[#allocation4 + $0x118] sm:$0xff]
    %v4600 = vld [vmem:[#allocation4 + $0x120] sm:$0xff]
    %v4601 = vld [vmem:[#allocation4 + $0x128] sm:$0xff]
    %v4602 = vld [vmem:[#allocation4 + $0x130] sm:$0xff]
    %v4603 = vld [vmem:[#allocation4 + $0x138] sm:$0xff]
    %v4604 = vld [vmem:[#allocation4 + $0x140] sm:$0xff]
    %v4605 = vld [vmem:[#allocation4 + $0x148] sm:$0xff]
    %v4606 = vld [vmem:[#allocation4 + $0x150] sm:$0xff]
    %v4607 = vld [vmem:[#allocation4 + $0x158] sm:$0xff]
    %v4608 = vld [vmem:[#allocation4 + $0x160] sm:$0xff]
    %v4609 = vld [vmem:[#allocation4 + $0x168] sm:$0xff]
    %v4610 = vld [vmem:[#allocation4 + $0x170] sm:$0xff]
    %v4611 = vld [vmem:[#allocation4 + $0x178] sm:$0xff]
    %v4612 = vld [vmem:[#allocation4 + $0x180] sm:$0xff]
    %v4613 = vld [vmem:[#allocation4 + $0x188] sm:$0xff]
    %v4614 = vld [vmem:[#allocation4 + $0x190] sm:$0xff]
    %v4615 = vld [vmem:[#allocation4 + $0x198] sm:$0xff]
    %v4616 = vld [vmem:[#allocation4 + $0x1a0] sm:$0xff]
    %v4617 = vld [vmem:[#allocation4 + $0x1a8] sm:$0xff]
    %v4618 = vld [vmem:[#allocation4 + $0x1b0] sm:$0xff]
    %v4619 = vld [vmem:[#allocation4 + $0x1b8] sm:$0xff]
    %v4620 = vld [vmem:[#allocation4 + $0x1c0] sm:$0xff]
    %v4621 = vld [vmem:[#allocation4 + $0x1c8] sm:$0xff]
    %v4622 = vld [vmem:[#allocation4 + $0x1d0] sm:$0xff]
    %v4623 = vld [vmem:[#allocation4 + $0x1d8] sm:$0xff]
    %v4624 = vld [vmem:[#allocation4 + $0x1e0] sm:$0xff]
    %v4625 = vld [vmem:[#allocation4 + $0x1e8] sm:$0xff]
    %v4626 = vld [vmem:[#allocation4 + $0x1f0] sm:$0xff]
    %v4627 = vld [vmem:[#allocation4 + $0x1f8] sm:$0xff]
    %4629 = vset.pattern.permute.xlu0 0
    %4630 = vperm.xlu0 %4629, %v4500
    %v4631 = vpop.permute.xlu0 %4630
    %4634 = vset.pattern.permute.xlu0 0
    %4635 = vperm.xlu0 %4634, %v4501
    %v4636 = vpop.permute.xlu0 %4635
    %4639 = vset.pattern.permute.xlu0 0
    %4640 = vperm.xlu0 %4639, %v4502
    %v4641 = vpop.permute.xlu0 %4640
    %4644 = vset.pattern.permute.xlu0 0
    %4645 = vperm.xlu0 %4644, %v4503
    %v4646 = vpop.permute.xlu0 %4645
    %4649 = vset.pattern.permute.xlu0 0
    %4650 = vperm.xlu0 %4649, %v4504
    %v4651 = vpop.permute.xlu0 %4650
    %4654 = vset.pattern.permute.xlu0 0
    %4655 = vperm.xlu0 %4654, %v4505
    %v4656 = vpop.permute.xlu0 %4655
    %4659 = vset.pattern.permute.xlu0 0
    %4660 = vperm.xlu0 %4659, %v4506
    %v4661 = vpop.permute.xlu0 %4660
    %4664 = vset.pattern.permute.xlu0 0
    %4665 = vperm.xlu0 %4664, %v4507
    %v4666 = vpop.permute.xlu0 %4665
    %4669 = vset.pattern.permute.xlu0 0
    %4670 = vperm.xlu0 %4669, %v4508
    %v4671 = vpop.permute.xlu0 %4670
    %4674 = vset.pattern.permute.xlu0 0
    %4675 = vperm.xlu0 %4674, %v4509
    %v4676 = vpop.permute.xlu0 %4675
    %4679 = vset.pattern.permute.xlu0 0
    %4680 = vperm.xlu0 %4679, %v4510
    %v4681 = vpop.permute.xlu0 %4680
    %4684 = vset.pattern.permute.xlu0 0
    %4685 = vperm.xlu0 %4684, %v4511
    %v4686 = vpop.permute.xlu0 %4685
    %4689 = vset.pattern.permute.xlu0 0
    %4690 = vperm.xlu0 %4689, %v4512
    %v4691 = vpop.permute.xlu0 %4690
    %4694 = vset.pattern.permute.xlu0 0
    %4695 = vperm.xlu0 %4694, %v4513
    %v4696 = vpop.permute.xlu0 %4695
    %4699 = vset.pattern.permute.xlu0 0
    %4700 = vperm.xlu0 %4699, %v4514
    %v4701 = vpop.permute.xlu0 %4700
    %4704 = vset.pattern.permute.xlu0 0
    %4705 = vperm.xlu0 %4704, %v4515
    %v4706 = vpop.permute.xlu0 %4705
    %4709 = vset.pattern.permute.xlu0 0
    %4710 = vperm.xlu0 %4709, %v4516
    %v4711 = vpop.permute.xlu0 %4710
    %4714 = vset.pattern.permute.xlu0 0
    %4715 = vperm.xlu0 %4714, %v4517
    %v4716 = vpop.permute.xlu0 %4715
    %4719 = vset.pattern.permute.xlu0 0
    %4720 = vperm.xlu0 %4719, %v4518
    %v4721 = vpop.permute.xlu0 %4720
    %4724 = vset.pattern.permute.xlu0 0
    %4725 = vperm.xlu0 %4724, %v4519
    %v4726 = vpop.permute.xlu0 %4725
    %4729 = vset.pattern.permute.xlu0 0
    %4730 = vperm.xlu0 %4729, %v4520
    %v4731 = vpop.permute.xlu0 %4730
    %4734 = vset.pattern.permute.xlu0 0
    %4735 = vperm.xlu0 %4734, %v4521
    %v4736 = vpop.permute.xlu0 %4735
    %4739 = vset.pattern.permute.xlu0 0
    %4740 = vperm.xlu0 %4739, %v4522
    %v4741 = vpop.permute.xlu0 %4740
    %4744 = vset.pattern.permute.xlu0 0
    %4745 = vperm.xlu0 %4744, %v4523
    %v4746 = vpop.permute.xlu0 %4745
    %4749 = vset.pattern.permute.xlu0 0
    %4750 = vperm.xlu0 %4749, %v4524
    %v4751 = vpop.permute.xlu0 %4750
    %4754 = vset.pattern.permute.xlu0 0
    %4755 = vperm.xlu0 %4754, %v4525
    %v4756 = vpop.permute.xlu0 %4755
    %4759 = vset.pattern.permute.xlu0 0
    %4760 = vperm.xlu0 %4759, %v4526
    %v4761 = vpop.permute.xlu0 %4760
    %4764 = vset.pattern.permute.xlu0 0
    %4765 = vperm.xlu0 %4764, %v4527
    %v4766 = vpop.permute.xlu0 %4765
    %4769 = vset.pattern.permute.xlu0 0
    %4770 = vperm.xlu0 %4769, %v4528
    %v4771 = vpop.permute.xlu0 %4770
    %4774 = vset.pattern.permute.xlu0 0
    %4775 = vperm.xlu0 %4774, %v4529
    %v4776 = vpop.permute.xlu0 %4775
    %4779 = vset.pattern.permute.xlu0 0
    %4780 = vperm.xlu0 %4779, %v4530
    %v4781 = vpop.permute.xlu0 %4780
    %4784 = vset.pattern.permute.xlu0 0
    %4785 = vperm.xlu0 %4784, %v4531
    %v4786 = vpop.permute.xlu0 %4785
    %4789 = vset.pattern.permute.xlu0 0
    %4790 = vperm.xlu0 %4789, %v4532
    %v4791 = vpop.permute.xlu0 %4790
    %4794 = vset.pattern.permute.xlu0 0
    %4795 = vperm.xlu0 %4794, %v4533
    %v4796 = vpop.permute.xlu0 %4795
    %4799 = vset.pattern.permute.xlu0 0
    %4800 = vperm.xlu0 %4799, %v4534
    %v4801 = vpop.permute.xlu0 %4800
    %4804 = vset.pattern.permute.xlu0 0
    %4805 = vperm.xlu0 %4804, %v4535
    %v4806 = vpop.permute.xlu0 %4805
    %4809 = vset.pattern.permute.xlu0 0
    %4810 = vperm.xlu0 %4809, %v4536
    %v4811 = vpop.permute.xlu0 %4810
    %4814 = vset.pattern.permute.xlu0 0
    %4815 = vperm.xlu0 %4814, %v4537
    %v4816 = vpop.permute.xlu0 %4815
    %4819 = vset.pattern.permute.xlu0 0
    %4820 = vperm.xlu0 %4819, %v4538
    %v4821 = vpop.permute.xlu0 %4820
    %4824 = vset.pattern.permute.xlu0 0
    %4825 = vperm.xlu0 %4824, %v4539
    %v4826 = vpop.permute.xlu0 %4825
    %4829 = vset.pattern.permute.xlu0 0
    %4830 = vperm.xlu0 %4829, %v4540
    %v4831 = vpop.permute.xlu0 %4830
    %4834 = vset.pattern.permute.xlu0 0
    %4835 = vperm.xlu0 %4834, %v4541
    %v4836 = vpop.permute.xlu0 %4835
    %4839 = vset.pattern.permute.xlu0 0
    %4840 = vperm.xlu0 %4839, %v4542
    %v4841 = vpop.permute.xlu0 %4840
    %4844 = vset.pattern.permute.xlu0 0
    %4845 = vperm.xlu0 %4844, %v4543
    %v4846 = vpop.permute.xlu0 %4845
    %4849 = vset.pattern.permute.xlu0 0
    %4850 = vperm.xlu0 %4849, %v4544
    %v4851 = vpop.permute.xlu0 %4850
    %4854 = vset.pattern.permute.xlu0 0
    %4855 = vperm.xlu0 %4854, %v4545
    %v4856 = vpop.permute.xlu0 %4855
    %4859 = vset.pattern.permute.xlu0 0
    %4860 = vperm.xlu0 %4859, %v4546
    %v4861 = vpop.permute.xlu0 %4860
    %4864 = vset.pattern.permute.xlu0 0
    %4865 = vperm.xlu0 %4864, %v4547
    %v4866 = vpop.permute.xlu0 %4865
    %4869 = vset.pattern.permute.xlu0 0
    %4870 = vperm.xlu0 %4869, %v4548
    %v4871 = vpop.permute.xlu0 %4870
    %4874 = vset.pattern.permute.xlu0 0
    %4875 = vperm.xlu0 %4874, %v4549
    %v4876 = vpop.permute.xlu0 %4875
    %4879 = vset.pattern.permute.xlu0 0
    %4880 = vperm.xlu0 %4879, %v4550
    %v4881 = vpop.permute.xlu0 %4880
    %4884 = vset.pattern.permute.xlu0 0
    %4885 = vperm.xlu0 %4884, %v4551
    %v4886 = vpop.permute.xlu0 %4885
    %4889 = vset.pattern.permute.xlu0 0
    %4890 = vperm.xlu0 %4889, %v4552
    %v4891 = vpop.permute.xlu0 %4890
    %4894 = vset.pattern.permute.xlu0 0
    %4895 = vperm.xlu0 %4894, %v4553
    %v4896 = vpop.permute.xlu0 %4895
    %4899 = vset.pattern.permute.xlu0 0
    %4900 = vperm.xlu0 %4899, %v4554
    %v4901 = vpop.permute.xlu0 %4900
    %4904 = vset.pattern.permute.xlu0 0
    %4905 = vperm.xlu0 %4904, %v4555
    %v4906 = vpop.permute.xlu0 %4905
    %4909 = vset.pattern.permute.xlu0 0
    %4910 = vperm.xlu0 %4909, %v4556
    %v4911 = vpop.permute.xlu0 %4910
    %4914 = vset.pattern.permute.xlu0 0
    %4915 = vperm.xlu0 %4914, %v4557
    %v4916 = vpop.permute.xlu0 %4915
    %4919 = vset.pattern.permute.xlu0 0
    %4920 = vperm.xlu0 %4919, %v4558
    %v4921 = vpop.permute.xlu0 %4920
    %4924 = vset.pattern.permute.xlu0 0
    %4925 = vperm.xlu0 %4924, %v4559
    %v4926 = vpop.permute.xlu0 %4925
    %4929 = vset.pattern.permute.xlu0 0
    %4930 = vperm.xlu0 %4929, %v4560
    %v4931 = vpop.permute.xlu0 %4930
    %4934 = vset.pattern.permute.xlu0 0
    %4935 = vperm.xlu0 %4934, %v4561
    %v4936 = vpop.permute.xlu0 %4935
    %4939 = vset.pattern.permute.xlu0 0
    %4940 = vperm.xlu0 %4939, %v4562
    %v4941 = vpop.permute.xlu0 %4940
    %4944 = vset.pattern.permute.xlu0 0
    %4945 = vperm.xlu0 %4944, %v4563
    %v4946 = vpop.permute.xlu0 %4945
    %v4948 = vmul.f32 %v4564, %v4631
    %v4949 = vmul.f32 %v4565, %v4636
    %v4950 = vmul.f32 %v4566, %v4641
    %v4951 = vmul.f32 %v4567, %v4646
    %v4952 = vmul.f32 %v4568, %v4651
    %v4953 = vmul.f32 %v4569, %v4656
    %v4954 = vmul.f32 %v4570, %v4661
    %v4955 = vmul.f32 %v4571, %v4666
    %v4956 = vmul.f32 %v4572, %v4671
    %v4957 = vmul.f32 %v4573, %v4676
    %v4958 = vmul.f32 %v4574, %v4681
    %v4959 = vmul.f32 %v4575, %v4686
    %v4960 = vmul.f32 %v4576, %v4691
    %v4961 = vmul.f32 %v4577, %v4696
    %v4962 = vmul.f32 %v4578, %v4701
    %v4963 = vmul.f32 %v4579, %v4706
    %v4964 = vmul.f32 %v4580, %v4711
    %v4965 = vmul.f32 %v4581, %v4716
    %v4966 = vmul.f32 %v4582, %v4721
    %v4967 = vmul.f32 %v4583, %v4726
    %v4968 = vmul.f32 %v4584, %v4731
    %v4969 = vmul.f32 %v4585, %v4736
    %v4970 = vmul.f32 %v4586, %v4741
    %v4971 = vmul.f32 %v4587, %v4746
    %v4972 = vmul.f32 %v4588, %v4751
    %v4973 = vmul.f32 %v4589, %v4756
    %v4974 = vmul.f32 %v4590, %v4761
    %v4975 = vmul.f32 %v4591, %v4766
    %v4976 = vmul.f32 %v4592, %v4771
    %v4977 = vmul.f32 %v4593, %v4776
    %v4978 = vmul.f32 %v4594, %v4781
    %v4979 = vmul.f32 %v4595, %v4786
    %v4980 = vmul.f32 %v4596, %v4791
    %v4981 = vmul.f32 %v4597, %v4796
    %v4982 = vmul.f32 %v4598, %v4801
    %v4983 = vmul.f32 %v4599, %v4806
    %v4984 = vmul.f32 %v4600, %v4811
    %v4985 = vmul.f32 %v4601, %v4816
    %v4986 = vmul.f32 %v4602, %v4821
    %v4987 = vmul.f32 %v4603, %v4826
    %v4988 = vmul.f32 %v4604, %v4831
    %v4989 = vmul.f32 %v4605, %v4836
    %v4990 = vmul.f32 %v4606, %v4841
    %v4991 = vmul.f32 %v4607, %v4846
    %v4992 = vmul.f32 %v4608, %v4851
    %v4993 = vmul.f32 %v4609, %v4856
    %v4994 = vmul.f32 %v4610, %v4861
    %v4995 = vmul.f32 %v4611, %v4866
    %v4996 = vmul.f32 %v4612, %v4871
    %v4997 = vmul.f32 %v4613, %v4876
    %v4998 = vmul.f32 %v4614, %v4881
    %v4999 = vmul.f32 %v4615, %v4886
    %v5000 = vmul.f32 %v4616, %v4891
    %v5001 = vmul.f32 %v4617, %v4896
    %v5002 = vmul.f32 %v4618, %v4901
    %v5003 = vmul.f32 %v4619, %v4906
    %v5004 = vmul.f32 %v4620, %v4911
    %v5005 = vmul.f32 %v4621, %v4916
    %v5006 = vmul.f32 %v4622, %v4921
    %v5007 = vmul.f32 %v4623, %v4926
    %v5008 = vmul.f32 %v4624, %v4931
    %v5009 = vmul.f32 %v4625, %v4936
    %v5010 = vmul.f32 %v4626, %v4941
    %v5011 = vmul.f32 %v4627, %v4946
    %5044 = vrot.lane.b32.xlu0 %v4980, 32
    %v5045 = vpop.permute.xlu0 %5044
    %5046 = vrot.lane.b32.xlu0 %v4981, 32
    %v5047 = vpop.permute.xlu0 %5046
    %5048 = vrot.lane.b32.xlu0 %v4982, 32
    %v5049 = vpop.permute.xlu0 %5048
    %5050 = vrot.lane.b32.xlu0 %v4983, 32
    %v5051 = vpop.permute.xlu0 %5050
    %5052 = vrot.lane.b32.xlu0 %v4984, 32
    %v5053 = vpop.permute.xlu0 %5052
    %5054 = vrot.lane.b32.xlu0 %v4985, 32
    %v5055 = vpop.permute.xlu0 %5054
    %5056 = vrot.lane.b32.xlu0 %v4986, 32
    %v5057 = vpop.permute.xlu0 %5056
    %5058 = vrot.lane.b32.xlu0 %v4987, 32
    %v5059 = vpop.permute.xlu0 %5058
    %5060 = vrot.lane.b32.xlu0 %v4988, 32
    %v5061 = vpop.permute.xlu0 %5060
    %5062 = vrot.lane.b32.xlu0 %v4989, 32
    %v5063 = vpop.permute.xlu0 %5062
    %5064 = vrot.lane.b32.xlu0 %v4990, 32
    %v5065 = vpop.permute.xlu0 %5064
    %5066 = vrot.lane.b32.xlu0 %v4991, 32
    %v5067 = vpop.permute.xlu0 %5066
    %5068 = vrot.lane.b32.xlu0 %v4992, 32
    %v5069 = vpop.permute.xlu0 %5068
    %5070 = vrot.lane.b32.xlu0 %v4993, 32
    %v5071 = vpop.permute.xlu0 %5070
    %5072 = vrot.lane.b32.xlu0 %v4994, 32
    %v5073 = vpop.permute.xlu0 %5072
    %5074 = vrot.lane.b32.xlu0 %v4995, 32
    %v5075 = vpop.permute.xlu0 %5074
    %5076 = vrot.lane.b32.xlu0 %v4996, 32
    %v5077 = vpop.permute.xlu0 %5076
    %5078 = vrot.lane.b32.xlu0 %v4997, 32
    %v5079 = vpop.permute.xlu0 %5078
    %5080 = vrot.lane.b32.xlu0 %v4998, 32
    %v5081 = vpop.permute.xlu0 %5080
    %5082 = vrot.lane.b32.xlu0 %v4999, 32
    %v5083 = vpop.permute.xlu0 %5082
    %5084 = vrot.lane.b32.xlu0 %v5000, 32
    %v5085 = vpop.permute.xlu0 %5084
    %5086 = vrot.lane.b32.xlu0 %v5001, 32
    %v5087 = vpop.permute.xlu0 %5086
    %5088 = vrot.lane.b32.xlu0 %v5002, 32
    %v5089 = vpop.permute.xlu0 %5088
    %5090 = vrot.lane.b32.xlu0 %v5003, 32
    %v5091 = vpop.permute.xlu0 %5090
    %5092 = vrot.lane.b32.xlu0 %v5004, 32
    %v5093 = vpop.permute.xlu0 %5092
    %5094 = vrot.lane.b32.xlu0 %v5005, 32
    %v5095 = vpop.permute.xlu0 %5094
    %5096 = vrot.lane.b32.xlu0 %v5006, 32
    %v5097 = vpop.permute.xlu0 %5096
    %5098 = vrot.lane.b32.xlu0 %v5007, 32
    %v5099 = vpop.permute.xlu0 %5098
    %5100 = vrot.lane.b32.xlu0 %v5008, 32
    %v5101 = vpop.permute.xlu0 %5100
    %5102 = vrot.lane.b32.xlu0 %v5009, 32
    %v5103 = vpop.permute.xlu0 %5102
    %5104 = vrot.lane.b32.xlu0 %v5010, 32
    %v5105 = vpop.permute.xlu0 %5104
    %5106 = vrot.lane.b32.xlu0 %v5011, 32
    %v5107 = vpop.permute.xlu0 %5106
    %vm5140 = vcmask 261120
    %v5141 = vsel %vm5140, %v4948, %v5045
    %v5142 = vsel %vm5140, %v4949, %v5047
    %v5143 = vsel %vm5140, %v4950, %v5049
    %v5144 = vsel %vm5140, %v4951, %v5051
    %v5145 = vsel %vm5140, %v4952, %v5053
    %v5146 = vsel %vm5140, %v4953, %v5055
    %v5147 = vsel %vm5140, %v4954, %v5057
    %v5148 = vsel %vm5140, %v4955, %v5059
    %v5149 = vsel %vm5140, %v4956, %v5061
    %v5150 = vsel %vm5140, %v4957, %v5063
    %v5151 = vsel %vm5140, %v4958, %v5065
    %v5152 = vsel %vm5140, %v4959, %v5067
    %v5153 = vsel %vm5140, %v4960, %v5069
    %v5154 = vsel %vm5140, %v4961, %v5071
    %v5155 = vsel %vm5140, %v4962, %v5073
    %v5156 = vsel %vm5140, %v4963, %v5075
    %v5157 = vsel %vm5140, %v4964, %v5077
    %v5158 = vsel %vm5140, %v4965, %v5079
    %v5159 = vsel %vm5140, %v4966, %v5081
    %v5160 = vsel %vm5140, %v4967, %v5083
    %v5161 = vsel %vm5140, %v4968, %v5085
    %v5162 = vsel %vm5140, %v4969, %v5087
    %v5163 = vsel %vm5140, %v4970, %v5089
    %v5164 = vsel %vm5140, %v4971, %v5091
    %v5165 = vsel %vm5140, %v4972, %v5093
    %v5166 = vsel %vm5140, %v4973, %v5095
    %v5167 = vsel %vm5140, %v4974, %v5097
    %v5168 = vsel %vm5140, %v4975, %v5099
    %v5169 = vsel %vm5140, %v4976, %v5101
    %v5170 = vsel %vm5140, %v4977, %v5103
    %v5171 = vsel %vm5140, %v4978, %v5105
    %v5172 = vsel %vm5140, %v4979, %v5107
    %v5173 = vpack.c.bf16 %v5142, %v5141
    %v5174 = vpack.c.bf16 %v5144, %v5143
    %v5175 = vpack.c.bf16 %v5146, %v5145
    %v5176 = vpack.c.bf16 %v5148, %v5147
    %v5177 = vpack.c.bf16 %v5150, %v5149
    %v5178 = vpack.c.bf16 %v5152, %v5151
    %v5179 = vpack.c.bf16 %v5154, %v5153
    %v5180 = vpack.c.bf16 %v5156, %v5155
    %v5181 = vpack.c.bf16 %v5158, %v5157
    %v5182 = vpack.c.bf16 %v5160, %v5159
    %v5183 = vpack.c.bf16 %v5162, %v5161
    %v5184 = vpack.c.bf16 %v5164, %v5163
    %v5185 = vpack.c.bf16 %v5166, %v5165
    %v5186 = vpack.c.bf16 %v5168, %v5167
    %v5187 = vpack.c.bf16 %v5170, %v5169
    %v5188 = vpack.c.bf16 %v5172, %v5171
    %v5205 = vunpack.c.l.b16 %v5173
    %v5206 = vunpack.c.h.b16 %v5173
    %v5207 = vunpack.c.l.b16 %v5174
    %v5208 = vunpack.c.h.b16 %v5174
    %v5209 = vunpack.c.l.b16 %v5175
    %v5210 = vunpack.c.h.b16 %v5175
    %v5211 = vunpack.c.l.b16 %v5176
    %v5212 = vunpack.c.h.b16 %v5176
    %v5213 = vunpack.c.l.b16 %v5177
    %v5214 = vunpack.c.h.b16 %v5177
    %v5215 = vunpack.c.l.b16 %v5178
    %v5216 = vunpack.c.h.b16 %v5178
    %v5217 = vunpack.c.l.b16 %v5179
    %v5218 = vunpack.c.h.b16 %v5179
    %v5219 = vunpack.c.l.b16 %v5180
    %v5220 = vunpack.c.h.b16 %v5180
    %v5221 = vunpack.c.l.b16 %v5181
    %v5222 = vunpack.c.h.b16 %v5181
    %v5223 = vunpack.c.l.b16 %v5182
    %v5224 = vunpack.c.h.b16 %v5182
    %v5225 = vunpack.c.l.b16 %v5183
    %v5226 = vunpack.c.h.b16 %v5183
    %v5227 = vunpack.c.l.b16 %v5184
    %v5228 = vunpack.c.h.b16 %v5184
    %v5229 = vunpack.c.l.b16 %v5185
    %v5230 = vunpack.c.h.b16 %v5185
    %v5231 = vunpack.c.l.b16 %v5186
    %v5232 = vunpack.c.h.b16 %v5186
    %v5233 = vunpack.c.l.b16 %v5187
    %v5234 = vunpack.c.h.b16 %v5187
    %v5235 = vunpack.c.l.b16 %v5188
    %v5236 = vunpack.c.h.b16 %v5188
    %v5237 = vpack.c.b16 %v5205, %v5205
    %v5238 = vpack.c.b16 %v5206, %v5206
    %v5239 = vpack.c.b16 %v5207, %v5207
    %v5240 = vpack.c.b16 %v5208, %v5208
    %v5241 = vpack.c.b16 %v5209, %v5209
    %v5242 = vpack.c.b16 %v5210, %v5210
    %v5243 = vpack.c.b16 %v5211, %v5211
    %v5244 = vpack.c.b16 %v5212, %v5212
    %v5245 = vpack.c.b16 %v5213, %v5213
    %v5246 = vpack.c.b16 %v5214, %v5214
    %v5247 = vpack.c.b16 %v5215, %v5215
    %v5248 = vpack.c.b16 %v5216, %v5216
    %v5249 = vpack.c.b16 %v5217, %v5217
    %v5250 = vpack.c.b16 %v5218, %v5218
    %v5251 = vpack.c.b16 %v5219, %v5219
    %v5252 = vpack.c.b16 %v5220, %v5220
    %v5253 = vpack.c.b16 %v5221, %v5221
    %v5254 = vpack.c.b16 %v5222, %v5222
    %v5255 = vpack.c.b16 %v5223, %v5223
    %v5256 = vpack.c.b16 %v5224, %v5224
    %v5257 = vpack.c.b16 %v5225, %v5225
    %v5258 = vpack.c.b16 %v5226, %v5226
    %v5259 = vpack.c.b16 %v5227, %v5227
    %v5260 = vpack.c.b16 %v5228, %v5228
    %v5261 = vpack.c.b16 %v5229, %v5229
    %v5262 = vpack.c.b16 %v5230, %v5230
    %v5263 = vpack.c.b16 %v5231, %v5231
    %v5264 = vpack.c.b16 %v5232, %v5232
    %v5265 = vpack.c.b16 %v5233, %v5233
    %v5266 = vpack.c.b16 %v5234, %v5234
    %v5267 = vpack.c.b16 %v5235, %v5235
    %v5268 = vpack.c.b16 %v5236, %v5236
    %vm5301 = vcmask 519168
    %5302 = vst.msk [vmem:[%s7] sm:$0xf] %vm5301, %v5237
    %5303 = vst.msk [vmem:[%s7 + $0x4] sm:$0xf] %vm5301, %v5238
    %5304 = vst.msk [vmem:[%s7 + $0x8] sm:$0xf] %vm5301, %v5239
    %5305 = vst.msk [vmem:[%s7 + $0xc] sm:$0xf] %vm5301, %v5240
    %5306 = vst.msk [vmem:[%s7 + $0x10] sm:$0xf] %vm5301, %v5241
    %5307 = vst.msk [vmem:[%s7 + $0x14] sm:$0xf] %vm5301, %v5242
    %5308 = vst.msk [vmem:[%s7 + $0x18] sm:$0xf] %vm5301, %v5243
    %5309 = vst.msk [vmem:[%s7 + $0x1c] sm:$0xf] %vm5301, %v5244
    %5310 = vst.msk [vmem:[%s7 + $0x20] sm:$0xf] %vm5301, %v5245
    %5311 = vst.msk [vmem:[%s7 + $0x24] sm:$0xf] %vm5301, %v5246
    %5312 = vst.msk [vmem:[%s7 + $0x28] sm:$0xf] %vm5301, %v5247
    %5313 = vst.msk [vmem:[%s7 + $0x2c] sm:$0xf] %vm5301, %v5248
    %5314 = vst.msk [vmem:[%s7 + $0x30] sm:$0xf] %vm5301, %v5249
    %5315 = vst.msk [vmem:[%s7 + $0x34] sm:$0xf] %vm5301, %v5250
    %5316 = vst.msk [vmem:[%s7 + $0x38] sm:$0xf] %vm5301, %v5251
    %5317 = vst.msk [vmem:[%s7 + $0x3c] sm:$0xf] %vm5301, %v5252
    %5318 = vst.msk [vmem:[%s7 + $0x40] sm:$0xf] %vm5301, %v5253
    %5319 = vst.msk [vmem:[%s7 + $0x44] sm:$0xf] %vm5301, %v5254
    %5320 = vst.msk [vmem:[%s7 + $0x48] sm:$0xf] %vm5301, %v5255
    %5321 = vst.msk [vmem:[%s7 + $0x4c] sm:$0xf] %vm5301, %v5256
    %5322 = vst.msk [vmem:[%s7 + $0x50] sm:$0xf] %vm5301, %v5257
    %5323 = vst.msk [vmem:[%s7 + $0x54] sm:$0xf] %vm5301, %v5258
    %5324 = vst.msk [vmem:[%s7 + $0x58] sm:$0xf] %vm5301, %v5259
    %5325 = vst.msk [vmem:[%s7 + $0x5c] sm:$0xf] %vm5301, %v5260
    %5326 = vst.msk [vmem:[%s7 + $0x60] sm:$0xf] %vm5301, %v5261
    %5327 = vst.msk [vmem:[%s7 + $0x64] sm:$0xf] %vm5301, %v5262
    %5328 = vst.msk [vmem:[%s7 + $0x68] sm:$0xf] %vm5301, %v5263
    %5329 = vst.msk [vmem:[%s7 + $0x6c] sm:$0xf] %vm5301, %v5264
    %5330 = vst.msk [vmem:[%s7 + $0x70] sm:$0xf] %vm5301, %v5265
    %5331 = vst.msk [vmem:[%s7 + $0x74] sm:$0xf] %vm5301, %v5266
    %5332 = vst.msk [vmem:[%s7 + $0x78] sm:$0xf] %vm5301, %v5267
    %5333 = vst.msk [vmem:[%s7 + $0x7c] sm:$0xf] %vm5301, %v5268
  $region33: #{flash_roberta_forward.9} parent=0 // pred_fallthru
    _
  // Predicated region
  $region34: #{flash_roberta_forward.9} parent=0 // pred_check
    _
  $region35: #{flash_roberta_forward.9} parent=0 // pred_check_branch
    %5335 = sbr.rel (0) target = $region37
  $region36: #{flash_roberta_forward.9} parent=0 // pred_region
    _
  $region37: #{flash_roberta_forward.9} parent=0 // pred_fallthru
    _
  // Predicated region
  $region38: #{flash_roberta_forward.9} parent=0 // pred_check
    _
  $region39: #{flash_roberta_forward.9} parent=0 // pred_check_branch
    %5337 = sbr.rel (0) target = $region41
  $region40: #{flash_roberta_forward.9} parent=0 // pred_region
    _
  $region41: #{flash_roberta_forward.9} parent=0 // pred_fallthru
    _

</llo_original>
